<compile_context>
chip_gen: v7x
topology: tpu7x:2x2x1
jax: 0.10.0
libtpu: 0.0.40
codegen_flags: <defaults>
</compile_context>

<pallas_src>
import math
import functools

import jax
import jax.numpy as jnp
from jax.experimental import pallas as pl
from jax.experimental.pallas import tpu as pltpu

LANE = 128


def _round_up(x, m):
    return ((x + m - 1) // m) * m


def _vmem_limit_bytes():
    # Generation-aware scoped-VMEM ceiling: half of physical, clamped 32..64 MiB
    # (v7x: 64 MiB physical -> 32 MiB; v5e/v6e: 128 MiB -> 64 MiB).
    try:
        cap = int(getattr(pltpu.get_tpu_info(), "vmem_capacity_bytes", 0))
        if cap > 0:
            return max(32 * 1024 * 1024, min(cap // 2, 64 * 1024 * 1024))
    except Exception:
        pass
    return 32 * 1024 * 1024


_VMEM_LIMIT = _vmem_limit_bytes()


# --------------------- cnn_to_embedding + positional enc ----------------------

def _cnn_pe_kernel(x_ref, w_ref, b_ref, pe_ref, o_ref):
    # x: (1, R, Fp) f32, w: (Fp, Ep) bf16, b: (1, Ep) f32, pe: (1, 1, Ep) f32
    y = jnp.dot(x_ref[0].astype(jnp.bfloat16), w_ref[...],
                preferred_element_type=jnp.float32)
    o_ref[0] = y + b_ref[...] + pe_ref[0]


def cnn_embed_pe(images_padded, w, b, pe_b):
    B, R, Fp = images_padded.shape
    Ep = w.shape[1]
    return pl.pallas_call(
        _cnn_pe_kernel,
        out_shape=jax.ShapeDtypeStruct((B, R, Ep), jnp.float32),
        grid=(B,),
        in_specs=[
            pl.BlockSpec((1, R, Fp), lambda i: (i, 0, 0)),
            pl.BlockSpec((Fp, Ep), lambda i: (0, 0)),
            pl.BlockSpec((1, Ep), lambda i: (0, 0)),
            pl.BlockSpec((1, 1, Ep), lambda i: (i, 0, 0)),
        ],
        out_specs=pl.BlockSpec((1, R, Ep), lambda i: (i, 0, 0)),
        compiler_params=pltpu.CompilerParams(
            dimension_semantics=("parallel",),
            vmem_limit_bytes=_VMEM_LIMIT),
    )(images_padded, w, b, pe_b)


# ------------------------- fused decoder layer kernel -------------------------

def _decoder_layer_kernel(x_ref, mem_ref,
                          sa_win_ref, sa_bin_ref, sa_wo_ref, sa_bo_ref,
                          ca_wq_ref, ca_bq_ref, ca_wkv_ref, ca_bkv_ref,
                          ca_wo_ref, ca_bo_ref,
                          ff1_w_ref, ff1_b_ref, ff2_w_ref, ff2_b_ref,
                          ln1_g_ref, ln1_b_ref, ln2_g_ref, ln2_b_ref,
                          ln3_g_ref, ln3_b_ref,
                          o_ref, *, num_heads, true_e, ep):
    S = x_ref.shape[1]
    H = num_heads
    Dh = true_e // H
    NEG = -1e30

    x = x_ref[0]                        # (S, Ep) f32, padded lanes are zero
    mem = mem_ref[0]                    # (R, Ep) f32, padded lanes are zero

    def add_layernorm(a, b, g_ref, beta_ref):
        # LayerNorm(a + b) over the true E lanes (torch eps=1e-5).  Padded lanes
        # are zero, so sum / sum-of-squares only see real data; zero-padded
        # gamma/beta keep the padded lanes zero in the output.
        y = a + b
        inv_e = 1.0 / true_e
        mean = jnp.sum(y, axis=-1, keepdims=True) * inv_e
        ssq = jnp.sum(y * y, axis=-1, keepdims=True) * inv_e
        var = ssq - mean * mean
        n = (y - mean) * jax.lax.rsqrt(var + 1e-5)
        return n * g_ref[...] + beta_ref[...]

    def mha(q, k, v, wo_ref, bo_ref, mask):
        # q: (Lq, E) f32 (already scaled via folded 1/sqrt(Dh)); k/v: (Lk, E).
        # Per-head work uses only 2-D lane slices; head merge + out-projection
        # are fused by accumulating o_h @ Wo[h] into a lane-dense accumulator.
        Lq = q.shape[0]
        acc = jnp.zeros((Lq, ep), jnp.float32)
        for h in range(H):
            lo = h * Dh
            qh = q[:, lo:lo + Dh].astype(jnp.bfloat16)
            kh = k[:, lo:lo + Dh].astype(jnp.bfloat16)
            vh = v[:, lo:lo + Dh].astype(jnp.bfloat16)
            s = jax.lax.dot_general(qh, kh, (((1,), (1,)), ((), ())),
                                    preferred_element_type=jnp.float32)  # (Lq,Lk)
            if mask is not None:
                s = jnp.where(mask, s, NEG)
            s = s - jnp.max(s, axis=-1, keepdims=True)
            p = jnp.exp(s)
            p = p * pl.reciprocal(jnp.sum(p, axis=-1, keepdims=True), approx=True)
            oh = jnp.dot(p.astype(jnp.bfloat16), vh,
                         preferred_element_type=jnp.float32)             # (Lq,Dh)
            w_h = wo_ref[pl.ds(lo, Dh), :].astype(jnp.bfloat16)          # (Dh,Ep)
            acc = acc + jnp.dot(oh.astype(jnp.bfloat16), w_h,
                                preferred_element_type=jnp.float32)
        return acc + bo_ref[...]

    # ---- self attention (causal mask built in-kernel, no mask DMA) ----
    qkv = jnp.dot(x.astype(jnp.bfloat16), sa_win_ref[...],
                  preferred_element_type=jnp.float32) + sa_bin_ref[...]
    q = qkv[:, 0:true_e]
    k = qkv[:, ep:ep + true_e]
    v = qkv[:, 2 * ep:2 * ep + true_e]
    rows = jax.lax.broadcasted_iota(jnp.int32, (S, S), 0)
    cols = jax.lax.broadcasted_iota(jnp.int32, (S, S), 1)
    x = add_layernorm(x, mha(q, k, v, sa_wo_ref, sa_bo_ref, cols <= rows),
                      ln1_g_ref, ln1_b_ref)

    # ---- cross attention (no mask) ----
    q = (jnp.dot(x.astype(jnp.bfloat16), ca_wq_ref[...],
                 preferred_element_type=jnp.float32) + ca_bq_ref[...])[:, 0:true_e]
    kv = jnp.dot(mem.astype(jnp.bfloat16), ca_wkv_ref[...],
                 preferred_element_type=jnp.float32) + ca_bkv_ref[...]
    k = kv[:, 0:true_e]
    v = kv[:, ep:ep + true_e]
    x = add_layernorm(x, mha(q, k, v, ca_wo_ref, ca_bo_ref, None),
                      ln2_g_ref, ln2_b_ref)

    # ---- feed forward (the (S, d_ff) hidden never leaves VMEM/vregs) ----
    h = jnp.maximum(
        jnp.dot(x.astype(jnp.bfloat16), ff1_w_ref[...],
                preferred_element_type=jnp.float32) + ff1_b_ref[...], 0.0)
    f = jnp.dot(h.astype(jnp.bfloat16), ff2_w_ref[...],
                preferred_element_type=jnp.float32) + ff2_b_ref[...]
    x = add_layernorm(x, f, ln3_g_ref, ln3_b_ref)

    o_ref[0] = x


def decoder_layer(x, mem, lp, *, num_heads, true_e):
    """One nn.TransformerDecoderLayer (post-norm, relu) as a single pallas_call."""
    B, S, Ep = x.shape
    R = mem.shape[1]
    weights = (lp["sa_win"], lp["sa_bin"], lp["sa_wo"], lp["sa_bo"],
               lp["ca_wq"], lp["ca_bq"], lp["ca_wkv"], lp["ca_bkv"],
               lp["ca_wo"], lp["ca_bo"],
               lp["ff1_w"], lp["ff1_b"], lp["ff2_w"], lp["ff2_b"],
               lp["ln1_g"], lp["ln1_b"], lp["ln2_g"], lp["ln2_b"],
               lp["ln3_g"], lp["ln3_b"])

    def _wspec(a):
        # Resident weight: full-array block, constant index map.
        # TODO(synk): for large d_model/d_ff, single-buffer the FFN weights
        # (pipeline_mode) and tile the d_ff contraction to respect v7x's 64 MiB.
        return pl.BlockSpec(a.shape, lambda b: (0, 0))

    return pl.pallas_call(
        functools.partial(_decoder_layer_kernel, num_heads=num_heads,
                          true_e=true_e, ep=Ep),
        out_shape=jax.ShapeDtypeStruct((B, S, Ep), jnp.float32),
        grid=(B,),
        in_specs=[pl.BlockSpec((1, S, Ep), lambda b: (b, 0, 0)),
                  pl.BlockSpec((1, R, Ep), lambda b: (b, 0, 0))]
                 + [_wspec(a) for a in weights],
        out_specs=pl.BlockSpec((1, S, Ep), lambda b: (b, 0, 0)),
        compiler_params=pltpu.CompilerParams(
            dimension_semantics=("parallel",),
            vmem_limit_bytes=_VMEM_LIMIT),
    )(x, mem, *weights)


# ------------------------ tiled linear (vocab projection) ---------------------

def _matmul_kernel(x_ref, w_ref, b_ref, o_ref, acc_ref):
    @pl.when(pl.program_id(2) == 0)
    def _():
        acc_ref[...] = jnp.zeros_like(acc_ref)

    acc_ref[...] += jnp.dot(x_ref[...].astype(jnp.bfloat16), w_ref[...],
                            preferred_element_type=jnp.float32)

    @pl.when(pl.program_id(2) == pl.num_programs(2) - 1)
    def _():
        o_ref[...] = (acc_ref[...] + b_ref[...]).astype(o_ref.dtype)


def pallas_linear(x, w_bf16, b_f32, tm=256, tn=1024, tk=512):
    """y = x @ w + b.  x: (M, K) f32 (K multiple of 128), w: (K, N) bf16 pre-padded."""
    M, K = x.shape
    N = w_bf16.shape[1]

    Mp = _round_up(M, 8)
    tm = min(tm, Mp)
    if Mp // tm < 2 and Mp >= 16:      # give v7x's second TensorCore a step
        tm = _round_up(Mp // 2, 8)
    Mp = _round_up(Mp, tm)

    def _fit(t, full):                 # largest multiple of 128 that divides `full`
        t = min(t, full)
        while full % t:
            t -= 128
        return t

    tk = _fit(tk, K)
    tn = _fit(tn, N)

    xp = jnp.pad(x, ((0, Mp - M), (0, 0)))
    out = pl.pallas_call(
        _matmul_kernel,
        out_shape=jax.ShapeDtypeStruct((Mp, N), jnp.float32),
        grid=(Mp // tm, N // tn, K // tk),
        in_specs=[
            pl.BlockSpec((tm, tk), lambda i, j, k: (i, k)),
            pl.BlockSpec((tk, tn), lambda i, j, k: (k, j)),
            pl.BlockSpec((1, tn), lambda i, j, k: (0, j)),
        ],
        out_specs=pl.BlockSpec((tm, tn), lambda i, j, k: (i, j)),
        scratch_shapes=[pltpu.VMEM((tm, tn), jnp.float32)],
        compiler_params=pltpu.CompilerParams(
            dimension_semantics=("parallel", "parallel", "arbitrary"),
            vmem_limit_bytes=_VMEM_LIMIT),
    )(xp, w_bf16, b_f32)
    return out[:M]


# ------------------------------- model glue ----------------------------------

def make_positional_encoding(max_len, d_model):
    position = jnp.arange(max_len, dtype=jnp.float32)[:, None]
    div_term = jnp.exp(
        jnp.arange(0, d_model, 2, dtype=jnp.float32) * (-math.log(10000.0) / d_model))
    pe = jnp.zeros((max_len, d_model), jnp.float32)
    pe = pe.at[:, 0::2].set(jnp.sin(position * div_term))
    pe = pe.at[:, 1::2].set(jnp.cos(position * div_term))
    return pe[:, None, :]   # torch: unsqueeze(0).transpose(0,1) -> (max_len, 1, d)


def prepare_params(raw, embed_size, num_heads):
    """One-time weight prep (outside jit): pad to lane-dense shapes, cast matmul
    weights to bf16, fold 1/sqrt(head_dim) into the Q projection, split the
    packed in-proj for cross attention.  Padded gamma/beta/bias lanes are zero
    so padded activation lanes stay exactly zero through the whole stack."""
    E = embed_size
    Dh = E // num_heads
    scale = 1.0 / math.sqrt(Dh)
    Ep = _round_up(E, LANE)

    def place(dst, src, r0, c0):
        return dst.at[r0:r0 + src.shape[0], c0:c0 + src.shape[1]].set(src)

    def vec(src, width, c0=0, scale_=1.0):
        return jnp.zeros((1, width), jnp.float32).at[0, c0:c0 + src.shape[0]].set(src * scale_)

    def vec_multi(width, pieces):
        out = jnp.zeros((1, width), jnp.float32)
        for src, c0, s_ in pieces:
            out = out.at[0, c0:c0 + src.shape[0]].set(src * s_)
        return out

    def prep_self(a):
        win = jnp.zeros((Ep, 3 * Ep), jnp.float32)
        win = place(win, a["w_in"][:, :E] * scale, 0, 0)          # Q (scaled)
        win = place(win, a["w_in"][:, E:2 * E], 0, Ep)            # K
        win = place(win, a["w_in"][:, 2 * E:], 0, 2 * Ep)         # V
        bin_ = vec_multi(3 * Ep, [(a["b_in"][:E], 0, scale),
                                  (a["b_in"][E:2 * E], Ep, 1.0),
                                  (a["b_in"][2 * E:], 2 * Ep, 1.0)])
        # wo kept f32 (tiny) so per-head (8,128) ref slices stay tile-aligned.
        wo = place(jnp.zeros((E, Ep), jnp.float32), a["w_o"], 0, 0)
        bo = vec(a["b_o"], Ep)
        return win.astype(jnp.bfloat16), bin_, wo, bo

    def prep_cross(a):
        wq = place(jnp.zeros((Ep, Ep), jnp.float32), a["w_in"][:, :E] * scale, 0, 0)
        bq = vec(a["b_in"][:E], Ep, 0, scale)
        wkv = jnp.zeros((Ep, 2 * Ep), jnp.float32)
        wkv = place(wkv, a["w_in"][:, E:2 * E], 0, 0)
        wkv = place(wkv, a["w_in"][:, 2 * E:], 0, Ep)
        bkv = vec_multi(2 * Ep, [(a["b_in"][E:2 * E], 0, 1.0),
                                 (a["b_in"][2 * E:], Ep, 1.0)])
        wo = place(jnp.zeros((E, Ep), jnp.float32), a["w_o"], 0, 0)
        bo = vec(a["b_o"], Ep)
        return wq.astype(jnp.bfloat16), bq, wkv.astype(jnp.bfloat16), bkv, wo, bo

    layers = []
    for lp in raw["layers"]:
        Dff = lp["ff1_w"].shape[1]
        Dffp = _round_up(Dff, LANE)
        sa_win, sa_bin, sa_wo, sa_bo = prep_self(lp["self_attn"])
        ca_wq, ca_bq, ca_wkv, ca_bkv, ca_wo, ca_bo = prep_cross(lp["cross_attn"])
        layers.append({
            "sa_win": sa_win, "sa_bin": sa_bin, "sa_wo": sa_wo, "sa_bo": sa_bo,
            "ca_wq": ca_wq, "ca_bq": ca_bq, "ca_wkv": ca_wkv, "ca_bkv": ca_bkv,
            "ca_wo": ca_wo, "ca_bo": ca_bo,
            "ff1_w": place(jnp.zeros((Ep, Dffp), jnp.float32),
                           lp["ff1_w"], 0, 0).astype(jnp.bfloat16),
            "ff1_b": vec(lp["ff1_b"], Dffp),
            "ff2_w": place(jnp.zeros((Dffp, Ep), jnp.float32),
                           lp["ff2_w"], 0, 0).astype(jnp.bfloat16),
            "ff2_b": vec(lp["ff2_b"], Ep),
            "ln1_g": vec(lp["ln1_g"], Ep), "ln1_b": vec(lp["ln1_b"], Ep),
            "ln2_g": vec(lp["ln2_g"], Ep), "ln2_b": vec(lp["ln2_b"], Ep),
            "ln3_g": vec(lp["ln3_g"], Ep), "ln3_b": vec(lp["ln3_b"], Ep),
        })

    F = raw["cnn_w"].shape[0]
    Fp = _round_up(F, LANE)
    V = raw["pred_w"].shape[1]
    Vp = _round_up(V, LANE)
    return {
        "cnn_w": place(jnp.zeros((Fp, Ep), jnp.float32),
                       raw["cnn_w"], 0, 0).astype(jnp.bfloat16),
        "cnn_b": vec(raw["cnn_b"], Ep),
        "embed": place(jnp.zeros((raw["embed"].shape[0], Ep), jnp.float32),
                       raw["embed"], 0, 0),
        "pe": place(jnp.zeros((raw["pe"].shape[0], Ep), jnp.float32),
                    raw["pe"][:, 0, :], 0, 0),
        "pred_w": place(jnp.zeros((Ep, Vp), jnp.float32),
                        raw["pred_w"], 0, 0).astype(jnp.bfloat16),
        "pred_b": vec(raw["pred_b"], Vp),
        "layers": layers,
    }


@functools.partial(jax.jit, static_argnames=("embed_size", "num_heads", "vocab_size"))
def forward_train(prep, encoded_images, captions, *, embed_size, num_heads, vocab_size):
    """Reproduces TransformerModel._forward_train (dropout = identity)."""
    E = embed_size
    B, R, F = encoded_images.shape
    S = captions.shape[1]
    Fp, Ep = prep["cnn_w"].shape

    # cnn_to_embedding + positional encoding fused in one kernel.
    # NOTE: the original torch code adds pe[:x.size(0)] to a *batch-first*
    # tensor, i.e. PE indexes the batch axis and broadcasts over regions /
    # sequence.  We reproduce that exactly.
    imgs = jnp.pad(encoded_images, ((0, 0), (0, 0), (0, Fp - F)))
    pe_b = prep["pe"][:B][:, None, :]                              # (B, 1, Ep)
    mem = cnn_embed_pe(imgs, prep["cnn_w"], prep["cnn_b"], pe_b)   # (B, R, Ep)

    # Target embedding lookup (XLA gather on the pre-padded table) + PE.
    tgt = prep["embed"][captions] * math.sqrt(E) + pe_b            # (B, S, Ep)

    x = tgt
    for lp in prep["layers"]:
        x = decoder_layer(x, mem, lp, num_heads=num_heads, true_e=E)

    # preds[:, :-1, :] == pred_linear(output[:-1]): slice before the vocab
    # projection to skip 1/S of the largest matmul.
    xs = x[:, :S - 1, :].reshape(B * (S - 1), Ep)
    logits = pallas_linear(xs, prep["pred_w"], prep["pred_b"])
    return logits[:, :vocab_size].reshape(B, S - 1, vocab_size)


# ---------------------------- parameter init ----------------------------------

def _xavier(key, shape, fan_in, fan_out):
    bound = math.sqrt(6.0 / (fan_in + fan_out))
    return jax.random.uniform(key, shape, jnp.float32, -bound, bound)


def init_params(key, image_feature_size, embed_size, num_heads, num_layers,
                vocab_size, d_ff=2048, max_len=5000):
    E = embed_size
    keys = jax.random.split(key, 4 + num_layers)
    params = {
        "pe": make_positional_encoding(max_len, E),
        "cnn_w": _xavier(keys[0], (image_feature_size, E), image_feature_size, E),
        "cnn_b": jnp.zeros((E,), jnp.float32),
        "embed": _xavier(keys[1], (vocab_size, E), vocab_size, E),
        "pred_w": _xavier(keys[2], (E, vocab_size), E, vocab_size),
        "pred_b": jnp.zeros((vocab_size,), jnp.float32),
        "layers": [],
    }

    def attn_params(k):
        k_in, k_out = jax.random.split(k, 2)
        return {
            "w_in": _xavier(k_in, (E, 3 * E), E, 3 * E),   # packed q/k/v, transposed
            "b_in": jnp.zeros((3 * E,), jnp.float32),
            "w_o": _xavier(k_out, (E, E), E, E),
            "b_o": jnp.zeros((E,), jnp.float32),
        }

    for li in range(num_layers):
        ks = jax.random.split(keys[4 + li], 4)
        params["layers"].append({
            "self_attn": attn_params(ks[0]),
            "cross_attn": attn_params(ks[1]),
            "ff1_w": _xavier(ks[2], (E, d_ff), E, d_ff),
            "ff1_b": jnp.zeros((d_ff,), jnp.float32),
            "ff2_w": _xavier(ks[3], (d_ff, E), d_ff, E),
            "ff2_b": jnp.zeros((E,), jnp.float32),
            "ln1_g": jnp.ones((E,), jnp.float32), "ln1_b": jnp.zeros((E,), jnp.float32),
            "ln2_g": jnp.ones((E,), jnp.float32), "ln2_b": jnp.zeros((E,), jnp.float32),
            "ln3_g": jnp.ones((E,), jnp.float32), "ln3_b": jnp.zeros((E,), jnp.float32),
        })
    return params


# --------------------------------- main ---------------------------------------

if __name__ == "__main__":
    # Small config: image_feature_size=32, embed_size=32, 4 heads, 2 layers,
    # vocab=16, sequence_length=8, batch=2, 4 image regions.
    B, R, F = 2, 4, 32
    E, H, L = 32, 4, 2
    V, S = 16, 8
    D_FF = 2048   # nn.TransformerDecoderLayer default dim_feedforward

    key = jax.random.PRNGKey(0)
    k_param, k_img, k_cap = jax.random.split(key, 3)

    raw = init_params(k_param, F, E, H, L, V, d_ff=D_FF)
    prep = prepare_params(raw, E, H)   # one-time pad + bf16 cast, outside the jit

    encoded_images = jax.random.normal(k_img, (B, R, F), jnp.float32)
    captions = jax.random.randint(k_cap, (B, S), 0, V, jnp.int32)

    # TODO(synk): dropout (p=0.1 pos-enc, p=0.5 decoder) is identity here (eval mode).
    out = forward_train(prep, encoded_images, captions,
                        embed_size=E, num_heads=H, vocab_size=V)
    out = jax.block_until_ready(out)

    assert out.shape == (B, S - 1, V), out.shape
    assert bool(jnp.all(jnp.isfinite(out)))
    print("KERNEL_OK")
</pallas_src>

<mosaic_0001>
module attributes {stable_mosaic.version = 11 : i64} {
  func.func @_cnn_pe_kernel(%arg0: i32, %arg1: memref<1x4x128xf32, #tpu.memory_space<vmem>>, %arg2: memref<128x128xbf16, #tpu.memory_space<vmem>>, %arg3: memref<1x128xf32, #tpu.memory_space<vmem>>, %arg4: memref<1x1x128xf32, #tpu.memory_space<vmem>>, %arg5: memref<1x4x128xf32, #tpu.memory_space<vmem>>) attributes {dimension_semantics = [#tpu.dimension_semantics<parallel>], iteration_bounds = array<i64: 2>, scalar_prefetch = 0 : i64, scratch_operands = 0 : i64, tpu.core_type = #tpu.core_type<tc>, window_params = [{transform_indices = @transform_0, window_bounds = array<i64: 1, 4, 128>}, {pipeline_mode = #tpu.pipeline_mode<synchronous>, transform_indices = @transform_1, window_bounds = array<i64: 128, 128>}, {pipeline_mode = #tpu.pipeline_mode<synchronous>, transform_indices = @transform_2, window_bounds = array<i64: 1, 128>}, {transform_indices = @transform_3, window_bounds = array<i64: 1, 1, 128>}, {transform_indices = @transform_4, window_bounds = array<i64: 1, 4, 128>}]} {
    %c0 = arith.constant 0 : index
    %c0_0 = arith.constant 0 : index
    %c0_1 = arith.constant 0 : index
    %0 = vector.load %arg1[%c0, %c0_0, %c0_1] : memref<1x4x128xf32, #tpu.memory_space<vmem>>, vector<1x4x128xf32>
    %1 = vector.shape_cast %0 : vector<1x4x128xf32> to vector<4x128xf32>
    %2 = arith.truncf %1 : vector<4x128xf32> to vector<4x128xbf16>
    %c0_2 = arith.constant 0 : index
    %c0_3 = arith.constant 0 : index
    %3 = vector.load %arg2[%c0_2, %c0_3] : memref<128x128xbf16, #tpu.memory_space<vmem>>, vector<128x128xbf16>
    %cst = arith.constant dense<0.000000e+00> : vector<4x128xf32>
    %4 = tpu.matmul %2, %3, %cst {dimension_numbers = #tpu.dot_dimension_numbers<[1], [0], [0], [1], [0, 0, 1, 1], [], []>} : vector<4x128xbf16>, vector<128x128xbf16>, vector<4x128xf32> -> vector<4x128xf32>
    %c0_4 = arith.constant 0 : index
    %c0_5 = arith.constant 0 : index
    %5 = vector.load %arg3[%c0_4, %c0_5] : memref<1x128xf32, #tpu.memory_space<vmem>>, vector<1x128xf32>
    %6 = vector.broadcast %5 : vector<1x128xf32> to vector<4x128xf32>
    %7 = arith.addf %4, %6 : vector<4x128xf32>
    %c0_6 = arith.constant 0 : index
    %c0_7 = arith.constant 0 : index
    %c0_8 = arith.constant 0 : index
    %8 = vector.load %arg4[%c0_6, %c0_7, %c0_8] : memref<1x1x128xf32, #tpu.memory_space<vmem>>, vector<1x1x128xf32>
    %9 = vector.shape_cast %8 : vector<1x1x128xf32> to vector<1x128xf32>
    %10 = vector.broadcast %9 : vector<1x128xf32> to vector<4x128xf32>
    %11 = arith.addf %7, %10 : vector<4x128xf32>
    %c0_9 = arith.constant 0 : index
    %c0_10 = arith.constant 0 : index
    %c0_11 = arith.constant 0 : index
    %12 = vector.load %arg5[%c0_9, %c0_10, %c0_11] : memref<1x4x128xf32, #tpu.memory_space<vmem>>, vector<1x4x128xf32>
    %13 = vector.shape_cast %12 : vector<1x4x128xf32> to vector<4x128xf32>
    %14 = vector.shape_cast %11 : vector<4x128xf32> to vector<1x4x128xf32>
    tpu.vector_store %arg5[%c0_9, %c0_10, %c0_11], %14 {strides = array<i32>} : memref<1x4x128xf32, #tpu.memory_space<vmem>>, vector<1x4x128xf32>,
    return
  }
  func.func @transform_0(%arg0: i32) -> (i32, i32, i32) {
    %c0_i32 = arith.constant 0 : i32
    %c0_i32_0 = arith.constant 0 : i32
    %c0_i32_1 = arith.constant 0 : i32
    return %arg0, %c0_i32, %c0_i32_0 : i32, i32, i32
  }
  func.func @transform_1(%arg0: i32) -> (i32, i32) {
    %c0_i32 = arith.constant 0 : i32
    %c0_i32_0 = arith.constant 0 : i32
    %c0_i32_1 = arith.constant 0 : i32
    return %c0_i32, %c0_i32_0 : i32, i32
  }
  func.func @transform_2(%arg0: i32) -> (i32, i32) {
    %c0_i32 = arith.constant 0 : i32
    %c0_i32_0 = arith.constant 0 : i32
    %c0_i32_1 = arith.constant 0 : i32
    return %c0_i32, %c0_i32_0 : i32, i32
  }
  func.func @transform_3(%arg0: i32) -> (i32, i32, i32) {
    %c0_i32 = arith.constant 0 : i32
    %c0_i32_0 = arith.constant 0 : i32
    %c0_i32_1 = arith.constant 0 : i32
    return %arg0, %c0_i32, %c0_i32_0 : i32, i32, i32
  }
  func.func @transform_4(%arg0: i32) -> (i32, i32, i32) {
    %c0_i32 = arith.constant 0 : i32
    %c0_i32_0 = arith.constant 0 : i32
    %c0_i32_1 = arith.constant 0 : i32
    return %arg0, %c0_i32, %c0_i32_0 : i32, i32, i32
  }
}

module attributes {stable_mosaic.version = 11 : i64} {
  func.func @_matmul_kernel(%arg0: i32, %arg1: i32, %arg2: i32, %arg3: memref<8x128xf32, #tpu.memory_space<vmem>>, %arg4: memref<128x128xbf16, #tpu.memory_space<vmem>>, %arg5: memref<1x128xf32, #tpu.memory_space<vmem>>, %arg6: memref<8x128xf32, #tpu.memory_space<vmem>>, %arg7: memref<8x128xf32, #tpu.memory_space<vmem>>) attributes {dimension_semantics = [#tpu.dimension_semantics<parallel>, #tpu.dimension_semantics<parallel>, #tpu.dimension_semantics<arbitrary>], iteration_bounds = array<i64: 2, 1, 1>, scalar_prefetch = 0 : i64, scratch_operands = 1 : i64, tpu.core_type = #tpu.core_type<tc>, window_params = [{transform_indices = @transform_0, window_bounds = array<i64: 8, 128>}, {transform_indices = @transform_1, window_bounds = array<i64: 128, 128>}, {transform_indices = @transform_2, window_bounds = array<i64: 1, 128>}, {transform_indices = @transform_3, window_bounds = array<i64: 8, 128>}]} {
    %c0_i32 = arith.constant 0 : i32
    %0 = arith.cmpi eq, %arg2, %c0_i32 : i32
    %1 = arith.extui %0 : i1 to i32
    %c0_i32_0 = arith.constant 0 : i32
    %2 = arith.cmpi ne, %1, %c0_i32_0 : i32
    scf.if %2 {
      %cst_10 = arith.constant 0.000000e+00 : f32
      %13 = vector.broadcast %cst_10 : f32 to vector<8x128xf32>
      %c0_11 = arith.constant 0 : index
      %c0_12 = arith.constant 0 : index
      %14 = vector.load %arg7[%c0_11, %c0_12] : memref<8x128xf32, #tpu.memory_space<vmem>>, vector<8x128xf32>
      tpu.vector_store %arg7[%c0_11, %c0_12], %13 {strides = array<i32>} : memref<8x128xf32, #tpu.memory_space<vmem>>, vector<8x128xf32>,
    } else {
    }
    %c0 = arith.constant 0 : index
    %c0_1 = arith.constant 0 : index
    %3 = vector.load %arg7[%c0, %c0_1] : memref<8x128xf32, #tpu.memory_space<vmem>>, vector<8x128xf32>
    %c0_2 = arith.constant 0 : index
    %c0_3 = arith.constant 0 : index
    %4 = vector.load %arg3[%c0_2, %c0_3] : memref<8x128xf32, #tpu.memory_space<vmem>>, vector<8x128xf32>
    %5 = arith.truncf %4 : vector<8x128xf32> to vector<8x128xbf16>
    %c0_4 = arith.constant 0 : index
    %c0_5 = arith.constant 0 : index
    %6 = vector.load %arg4[%c0_4, %c0_5] : memref<128x128xbf16, #tpu.memory_space<vmem>>, vector<128x128xbf16>
    %cst = arith.constant dense<0.000000e+00> : vector<8x128xf32>
    %7 = tpu.matmul %5, %6, %cst {dimension_numbers = #tpu.dot_dimension_numbers<[1], [0], [0], [1], [0, 0, 1, 1], [], []>} : vector<8x128xbf16>, vector<128x128xbf16>, vector<8x128xf32> -> vector<8x128xf32>
    %8 = arith.addf %3, %7 : vector<8x128xf32>
    %c0_6 = arith.constant 0 : index
    %c0_7 = arith.constant 0 : index
    %9 = vector.load %arg7[%c0_6, %c0_7] : memref<8x128xf32, #tpu.memory_space<vmem>>, vector<8x128xf32>
    tpu.vector_store %arg7[%c0_6, %c0_7], %8 {strides = array<i32>} : memref<8x128xf32, #tpu.memory_space<vmem>>, vector<8x128xf32>,
    %c0_i32_8 = arith.constant 0 : i32
    %10 = arith.cmpi eq, %arg2, %c0_i32_8 : i32
    %11 = arith.extui %10 : i1 to i32
    %c0_i32_9 = arith.constant 0 : i32
    %12 = arith.cmpi ne, %11, %c0_i32_9 : i32
    scf.if %12 {
      %c0_10 = arith.constant 0 : index
      %c0_11 = arith.constant 0 : index
      %13 = vector.load %arg7[%c0_10, %c0_11] : memref<8x128xf32, #tpu.memory_space<vmem>>, vector<8x128xf32>
      %c0_12 = arith.constant 0 : index
      %c0_13 = arith.constant 0 : index
      %14 = vector.load %arg5[%c0_12, %c0_13] : memref<1x128xf32, #tpu.memory_space<vmem>>, vector<1x128xf32>
      %15 = vector.broadcast %14 : vector<1x128xf32> to vector<8x128xf32>
      %16 = arith.addf %13, %15 : vector<8x128xf32>
      %c0_14 = arith.constant 0 : index
      %c0_15 = arith.constant 0 : index
      %17 = vector.load %arg6[%c0_14, %c0_15] : memref<8x128xf32, #tpu.memory_space<vmem>>, vector<8x128xf32>
      tpu.vector_store %arg6[%c0_14, %c0_15], %16 {strides = array<i32>} : memref<8x128xf32, #tpu.memory_space<vmem>>, vector<8x128xf32>,
    } else {
    }
    return
  }
  func.func @transform_0(%arg0: i32, %arg1: i32, %arg2: i32) -> (i32, i32) {
    %c0_i32 = arith.constant 0 : i32
    return %arg0, %arg2 : i32, i32
  }
  func.func @transform_1(%arg0: i32, %arg1: i32, %arg2: i32) -> (i32, i32) {
    %c0_i32 = arith.constant 0 : i32
    return %arg2, %arg1 : i32, i32
  }
  func.func @transform_2(%arg0: i32, %arg1: i32, %arg2: i32) -> (i32, i32) {
    %c0_i32 = arith.constant 0 : i32
    %c0_i32_0 = arith.constant 0 : i32
    return %c0_i32, %arg1 : i32, i32
  }
  func.func @transform_3(%arg0: i32, %arg1: i32, %arg2: i32) -> (i32, i32) {
    %c0_i32 = arith.constant 0 : i32
    return %arg0, %arg1 : i32, i32
  }
}

module attributes {stable_mosaic.version = 11 : i64} {
  func.func @_decoder_layer_kernel(%arg0: i32, %arg1: memref<1x8x128xf32, #tpu.memory_space<vmem>>, %arg2: memref<1x4x128xf32, #tpu.memory_space<vmem>>, %arg3: memref<128x384xbf16, #tpu.memory_space<vmem>>, %arg4: memref<1x384xf32, #tpu.memory_space<vmem>>, %arg5: memref<32x128xf32, #tpu.memory_space<vmem>>, %arg6: memref<1x128xf32, #tpu.memory_space<vmem>>, %arg7: memref<128x128xbf16, #tpu.memory_space<vmem>>, %arg8: memref<1x128xf32, #tpu.memory_space<vmem>>, %arg9: memref<128x256xbf16, #tpu.memory_space<vmem>>, %arg10: memref<1x256xf32, #tpu.memory_space<vmem>>, %arg11: memref<32x128xf32, #tpu.memory_space<vmem>>, %arg12: memref<1x128xf32, #tpu.memory_space<vmem>>, %arg13: memref<128x2048xbf16, #tpu.memory_space<vmem>>, %arg14: memref<1x2048xf32, #tpu.memory_space<vmem>>, %arg15: memref<2048x128xbf16, #tpu.memory_space<vmem>>, %arg16: memref<1x128xf32, #tpu.memory_space<vmem>>, %arg17: memref<1x128xf32, #tpu.memory_space<vmem>>, %arg18: memref<1x128xf32, #tpu.memory_space<vmem>>, %arg19: memref<1x128xf32, #tpu.memory_space<vmem>>, %arg20: memref<1x128xf32, #tpu.memory_space<vmem>>, %arg21: memref<1x128xf32, #tpu.memory_space<vmem>>, %arg22: memref<1x128xf32, #tpu.memory_space<vmem>>, %arg23: memref<1x8x128xf32, #tpu.memory_space<vmem>>) attributes {dimension_semantics = [#tpu.dimension_semantics<parallel>], iteration_bounds = array<i64: 2>, scalar_prefetch = 0 : i64, scratch_operands = 0 : i64, tpu.core_type = #tpu.core_type<tc>, window_params = [{transform_indices = @transform_0, window_bounds = array<i64: 1, 8, 128>}, {transform_indices = @transform_1, window_bounds = array<i64: 1, 4, 128>}, {pipeline_mode = #tpu.pipeline_mode<synchronous>, transform_indices = @transform_2, window_bounds = array<i64: 128, 384>}, {pipeline_mode = #tpu.pipeline_mode<synchronous>, transform_indices = @transform_3, window_bounds = array<i64: 1, 384>}, {pipeline_mode = #tpu.pipeline_mode<synchronous>, transform_indices = @transform_4, window_bounds = array<i64: 32, 128>}, {pipeline_mode = #tpu.pipeline_mode<synchronous>, transform_indices = @transform_5, window_bounds = array<i64: 1, 128>}, {pipeline_mode = #tpu.pipeline_mode<synchronous>, transform_indices = @transform_6, window_bounds = array<i64: 128, 128>}, {pipeline_mode = #tpu.pipeline_mode<synchronous>, transform_indices = @transform_7, window_bounds = array<i64: 1, 128>}, {pipeline_mode = #tpu.pipeline_mode<synchronous>, transform_indices = @transform_8, window_bounds = array<i64: 128, 256>}, {pipeline_mode = #tpu.pipeline_mode<synchronous>, transform_indices = @transform_9, window_bounds = array<i64: 1, 256>}, {pipeline_mode = #tpu.pipeline_mode<synchronous>, transform_indices = @transform_10, window_bounds = array<i64: 32, 128>}, {pipeline_mode = #tpu.pipeline_mode<synchronous>, transform_indices = @transform_11, window_bounds = array<i64: 1, 128>}, {pipeline_mode = #tpu.pipeline_mode<synchronous>, transform_indices = @transform_12, window_bounds = array<i64: 128, 2048>}, {pipeline_mode = #tpu.pipeline_mode<synchronous>, transform_indices = @transform_13, window_bounds = array<i64: 1, 2048>}, {pipeline_mode = #tpu.pipeline_mode<synchronous>, transform_indices = @transform_14, window_bounds = array<i64: 2048, 128>}, {pipeline_mode = #tpu.pipeline_mode<synchronous>, transform_indices = @transform_15, window_bounds = array<i64: 1, 128>}, {pipeline_mode = #tpu.pipeline_mode<synchronous>, transform_indices = @transform_16, window_bounds = array<i64: 1, 128>}, {pipeline_mode = #tpu.pipeline_mode<synchronous>, transform_indices = @transform_17, window_bounds = array<i64: 1, 128>}, {pipeline_mode = #tpu.pipeline_mode<synchronous>, transform_indices = @transform_18, window_bounds = array<i64: 1, 128>}, {pipeline_mode = #tpu.pipeline_mode<synchronous>, transform_indices = @transform_19, window_bounds = array<i64: 1, 128>}, {pipeline_mode = #tpu.pipeline_mode<synchronous>, transform_indices = @transform_20, window_bounds = array<i64: 1, 128>}, {pipeline_mode = #tpu.pipeline_mode<synchronous>, transform_indices = @transform_21, window_bounds = array<i64: 1, 128>}, {transform_indices = @transform_22, window_bounds = array<i64: 1, 8, 128>}]} {
    %c0 = arith.constant 0 : index
    %c0_0 = arith.constant 0 : index
    %c0_1 = arith.constant 0 : index
    %0 = vector.load %arg1[%c0, %c0_0, %c0_1] : memref<1x8x128xf32, #tpu.memory_space<vmem>>, vector<1x8x128xf32>
    %1 = vector.shape_cast %0 : vector<1x8x128xf32> to vector<8x128xf32>
    %c0_2 = arith.constant 0 : index
    %c0_3 = arith.constant 0 : index
    %c0_4 = arith.constant 0 : index
    %2 = vector.load %arg2[%c0_2, %c0_3, %c0_4] : memref<1x4x128xf32, #tpu.memory_space<vmem>>, vector<1x4x128xf32>
    %3 = vector.shape_cast %2 : vector<1x4x128xf32> to vector<4x128xf32>
    %4 = arith.truncf %1 : vector<8x128xf32> to vector<8x128xbf16>
    %c0_5 = arith.constant 0 : index
    %c0_6 = arith.constant 0 : index
    %5 = vector.load %arg3[%c0_5, %c0_6] : memref<128x384xbf16, #tpu.memory_space<vmem>>, vector<128x384xbf16>
    %cst = arith.constant dense<0.000000e+00> : vector<8x384xf32>
    %6 = tpu.matmul %4, %5, %cst {dimension_numbers = #tpu.dot_dimension_numbers<[1], [0], [0], [1], [0, 0, 1, 1], [], []>} : vector<8x128xbf16>, vector<128x384xbf16>, vector<8x384xf32> -> vector<8x384xf32>
    %c0_7 = arith.constant 0 : index
    %c0_8 = arith.constant 0 : index
    %7 = vector.load %arg4[%c0_7, %c0_8] : memref<1x384xf32, #tpu.memory_space<vmem>>, vector<1x384xf32>
    %8 = vector.broadcast %7 : vector<1x384xf32> to vector<8x384xf32>
    %9 = arith.addf %6, %8 : vector<8x384xf32>
    %10 = vector.extract_strided_slice %9 {offsets = [0, 0], sizes = [8, 32], strides = [1, 1]} : vector<8x384xf32> to vector<8x32xf32>
    %11 = vector.extract_strided_slice %9 {offsets = [0, 128], sizes = [8, 32], strides = [1, 1]} : vector<8x384xf32> to vector<8x32xf32>
    %12 = vector.extract_strided_slice %9 {offsets = [0, 256], sizes = [8, 32], strides = [1, 1]} : vector<8x384xf32> to vector<8x32xf32>
    %13 = tpu.iota {dimensions = array<i32: 0>} : vector<8x8xi32>
    %14 = tpu.iota {dimensions = array<i32: 1>} : vector<8x8xi32>
    %15 = arith.cmpi sle, %14, %13 : vector<8x8xi32>
    %cst_9 = arith.constant 0.000000e+00 : f32
    %16 = vector.broadcast %cst_9 : f32 to vector<8x128xf32>
    %17 = vector.extract_strided_slice %10 {offsets = [0, 0], sizes = [8, 8], strides = [1, 1]} : vector<8x32xf32> to vector<8x8xf32>
    %18 = arith.truncf %17 : vector<8x8xf32> to vector<8x8xbf16>
    %19 = vector.extract_strided_slice %11 {offsets = [0, 0], sizes = [8, 8], strides = [1, 1]} : vector<8x32xf32> to vector<8x8xf32>
    %20 = arith.truncf %19 : vector<8x8xf32> to vector<8x8xbf16>
    %21 = vector.extract_strided_slice %12 {offsets = [0, 0], sizes = [8, 8], strides = [1, 1]} : vector<8x32xf32> to vector<8x8xf32>
    %22 = arith.truncf %21 : vector<8x8xf32> to vector<8x8xbf16>
    %cst_10 = arith.constant dense<0.000000e+00> : vector<8x8xf32>
    %23 = tpu.matmul %18, %20, %cst_10 {dimension_numbers = #tpu.dot_dimension_numbers<[1], [1], [0], [0], [0, 0, 1, 0], [], []>} : vector<8x8xbf16>, vector<8x8xbf16>, vector<8x8xf32> -> vector<8x8xf32>
    %cst_11 = arith.constant -1.000000e+30 : f32
    %24 = vector.broadcast %cst_11 : f32 to vector<8x8xf32>
    %25 = arith.select %15, %23, %24 : vector<8x8xi1>, vector<8x8xf32>
    %cst_12 = arith.constant dense<0xFF800000> : vector<8xf32>
    %26 = vector.multi_reduction <maximumf>, %25, %cst_12 [1] : vector<8x8xf32> to vector<8xf32>
    %27 = vector.shape_cast %26 : vector<8xf32> to vector<8x1xf32>
    %28 = vector.broadcast %27 : vector<8x1xf32> to vector<8x8xf32>
    %29 = arith.subf %25, %28 : vector<8x8xf32>
    %30 = math.exp %29 : vector<8x8xf32>
    %cst_13 = arith.constant dense<0.000000e+00> : vector<8xf32>
    %31 = vector.multi_reduction <add>, %30, %cst_13 [1] : vector<8x8xf32> to vector<8xf32>
    %32 = vector.shape_cast %31 : vector<8xf32> to vector<8x1xf32>
    %33 = tpu.reciprocal %32 {approx = true} : vector<8x1xf32> -> vector<8x1xf32>
    %34 = vector.broadcast %33 : vector<8x1xf32> to vector<8x8xf32>
    %35 = arith.mulf %30, %34 : vector<8x8xf32>
    %36 = arith.truncf %35 : vector<8x8xf32> to vector<8x8xbf16>
    %cst_14 = arith.constant dense<0.000000e+00> : vector<8x8xf32>
    %37 = tpu.matmul %36, %22, %cst_14 {dimension_numbers = #tpu.dot_dimension_numbers<[1], [0], [0], [1], [0, 0, 1, 1], [], []>} : vector<8x8xbf16>, vector<8x8xbf16>, vector<8x8xf32> -> vector<8x8xf32>
    %c0_15 = arith.constant 0 : index
    %c0_16 = arith.constant 0 : index
    %38 = vector.load %arg5[%c0_15, %c0_16] : memref<32x128xf32, #tpu.memory_space<vmem>>, vector<8x128xf32>
    %39 = arith.truncf %38 : vector<8x128xf32> to vector<8x128xbf16>
    %40 = arith.truncf %37 : vector<8x8xf32> to vector<8x8xbf16>
    %cst_17 = arith.constant dense<0.000000e+00> : vector<8x128xf32>
    %41 = tpu.matmul %40, %39, %cst_17 {dimension_numbers = #tpu.dot_dimension_numbers<[1], [0], [0], [1], [0, 0, 1, 1], [], []>} : vector<8x8xbf16>, vector<8x128xbf16>, vector<8x128xf32> -> vector<8x128xf32>
    %42 = arith.addf %16, %41 : vector<8x128xf32>
    %43 = vector.extract_strided_slice %10 {offsets = [0, 8], sizes = [8, 8], strides = [1, 1]} : vector<8x32xf32> to vector<8x8xf32>
    %44 = arith.truncf %43 : vector<8x8xf32> to vector<8x8xbf16>
    %45 = vector.extract_strided_slice %11 {offsets = [0, 8], sizes = [8, 8], strides = [1, 1]} : vector<8x32xf32> to vector<8x8xf32>
    %46 = arith.truncf %45 : vector<8x8xf32> to vector<8x8xbf16>
    %47 = vector.extract_strided_slice %12 {offsets = [0, 8], sizes = [8, 8], strides = [1, 1]} : vector<8x32xf32> to vector<8x8xf32>
    %48 = arith.truncf %47 : vector<8x8xf32> to vector<8x8xbf16>
    %cst_18 = arith.constant dense<0.000000e+00> : vector<8x8xf32>
    %49 = tpu.matmul %44, %46, %cst_18 {dimension_numbers = #tpu.dot_dimension_numbers<[1], [1], [0], [0], [0, 0, 1, 0], [], []>} : vector<8x8xbf16>, vector<8x8xbf16>, vector<8x8xf32> -> vector<8x8xf32>
    %cst_19 = arith.constant -1.000000e+30 : f32
    %50 = vector.broadcast %cst_19 : f32 to vector<8x8xf32>
    %51 = arith.select %15, %49, %50 : vector<8x8xi1>, vector<8x8xf32>
    %cst_20 = arith.constant dense<0xFF800000> : vector<8xf32>
    %52 = vector.multi_reduction <maximumf>, %51, %cst_20 [1] : vector<8x8xf32> to vector<8xf32>
    %53 = vector.shape_cast %52 : vector<8xf32> to vector<8x1xf32>
    %54 = vector.broadcast %53 : vector<8x1xf32> to vector<8x8xf32>
    %55 = arith.subf %51, %54 : vector<8x8xf32>
    %56 = math.exp %55 : vector<8x8xf32>
    %cst_21 = arith.constant dense<0.000000e+00> : vector<8xf32>
    %57 = vector.multi_reduction <add>, %56, %cst_21 [1] : vector<8x8xf32> to vector<8xf32>
    %58 = vector.shape_cast %57 : vector<8xf32> to vector<8x1xf32>
    %59 = tpu.reciprocal %58 {approx = true} : vector<8x1xf32> -> vector<8x1xf32>
    %60 = vector.broadcast %59 : vector<8x1xf32> to vector<8x8xf32>
    %61 = arith.mulf %56, %60 : vector<8x8xf32>
    %62 = arith.truncf %61 : vector<8x8xf32> to vector<8x8xbf16>
    %cst_22 = arith.constant dense<0.000000e+00> : vector<8x8xf32>
    %63 = tpu.matmul %62, %48, %cst_22 {dimension_numbers = #tpu.dot_dimension_numbers<[1], [0], [0], [1], [0, 0, 1, 1], [], []>} : vector<8x8xbf16>, vector<8x8xbf16>, vector<8x8xf32> -> vector<8x8xf32>
    %c8 = arith.constant 8 : index
    %c0_23 = arith.constant 0 : index
    %64 = vector.load %arg5[%c8, %c0_23] : memref<32x128xf32, #tpu.memory_space<vmem>>, vector<8x128xf32>
    %65 = arith.truncf %64 : vector<8x128xf32> to vector<8x128xbf16>
    %66 = arith.truncf %63 : vector<8x8xf32> to vector<8x8xbf16>
    %cst_24 = arith.constant dense<0.000000e+00> : vector<8x128xf32>
    %67 = tpu.matmul %66, %65, %cst_24 {dimension_numbers = #tpu.dot_dimension_numbers<[1], [0], [0], [1], [0, 0, 1, 1], [], []>} : vector<8x8xbf16>, vector<8x128xbf16>, vector<8x128xf32> -> vector<8x128xf32>
    %68 = arith.addf %42, %67 : vector<8x128xf32>
    %69 = vector.extract_strided_slice %10 {offsets = [0, 16], sizes = [8, 8], strides = [1, 1]} : vector<8x32xf32> to vector<8x8xf32>
    %70 = arith.truncf %69 : vector<8x8xf32> to vector<8x8xbf16>
    %71 = vector.extract_strided_slice %11 {offsets = [0, 16], sizes = [8, 8], strides = [1, 1]} : vector<8x32xf32> to vector<8x8xf32>
    %72 = arith.truncf %71 : vector<8x8xf32> to vector<8x8xbf16>
    %73 = vector.extract_strided_slice %12 {offsets = [0, 16], sizes = [8, 8], strides = [1, 1]} : vector<8x32xf32> to vector<8x8xf32>
    %74 = arith.truncf %73 : vector<8x8xf32> to vector<8x8xbf16>
    %cst_25 = arith.constant dense<0.000000e+00> : vector<8x8xf32>
    %75 = tpu.matmul %70, %72, %cst_25 {dimension_numbers = #tpu.dot_dimension_numbers<[1], [1], [0], [0], [0, 0, 1, 0], [], []>} : vector<8x8xbf16>, vector<8x8xbf16>, vector<8x8xf32> -> vector<8x8xf32>
    %cst_26 = arith.constant -1.000000e+30 : f32
    %76 = vector.broadcast %cst_26 : f32 to vector<8x8xf32>
    %77 = arith.select %15, %75, %76 : vector<8x8xi1>, vector<8x8xf32>
    %cst_27 = arith.constant dense<0xFF800000> : vector<8xf32>
    %78 = vector.multi_reduction <maximumf>, %77, %cst_27 [1] : vector<8x8xf32> to vector<8xf32>
    %79 = vector.shape_cast %78 : vector<8xf32> to vector<8x1xf32>
    %80 = vector.broadcast %79 : vector<8x1xf32> to vector<8x8xf32>
    %81 = arith.subf %77, %80 : vector<8x8xf32>
    %82 = math.exp %81 : vector<8x8xf32>
    %cst_28 = arith.constant dense<0.000000e+00> : vector<8xf32>
    %83 = vector.multi_reduction <add>, %82, %cst_28 [1] : vector<8x8xf32> to vector<8xf32>
    %84 = vector.shape_cast %83 : vector<8xf32> to vector<8x1xf32>
    %85 = tpu.reciprocal %84 {approx = true} : vector<8x1xf32> -> vector<8x1xf32>
    %86 = vector.broadcast %85 : vector<8x1xf32> to vector<8x8xf32>
    %87 = arith.mulf %82, %86 : vector<8x8xf32>
    %88 = arith.truncf %87 : vector<8x8xf32> to vector<8x8xbf16>
    %cst_29 = arith.constant dense<0.000000e+00> : vector<8x8xf32>
    %89 = tpu.matmul %88, %74, %cst_29 {dimension_numbers = #tpu.dot_dimension_numbers<[1], [0], [0], [1], [0, 0, 1, 1], [], []>} : vector<8x8xbf16>, vector<8x8xbf16>, vector<8x8xf32> -> vector<8x8xf32>
    %c16 = arith.constant 16 : index
    %c0_30 = arith.constant 0 : index
    %90 = vector.load %arg5[%c16, %c0_30] : memref<32x128xf32, #tpu.memory_space<vmem>>, vector<8x128xf32>
    %91 = arith.truncf %90 : vector<8x128xf32> to vector<8x128xbf16>
    %92 = arith.truncf %89 : vector<8x8xf32> to vector<8x8xbf16>
    %cst_31 = arith.constant dense<0.000000e+00> : vector<8x128xf32>
    %93 = tpu.matmul %92, %91, %cst_31 {dimension_numbers = #tpu.dot_dimension_numbers<[1], [0], [0], [1], [0, 0, 1, 1], [], []>} : vector<8x8xbf16>, vector<8x128xbf16>, vector<8x128xf32> -> vector<8x128xf32>
    %94 = arith.addf %68, %93 : vector<8x128xf32>
    %95 = vector.extract_strided_slice %10 {offsets = [0, 24], sizes = [8, 8], strides = [1, 1]} : vector<8x32xf32> to vector<8x8xf32>
    %96 = arith.truncf %95 : vector<8x8xf32> to vector<8x8xbf16>
    %97 = vector.extract_strided_slice %11 {offsets = [0, 24], sizes = [8, 8], strides = [1, 1]} : vector<8x32xf32> to vector<8x8xf32>
    %98 = arith.truncf %97 : vector<8x8xf32> to vector<8x8xbf16>
    %99 = vector.extract_strided_slice %12 {offsets = [0, 24], sizes = [8, 8], strides = [1, 1]} : vector<8x32xf32> to vector<8x8xf32>
    %100 = arith.truncf %99 : vector<8x8xf32> to vector<8x8xbf16>
    %cst_32 = arith.constant dense<0.000000e+00> : vector<8x8xf32>
    %101 = tpu.matmul %96, %98, %cst_32 {dimension_numbers = #tpu.dot_dimension_numbers<[1], [1], [0], [0], [0, 0, 1, 0], [], []>} : vector<8x8xbf16>, vector<8x8xbf16>, vector<8x8xf32> -> vector<8x8xf32>
    %cst_33 = arith.constant -1.000000e+30 : f32
    %102 = vector.broadcast %cst_33 : f32 to vector<8x8xf32>
    %103 = arith.select %15, %101, %102 : vector<8x8xi1>, vector<8x8xf32>
    %cst_34 = arith.constant dense<0xFF800000> : vector<8xf32>
    %104 = vector.multi_reduction <maximumf>, %103, %cst_34 [1] : vector<8x8xf32> to vector<8xf32>
    %105 = vector.shape_cast %104 : vector<8xf32> to vector<8x1xf32>
    %106 = vector.broadcast %105 : vector<8x1xf32> to vector<8x8xf32>
    %107 = arith.subf %103, %106 : vector<8x8xf32>
    %108 = math.exp %107 : vector<8x8xf32>
    %cst_35 = arith.constant dense<0.000000e+00> : vector<8xf32>
    %109 = vector.multi_reduction <add>, %108, %cst_35 [1] : vector<8x8xf32> to vector<8xf32>
    %110 = vector.shape_cast %109 : vector<8xf32> to vector<8x1xf32>
    %111 = tpu.reciprocal %110 {approx = true} : vector<8x1xf32> -> vector<8x1xf32>
    %112 = vector.broadcast %111 : vector<8x1xf32> to vector<8x8xf32>
    %113 = arith.mulf %108, %112 : vector<8x8xf32>
    %114 = arith.truncf %113 : vector<8x8xf32> to vector<8x8xbf16>
    %cst_36 = arith.constant dense<0.000000e+00> : vector<8x8xf32>
    %115 = tpu.matmul %114, %100, %cst_36 {dimension_numbers = #tpu.dot_dimension_numbers<[1], [0], [0], [1], [0, 0, 1, 1], [], []>} : vector<8x8xbf16>, vector<8x8xbf16>, vector<8x8xf32> -> vector<8x8xf32>
    %c24 = arith.constant 24 : index
    %c0_37 = arith.constant 0 : index
    %116 = vector.load %arg5[%c24, %c0_37] : memref<32x128xf32, #tpu.memory_space<vmem>>, vector<8x128xf32>
    %117 = arith.truncf %116 : vector<8x128xf32> to vector<8x128xbf16>
    %118 = arith.truncf %115 : vector<8x8xf32> to vector<8x8xbf16>
    %cst_38 = arith.constant dense<0.000000e+00> : vector<8x128xf32>
    %119 = tpu.matmul %118, %117, %cst_38 {dimension_numbers = #tpu.dot_dimension_numbers<[1], [0], [0], [1], [0, 0, 1, 1], [], []>} : vector<8x8xbf16>, vector<8x128xbf16>, vector<8x128xf32> -> vector<8x128xf32>
    %120 = arith.addf %94, %119 : vector<8x128xf32>
    %c0_39 = arith.constant 0 : index
    %c0_40 = arith.constant 0 : index
    %121 = vector.load %arg6[%c0_39, %c0_40] : memref<1x128xf32, #tpu.memory_space<vmem>>, vector<1x128xf32>
    %122 = vector.broadcast %121 : vector<1x128xf32> to vector<8x128xf32>
    %123 = arith.addf %120, %122 : vector<8x128xf32>
    %124 = arith.addf %1, %123 : vector<8x128xf32>
    %cst_41 = arith.constant dense<0.000000e+00> : vector<8xf32>
    %125 = vector.multi_reduction <add>, %124, %cst_41 [1] : vector<8x128xf32> to vector<8xf32>
    %126 = vector.shape_cast %125 : vector<8xf32> to vector<8x1xf32>
    %cst_42 = arith.constant 3.125000e-02 : f32
    %127 = vector.broadcast %cst_42 : f32 to vector<8x1xf32>
    %128 = arith.mulf %126, %127 : vector<8x1xf32>
    %129 = arith.mulf %124, %124 : vector<8x128xf32>
    %cst_43 = arith.constant dense<0.000000e+00> : vector<8xf32>
    %130 = vector.multi_reduction <add>, %129, %cst_43 [1] : vector<8x128xf32> to vector<8xf32>
    %131 = vector.shape_cast %130 : vector<8xf32> to vector<8x1xf32>
    %cst_44 = arith.constant 3.125000e-02 : f32
    %132 = vector.broadcast %cst_44 : f32 to vector<8x1xf32>
    %133 = arith.mulf %131, %132 : vector<8x1xf32>
    %134 = arith.mulf %128, %128 : vector<8x1xf32>
    %135 = arith.subf %133, %134 : vector<8x1xf32>
    %136 = vector.broadcast %128 : vector<8x1xf32> to vector<8x128xf32>
    %137 = arith.subf %124, %136 : vector<8x128xf32>
    %cst_45 = arith.constant 9.99999974E-6 : f32
    %138 = vector.broadcast %cst_45 : f32 to vector<8x1xf32>
    %139 = arith.addf %135, %138 : vector<8x1xf32>
    %140 = math.rsqrt %139 : vector<8x1xf32>
    %141 = vector.broadcast %140 : vector<8x1xf32> to vector<8x128xf32>
    %142 = arith.mulf %137, %141 : vector<8x128xf32>
    %c0_46 = arith.constant 0 : index
    %c0_47 = arith.constant 0 : index
    %143 = vector.load %arg17[%c0_46, %c0_47] : memref<1x128xf32, #tpu.memory_space<vmem>>, vector<1x128xf32>
    %144 = vector.broadcast %143 : vector<1x128xf32> to vector<8x128xf32>
    %145 = arith.mulf %142, %144 : vector<8x128xf32>
    %c0_48 = arith.constant 0 : index
    %c0_49 = arith.constant 0 : index
    %146 = vector.load %arg18[%c0_48, %c0_49] : memref<1x128xf32, #tpu.memory_space<vmem>>, vector<1x128xf32>
    %147 = vector.broadcast %146 : vector<1x128xf32> to vector<8x128xf32>
    %148 = arith.addf %145, %147 : vector<8x128xf32>
    %149 = arith.truncf %148 : vector<8x128xf32> to vector<8x128xbf16>
    %c0_50 = arith.constant 0 : index
    %c0_51 = arith.constant 0 : index
    %150 = vector.load %arg7[%c0_50, %c0_51] : memref<128x128xbf16, #tpu.memory_space<vmem>>, vector<128x128xbf16>
    %cst_52 = arith.constant dense<0.000000e+00> : vector<8x128xf32>
    %151 = tpu.matmul %149, %150, %cst_52 {dimension_numbers = #tpu.dot_dimension_numbers<[1], [0], [0], [1], [0, 0, 1, 1], [], []>} : vector<8x128xbf16>, vector<128x128xbf16>, vector<8x128xf32> -> vector<8x128xf32>
    %c0_53 = arith.constant 0 : index
    %c0_54 = arith.constant 0 : index
    %152 = vector.load %arg8[%c0_53, %c0_54] : memref<1x128xf32, #tpu.memory_space<vmem>>, vector<1x128xf32>
    %153 = vector.broadcast %152 : vector<1x128xf32> to vector<8x128xf32>
    %154 = arith.addf %151, %153 : vector<8x128xf32>
    %155 = vector.extract_strided_slice %154 {offsets = [0, 0], sizes = [8, 32], strides = [1, 1]} : vector<8x128xf32> to vector<8x32xf32>
    %156 = arith.truncf %3 : vector<4x128xf32> to vector<4x128xbf16>
    %c0_55 = arith.constant 0 : index
    %c0_56 = arith.constant 0 : index
    %157 = vector.load %arg9[%c0_55, %c0_56] : memref<128x256xbf16, #tpu.memory_space<vmem>>, vector<128x256xbf16>
    %cst_57 = arith.constant dense<0.000000e+00> : vector<4x256xf32>
    %158 = tpu.matmul %156, %157, %cst_57 {dimension_numbers = #tpu.dot_dimension_numbers<[1], [0], [0], [1], [0, 0, 1, 1], [], []>} : vector<4x128xbf16>, vector<128x256xbf16>, vector<4x256xf32> -> vector<4x256xf32>
    %c0_58 = arith.constant 0 : index
    %c0_59 = arith.constant 0 : index
    %159 = vector.load %arg10[%c0_58, %c0_59] : memref<1x256xf32, #tpu.memory_space<vmem>>, vector<1x256xf32>
    %160 = vector.broadcast %159 : vector<1x256xf32> to vector<4x256xf32>
    %161 = arith.addf %158, %160 : vector<4x256xf32>
    %162 = vector.extract_strided_slice %161 {offsets = [0, 0], sizes = [4, 32], strides = [1, 1]} : vector<4x256xf32> to vector<4x32xf32>
    %163 = vector.extract_strided_slice %161 {offsets = [0, 128], sizes = [4, 32], strides = [1, 1]} : vector<4x256xf32> to vector<4x32xf32>
    %cst_60 = arith.constant 0.000000e+00 : f32
    %164 = vector.broadcast %cst_60 : f32 to vector<8x128xf32>
    %165 = vector.extract_strided_slice %155 {offsets = [0, 0], sizes = [8, 8], strides = [1, 1]} : vector<8x32xf32> to vector<8x8xf32>
    %166 = arith.truncf %165 : vector<8x8xf32> to vector<8x8xbf16>
    %167 = vector.extract_strided_slice %162 {offsets = [0, 0], sizes = [4, 8], strides = [1, 1]} : vector<4x32xf32> to vector<4x8xf32>
    %168 = arith.truncf %167 : vector<4x8xf32> to vector<4x8xbf16>
    %169 = vector.extract_strided_slice %163 {offsets = [0, 0], sizes = [4, 8], strides = [1, 1]} : vector<4x32xf32> to vector<4x8xf32>
    %170 = arith.truncf %169 : vector<4x8xf32> to vector<4x8xbf16>
    %cst_61 = arith.constant dense<0.000000e+00> : vector<8x4xf32>
    %171 = tpu.matmul %166, %168, %cst_61 {dimension_numbers = #tpu.dot_dimension_numbers<[1], [1], [0], [0], [0, 0, 1, 0], [], []>} : vector<8x8xbf16>, vector<4x8xbf16>, vector<8x4xf32> -> vector<8x4xf32>
    %cst_62 = arith.constant dense<0xFF800000> : vector<8xf32>
    %172 = vector.multi_reduction <maximumf>, %171, %cst_62 [1] : vector<8x4xf32> to vector<8xf32>
    %173 = vector.shape_cast %172 : vector<8xf32> to vector<8x1xf32>
    %174 = vector.broadcast %173 : vector<8x1xf32> to vector<8x4xf32>
    %175 = arith.subf %171, %174 : vector<8x4xf32>
    %176 = math.exp %175 : vector<8x4xf32>
    %cst_63 = arith.constant dense<0.000000e+00> : vector<8xf32>
    %177 = vector.multi_reduction <add>, %176, %cst_63 [1] : vector<8x4xf32> to vector<8xf32>
    %178 = vector.shape_cast %177 : vector<8xf32> to vector<8x1xf32>
    %179 = tpu.reciprocal %178 {approx = true} : vector<8x1xf32> -> vector<8x1xf32>
    %180 = vector.broadcast %179 : vector<8x1xf32> to vector<8x4xf32>
    %181 = arith.mulf %176, %180 : vector<8x4xf32>
    %182 = arith.truncf %181 : vector<8x4xf32> to vector<8x4xbf16>
    %cst_64 = arith.constant dense<0.000000e+00> : vector<8x8xf32>
    %183 = tpu.matmul %182, %170, %cst_64 {dimension_numbers = #tpu.dot_dimension_numbers<[1], [0], [0], [1], [0, 0, 1, 1], [], []>} : vector<8x4xbf16>, vector<4x8xbf16>, vector<8x8xf32> -> vector<8x8xf32>
    %c0_65 = arith.constant 0 : index
    %c0_66 = arith.constant 0 : index
    %184 = vector.load %arg11[%c0_65, %c0_66] : memref<32x128xf32, #tpu.memory_space<vmem>>, vector<8x128xf32>
    %185 = arith.truncf %184 : vector<8x128xf32> to vector<8x128xbf16>
    %186 = arith.truncf %183 : vector<8x8xf32> to vector<8x8xbf16>
    %cst_67 = arith.constant dense<0.000000e+00> : vector<8x128xf32>
    %187 = tpu.matmul %186, %185, %cst_67 {dimension_numbers = #tpu.dot_dimension_numbers<[1], [0], [0], [1], [0, 0, 1, 1], [], []>} : vector<8x8xbf16>, vector<8x128xbf16>, vector<8x128xf32> -> vector<8x128xf32>
    %188 = arith.addf %164, %187 : vector<8x128xf32>
    %189 = vector.extract_strided_slice %155 {offsets = [0, 8], sizes = [8, 8], strides = [1, 1]} : vector<8x32xf32> to vector<8x8xf32>
    %190 = arith.truncf %189 : vector<8x8xf32> to vector<8x8xbf16>
    %191 = vector.extract_strided_slice %162 {offsets = [0, 8], sizes = [4, 8], strides = [1, 1]} : vector<4x32xf32> to vector<4x8xf32>
    %192 = arith.truncf %191 : vector<4x8xf32> to vector<4x8xbf16>
    %193 = vector.extract_strided_slice %163 {offsets = [0, 8], sizes = [4, 8], strides = [1, 1]} : vector<4x32xf32> to vector<4x8xf32>
    %194 = arith.truncf %193 : vector<4x8xf32> to vector<4x8xbf16>
    %cst_68 = arith.constant dense<0.000000e+00> : vector<8x4xf32>
    %195 = tpu.matmul %190, %192, %cst_68 {dimension_numbers = #tpu.dot_dimension_numbers<[1], [1], [0], [0], [0, 0, 1, 0], [], []>} : vector<8x8xbf16>, vector<4x8xbf16>, vector<8x4xf32> -> vector<8x4xf32>
    %cst_69 = arith.constant dense<0xFF800000> : vector<8xf32>
    %196 = vector.multi_reduction <maximumf>, %195, %cst_69 [1] : vector<8x4xf32> to vector<8xf32>
    %197 = vector.shape_cast %196 : vector<8xf32> to vector<8x1xf32>
    %198 = vector.broadcast %197 : vector<8x1xf32> to vector<8x4xf32>
    %199 = arith.subf %195, %198 : vector<8x4xf32>
    %200 = math.exp %199 : vector<8x4xf32>
    %cst_70 = arith.constant dense<0.000000e+00> : vector<8xf32>
    %201 = vector.multi_reduction <add>, %200, %cst_70 [1] : vector<8x4xf32> to vector<8xf32>
    %202 = vector.shape_cast %201 : vector<8xf32> to vector<8x1xf32>
    %203 = tpu.reciprocal %202 {approx = true} : vector<8x1xf32> -> vector<8x1xf32>
    %204 = vector.broadcast %203 : vector<8x1xf32> to vector<8x4xf32>
    %205 = arith.mulf %200, %204 : vector<8x4xf32>
    %206 = arith.truncf %205 : vector<8x4xf32> to vector<8x4xbf16>
    %cst_71 = arith.constant dense<0.000000e+00> : vector<8x8xf32>
    %207 = tpu.matmul %206, %194, %cst_71 {dimension_numbers = #tpu.dot_dimension_numbers<[1], [0], [0], [1], [0, 0, 1, 1], [], []>} : vector<8x4xbf16>, vector<4x8xbf16>, vector<8x8xf32> -> vector<8x8xf32>
    %c8_72 = arith.constant 8 : index
    %c0_73 = arith.constant 0 : index
    %208 = vector.load %arg11[%c8_72, %c0_73] : memref<32x128xf32, #tpu.memory_space<vmem>>, vector<8x128xf32>
    %209 = arith.truncf %208 : vector<8x128xf32> to vector<8x128xbf16>
    %210 = arith.truncf %207 : vector<8x8xf32> to vector<8x8xbf16>
    %cst_74 = arith.constant dense<0.000000e+00> : vector<8x128xf32>
    %211 = tpu.matmul %210, %209, %cst_74 {dimension_numbers = #tpu.dot_dimension_numbers<[1], [0], [0], [1], [0, 0, 1, 1], [], []>} : vector<8x8xbf16>, vector<8x128xbf16>, vector<8x128xf32> -> vector<8x128xf32>
    %212 = arith.addf %188, %211 : vector<8x128xf32>
    %213 = vector.extract_strided_slice %155 {offsets = [0, 16], sizes = [8, 8], strides = [1, 1]} : vector<8x32xf32> to vector<8x8xf32>
    %214 = arith.truncf %213 : vector<8x8xf32> to vector<8x8xbf16>
    %215 = vector.extract_strided_slice %162 {offsets = [0, 16], sizes = [4, 8], strides = [1, 1]} : vector<4x32xf32> to vector<4x8xf32>
    %216 = arith.truncf %215 : vector<4x8xf32> to vector<4x8xbf16>
    %217 = vector.extract_strided_slice %163 {offsets = [0, 16], sizes = [4, 8], strides = [1, 1]} : vector<4x32xf32> to vector<4x8xf32>
    %218 = arith.truncf %217 : vector<4x8xf32> to vector<4x8xbf16>
    %cst_75 = arith.constant dense<0.000000e+00> : vector<8x4xf32>
    %219 = tpu.matmul %214, %216, %cst_75 {dimension_numbers = #tpu.dot_dimension_numbers<[1], [1], [0], [0], [0, 0, 1, 0], [], []>} : vector<8x8xbf16>, vector<4x8xbf16>, vector<8x4xf32> -> vector<8x4xf32>
    %cst_76 = arith.constant dense<0xFF800000> : vector<8xf32>
    %220 = vector.multi_reduction <maximumf>, %219, %cst_76 [1] : vector<8x4xf32> to vector<8xf32>
    %221 = vector.shape_cast %220 : vector<8xf32> to vector<8x1xf32>
    %222 = vector.broadcast %221 : vector<8x1xf32> to vector<8x4xf32>
    %223 = arith.subf %219, %222 : vector<8x4xf32>
    %224 = math.exp %223 : vector<8x4xf32>
    %cst_77 = arith.constant dense<0.000000e+00> : vector<8xf32>
    %225 = vector.multi_reduction <add>, %224, %cst_77 [1] : vector<8x4xf32> to vector<8xf32>
    %226 = vector.shape_cast %225 : vector<8xf32> to vector<8x1xf32>
    %227 = tpu.reciprocal %226 {approx = true} : vector<8x1xf32> -> vector<8x1xf32>
    %228 = vector.broadcast %227 : vector<8x1xf32> to vector<8x4xf32>
    %229 = arith.mulf %224, %228 : vector<8x4xf32>
    %230 = arith.truncf %229 : vector<8x4xf32> to vector<8x4xbf16>
    %cst_78 = arith.constant dense<0.000000e+00> : vector<8x8xf32>
    %231 = tpu.matmul %230, %218, %cst_78 {dimension_numbers = #tpu.dot_dimension_numbers<[1], [0], [0], [1], [0, 0, 1, 1], [], []>} : vector<8x4xbf16>, vector<4x8xbf16>, vector<8x8xf32> -> vector<8x8xf32>
    %c16_79 = arith.constant 16 : index
    %c0_80 = arith.constant 0 : index
    %232 = vector.load %arg11[%c16_79, %c0_80] : memref<32x128xf32, #tpu.memory_space<vmem>>, vector<8x128xf32>
    %233 = arith.truncf %232 : vector<8x128xf32> to vector<8x128xbf16>
    %234 = arith.truncf %231 : vector<8x8xf32> to vector<8x8xbf16>
    %cst_81 = arith.constant dense<0.000000e+00> : vector<8x128xf32>
    %235 = tpu.matmul %234, %233, %cst_81 {dimension_numbers = #tpu.dot_dimension_numbers<[1], [0], [0], [1], [0, 0, 1, 1], [], []>} : vector<8x8xbf16>, vector<8x128xbf16>, vector<8x128xf32> -> vector<8x128xf32>
    %236 = arith.addf %212, %235 : vector<8x128xf32>
    %237 = vector.extract_strided_slice %155 {offsets = [0, 24], sizes = [8, 8], strides = [1, 1]} : vector<8x32xf32> to vector<8x8xf32>
    %238 = arith.truncf %237 : vector<8x8xf32> to vector<8x8xbf16>
    %239 = vector.extract_strided_slice %162 {offsets = [0, 24], sizes = [4, 8], strides = [1, 1]} : vector<4x32xf32> to vector<4x8xf32>
    %240 = arith.truncf %239 : vector<4x8xf32> to vector<4x8xbf16>
    %241 = vector.extract_strided_slice %163 {offsets = [0, 24], sizes = [4, 8], strides = [1, 1]} : vector<4x32xf32> to vector<4x8xf32>
    %242 = arith.truncf %241 : vector<4x8xf32> to vector<4x8xbf16>
    %cst_82 = arith.constant dense<0.000000e+00> : vector<8x4xf32>
    %243 = tpu.matmul %238, %240, %cst_82 {dimension_numbers = #tpu.dot_dimension_numbers<[1], [1], [0], [0], [0, 0, 1, 0], [], []>} : vector<8x8xbf16>, vector<4x8xbf16>, vector<8x4xf32> -> vector<8x4xf32>
    %cst_83 = arith.constant dense<0xFF800000> : vector<8xf32>
    %244 = vector.multi_reduction <maximumf>, %243, %cst_83 [1] : vector<8x4xf32> to vector<8xf32>
    %245 = vector.shape_cast %244 : vector<8xf32> to vector<8x1xf32>
    %246 = vector.broadcast %245 : vector<8x1xf32> to vector<8x4xf32>
    %247 = arith.subf %243, %246 : vector<8x4xf32>
    %248 = math.exp %247 : vector<8x4xf32>
    %cst_84 = arith.constant dense<0.000000e+00> : vector<8xf32>
    %249 = vector.multi_reduction <add>, %248, %cst_84 [1] : vector<8x4xf32> to vector<8xf32>
    %250 = vector.shape_cast %249 : vector<8xf32> to vector<8x1xf32>
    %251 = tpu.reciprocal %250 {approx = true} : vector<8x1xf32> -> vector<8x1xf32>
    %252 = vector.broadcast %251 : vector<8x1xf32> to vector<8x4xf32>
    %253 = arith.mulf %248, %252 : vector<8x4xf32>
    %254 = arith.truncf %253 : vector<8x4xf32> to vector<8x4xbf16>
    %cst_85 = arith.constant dense<0.000000e+00> : vector<8x8xf32>
    %255 = tpu.matmul %254, %242, %cst_85 {dimension_numbers = #tpu.dot_dimension_numbers<[1], [0], [0], [1], [0, 0, 1, 1], [], []>} : vector<8x4xbf16>, vector<4x8xbf16>, vector<8x8xf32> -> vector<8x8xf32>
    %c24_86 = arith.constant 24 : index
    %c0_87 = arith.constant 0 : index
    %256 = vector.load %arg11[%c24_86, %c0_87] : memref<32x128xf32, #tpu.memory_space<vmem>>, vector<8x128xf32>
    %257 = arith.truncf %256 : vector<8x128xf32> to vector<8x128xbf16>
    %258 = arith.truncf %255 : vector<8x8xf32> to vector<8x8xbf16>
    %cst_88 = arith.constant dense<0.000000e+00> : vector<8x128xf32>
    %259 = tpu.matmul %258, %257, %cst_88 {dimension_numbers = #tpu.dot_dimension_numbers<[1], [0], [0], [1], [0, 0, 1, 1], [], []>} : vector<8x8xbf16>, vector<8x128xbf16>, vector<8x128xf32> -> vector<8x128xf32>
    %260 = arith.addf %236, %259 : vector<8x128xf32>
    %c0_89 = arith.constant 0 : index
    %c0_90 = arith.constant 0 : index
    %261 = vector.load %arg12[%c0_89, %c0_90] : memref<1x128xf32, #tpu.memory_space<vmem>>, vector<1x128xf32>
    %262 = vector.broadcast %261 : vector<1x128xf32> to vector<8x128xf32>
    %263 = arith.addf %260, %262 : vector<8x128xf32>
    %264 = arith.addf %148, %263 : vector<8x128xf32>
    %cst_91 = arith.constant dense<0.000000e+00> : vector<8xf32>
    %265 = vector.multi_reduction <add>, %264, %cst_91 [1] : vector<8x128xf32> to vector<8xf32>
    %266 = vector.shape_cast %265 : vector<8xf32> to vector<8x1xf32>
    %cst_92 = arith.constant 3.125000e-02 : f32
    %267 = vector.broadcast %cst_92 : f32 to vector<8x1xf32>
    %268 = arith.mulf %266, %267 : vector<8x1xf32>
    %269 = arith.mulf %264, %264 : vector<8x128xf32>
    %cst_93 = arith.constant dense<0.000000e+00> : vector<8xf32>
    %270 = vector.multi_reduction <add>, %269, %cst_93 [1] : vector<8x128xf32> to vector<8xf32>
    %271 = vector.shape_cast %270 : vector<8xf32> to vector<8x1xf32>
    %cst_94 = arith.constant 3.125000e-02 : f32
    %272 = vector.broadcast %cst_94 : f32 to vector<8x1xf32>
    %273 = arith.mulf %271, %272 : vector<8x1xf32>
    %274 = arith.mulf %268, %268 : vector<8x1xf32>
    %275 = arith.subf %273, %274 : vector<8x1xf32>
    %276 = vector.broadcast %268 : vector<8x1xf32> to vector<8x128xf32>
    %277 = arith.subf %264, %276 : vector<8x128xf32>
    %cst_95 = arith.constant 9.99999974E-6 : f32
    %278 = vector.broadcast %cst_95 : f32 to vector<8x1xf32>
    %279 = arith.addf %275, %278 : vector<8x1xf32>
    %280 = math.rsqrt %279 : vector<8x1xf32>
    %281 = vector.broadcast %280 : vector<8x1xf32> to vector<8x128xf32>
    %282 = arith.mulf %277, %281 : vector<8x128xf32>
    %c0_96 = arith.constant 0 : index
    %c0_97 = arith.constant 0 : index
    %283 = vector.load %arg19[%c0_96, %c0_97] : memref<1x128xf32, #tpu.memory_space<vmem>>, vector<1x128xf32>
    %284 = vector.broadcast %283 : vector<1x128xf32> to vector<8x128xf32>
    %285 = arith.mulf %282, %284 : vector<8x128xf32>
    %c0_98 = arith.constant 0 : index
    %c0_99 = arith.constant 0 : index
    %286 = vector.load %arg20[%c0_98, %c0_99] : memref<1x128xf32, #tpu.memory_space<vmem>>, vector<1x128xf32>
    %287 = vector.broadcast %286 : vector<1x128xf32> to vector<8x128xf32>
    %288 = arith.addf %285, %287 : vector<8x128xf32>
    %289 = arith.truncf %288 : vector<8x128xf32> to vector<8x128xbf16>
    %c0_100 = arith.constant 0 : index
    %c0_101 = arith.constant 0 : index
    %290 = vector.load %arg13[%c0_100, %c0_101] : memref<128x2048xbf16, #tpu.memory_space<vmem>>, vector<128x2048xbf16>
    %cst_102 = arith.constant dense<0.000000e+00> : vector<8x2048xf32>
    %291 = tpu.matmul %289, %290, %cst_102 {dimension_numbers = #tpu.dot_dimension_numbers<[1], [0], [0], [1], [0, 0, 1, 1], [], []>} : vector<8x128xbf16>, vector<128x2048xbf16>, vector<8x2048xf32> -> vector<8x2048xf32>
    %c0_103 = arith.constant 0 : index
    %c0_104 = arith.constant 0 : index
    %292 = vector.load %arg14[%c0_103, %c0_104] : memref<1x2048xf32, #tpu.memory_space<vmem>>, vector<1x2048xf32>
    %293 = vector.broadcast %292 : vector<1x2048xf32> to vector<8x2048xf32>
    %294 = arith.addf %291, %293 : vector<8x2048xf32>
    %cst_105 = arith.constant 0.000000e+00 : f32
    %295 = vector.broadcast %cst_105 : f32 to vector<8x2048xf32>
    %296 = arith.maximumf %294, %295 : vector<8x2048xf32>
    %297 = arith.truncf %296 : vector<8x2048xf32> to vector<8x2048xbf16>
    %c0_106 = arith.constant 0 : index
    %c0_107 = arith.constant 0 : index
    %298 = vector.load %arg15[%c0_106, %c0_107] : memref<2048x128xbf16, #tpu.memory_space<vmem>>, vector<2048x128xbf16>
    %cst_108 = arith.constant dense<0.000000e+00> : vector<8x128xf32>
    %299 = tpu.matmul %297, %298, %cst_108 {dimension_numbers = #tpu.dot_dimension_numbers<[1], [0], [0], [1], [0, 0, 1, 1], [], []>} : vector<8x2048xbf16>, vector<2048x128xbf16>, vector<8x128xf32> -> vector<8x128xf32>
    %c0_109 = arith.constant 0 : index
    %c0_110 = arith.constant 0 : index
    %300 = vector.load %arg16[%c0_109, %c0_110] : memref<1x128xf32, #tpu.memory_space<vmem>>, vector<1x128xf32>
    %301 = vector.broadcast %300 : vector<1x128xf32> to vector<8x128xf32>
    %302 = arith.addf %299, %301 : vector<8x128xf32>
    %303 = arith.addf %288, %302 : vector<8x128xf32>
    %cst_111 = arith.constant dense<0.000000e+00> : vector<8xf32>
    %304 = vector.multi_reduction <add>, %303, %cst_111 [1] : vector<8x128xf32> to vector<8xf32>
    %305 = vector.shape_cast %304 : vector<8xf32> to vector<8x1xf32>
    %cst_112 = arith.constant 3.125000e-02 : f32
    %306 = vector.broadcast %cst_112 : f32 to vector<8x1xf32>
    %307 = arith.mulf %305, %306 : vector<8x1xf32>
    %308 = arith.mulf %303, %303 : vector<8x128xf32>
    %cst_113 = arith.constant dense<0.000000e+00> : vector<8xf32>
    %309 = vector.multi_reduction <add>, %308, %cst_113 [1] : vector<8x128xf32> to vector<8xf32>
    %310 = vector.shape_cast %309 : vector<8xf32> to vector<8x1xf32>
    %cst_114 = arith.constant 3.125000e-02 : f32
    %311 = vector.broadcast %cst_114 : f32 to vector<8x1xf32>
    %312 = arith.mulf %310, %311 : vector<8x1xf32>
    %313 = arith.mulf %307, %307 : vector<8x1xf32>
    %314 = arith.subf %312, %313 : vector<8x1xf32>
    %315 = vector.broadcast %307 : vector<8x1xf32> to vector<8x128xf32>
    %316 = arith.subf %303, %315 : vector<8x128xf32>
    %cst_115 = arith.constant 9.99999974E-6 : f32
    %317 = vector.broadcast %cst_115 : f32 to vector<8x1xf32>
    %318 = arith.addf %314, %317 : vector<8x1xf32>
    %319 = math.rsqrt %318 : vector<8x1xf32>
    %320 = vector.broadcast %319 : vector<8x1xf32> to vector<8x128xf32>
    %321 = arith.mulf %316, %320 : vector<8x128xf32>
    %c0_116 = arith.constant 0 : index
    %c0_117 = arith.constant 0 : index
    %322 = vector.load %arg21[%c0_116, %c0_117] : memref<1x128xf32, #tpu.memory_space<vmem>>, vector<1x128xf32>
    %323 = vector.broadcast %322 : vector<1x128xf32> to vector<8x128xf32>
    %324 = arith.mulf %321, %323 : vector<8x128xf32>
    %c0_118 = arith.constant 0 : index
    %c0_119 = arith.constant 0 : index
    %325 = vector.load %arg22[%c0_118, %c0_119] : memref<1x128xf32, #tpu.memory_space<vmem>>, vector<1x128xf32>
    %326 = vector.broadcast %325 : vector<1x128xf32> to vector<8x128xf32>
    %327 = arith.addf %324, %326 : vector<8x128xf32>
    %c0_120 = arith.constant 0 : index
    %c0_121 = arith.constant 0 : index
    %c0_122 = arith.constant 0 : index
    %328 = vector.load %arg23[%c0_120, %c0_121, %c0_122] : memref<1x8x128xf32, #tpu.memory_space<vmem>>, vector<1x8x128xf32>
    %329 = vector.shape_cast %328 : vector<1x8x128xf32> to vector<8x128xf32>
    %330 = vector.shape_cast %327 : vector<8x128xf32> to vector<1x8x128xf32>
    tpu.vector_store %arg23[%c0_120, %c0_121, %c0_122], %330 {strides = array<i32>} : memref<1x8x128xf32, #tpu.memory_space<vmem>>, vector<1x8x128xf32>,
    return
  }
  func.func @transform_0(%arg0: i32) -> (i32, i32, i32) {
    %c0_i32 = arith.constant 0 : i32
    %c0_i32_0 = arith.constant 0 : i32
    %c0_i32_1 = arith.constant 0 : i32
    return %arg0, %c0_i32, %c0_i32_0 : i32, i32, i32
  }
  func.func @transform_1(%arg0: i32) -> (i32, i32, i32) {
    %c0_i32 = arith.constant 0 : i32
    %c0_i32_0 = arith.constant 0 : i32
    %c0_i32_1 = arith.constant 0 : i32
    return %arg0, %c0_i32, %c0_i32_0 : i32, i32, i32
  }
  func.func @transform_2(%arg0: i32) -> (i32, i32) {
    %c0_i32 = arith.constant 0 : i32
    %c0_i32_0 = arith.constant 0 : i32
    %c0_i32_1 = arith.constant 0 : i32
    return %c0_i32, %c0_i32_0 : i32, i32
  }
  func.func @transform_3(%arg0: i32) -> (i32, i32) {
    %c0_i32 = arith.constant 0 : i32
    %c0_i32_0 = arith.constant 0 : i32
    %c0_i32_1 = arith.constant 0 : i32
    return %c0_i32, %c0_i32_0 : i32, i32
  }
  func.func @transform_4(%arg0: i32) -> (i32, i32) {
    %c0_i32 = arith.constant 0 : i32
    %c0_i32_0 = arith.constant 0 : i32
    %c0_i32_1 = arith.constant 0 : i32
    return %c0_i32, %c0_i32_0 : i32, i32
  }
  func.func @transform_5(%arg0: i32) -> (i32, i32) {
    %c0_i32 = arith.constant 0 : i32
    %c0_i32_0 = arith.constant 0 : i32
    %c0_i32_1 = arith.constant 0 : i32
    return %c0_i32, %c0_i32_0 : i32, i32
  }
  func.func @transform_6(%arg0: i32) -> (i32, i32) {
    %c0_i32 = arith.constant 0 : i32
    %c0_i32_0 = arith.constant 0 : i32
    %c0_i32_1 = arith.constant 0 : i32
    return %c0_i32, %c0_i32_0 : i32, i32
  }
  func.func @transform_7(%arg0: i32) -> (i32, i32) {
    %c0_i32 = arith.constant 0 : i32
    %c0_i32_0 = arith.constant 0 : i32
    %c0_i32_1 = arith.constant 0 : i32
    return %c0_i32, %c0_i32_0 : i32, i32
  }
  func.func @transform_8(%arg0: i32) -> (i32, i32) {
    %c0_i32 = arith.constant 0 : i32
    %c0_i32_0 = arith.constant 0 : i32
    %c0_i32_1 = arith.constant 0 : i32
    return %c0_i32, %c0_i32_0 : i32, i32
  }
  func.func @transform_9(%arg0: i32) -> (i32, i32) {
    %c0_i32 = arith.constant 0 : i32
    %c0_i32_0 = arith.constant 0 : i32
    %c0_i32_1 = arith.constant 0 : i32
    return %c0_i32, %c0_i32_0 : i32, i32
  }
  func.func @transform_10(%arg0: i32) -> (i32, i32) {
    %c0_i32 = arith.constant 0 : i32
    %c0_i32_0 = arith.constant 0 : i32
    %c0_i32_1 = arith.constant 0 : i32
    return %c0_i32, %c0_i32_0 : i32, i32
  }
  func.func @transform_11(%arg0: i32) -> (i32, i32) {
    %c0_i32 = arith.constant 0 : i32
    %c0_i32_0 = arith.constant 0 : i32
    %c0_i32_1 = arith.constant 0 : i32
    return %c0_i32, %c0_i32_0 : i32, i32
  }
  func.func @transform_12(%arg0: i32) -> (i32, i32) {
    %c0_i32 = arith.constant 0 : i32
    %c0_i32_0 = arith.constant 0 : i32
    %c0_i32_1 = arith.constant 0 : i32
    return %c0_i32, %c0_i32_0 : i32, i32
  }
  func.func @transform_13(%arg0: i32) -> (i32, i32) {
    %c0_i32 = arith.constant 0 : i32
    %c0_i32_0 = arith.constant 0 : i32
    %c0_i32_1 = arith.constant 0 : i32
    return %c0_i32, %c0_i32_0 : i32, i32
  }
  func.func @transform_14(%arg0: i32) -> (i32, i32) {
    %c0_i32 = arith.constant 0 : i32
    %c0_i32_0 = arith.constant 0 : i32
    %c0_i32_1 = arith.constant 0 : i32
    return %c0_i32, %c0_i32_0 : i32, i32
  }
  func.func @transform_15(%arg0: i32) -> (i32, i32) {
    %c0_i32 = arith.constant 0 : i32
    %c0_i32_0 = arith.constant 0 : i32
    %c0_i32_1 = arith.constant 0 : i32
    return %c0_i32, %c0_i32_0 : i32, i32
  }
  func.func @transform_16(%arg0: i32) -> (i32, i32) {
    %c0_i32 = arith.constant 0 : i32
    %c0_i32_0 = arith.constant 0 : i32
    %c0_i32_1 = arith.constant 0 : i32
    return %c0_i32, %c0_i32_0 : i32, i32
  }
  func.func @transform_17(%arg0: i32) -> (i32, i32) {
    %c0_i32 = arith.constant 0 : i32
    %c0_i32_0 = arith.constant 0 : i32
    %c0_i32_1 = arith.constant 0 : i32
    return %c0_i32, %c0_i32_0 : i32, i32
  }
  func.func @transform_18(%arg0: i32) -> (i32, i32) {
    %c0_i32 = arith.constant 0 : i32
    %c0_i32_0 = arith.constant 0 : i32
    %c0_i32_1 = arith.constant 0 : i32
    return %c0_i32, %c0_i32_0 : i32, i32
  }
  func.func @transform_19(%arg0: i32) -> (i32, i32) {
    %c0_i32 = arith.constant 0 : i32
    %c0_i32_0 = arith.constant 0 : i32
    %c0_i32_1 = arith.constant 0 : i32
    return %c0_i32, %c0_i32_0 : i32, i32
  }
  func.func @transform_20(%arg0: i32) -> (i32, i32) {
    %c0_i32 = arith.constant 0 : i32
    %c0_i32_0 = arith.constant 0 : i32
    %c0_i32_1 = arith.constant 0 : i32
    return %c0_i32, %c0_i32_0 : i32, i32
  }
  func.func @transform_21(%arg0: i32) -> (i32, i32) {
    %c0_i32 = arith.constant 0 : i32
    %c0_i32_0 = arith.constant 0 : i32
    %c0_i32_1 = arith.constant 0 : i32
    return %c0_i32, %c0_i32_0 : i32, i32
  }
  func.func @transform_22(%arg0: i32) -> (i32, i32, i32) {
    %c0_i32 = arith.constant 0 : i32
    %c0_i32_0 = arith.constant 0 : i32
    %c0_i32_1 = arith.constant 0 : i32
    return %arg0, %c0_i32, %c0_i32_0 : i32, i32, i32
  }
}

</mosaic_0001>

<llo_original>
// kernel: forward_train.7
$region0: #{forward_train.7}
  #allocation0 [shape = 'u32[]', space=smem, size = 0x4, offset = 0x4, fixed_abs, tag = 'smem constant byte address 0x4 - core index']
  #allocation1 [shape = 'u32[144,128]{1,0:T(1,128)}', space=vmem, size = 0x12000, scoped, tag = 'internal scratch']
  #allocation2 [shape = 'f32[8,128]{1,0:T(8,128)}', space=vmem, size = 0x1000, scoped, tag = 'scratch operand']
  %s0 = inlined_call_operand.vmem [shape: f32[16,128], index: 0, kind: input, shape index: {}]
  %s1 = inlined_call_operand.vmem [shape: bf16[128,128], index: 1, kind: input, shape index: {}]
  %s2 = inlined_call_operand.vmem [shape: f32[1,128], index: 2, kind: input, shape index: {}]
  %s3 = inlined_call_operand.vmem [shape: f32[16,128], index: 3, kind: output, shape index: {}]
  %s4 = sld [smem:[#allocation0]]
  $region53: #{forward_train.7} parent=0
    _
  %s6 = ssub.s32 1, %s4
  %s7 = scalar_select 0, %s6, %s4
  loop: start=0, step=1, limit=4
  $region2: #{forward_train.7} parent=0 // loop_pre_header
    _
  $region3: #{forward_train.7} parent=0 // loop_header
    %s9 = sphi 0, %s13
    %p10 = scmp.ge.s32.totalorder %s9, 4
    %s16 = sphi 0, %s35
    %s17 = sphi 0, %s31
    %s18 = sphi 0, %s27
    %s19 = sphi 0, %s16
    %s20 = sphi 0, %s17
    %s21 = sphi 0, %s18
    %s22 = sphi 0, %s19
    %s23 = sphi 0, %s20
    %s24 = sphi 0, %s21
    %s40 = sphi 0, %s42
    %s43 = sphi 0, %s40
    %s44 = sphi 0, %s43
    %s60 = sphi 0, %s44
    %s68 = sphi 0, %s70
    %s71 = sphi 0, %s68
    %s72 = sphi 0, %s71
    %s88 = sphi 0, %s72
    %s94 = sphi 0, %s96
    %s97 = sphi 0, %s94
    %s98 = sphi 0, %s97
    %s114 = sphi 0, %s98
    %s122 = sphi 0, %s124
    %s125 = sphi 0, %s122
    %s126 = sphi 0, %s125
    %s142 = sphi 0, %s126
  $region4: #{forward_train.7} parent=0 // loop_header_branch
    %12 = sbr.rel (%p10) target = $region8
  $region5: #{forward_train.7} parent=0 // loop_body
    %s14 = ssub.s32 %s9, 1
    %s15 = ssub.s32 %s9, 2
    %s25 = sadd.s32 1, %s18
    %p26 = scmp.ge.s32.totalorder %s25, 1
    %s27 = scalar_select %p26, 0, %s25
    %s28 = sadd.s32 1, %s17
    %s29 = scalar_select %p26, %s28, %s17
    %p30 = scmp.ge.s32.totalorder %s29, 1
    %s31 = scalar_select %p30, 0, %s29
    %s32 = sadd.s32 1, %s16
    %s33 = scalar_select %p30, %s32, %s16
    %p34 = scmp.ge.s32.totalorder %s33, 2
    %s35 = scalar_select %p34, 0, %s33
    %s36 = ssub.s32 %s16, %s35
    %s37 = ssub.s32 %s18, %s27
    %s38 = sor.u32 %s36, %s37
    %p39 = scmp.eq.s32.totalorder %s38, 0
    %s41 = sadd.s32 %s40, 1
    %s42 = scalar_select %p39, %s40, %s41
    %p45 = pneg %p39
    %p46 = scmp.eq.s32.totalorder %s9, 1
    %p47 = por %p45, %p46
    %p48 = scmp.ne.s32.totalorder %s40, %s43
    %p49 = scmp.eq.s32.totalorder %s9, 0
    %p50 = por %p48, %p49
    %p51 = scmp.ne.s32.totalorder %s40, %s43
    %p52 = scmp.eq.s32.totalorder %s14, 1
    %p53 = por %p51, %p52
    %p54 = scmp.ne.s32.totalorder %s43, %s44
    %p55 = scmp.eq.s32.totalorder %s14, 0
    %p56 = por %p54, %p55
    %p57 = scmp.ne.s32.totalorder %s43, %s44
    %p58 = scmp.eq.s32.totalorder %s15, 1
    %p59 = por %p57, %p58
    %p61 = scmp.ne.s32.totalorder %s44, %s60
    %p62 = scmp.eq.s32.totalorder %s15, 0
    %p63 = por %p61, %p62
    %s64 = ssub.s32 %s18, %s27
    %s65 = ssub.s32 %s17, %s31
    %s66 = sor.u32 %s64, %s65
    %p67 = scmp.eq.s32.totalorder %s66, 0
    %s69 = sadd.s32 %s68, 1
    %s70 = scalar_select %p67, %s68, %s69
    %p73 = pneg %p67
    %p74 = scmp.eq.s32.totalorder %s9, 1
    %p75 = por %p73, %p74
    %p76 = scmp.ne.s32.totalorder %s68, %s71
    %p77 = scmp.eq.s32.totalorder %s9, 0
    %p78 = por %p76, %p77
    %p79 = scmp.ne.s32.totalorder %s68, %s71
    %p80 = scmp.eq.s32.totalorder %s14, 1
    %p81 = por %p79, %p80
    %p82 = scmp.ne.s32.totalorder %s71, %s72
    %p83 = scmp.eq.s32.totalorder %s14, 0
    %p84 = por %p82, %p83
    %p85 = scmp.ne.s32.totalorder %s71, %s72
    %p86 = scmp.eq.s32.totalorder %s15, 1
    %p87 = por %p85, %p86
    %p89 = scmp.ne.s32.totalorder %s72, %s88
    %p90 = scmp.eq.s32.totalorder %s15, 0
    %p91 = por %p89, %p90
    %s92 = ssub.s32 %s17, %s31
    %p93 = scmp.eq.s32.totalorder %s92, 0
    %s95 = sadd.s32 %s94, 1
    %s96 = scalar_select %p93, %s94, %s95
    %p99 = pneg %p93
    %p100 = scmp.eq.s32.totalorder %s9, 1
    %p101 = por %p99, %p100
    %p102 = scmp.ne.s32.totalorder %s94, %s97
    %p103 = scmp.eq.s32.totalorder %s9, 0
    %p104 = por %p102, %p103
    %p105 = scmp.ne.s32.totalorder %s94, %s97
    %p106 = scmp.eq.s32.totalorder %s14, 1
    %p107 = por %p105, %p106
    %p108 = scmp.ne.s32.totalorder %s97, %s98
    %p109 = scmp.eq.s32.totalorder %s14, 0
    %p110 = por %p108, %p109
    %p111 = scmp.ne.s32.totalorder %s97, %s98
    %p112 = scmp.eq.s32.totalorder %s15, 1
    %p113 = por %p111, %p112
    %p115 = scmp.ne.s32.totalorder %s98, %s114
    %p116 = scmp.eq.s32.totalorder %s15, 0
    %p117 = por %p115, %p116
    %s118 = ssub.s32 %s16, %s35
    %s119 = ssub.s32 %s17, %s31
    %s120 = sor.u32 %s118, %s119
    %p121 = scmp.eq.s32.totalorder %s120, 0
    %s123 = sadd.s32 %s122, 1
    %s124 = scalar_select %p121, %s122, %s123
    %p127 = pneg %p121
    %p128 = scmp.eq.s32.totalorder %s9, 1
    %p129 = por %p127, %p128
    %p130 = scmp.ne.s32.totalorder %s122, %s125
    %p131 = scmp.eq.s32.totalorder %s9, 0
    %p132 = por %p130, %p131
    %p133 = scmp.ne.s32.totalorder %s122, %s125
    %p134 = scmp.eq.s32.totalorder %s14, 1
    %p135 = por %p133, %p134
    %p136 = scmp.ne.s32.totalorder %s125, %s126
    %p137 = scmp.eq.s32.totalorder %s14, 0
    %p138 = por %p136, %p137
    %p139 = scmp.ne.s32.totalorder %s125, %s126
    %p140 = scmp.eq.s32.totalorder %s15, 1
    %p141 = por %p139, %p140
    %p143 = scmp.ne.s32.totalorder %s126, %s142
    %p144 = scmp.eq.s32.totalorder %s15, 0
    %p145 = por %p143, %p144
    %p146 = scmp.le.s32.totalorder 1, %s9
    %p147 = scmp.lt.s32.totalorder %s9, 3
    %p148 = pnand %p146, %p147
    %p149 = pneg %p148
    // Predicated region
    $region9: #{forward_train.7} parent=5 // pred_check
      _
    $region10: #{forward_train.7} parent=5 // pred_check_branch
      %151 = sbr.rel (%p148) target = $region12
    $region11: #{forward_train.7} parent=5 // pred_region
      %s152 = ssub.s32 %s9, 1
      // Predicated region
      $region13: #{forward_train.7} parent=11 // pred_check
        %p153 = pneg %p84
      $region14: #{forward_train.7} parent=11 // pred_check_branch
        %155 = sbr.rel (%p153) target = $region16
      $region15: #{forward_train.7} parent=11 // pred_region
        %s156 = smul.u32 16, %s21
        %p157 = scmp.lt.s32.totalorder %s156, 15
        %s158 = scalar_select %p157, %s156, 15
        %p159 = scmp.lt.s32.totalorder %s20, 0
        %s160 = scalar_select %p159, %s20, 0
        %s161 = sadd.s32 %s160, %s158
        %s162 = smul.addr %s161, 4
        %s163 = scalar_lea.vmem %s1, %s162
        %s164 = smul.u32 16, %s21
      $region16: #{forward_train.7} parent=11 // pred_fallthru
        _
      // Predicated region
      $region17: #{forward_train.7} parent=11 // pred_check
        %p165 = pneg %p110
      $region18: #{forward_train.7} parent=11 // pred_check_branch
        %167 = sbr.rel (%p165) target = $region20
      $region19: #{forward_train.7} parent=11 // pred_region
        %p168 = scmp.lt.s32.totalorder %s20, 0
        %s169 = scalar_select %p168, %s20, 0
        %s170 = scalar_lea.vmem %s2, %s169
      $region20: #{forward_train.7} parent=11 // pred_fallthru
        _
    $region12: #{forward_train.7} parent=5 // pred_fallthru
      _
    %p171 = scmp.lt.s32.totalorder %s9, 2
    // Predicated region
    $region21: #{forward_train.7} parent=5 // pred_check
      %p172 = pneg %p171
    $region22: #{forward_train.7} parent=5 // pred_check_branch
      %174 = sbr.rel (%p172) target = $region24
    $region23: #{forward_train.7} parent=5 // pred_region
      // Predicated region
      $region25: #{forward_train.7} parent=23 // pred_check
        %p175 = pneg %p50
      $region26: #{forward_train.7} parent=23 // pred_check_branch
        %177 = sbr.rel (%p175) target = $region28
      $region27: #{forward_train.7} parent=23 // pred_region
        %p178 = scmp.lt.s32.totalorder %s16, 1
        %s179 = scalar_select %p178, %s16, 1
        %p180 = scmp.lt.s32.totalorder %s18, 0
        %s181 = scalar_select %p180, %s18, 0
        %s182 = sadd.s32 %s181, %s179
        %s183 = smul.addr %s182, 8
        %s184 = scalar_lea.vmem %s0, %s183
      $region28: #{forward_train.7} parent=23 // pred_fallthru
        _
    $region24: #{forward_train.7} parent=5 // pred_fallthru
      _
    %p185 = scmp.le.s32.totalorder 1, %s9
    %p186 = scmp.lt.s32.totalorder %s9, 3
    %p187 = pnand %p185, %p186
    %p188 = pneg %p187
    // Predicated region
    $region29: #{forward_train.7} parent=5 // pred_check
      _
    $region30: #{forward_train.7} parent=5 // pred_check_branch
      %190 = sbr.rel (%p187) target = $region32
    $region31: #{forward_train.7} parent=5 // pred_region
      %s191 = ssub.s32 %s9, 1
      %p192 = scmp.lt.s32.totalorder %s19, 1
      %s193 = scalar_select %p192, %s19, 1
      %p194 = scmp.lt.s32.totalorder %s21, 0
      %s195 = scalar_select %p194, %s21, 0
      %s196 = sadd.s32 %s195, %s193
      %s197 = smul.addr %s196, 8
      %s198 = scalar_lea.vmem %s0, %s197
      %p199 = pneg %p56
      %p200 = pneg %p53
      %s201 = smul.u32 16, %s21
      %p202 = scmp.lt.s32.totalorder %s201, 15
      %s203 = scalar_select %p202, %s201, 15
      %p204 = scmp.lt.s32.totalorder %s20, 0
      %s205 = scalar_select %p204, %s20, 0
      %s206 = sadd.s32 %s205, %s203
      %s207 = smul.addr %s206, 4
      %s208 = scalar_lea.vmem %s1, %s207
      %p209 = pneg %p84
      %p210 = pneg %p81
      %p211 = scmp.lt.s32.totalorder %s20, 0
      %s212 = scalar_select %p211, %s20, 0
      %s213 = scalar_lea.vmem %s2, %s212
      %p214 = pneg %p110
      %p215 = pneg %p107
      %p216 = pneg %p138
      %p217 = pneg %p135
      %p218 = scmp.lt.s32.totalorder %s19, 1
      %s219 = scalar_select %p218, %s19, 1
      %p220 = scmp.lt.s32.totalorder %s20, 0
      %s221 = scalar_select %p220, %s20, 0
      %s222 = sadd.s32 %s221, %s219
      %s223 = smul.addr %s222, 8
      %s224 = scalar_lea.vmem %s3, %s223
      %p225 = scmp.lt.s32.totalorder %s19, 1
      %s226 = scalar_select %p225, %s19, 1
      %p227 = scmp.lt.s32.totalorder %s21, 0
      %s228 = scalar_select %p227, %s21, 0
      %s229 = sadd.s32 %s228, %s226
      %s230 = smul.addr %s229, 8
      %s231 = scalar_lea.vmem %s0, %s230
      %s232 = smul.u32 16, %s21
      %p233 = scmp.lt.s32.totalorder %s232, 15
      %s234 = scalar_select %p233, %s232, 15
      %p235 = scmp.lt.s32.totalorder %s20, 0
      %s236 = scalar_select %p235, %s20, 0
      %s237 = sadd.s32 %s236, %s234
      %s238 = smul.addr %s237, 4
      %s239 = scalar_lea.vmem %s1, %s238
      %s240 = smul.u32 16, %s21
      %p241 = scmp.lt.s32.totalorder %s20, 0
      %s242 = scalar_select %p241, %s20, 0
      %s243 = scalar_lea.vmem %s2, %s242
      %p244 = scmp.lt.s32.totalorder %s19, 1
      %s245 = scalar_select %p244, %s19, 1
      %p246 = scmp.lt.s32.totalorder %s20, 0
      %s247 = scalar_select %p246, %s20, 0
      %s248 = sadd.s32 %s247, %s245
      %s249 = smul.addr %s248, 8
      %s250 = scalar_lea.vmem %s3, %s249
      %p252 = scmp.eq.s32.totalorder %s21, 0
      // Predicated region
      $region33: #{forward_train.7} parent=31 // pred_check
        %p253 = pneg %p252
      $region34: #{forward_train.7} parent=31 // pred_check_branch
        %255 = sbr.rel (%p253) target = $region36
      $region35: #{forward_train.7} parent=31 // pred_region
        %256 = vst [vmem:[#allocation2] sm:$0xff] 0.0
      $region36: #{forward_train.7} parent=31 // pred_fallthru
        _
      %v257 = vld [vmem:[#allocation2] sm:$0xff]
      %v258 = vld [vmem:[%s231] sm:$0xff]
      %v259 = vpack.c.bf16 %v258, %v258
      %v260 = vld [vmem:[%s239] sm:$0xf]
      %v261 = vld [vmem:[%s239 + $0x4] sm:$0xf]
      %v262 = vld [vmem:[%s239 + $0x8] sm:$0xf]
      %v263 = vld [vmem:[%s239 + $0xc] sm:$0xf]
      %v264 = vld [vmem:[%s239 + $0x10] sm:$0xf]
      %v265 = vld [vmem:[%s239 + $0x14] sm:$0xf]
      %v266 = vld [vmem:[%s239 + $0x18] sm:$0xf]
      %v267 = vld [vmem:[%s239 + $0x1c] sm:$0xf]
      %v268 = vld [vmem:[%s239 + $0x20] sm:$0xf]
      %v269 = vld [vmem:[%s239 + $0x24] sm:$0xf]
      %v270 = vld [vmem:[%s239 + $0x28] sm:$0xf]
      %v271 = vld [vmem:[%s239 + $0x2c] sm:$0xf]
      %v272 = vld [vmem:[%s239 + $0x30] sm:$0xf]
      %v273 = vld [vmem:[%s239 + $0x34] sm:$0xf]
      %v274 = vld [vmem:[%s239 + $0x38] sm:$0xf]
      %v275 = vld [vmem:[%s239 + $0x3c] sm:$0xf]
      %v292 = vunpack.c.l.b16 %v260
      %v293 = vunpack.c.l.b16 %v261
      %v294 = vunpack.c.l.b16 %v262
      %v295 = vunpack.c.l.b16 %v263
      %v296 = vunpack.c.l.b16 %v264
      %v297 = vunpack.c.l.b16 %v265
      %v298 = vunpack.c.l.b16 %v266
      %v299 = vunpack.c.l.b16 %v267
      %v300 = vunpack.c.l.b16 %v268
      %v301 = vunpack.c.l.b16 %v269
      %v302 = vunpack.c.l.b16 %v270
      %v303 = vunpack.c.l.b16 %v271
      %v304 = vunpack.c.l.b16 %v272
      %v305 = vunpack.c.l.b16 %v273
      %v306 = vunpack.c.l.b16 %v274
      %v307 = vunpack.c.l.b16 %v275
      %v308 = vpack.c.b16 %v293, %v292
      %v309 = vpack.c.b16 %v295, %v294
      %v310 = vpack.c.b16 %v297, %v296
      %v311 = vpack.c.b16 %v299, %v298
      %v312 = vpack.c.b16 %v301, %v300
      %v313 = vpack.c.b16 %v303, %v302
      %v314 = vpack.c.b16 %v305, %v304
      %v315 = vpack.c.b16 %v307, %v306
      %324 = vmatprep.subr.bf16.mxu0 0
      %325 = vmatpush1.bf16.msra.mxu0 %v308
      %326 = vmatprep.subr.bf16.mxu0 0
      %327 = vmatpush1.bf16.msra.mxu0 %v309
      %328 = vmatprep.subr.bf16.mxu0 0
      %329 = vmatpush1.bf16.msra.mxu0 %v310
      %330 = vmatprep.subr.bf16.mxu0 0
      %331 = vmatpush1.bf16.msra.mxu0 %v311
      %332 = vmatprep.subr.bf16.mxu0 0
      %333 = vmatpush1.bf16.msra.mxu0 %v312
      %334 = vmatprep.subr.bf16.mxu0 0
      %335 = vmatpush1.bf16.msra.mxu0 %v313
      %336 = vmatprep.subr.bf16.mxu0 0
      %337 = vmatpush1.bf16.msra.mxu0 %v314
      %338 = vmatprep.subr.bf16.mxu0 0
      %339 = vmatpush1.bf16.msra.mxu0 %v315
      %340 = vmatprep.subr.bf16.mxu0 0
      %341 = vmatpush1.bf16.msra.mxu0 0
      %342 = vmatprep.subr.bf16.mxu0 0
      %343 = vmatpush1.bf16.msra.mxu0 0
      %344 = vmatprep.subr.bf16.mxu0 0
      %345 = vmatpush1.bf16.msra.mxu0 0
      %346 = vmatprep.subr.bf16.mxu0 0
      %347 = vmatpush1.bf16.msra.mxu0 0
      %348 = vmatprep.subr.bf16.mxu0 0
      %349 = vmatpush1.bf16.msra.mxu0 0
      %350 = vmatprep.subr.bf16.mxu0 0
      %351 = vmatpush1.bf16.msra.mxu0 0
      %352 = vmatprep.subr.bf16.mxu0 0
      %353 = vmatpush1.bf16.msra.mxu0 0
      %354 = vmatprep.subr.bf16.mxu0 0
      %355 = vmatpush1.bf16.msra.mxu0 0
      %356 = vmatprep.mubr.bf16.mxu0 0
      %357 = vmatmul.mubr.bf16.gmra.mrb[0].mxu0 %v259
      %v358 = vpop.f32.mrb[0].mxu0
      %v359 = vadd.f32 0.0, %v358
      %v360 = vpop.f32.mrb[0].mxu0
      %v361 = vpop.f32.mrb[0].mxu0
      %v362 = vpop.f32.mrb[0].mxu0
      %363 = vdwg.mxu0
      %v364 = vadd.f32 %v257, %v359
      %365 = vst [vmem:[#allocation2] sm:$0xff] %v364
      // Predicated region
      $region37: #{forward_train.7} parent=31 // pred_check
        %p366 = pneg %p252
      $region38: #{forward_train.7} parent=31 // pred_check_branch
        %368 = sbr.rel (%p366) target = $region40
      $region39: #{forward_train.7} parent=31 // pred_region
        %v369 = vld [vmem:[#allocation2] sm:$0xff]
        %v370 = vld [vmem:[%s243] sm:$0x1]
        %v372 = vlaneseq
        %v373 = vshrl.u32 %v372, 7
        %v374 = vsub.s32 0, %v373
        %v375 = vrot.slane %v370, %v374
        %v377 = vadd.f32 %v369, %v375
        %378 = vst [vmem:[%s250] sm:$0xff] %v377
      $region40: #{forward_train.7} parent=31 // pred_fallthru
        _
      %p379 = scmp.lt.s32.totalorder %s19, 1
      %s380 = scalar_select %p379, %s19, 1
      %p381 = scmp.lt.s32.totalorder %s20, 0
      %s382 = scalar_select %p381, %s20, 0
      %s383 = sadd.s32 %s382, %s380
      %s384 = smul.addr %s383, 8
      %s385 = scalar_lea.vmem %s3, %s384
      // Predicated region
      $region41: #{forward_train.7} parent=31 // pred_check
        %p386 = pneg %p135
      $region42: #{forward_train.7} parent=31 // pred_check_branch
        %388 = sbr.rel (%p386) target = $region44
      $region43: #{forward_train.7} parent=31 // pred_region
        _
      $region44: #{forward_train.7} parent=31 // pred_fallthru
        _
    $region32: #{forward_train.7} parent=5 // pred_fallthru
      _
    %p389 = scmp.le.s32.totalorder 2, %s9
    // Predicated region
    $region45: #{forward_train.7} parent=5 // pred_check
      %p390 = pneg %p389
    $region46: #{forward_train.7} parent=5 // pred_check_branch
      %392 = sbr.rel (%p390) target = $region48
    $region47: #{forward_train.7} parent=5 // pred_region
      %s393 = ssub.s32 %s9, 2
      // Predicated region
      $region49: #{forward_train.7} parent=47 // pred_check
        %p394 = pneg %p141
      $region50: #{forward_train.7} parent=47 // pred_check_branch
        %396 = sbr.rel (%p394) target = $region52
      $region51: #{forward_train.7} parent=47 // pred_region
        %p397 = scmp.lt.s32.totalorder %s22, 1
        %s398 = scalar_select %p397, %s22, 1
        %p399 = scmp.lt.s32.totalorder %s23, 0
        %s400 = scalar_select %p399, %s23, 0
        %s401 = sadd.s32 %s400, %s398
        %s402 = smul.addr %s401, 8
        %s403 = scalar_lea.vmem %s3, %s402
      $region52: #{forward_train.7} parent=47 // pred_fallthru
        _
    $region48: #{forward_train.7} parent=5 // pred_fallthru
      _
  $region6: #{forward_train.7} parent=0 // loop_footer
    %s13 = sadd.s32 1, %s9
  $region7: #{forward_train.7} parent=0 // loop_footer_branch
    %8 = sbr.rel target = $region3
  $region8: #{forward_train.7} parent=0 // loop_exit
    _

// kernel: forward_train.4
$region0: #{forward_train.4}
  #allocation0 [shape = 'u32[]', space=smem, size = 0x4, offset = 0x4, fixed_abs, tag = 'smem constant byte address 0x4 - core index']
  #allocation1 [shape = 'u32[144,128]{1,0:T(1,128)}', space=vmem, size = 0x12000, scoped, tag = 'internal scratch']
  %s0 = inlined_call_operand.vmem [shape: f32[2,4,128], index: 0, kind: input, shape index: {}]
  %s1 = inlined_call_operand.hbm [shape: bf16[128,128], index: 1, kind: input, shape index: {}]
  %s2 = inlined_call_operand.hbm [shape: f32[1,128], index: 2, kind: input, shape index: {}]
  %s3 = inlined_call_operand.vmem [shape: f32[2,1,128], index: 3, kind: input, shape index: {}]
  %s4 = inlined_call_operand.vmem [shape: f32[2,4,128], index: 4, kind: output, shape index: {}]
  %s5 = sld [smem:[#allocation0]]
  $region57: #{forward_train.4} parent=0
    _
  %s7 = ssub.s32 1, %s5
  %s8 = scalar_select 0, %s7, %s5
  $region1: #{forward_train.4} parent=0
    #allocation2 [shape = 'u8[32768]{0}', space=vmem, size = 0x8000, scoped, tag = 'input window, operand 1, single buffered']
    #allocation3 [shape = 's32[2]{0}', space=sflag, size = 0x8, scoped, tag = 'scoped memory for forward_train.4']
    #allocation4 [shape = 'u8[512]{0}', space=vmem, size = 0x400, scoped, tag = 'input window, operand 2, single buffered']
    #allocation5 [shape = 's32[1]{0}', space=sflag, size = 0x4, scoped, tag = 'scoped memory for forward_train.4']
    %9 = vsyncpa [#allocation3], 0
    %10 = vsyncpa [#allocation5], 0
    loop: start=0, step=1, limit=4
    $region2: #{forward_train.4} parent=1 // loop_pre_header
      _
    $region3: #{forward_train.4} parent=1 // loop_header
      %s12 = sphi 0, %s16
      %p13 = scmp.ge.s32.totalorder %s12, 4
      %s22 = sphi 0, %s24
      %s25 = sphi 0, %s22
      %s26 = sphi 0, %s25
      %s42 = sphi 0, %s26
      %s46 = sphi 0, %s46
      %s48 = sphi 0, %s46
      %s49 = sphi 0, %s48
      %s63 = sphi 0, %s49
      %s67 = sphi 0, %s67
      %s69 = sphi 0, %s67
      %s70 = sphi 0, %s69
      %s84 = sphi 0, %s70
      %s90 = sphi 0, %s92
      %s93 = sphi 0, %s90
      %s94 = sphi 0, %s93
      %s110 = sphi 0, %s94
      %s116 = sphi 0, %s118
      %s119 = sphi 0, %s116
      %s120 = sphi 0, %s119
      %s136 = sphi 0, %s120
    $region4: #{forward_train.4} parent=1 // loop_header_branch
      %15 = sbr.rel (%p13) target = $region8
    $region5: #{forward_train.4} parent=1 // loop_body
      %s17 = ssub.s32 %s12, 1
      %s18 = ssub.s32 %s12, 2
      %s19 = sadd.s32 %s12, 1
      %s20 = ssub.s32 %s12, %s19
      %p21 = scmp.eq.s32.totalorder %s20, 0
      %s23 = sadd.s32 %s22, 1
      %s24 = scalar_select %p21, %s22, %s23
      %p27 = pneg %p21
      %p28 = scmp.eq.s32.totalorder %s12, 1
      %p29 = por %p27, %p28
      %p30 = scmp.ne.s32.totalorder %s22, %s25
      %p31 = scmp.eq.s32.totalorder %s12, 0
      %p32 = por %p30, %p31
      %p33 = scmp.ne.s32.totalorder %s22, %s25
      %p34 = scmp.eq.s32.totalorder %s17, 1
      %p35 = por %p33, %p34
      %p36 = scmp.ne.s32.totalorder %s25, %s26
      %p37 = scmp.eq.s32.totalorder %s17, 0
      %p38 = por %p36, %p37
      %p39 = scmp.ne.s32.totalorder %s25, %s26
      %p40 = scmp.eq.s32.totalorder %s18, 1
      %p41 = por %p39, %p40
      %p43 = scmp.ne.s32.totalorder %s26, %s42
      %p44 = scmp.eq.s32.totalorder %s18, 0
      %p45 = por %p43, %p44
      %s47 = sadd.s32 %s46, 1
      %p50 = scmp.eq.s32.totalorder %s12, 1
      %p51 = scmp.ne.s32.totalorder %s46, %s48
      %p52 = scmp.eq.s32.totalorder %s12, 0
      %p53 = por %p51, %p52
      %p54 = scmp.ne.s32.totalorder %s46, %s48
      %p55 = scmp.eq.s32.totalorder %s17, 1
      %p56 = por %p54, %p55
      %p57 = scmp.ne.s32.totalorder %s48, %s49
      %p58 = scmp.eq.s32.totalorder %s17, 0
      %p59 = por %p57, %p58
      %p60 = scmp.ne.s32.totalorder %s48, %s49
      %p61 = scmp.eq.s32.totalorder %s18, 1
      %p62 = por %p60, %p61
      %p64 = scmp.ne.s32.totalorder %s49, %s63
      %p65 = scmp.eq.s32.totalorder %s18, 0
      %p66 = por %p64, %p65
      %s68 = sadd.s32 %s67, 1
      %p71 = scmp.eq.s32.totalorder %s12, 1
      %p72 = scmp.ne.s32.totalorder %s67, %s69
      %p73 = scmp.eq.s32.totalorder %s12, 0
      %p74 = por %p72, %p73
      %p75 = scmp.ne.s32.totalorder %s67, %s69
      %p76 = scmp.eq.s32.totalorder %s17, 1
      %p77 = por %p75, %p76
      %p78 = scmp.ne.s32.totalorder %s69, %s70
      %p79 = scmp.eq.s32.totalorder %s17, 0
      %p80 = por %p78, %p79
      %p81 = scmp.ne.s32.totalorder %s69, %s70
      %p82 = scmp.eq.s32.totalorder %s18, 1
      %p83 = por %p81, %p82
      %p85 = scmp.ne.s32.totalorder %s70, %s84
      %p86 = scmp.eq.s32.totalorder %s18, 0
      %p87 = por %p85, %p86
      %s88 = ssub.s32 %s12, %s19
      %p89 = scmp.eq.s32.totalorder %s88, 0
      %s91 = sadd.s32 %s90, 1
      %s92 = scalar_select %p89, %s90, %s91
      %p95 = pneg %p89
      %p96 = scmp.eq.s32.totalorder %s12, 1
      %p97 = por %p95, %p96
      %p98 = scmp.ne.s32.totalorder %s90, %s93
      %p99 = scmp.eq.s32.totalorder %s12, 0
      %p100 = por %p98, %p99
      %p101 = scmp.ne.s32.totalorder %s90, %s93
      %p102 = scmp.eq.s32.totalorder %s17, 1
      %p103 = por %p101, %p102
      %p104 = scmp.ne.s32.totalorder %s93, %s94
      %p105 = scmp.eq.s32.totalorder %s17, 0
      %p106 = por %p104, %p105
      %p107 = scmp.ne.s32.totalorder %s93, %s94
      %p108 = scmp.eq.s32.totalorder %s18, 1
      %p109 = por %p107, %p108
      %p111 = scmp.ne.s32.totalorder %s94, %s110
      %p112 = scmp.eq.s32.totalorder %s18, 0
      %p113 = por %p111, %p112
      %s114 = ssub.s32 %s12, %s19
      %p115 = scmp.eq.s32.totalorder %s114, 0
      %s117 = sadd.s32 %s116, 1
      %s118 = scalar_select %p115, %s116, %s117
      %p121 = pneg %p115
      %p122 = scmp.eq.s32.totalorder %s12, 1
      %p123 = por %p121, %p122
      %p124 = scmp.ne.s32.totalorder %s116, %s119
      %p125 = scmp.eq.s32.totalorder %s12, 0
      %p126 = por %p124, %p125
      %p127 = scmp.ne.s32.totalorder %s116, %s119
      %p128 = scmp.eq.s32.totalorder %s17, 1
      %p129 = por %p127, %p128
      %p130 = scmp.ne.s32.totalorder %s119, %s120
      %p131 = scmp.eq.s32.totalorder %s17, 0
      %p132 = por %p130, %p131
      %p133 = scmp.ne.s32.totalorder %s119, %s120
      %p134 = scmp.eq.s32.totalorder %s18, 1
      %p135 = por %p133, %p134
      %p137 = scmp.ne.s32.totalorder %s120, %s136
      %p138 = scmp.eq.s32.totalorder %s18, 0
      %p139 = por %p137, %p138
      %p140 = scmp.le.s32.totalorder 1, %s12
      %p141 = scmp.lt.s32.totalorder %s12, 3
      %p142 = pnand %p140, %p141
      %p143 = pneg %p142
      // Predicated region
      $region9: #{forward_train.4} parent=5 // pred_check
        _
      $region10: #{forward_train.4} parent=5 // pred_check_branch
        %145 = sbr.rel (%p142) target = $region12
      $region11: #{forward_train.4} parent=5 // pred_region
        %s146 = ssub.s32 %s12, 1
        // Predicated region
        $region13: #{forward_train.4} parent=11 // pred_check
          %p147 = pneg %p59
        $region14: #{forward_train.4} parent=11 // pred_check_branch
          %149 = sbr.rel (%p147) target = $region16
        $region15: #{forward_train.4} parent=11 // pred_region
          %s151 = ssub.s32 1024, 1024
          %152 = vsyncadd [#allocation3], %s151
          %s153 = sshll.u32 [#allocation2], 4
          %s154 = int_to_ptr.vmem [resolvable:$true] %s153
          %159 = dma.hbm_to_vmem [thread:$0]  %s1, 1024, %s154, [#allocation3], 64, 64, 4
        $region16: #{forward_train.4} parent=11 // pred_fallthru
          _
        // Predicated region
        $region17: #{forward_train.4} parent=11 // pred_check
          %p160 = pneg %p80
        $region18: #{forward_train.4} parent=11 // pred_check_branch
          %162 = sbr.rel (%p160) target = $region20
        $region19: #{forward_train.4} parent=11 // pred_region
          %s164 = ssub.s32 16, 16
          %165 = vsyncadd [#allocation5], %s164
          %s167 = sshll.u32 [#allocation4], 4
          %s168 = int_to_ptr.vmem [resolvable:$true] %s167
          %170 = dma.hbm_to_vmem [thread:$0]  %s2, 16, %s168, [#allocation5]
        $region20: #{forward_train.4} parent=11 // pred_fallthru
          _
      $region12: #{forward_train.4} parent=5 // pred_fallthru
        _
      %p171 = scmp.lt.s32.totalorder %s12, 2
      // Predicated region
      $region21: #{forward_train.4} parent=5 // pred_check
        %p172 = pneg %p171
      $region22: #{forward_train.4} parent=5 // pred_check_branch
        %174 = sbr.rel (%p172) target = $region24
      $region23: #{forward_train.4} parent=5 // pred_region
        // Predicated region
        $region25: #{forward_train.4} parent=23 // pred_check
          %p175 = pneg %p32
        $region26: #{forward_train.4} parent=23 // pred_check_branch
          %177 = sbr.rel (%p175) target = $region28
        $region27: #{forward_train.4} parent=23 // pred_region
          %p178 = scmp.lt.s32.totalorder %s12, 1
          %s179 = scalar_select %p178, %s12, 1
          %s180 = smul.addr %s179, 4
          %s181 = scalar_lea.vmem %s0, %s180
        $region28: #{forward_train.4} parent=23 // pred_fallthru
          _
        // Predicated region
        $region29: #{forward_train.4} parent=23 // pred_check
          %p182 = pneg %p100
        $region30: #{forward_train.4} parent=23 // pred_check_branch
          %184 = sbr.rel (%p182) target = $region32
        $region31: #{forward_train.4} parent=23 // pred_region
          %p185 = scmp.lt.s32.totalorder %s12, 1
          %s186 = scalar_select %p185, %s12, 1
          %s187 = scalar_lea.vmem %s3, %s186
        $region32: #{forward_train.4} parent=23 // pred_fallthru
          _
      $region24: #{forward_train.4} parent=5 // pred_fallthru
        _
      %p188 = scmp.le.s32.totalorder 1, %s12
      %p189 = scmp.lt.s32.totalorder %s12, 3
      %p190 = pnand %p188, %p189
      %p191 = pneg %p190
      // Predicated region
      $region33: #{forward_train.4} parent=5 // pred_check
        _
      $region34: #{forward_train.4} parent=5 // pred_check_branch
        %193 = sbr.rel (%p190) target = $region36
      $region35: #{forward_train.4} parent=5 // pred_region
        %s194 = ssub.s32 %s12, 1
        // Predicated region
        $region37: #{forward_train.4} parent=35 // pred_check
          %p195 = pneg %p59
        $region38: #{forward_train.4} parent=35 // pred_check_branch
          %197 = sbr.rel (%p195) target = $region40
        $region39: #{forward_train.4} parent=35 // pred_region
          %198 = dma.done [#allocation3], 1024
        $region40: #{forward_train.4} parent=35 // pred_fallthru
          _
        // Predicated region
        $region41: #{forward_train.4} parent=35 // pred_check
          %p199 = pneg %p80
        $region42: #{forward_train.4} parent=35 // pred_check_branch
          %201 = sbr.rel (%p199) target = $region44
        $region43: #{forward_train.4} parent=35 // pred_region
          %202 = dma.done [#allocation5], 16
        $region44: #{forward_train.4} parent=35 // pred_fallthru
          _
        %p203 = scmp.lt.s32.totalorder %s17, 1
        %s204 = scalar_select %p203, %s17, 1
        %s205 = smul.addr %s204, 4
        %s206 = scalar_lea.vmem %s0, %s205
        %p207 = pneg %p38
        %p208 = pneg %p35
        %p209 = pneg %p59
        %p210 = pneg %p56
        %p211 = pneg %p80
        %p212 = pneg %p77
        %p213 = scmp.lt.s32.totalorder %s17, 1
        %s214 = scalar_select %p213, %s17, 1
        %s215 = scalar_lea.vmem %s3, %s214
        %p216 = pneg %p106
        %p217 = pneg %p103
        %p218 = pneg %p132
        %p219 = pneg %p129
        %p220 = scmp.lt.s32.totalorder %s17, 1
        %s221 = scalar_select %p220, %s17, 1
        %s222 = smul.addr %s221, 4
        %s223 = scalar_lea.vmem %s4, %s222
        %p224 = scmp.lt.s32.totalorder %s17, 1
        %s225 = scalar_select %p224, %s17, 1
        %s226 = smul.addr %s225, 4
        %s227 = scalar_lea.vmem %s0, %s226
        %p228 = scmp.lt.s32.totalorder %s17, 1
        %s229 = scalar_select %p228, %s17, 1
        %s230 = scalar_lea.vmem %s3, %s229
        %p231 = scmp.lt.s32.totalorder %s17, 1
        %s232 = scalar_select %p231, %s17, 1
        %s233 = smul.addr %s232, 4
        %s234 = scalar_lea.vmem %s4, %s233
        %v236 = vld [vmem:[%s227] sm:$0xf]
        %v237 = vpack.c.bf16 %v236, %v236
        %v238 = vld [vmem:[#allocation2] sm:$0xf]
        %v239 = vld [vmem:[#allocation2 + $0x4] sm:$0xf]
        %v240 = vld [vmem:[#allocation2 + $0x8] sm:$0xf]
        %v241 = vld [vmem:[#allocation2 + $0xc] sm:$0xf]
        %v242 = vld [vmem:[#allocation2 + $0x10] sm:$0xf]
        %v243 = vld [vmem:[#allocation2 + $0x14] sm:$0xf]
        %v244 = vld [vmem:[#allocation2 + $0x18] sm:$0xf]
        %v245 = vld [vmem:[#allocation2 + $0x1c] sm:$0xf]
        %v246 = vld [vmem:[#allocation2 + $0x20] sm:$0xf]
        %v247 = vld [vmem:[#allocation2 + $0x24] sm:$0xf]
        %v248 = vld [vmem:[#allocation2 + $0x28] sm:$0xf]
        %v249 = vld [vmem:[#allocation2 + $0x2c] sm:$0xf]
        %v250 = vld [vmem:[#allocation2 + $0x30] sm:$0xf]
        %v251 = vld [vmem:[#allocation2 + $0x34] sm:$0xf]
        %v252 = vld [vmem:[#allocation2 + $0x38] sm:$0xf]
        %v253 = vld [vmem:[#allocation2 + $0x3c] sm:$0xf]
        %v254 = vld [vmem:[#allocation4] sm:$0x1]
        %v256 = vlaneseq
        %v257 = vshrl.u32 %v256, 7
        %v258 = vsub.s32 0, %v257
        %v259 = vrot.slane %v254, %v258
        %v277 = vunpack.c.l.b16 %v238
        %v278 = vunpack.c.l.b16 %v239
        %v279 = vunpack.c.l.b16 %v240
        %v280 = vunpack.c.l.b16 %v241
        %v281 = vunpack.c.l.b16 %v242
        %v282 = vunpack.c.l.b16 %v243
        %v283 = vunpack.c.l.b16 %v244
        %v284 = vunpack.c.l.b16 %v245
        %v285 = vunpack.c.l.b16 %v246
        %v286 = vunpack.c.l.b16 %v247
        %v287 = vunpack.c.l.b16 %v248
        %v288 = vunpack.c.l.b16 %v249
        %v289 = vunpack.c.l.b16 %v250
        %v290 = vunpack.c.l.b16 %v251
        %v291 = vunpack.c.l.b16 %v252
        %v292 = vunpack.c.l.b16 %v253
        %v293 = vpack.c.b16 %v278, %v277
        %v294 = vpack.c.b16 %v280, %v279
        %v295 = vpack.c.b16 %v282, %v281
        %v296 = vpack.c.b16 %v284, %v283
        %v297 = vpack.c.b16 %v286, %v285
        %v298 = vpack.c.b16 %v288, %v287
        %v299 = vpack.c.b16 %v290, %v289
        %v300 = vpack.c.b16 %v292, %v291
        %309 = vmatprep.subr.bf16.mxu0 0
        %310 = vmatpush1.bf16.msra.mxu0 %v293
        %311 = vmatprep.subr.bf16.mxu0 0
        %312 = vmatpush1.bf16.msra.mxu0 %v294
        %313 = vmatprep.subr.bf16.mxu0 0
        %314 = vmatpush1.bf16.msra.mxu0 %v295
        %315 = vmatprep.subr.bf16.mxu0 0
        %316 = vmatpush1.bf16.msra.mxu0 %v296
        %317 = vmatprep.subr.bf16.mxu0 0
        %318 = vmatpush1.bf16.msra.mxu0 %v297
        %319 = vmatprep.subr.bf16.mxu0 0
        %320 = vmatpush1.bf16.msra.mxu0 %v298
        %321 = vmatprep.subr.bf16.mxu0 0
        %322 = vmatpush1.bf16.msra.mxu0 %v299
        %323 = vmatprep.subr.bf16.mxu0 0
        %324 = vmatpush1.bf16.msra.mxu0 %v300
        %325 = vmatprep.subr.bf16.mxu0 0
        %326 = vmatpush1.bf16.msra.mxu0 0
        %327 = vmatprep.subr.bf16.mxu0 0
        %328 = vmatpush1.bf16.msra.mxu0 0
        %329 = vmatprep.subr.bf16.mxu0 0
        %330 = vmatpush1.bf16.msra.mxu0 0
        %331 = vmatprep.subr.bf16.mxu0 0
        %332 = vmatpush1.bf16.msra.mxu0 0
        %333 = vmatprep.subr.bf16.mxu0 0
        %334 = vmatpush1.bf16.msra.mxu0 0
        %335 = vmatprep.subr.bf16.mxu0 0
        %336 = vmatpush1.bf16.msra.mxu0 0
        %337 = vmatprep.subr.bf16.mxu0 0
        %338 = vmatpush1.bf16.msra.mxu0 0
        %339 = vmatprep.subr.bf16.mxu0 0
        %340 = vmatpush1.bf16.msra.mxu0 0
        %341 = vmatprep.mubr.bf16.mxu0 0
        %342 = vmatmul.mubr.bf16.gmra.mrb[0].mxu0 %v237
        %v343 = vpop.f32.mrb[0].mxu0
        %v344 = vadd.f32 %v259, %v343
        %v345 = vpop.f32.mrb[0].mxu0
        %v346 = vpop.f32.mrb[0].mxu0
        %v347 = vpop.f32.mrb[0].mxu0
        %348 = vdwg.mxu0
        %v349 = vld [vmem:[%s230] sm:$0x1]
        %v351 = vlaneseq
        %v352 = vshrl.u32 %v351, 7
        %v353 = vsub.s32 0, %v352
        %v354 = vrot.slane %v349, %v353
        %v356 = vadd.f32 %v344, %v354
        %357 = vst [vmem:[%s234] sm:$0xf] %v356
        %p358 = scmp.lt.s32.totalorder %s17, 1
        %s359 = scalar_select %p358, %s17, 1
        %s360 = smul.addr %s359, 4
        %s361 = scalar_lea.vmem %s4, %s360
        // Predicated region
        $region45: #{forward_train.4} parent=35 // pred_check
          %p362 = pneg %p129
        $region46: #{forward_train.4} parent=35 // pred_check_branch
          %364 = sbr.rel (%p362) target = $region48
        $region47: #{forward_train.4} parent=35 // pred_region
          _
        $region48: #{forward_train.4} parent=35 // pred_fallthru
          _
      $region36: #{forward_train.4} parent=5 // pred_fallthru
        _
      %p365 = scmp.le.s32.totalorder 2, %s12
      // Predicated region
      $region49: #{forward_train.4} parent=5 // pred_check
        %p366 = pneg %p365
      $region50: #{forward_train.4} parent=5 // pred_check_branch
        %368 = sbr.rel (%p366) target = $region52
      $region51: #{forward_train.4} parent=5 // pred_region
        %s369 = ssub.s32 %s12, 2
        // Predicated region
        $region53: #{forward_train.4} parent=51 // pred_check
          %p370 = pneg %p135
        $region54: #{forward_train.4} parent=51 // pred_check_branch
          %372 = sbr.rel (%p370) target = $region56
        $region55: #{forward_train.4} parent=51 // pred_region
          %p373 = scmp.lt.s32.totalorder %s18, 1
          %s374 = scalar_select %p373, %s18, 1
          %s375 = smul.addr %s374, 4
          %s376 = scalar_lea.vmem %s4, %s375
        $region56: #{forward_train.4} parent=51 // pred_fallthru
          _
      $region52: #{forward_train.4} parent=5 // pred_fallthru
        _
    $region6: #{forward_train.4} parent=1 // loop_footer
      %s16 = sadd.s32 1, %s12
    $region7: #{forward_train.4} parent=1 // loop_footer_branch
      %11 = sbr.rel target = $region3
    $region8: #{forward_train.4} parent=1 // loop_exit
      _
    %377 = vsyncpa [#allocation3], 1
    %s378 = scalar_lea.sflag [#allocation3], 1
    %379 = vsyncpa %s378, 1
    %380 = vsyncpa [#allocation5], 1

// kernel: forward_train.5
$region0: #{forward_train.5}
  #allocation0 [shape = 'u32[]', space=smem, size = 0x4, offset = 0x4, fixed_abs, tag = 'smem constant byte address 0x4 - core index']
  #allocation1 [shape = 'u32[144,128]{1,0:T(1,128)}', space=vmem, size = 0x12000, scoped, tag = 'internal scratch']
  %s0 = inlined_call_operand.vmem [shape: f32[2,8,128], index: 0, kind: input, shape index: {}]
  %s1 = inlined_call_operand.vmem [shape: f32[2,4,128], index: 1, kind: input, shape index: {}]
  %s2 = inlined_call_operand.hbm [shape: bf16[128,384], index: 2, kind: input, shape index: {}]
  %s3 = inlined_call_operand.hbm [shape: f32[1,384], index: 3, kind: input, shape index: {}]
  %s4 = inlined_call_operand.hbm [shape: f32[32,128], index: 4, kind: input, shape index: {}]
  %s5 = inlined_call_operand.hbm [shape: f32[1,128], index: 5, kind: input, shape index: {}]
  %s6 = inlined_call_operand.hbm [shape: bf16[128,128], index: 6, kind: input, shape index: {}]
  %s7 = inlined_call_operand.hbm [shape: f32[1,128], index: 7, kind: input, shape index: {}]
  %s8 = inlined_call_operand.hbm [shape: bf16[128,256], index: 8, kind: input, shape index: {}]
  %s9 = inlined_call_operand.hbm [shape: f32[1,256], index: 9, kind: input, shape index: {}]
  %s10 = inlined_call_operand.hbm [shape: f32[32,128], index: 10, kind: input, shape index: {}]
  %s11 = inlined_call_operand.hbm [shape: f32[1,128], index: 11, kind: input, shape index: {}]
  %s12 = inlined_call_operand.hbm [shape: bf16[128,2048], index: 12, kind: input, shape index: {}]
  %s13 = inlined_call_operand.hbm [shape: f32[1,2048], index: 13, kind: input, shape index: {}]
  %s14 = inlined_call_operand.hbm [shape: bf16[2048,128], index: 14, kind: input, shape index: {}]
  %s15 = inlined_call_operand.hbm [shape: f32[1,128], index: 15, kind: input, shape index: {}]
  %s16 = inlined_call_operand.hbm [shape: f32[1,128], index: 16, kind: input, shape index: {}]
  %s17 = inlined_call_operand.hbm [shape: f32[1,128], index: 17, kind: input, shape index: {}]
  %s18 = inlined_call_operand.hbm [shape: f32[1,128], index: 18, kind: input, shape index: {}]
  %s19 = inlined_call_operand.hbm [shape: f32[1,128], index: 19, kind: input, shape index: {}]
  %s20 = inlined_call_operand.hbm [shape: f32[1,128], index: 20, kind: input, shape index: {}]
  %s21 = inlined_call_operand.hbm [shape: f32[1,128], index: 21, kind: input, shape index: {}]
  %s22 = inlined_call_operand.vmem [shape: f32[2,8,128], index: 22, kind: output, shape index: {}]
  %s23 = sld [smem:[#allocation0]]
  $region201: #{forward_train.5} parent=0
    _
  %s25 = ssub.s32 1, %s23
  %s26 = scalar_select 0, %s25, %s23
  $region1: #{forward_train.5} parent=0
    #allocation2 [shape = 'u8[98304]{0}', space=vmem, size = 0x18000, scoped, tag = 'input window, operand 2, single buffered']
    #allocation3 [shape = 's32[2]{0}', space=sflag, size = 0x8, scoped, tag = 'scoped memory for forward_train.5']
    #allocation4 [shape = 'u8[1536]{0}', space=vmem, size = 0x800, scoped, tag = 'input window, operand 3, single buffered']
    #allocation5 [shape = 's32[1]{0}', space=sflag, size = 0x4, scoped, tag = 'scoped memory for forward_train.5']
    #allocation6 [shape = 'u8[16384]{0}', space=vmem, size = 0x4000, scoped, tag = 'input window, operand 4, single buffered']
    #allocation7 [shape = 'u8[512]{0}', space=vmem, size = 0x400, scoped, tag = 'input window, operand 5, single buffered']
    #allocation8 [shape = 's32[1]{0}', space=sflag, size = 0x4, scoped, tag = 'scoped memory for forward_train.5']
    #allocation9 [shape = 'u8[32768]{0}', space=vmem, size = 0x8000, scoped, tag = 'input window, operand 6, single buffered']
    #allocation10 [shape = 'u8[512]{0}', space=vmem, size = 0x400, scoped, tag = 'input window, operand 7, single buffered']
    #allocation11 [shape = 's32[1]{0}', space=sflag, size = 0x4, scoped, tag = 'scoped memory for forward_train.5']
    #allocation12 [shape = 'u8[65536]{0}', space=vmem, size = 0x10000, scoped, tag = 'input window, operand 8, single buffered']
    #allocation13 [shape = 'u8[1024]{0}', space=vmem, size = 0x400, scoped, tag = 'input window, operand 9, single buffered']
    #allocation14 [shape = 's32[1]{0}', space=sflag, size = 0x4, scoped, tag = 'scoped memory for forward_train.5']
    #allocation15 [shape = 'u8[16384]{0}', space=vmem, size = 0x4000, scoped, tag = 'input window, operand 10, single buffered']
    #allocation16 [shape = 'u8[512]{0}', space=vmem, size = 0x400, scoped, tag = 'input window, operand 11, single buffered']
    #allocation17 [shape = 's32[1]{0}', space=sflag, size = 0x4, scoped, tag = 'scoped memory for forward_train.5']
    #allocation18 [shape = 'u8[524288]{0}', space=vmem, size = 0x80000, scoped, tag = 'input window, operand 12, single buffered']
    #allocation19 [shape = 'u8[8192]{0}', space=vmem, size = 0x2000, scoped, tag = 'input window, operand 13, single buffered']
    #allocation20 [shape = 's32[1]{0}', space=sflag, size = 0x4, scoped, tag = 'scoped memory for forward_train.5']
    #allocation21 [shape = 'u8[524288]{0}', space=vmem, size = 0x80000, scoped, tag = 'input window, operand 14, single buffered']
    #allocation22 [shape = 'u8[512]{0}', space=vmem, size = 0x400, scoped, tag = 'input window, operand 15, single buffered']
    #allocation23 [shape = 's32[1]{0}', space=sflag, size = 0x4, scoped, tag = 'scoped memory for forward_train.5']
    #allocation24 [shape = 'u8[512]{0}', space=vmem, size = 0x400, scoped, tag = 'input window, operand 16, single buffered']
    #allocation25 [shape = 'u8[512]{0}', space=vmem, size = 0x400, scoped, tag = 'input window, operand 17, single buffered']
    #allocation26 [shape = 's32[1]{0}', space=sflag, size = 0x4, scoped, tag = 'scoped memory for forward_train.5']
    #allocation27 [shape = 'u8[512]{0}', space=vmem, size = 0x400, scoped, tag = 'input window, operand 18, single buffered']
    #allocation28 [shape = 'u8[512]{0}', space=vmem, size = 0x400, scoped, tag = 'input window, operand 19, single buffered']
    #allocation29 [shape = 's32[1]{0}', space=sflag, size = 0x4, scoped, tag = 'scoped memory for forward_train.5']
    #allocation30 [shape = 'u8[512]{0}', space=vmem, size = 0x400, scoped, tag = 'input window, operand 20, single buffered']
    #allocation31 [shape = 'u8[512]{0}', space=vmem, size = 0x400, scoped, tag = 'input window, operand 21, single buffered']
    #allocation32 [shape = 's32[1]{0}', space=sflag, size = 0x4, scoped, tag = 'scoped memory for forward_train.5']
    %27 = vsyncpa [#allocation3], 0
    %28 = vsyncpa [#allocation5], 0
    %29 = vsyncpa [#allocation8], 0
    %30 = vsyncpa [#allocation11], 0
    %31 = vsyncpa [#allocation14], 0
    %32 = vsyncpa [#allocation17], 0
    %33 = vsyncpa [#allocation20], 0
    %34 = vsyncpa [#allocation23], 0
    %35 = vsyncpa [#allocation26], 0
    %36 = vsyncpa [#allocation29], 0
    %37 = vsyncpa [#allocation32], 0
    loop: start=0, step=1, limit=4
    $region2: #{forward_train.5} parent=1 // loop_pre_header
      _
    $region3: #{forward_train.5} parent=1 // loop_header
      %s39 = sphi 0, %s43
      %p40 = scmp.ge.s32.totalorder %s39, 4
      %s49 = sphi 0, %s51
      %s52 = sphi 0, %s49
      %s53 = sphi 0, %s52
      %s69 = sphi 0, %s53
      %s75 = sphi 0, %s77
      %s78 = sphi 0, %s75
      %s79 = sphi 0, %s78
      %s95 = sphi 0, %s79
      %s99 = sphi 0, %s99
      %s101 = sphi 0, %s99
      %s102 = sphi 0, %s101
      %s116 = sphi 0, %s102
      %s120 = sphi 0, %s120
      %s122 = sphi 0, %s120
      %s123 = sphi 0, %s122
      %s137 = sphi 0, %s123
      %s141 = sphi 0, %s141
      %s143 = sphi 0, %s141
      %s144 = sphi 0, %s143
      %s158 = sphi 0, %s144
      %s162 = sphi 0, %s162
      %s164 = sphi 0, %s162
      %s165 = sphi 0, %s164
      %s179 = sphi 0, %s165
      %s183 = sphi 0, %s183
      %s185 = sphi 0, %s183
      %s186 = sphi 0, %s185
      %s200 = sphi 0, %s186
      %s204 = sphi 0, %s204
      %s206 = sphi 0, %s204
      %s207 = sphi 0, %s206
      %s221 = sphi 0, %s207
      %s225 = sphi 0, %s225
      %s227 = sphi 0, %s225
      %s228 = sphi 0, %s227
      %s242 = sphi 0, %s228
      %s246 = sphi 0, %s246
      %s248 = sphi 0, %s246
      %s249 = sphi 0, %s248
      %s263 = sphi 0, %s249
      %s267 = sphi 0, %s267
      %s269 = sphi 0, %s267
      %s270 = sphi 0, %s269
      %s284 = sphi 0, %s270
      %s288 = sphi 0, %s288
      %s290 = sphi 0, %s288
      %s291 = sphi 0, %s290
      %s305 = sphi 0, %s291
      %s309 = sphi 0, %s309
      %s311 = sphi 0, %s309
      %s312 = sphi 0, %s311
      %s326 = sphi 0, %s312
      %s330 = sphi 0, %s330
      %s332 = sphi 0, %s330
      %s333 = sphi 0, %s332
      %s347 = sphi 0, %s333
      %s351 = sphi 0, %s351
      %s353 = sphi 0, %s351
      %s354 = sphi 0, %s353
      %s368 = sphi 0, %s354
      %s372 = sphi 0, %s372
      %s374 = sphi 0, %s372
      %s375 = sphi 0, %s374
      %s389 = sphi 0, %s375
      %s393 = sphi 0, %s393
      %s395 = sphi 0, %s393
      %s396 = sphi 0, %s395
      %s410 = sphi 0, %s396
      %s414 = sphi 0, %s414
      %s416 = sphi 0, %s414
      %s417 = sphi 0, %s416
      %s431 = sphi 0, %s417
      %s435 = sphi 0, %s435
      %s437 = sphi 0, %s435
      %s438 = sphi 0, %s437
      %s452 = sphi 0, %s438
      %s456 = sphi 0, %s456
      %s458 = sphi 0, %s456
      %s459 = sphi 0, %s458
      %s473 = sphi 0, %s459
      %s477 = sphi 0, %s477
      %s479 = sphi 0, %s477
      %s480 = sphi 0, %s479
      %s494 = sphi 0, %s480
      %s498 = sphi 0, %s498
      %s500 = sphi 0, %s498
      %s501 = sphi 0, %s500
      %s515 = sphi 0, %s501
      %s521 = sphi 0, %s523
      %s524 = sphi 0, %s521
      %s525 = sphi 0, %s524
      %s541 = sphi 0, %s525
    $region4: #{forward_train.5} parent=1 // loop_header_branch
      %42 = sbr.rel (%p40) target = $region8
    $region5: #{forward_train.5} parent=1 // loop_body
      %s44 = ssub.s32 %s39, 1
      %s45 = ssub.s32 %s39, 2
      %s46 = sadd.s32 %s39, 1
      %s47 = ssub.s32 %s39, %s46
      %p48 = scmp.eq.s32.totalorder %s47, 0
      %s50 = sadd.s32 %s49, 1
      %s51 = scalar_select %p48, %s49, %s50
      %p54 = pneg %p48
      %p55 = scmp.eq.s32.totalorder %s39, 1
      %p56 = por %p54, %p55
      %p57 = scmp.ne.s32.totalorder %s49, %s52
      %p58 = scmp.eq.s32.totalorder %s39, 0
      %p59 = por %p57, %p58
      %p60 = scmp.ne.s32.totalorder %s49, %s52
      %p61 = scmp.eq.s32.totalorder %s44, 1
      %p62 = por %p60, %p61
      %p63 = scmp.ne.s32.totalorder %s52, %s53
      %p64 = scmp.eq.s32.totalorder %s44, 0
      %p65 = por %p63, %p64
      %p66 = scmp.ne.s32.totalorder %s52, %s53
      %p67 = scmp.eq.s32.totalorder %s45, 1
      %p68 = por %p66, %p67
      %p70 = scmp.ne.s32.totalorder %s53, %s69
      %p71 = scmp.eq.s32.totalorder %s45, 0
      %p72 = por %p70, %p71
      %s73 = ssub.s32 %s39, %s46
      %p74 = scmp.eq.s32.totalorder %s73, 0
      %s76 = sadd.s32 %s75, 1
      %s77 = scalar_select %p74, %s75, %s76
      %p80 = pneg %p74
      %p81 = scmp.eq.s32.totalorder %s39, 1
      %p82 = por %p80, %p81
      %p83 = scmp.ne.s32.totalorder %s75, %s78
      %p84 = scmp.eq.s32.totalorder %s39, 0
      %p85 = por %p83, %p84
      %p86 = scmp.ne.s32.totalorder %s75, %s78
      %p87 = scmp.eq.s32.totalorder %s44, 1
      %p88 = por %p86, %p87
      %p89 = scmp.ne.s32.totalorder %s78, %s79
      %p90 = scmp.eq.s32.totalorder %s44, 0
      %p91 = por %p89, %p90
      %p92 = scmp.ne.s32.totalorder %s78, %s79
      %p93 = scmp.eq.s32.totalorder %s45, 1
      %p94 = por %p92, %p93
      %p96 = scmp.ne.s32.totalorder %s79, %s95
      %p97 = scmp.eq.s32.totalorder %s45, 0
      %p98 = por %p96, %p97
      %s100 = sadd.s32 %s99, 1
      %p103 = scmp.eq.s32.totalorder %s39, 1
      %p104 = scmp.ne.s32.totalorder %s99, %s101
      %p105 = scmp.eq.s32.totalorder %s39, 0
      %p106 = por %p104, %p105
      %p107 = scmp.ne.s32.totalorder %s99, %s101
      %p108 = scmp.eq.s32.totalorder %s44, 1
      %p109 = por %p107, %p108
      %p110 = scmp.ne.s32.totalorder %s101, %s102
      %p111 = scmp.eq.s32.totalorder %s44, 0
      %p112 = por %p110, %p111
      %p113 = scmp.ne.s32.totalorder %s101, %s102
      %p114 = scmp.eq.s32.totalorder %s45, 1
      %p115 = por %p113, %p114
      %p117 = scmp.ne.s32.totalorder %s102, %s116
      %p118 = scmp.eq.s32.totalorder %s45, 0
      %p119 = por %p117, %p118
      %s121 = sadd.s32 %s120, 1
      %p124 = scmp.eq.s32.totalorder %s39, 1
      %p125 = scmp.ne.s32.totalorder %s120, %s122
      %p126 = scmp.eq.s32.totalorder %s39, 0
      %p127 = por %p125, %p126
      %p128 = scmp.ne.s32.totalorder %s120, %s122
      %p129 = scmp.eq.s32.totalorder %s44, 1
      %p130 = por %p128, %p129
      %p131 = scmp.ne.s32.totalorder %s122, %s123
      %p132 = scmp.eq.s32.totalorder %s44, 0
      %p133 = por %p131, %p132
      %p134 = scmp.ne.s32.totalorder %s122, %s123
      %p135 = scmp.eq.s32.totalorder %s45, 1
      %p136 = por %p134, %p135
      %p138 = scmp.ne.s32.totalorder %s123, %s137
      %p139 = scmp.eq.s32.totalorder %s45, 0
      %p140 = por %p138, %p139
      %s142 = sadd.s32 %s141, 1
      %p145 = scmp.eq.s32.totalorder %s39, 1
      %p146 = scmp.ne.s32.totalorder %s141, %s143
      %p147 = scmp.eq.s32.totalorder %s39, 0
      %p148 = por %p146, %p147
      %p149 = scmp.ne.s32.totalorder %s141, %s143
      %p150 = scmp.eq.s32.totalorder %s44, 1
      %p151 = por %p149, %p150
      %p152 = scmp.ne.s32.totalorder %s143, %s144
      %p153 = scmp.eq.s32.totalorder %s44, 0
      %p154 = por %p152, %p153
      %p155 = scmp.ne.s32.totalorder %s143, %s144
      %p156 = scmp.eq.s32.totalorder %s45, 1
      %p157 = por %p155, %p156
      %p159 = scmp.ne.s32.totalorder %s144, %s158
      %p160 = scmp.eq.s32.totalorder %s45, 0
      %p161 = por %p159, %p160
      %s163 = sadd.s32 %s162, 1
      %p166 = scmp.eq.s32.totalorder %s39, 1
      %p167 = scmp.ne.s32.totalorder %s162, %s164
      %p168 = scmp.eq.s32.totalorder %s39, 0
      %p169 = por %p167, %p168
      %p170 = scmp.ne.s32.totalorder %s162, %s164
      %p171 = scmp.eq.s32.totalorder %s44, 1
      %p172 = por %p170, %p171
      %p173 = scmp.ne.s32.totalorder %s164, %s165
      %p174 = scmp.eq.s32.totalorder %s44, 0
      %p175 = por %p173, %p174
      %p176 = scmp.ne.s32.totalorder %s164, %s165
      %p177 = scmp.eq.s32.totalorder %s45, 1
      %p178 = por %p176, %p177
      %p180 = scmp.ne.s32.totalorder %s165, %s179
      %p181 = scmp.eq.s32.totalorder %s45, 0
      %p182 = por %p180, %p181
      %s184 = sadd.s32 %s183, 1
      %p187 = scmp.eq.s32.totalorder %s39, 1
      %p188 = scmp.ne.s32.totalorder %s183, %s185
      %p189 = scmp.eq.s32.totalorder %s39, 0
      %p190 = por %p188, %p189
      %p191 = scmp.ne.s32.totalorder %s183, %s185
      %p192 = scmp.eq.s32.totalorder %s44, 1
      %p193 = por %p191, %p192
      %p194 = scmp.ne.s32.totalorder %s185, %s186
      %p195 = scmp.eq.s32.totalorder %s44, 0
      %p196 = por %p194, %p195
      %p197 = scmp.ne.s32.totalorder %s185, %s186
      %p198 = scmp.eq.s32.totalorder %s45, 1
      %p199 = por %p197, %p198
      %p201 = scmp.ne.s32.totalorder %s186, %s200
      %p202 = scmp.eq.s32.totalorder %s45, 0
      %p203 = por %p201, %p202
      %s205 = sadd.s32 %s204, 1
      %p208 = scmp.eq.s32.totalorder %s39, 1
      %p209 = scmp.ne.s32.totalorder %s204, %s206
      %p210 = scmp.eq.s32.totalorder %s39, 0
      %p211 = por %p209, %p210
      %p212 = scmp.ne.s32.totalorder %s204, %s206
      %p213 = scmp.eq.s32.totalorder %s44, 1
      %p214 = por %p212, %p213
      %p215 = scmp.ne.s32.totalorder %s206, %s207
      %p216 = scmp.eq.s32.totalorder %s44, 0
      %p217 = por %p215, %p216
      %p218 = scmp.ne.s32.totalorder %s206, %s207
      %p219 = scmp.eq.s32.totalorder %s45, 1
      %p220 = por %p218, %p219
      %p222 = scmp.ne.s32.totalorder %s207, %s221
      %p223 = scmp.eq.s32.totalorder %s45, 0
      %p224 = por %p222, %p223
      %s226 = sadd.s32 %s225, 1
      %p229 = scmp.eq.s32.totalorder %s39, 1
      %p230 = scmp.ne.s32.totalorder %s225, %s227
      %p231 = scmp.eq.s32.totalorder %s39, 0
      %p232 = por %p230, %p231
      %p233 = scmp.ne.s32.totalorder %s225, %s227
      %p234 = scmp.eq.s32.totalorder %s44, 1
      %p235 = por %p233, %p234
      %p236 = scmp.ne.s32.totalorder %s227, %s228
      %p237 = scmp.eq.s32.totalorder %s44, 0
      %p238 = por %p236, %p237
      %p239 = scmp.ne.s32.totalorder %s227, %s228
      %p240 = scmp.eq.s32.totalorder %s45, 1
      %p241 = por %p239, %p240
      %p243 = scmp.ne.s32.totalorder %s228, %s242
      %p244 = scmp.eq.s32.totalorder %s45, 0
      %p245 = por %p243, %p244
      %s247 = sadd.s32 %s246, 1
      %p250 = scmp.eq.s32.totalorder %s39, 1
      %p251 = scmp.ne.s32.totalorder %s246, %s248
      %p252 = scmp.eq.s32.totalorder %s39, 0
      %p253 = por %p251, %p252
      %p254 = scmp.ne.s32.totalorder %s246, %s248
      %p255 = scmp.eq.s32.totalorder %s44, 1
      %p256 = por %p254, %p255
      %p257 = scmp.ne.s32.totalorder %s248, %s249
      %p258 = scmp.eq.s32.totalorder %s44, 0
      %p259 = por %p257, %p258
      %p260 = scmp.ne.s32.totalorder %s248, %s249
      %p261 = scmp.eq.s32.totalorder %s45, 1
      %p262 = por %p260, %p261
      %p264 = scmp.ne.s32.totalorder %s249, %s263
      %p265 = scmp.eq.s32.totalorder %s45, 0
      %p266 = por %p264, %p265
      %s268 = sadd.s32 %s267, 1
      %p271 = scmp.eq.s32.totalorder %s39, 1
      %p272 = scmp.ne.s32.totalorder %s267, %s269
      %p273 = scmp.eq.s32.totalorder %s39, 0
      %p274 = por %p272, %p273
      %p275 = scmp.ne.s32.totalorder %s267, %s269
      %p276 = scmp.eq.s32.totalorder %s44, 1
      %p277 = por %p275, %p276
      %p278 = scmp.ne.s32.totalorder %s269, %s270
      %p279 = scmp.eq.s32.totalorder %s44, 0
      %p280 = por %p278, %p279
      %p281 = scmp.ne.s32.totalorder %s269, %s270
      %p282 = scmp.eq.s32.totalorder %s45, 1
      %p283 = por %p281, %p282
      %p285 = scmp.ne.s32.totalorder %s270, %s284
      %p286 = scmp.eq.s32.totalorder %s45, 0
      %p287 = por %p285, %p286
      %s289 = sadd.s32 %s288, 1
      %p292 = scmp.eq.s32.totalorder %s39, 1
      %p293 = scmp.ne.s32.totalorder %s288, %s290
      %p294 = scmp.eq.s32.totalorder %s39, 0
      %p295 = por %p293, %p294
      %p296 = scmp.ne.s32.totalorder %s288, %s290
      %p297 = scmp.eq.s32.totalorder %s44, 1
      %p298 = por %p296, %p297
      %p299 = scmp.ne.s32.totalorder %s290, %s291
      %p300 = scmp.eq.s32.totalorder %s44, 0
      %p301 = por %p299, %p300
      %p302 = scmp.ne.s32.totalorder %s290, %s291
      %p303 = scmp.eq.s32.totalorder %s45, 1
      %p304 = por %p302, %p303
      %p306 = scmp.ne.s32.totalorder %s291, %s305
      %p307 = scmp.eq.s32.totalorder %s45, 0
      %p308 = por %p306, %p307
      %s310 = sadd.s32 %s309, 1
      %p313 = scmp.eq.s32.totalorder %s39, 1
      %p314 = scmp.ne.s32.totalorder %s309, %s311
      %p315 = scmp.eq.s32.totalorder %s39, 0
      %p316 = por %p314, %p315
      %p317 = scmp.ne.s32.totalorder %s309, %s311
      %p318 = scmp.eq.s32.totalorder %s44, 1
      %p319 = por %p317, %p318
      %p320 = scmp.ne.s32.totalorder %s311, %s312
      %p321 = scmp.eq.s32.totalorder %s44, 0
      %p322 = por %p320, %p321
      %p323 = scmp.ne.s32.totalorder %s311, %s312
      %p324 = scmp.eq.s32.totalorder %s45, 1
      %p325 = por %p323, %p324
      %p327 = scmp.ne.s32.totalorder %s312, %s326
      %p328 = scmp.eq.s32.totalorder %s45, 0
      %p329 = por %p327, %p328
      %s331 = sadd.s32 %s330, 1
      %p334 = scmp.eq.s32.totalorder %s39, 1
      %p335 = scmp.ne.s32.totalorder %s330, %s332
      %p336 = scmp.eq.s32.totalorder %s39, 0
      %p337 = por %p335, %p336
      %p338 = scmp.ne.s32.totalorder %s330, %s332
      %p339 = scmp.eq.s32.totalorder %s44, 1
      %p340 = por %p338, %p339
      %p341 = scmp.ne.s32.totalorder %s332, %s333
      %p342 = scmp.eq.s32.totalorder %s44, 0
      %p343 = por %p341, %p342
      %p344 = scmp.ne.s32.totalorder %s332, %s333
      %p345 = scmp.eq.s32.totalorder %s45, 1
      %p346 = por %p344, %p345
      %p348 = scmp.ne.s32.totalorder %s333, %s347
      %p349 = scmp.eq.s32.totalorder %s45, 0
      %p350 = por %p348, %p349
      %s352 = sadd.s32 %s351, 1
      %p355 = scmp.eq.s32.totalorder %s39, 1
      %p356 = scmp.ne.s32.totalorder %s351, %s353
      %p357 = scmp.eq.s32.totalorder %s39, 0
      %p358 = por %p356, %p357
      %p359 = scmp.ne.s32.totalorder %s351, %s353
      %p360 = scmp.eq.s32.totalorder %s44, 1
      %p361 = por %p359, %p360
      %p362 = scmp.ne.s32.totalorder %s353, %s354
      %p363 = scmp.eq.s32.totalorder %s44, 0
      %p364 = por %p362, %p363
      %p365 = scmp.ne.s32.totalorder %s353, %s354
      %p366 = scmp.eq.s32.totalorder %s45, 1
      %p367 = por %p365, %p366
      %p369 = scmp.ne.s32.totalorder %s354, %s368
      %p370 = scmp.eq.s32.totalorder %s45, 0
      %p371 = por %p369, %p370
      %s373 = sadd.s32 %s372, 1
      %p376 = scmp.eq.s32.totalorder %s39, 1
      %p377 = scmp.ne.s32.totalorder %s372, %s374
      %p378 = scmp.eq.s32.totalorder %s39, 0
      %p379 = por %p377, %p378
      %p380 = scmp.ne.s32.totalorder %s372, %s374
      %p381 = scmp.eq.s32.totalorder %s44, 1
      %p382 = por %p380, %p381
      %p383 = scmp.ne.s32.totalorder %s374, %s375
      %p384 = scmp.eq.s32.totalorder %s44, 0
      %p385 = por %p383, %p384
      %p386 = scmp.ne.s32.totalorder %s374, %s375
      %p387 = scmp.eq.s32.totalorder %s45, 1
      %p388 = por %p386, %p387
      %p390 = scmp.ne.s32.totalorder %s375, %s389
      %p391 = scmp.eq.s32.totalorder %s45, 0
      %p392 = por %p390, %p391
      %s394 = sadd.s32 %s393, 1
      %p397 = scmp.eq.s32.totalorder %s39, 1
      %p398 = scmp.ne.s32.totalorder %s393, %s395
      %p399 = scmp.eq.s32.totalorder %s39, 0
      %p400 = por %p398, %p399
      %p401 = scmp.ne.s32.totalorder %s393, %s395
      %p402 = scmp.eq.s32.totalorder %s44, 1
      %p403 = por %p401, %p402
      %p404 = scmp.ne.s32.totalorder %s395, %s396
      %p405 = scmp.eq.s32.totalorder %s44, 0
      %p406 = por %p404, %p405
      %p407 = scmp.ne.s32.totalorder %s395, %s396
      %p408 = scmp.eq.s32.totalorder %s45, 1
      %p409 = por %p407, %p408
      %p411 = scmp.ne.s32.totalorder %s396, %s410
      %p412 = scmp.eq.s32.totalorder %s45, 0
      %p413 = por %p411, %p412
      %s415 = sadd.s32 %s414, 1
      %p418 = scmp.eq.s32.totalorder %s39, 1
      %p419 = scmp.ne.s32.totalorder %s414, %s416
      %p420 = scmp.eq.s32.totalorder %s39, 0
      %p421 = por %p419, %p420
      %p422 = scmp.ne.s32.totalorder %s414, %s416
      %p423 = scmp.eq.s32.totalorder %s44, 1
      %p424 = por %p422, %p423
      %p425 = scmp.ne.s32.totalorder %s416, %s417
      %p426 = scmp.eq.s32.totalorder %s44, 0
      %p427 = por %p425, %p426
      %p428 = scmp.ne.s32.totalorder %s416, %s417
      %p429 = scmp.eq.s32.totalorder %s45, 1
      %p430 = por %p428, %p429
      %p432 = scmp.ne.s32.totalorder %s417, %s431
      %p433 = scmp.eq.s32.totalorder %s45, 0
      %p434 = por %p432, %p433
      %s436 = sadd.s32 %s435, 1
      %p439 = scmp.eq.s32.totalorder %s39, 1
      %p440 = scmp.ne.s32.totalorder %s435, %s437
      %p441 = scmp.eq.s32.totalorder %s39, 0
      %p442 = por %p440, %p441
      %p443 = scmp.ne.s32.totalorder %s435, %s437
      %p444 = scmp.eq.s32.totalorder %s44, 1
      %p445 = por %p443, %p444
      %p446 = scmp.ne.s32.totalorder %s437, %s438
      %p447 = scmp.eq.s32.totalorder %s44, 0
      %p448 = por %p446, %p447
      %p449 = scmp.ne.s32.totalorder %s437, %s438
      %p450 = scmp.eq.s32.totalorder %s45, 1
      %p451 = por %p449, %p450
      %p453 = scmp.ne.s32.totalorder %s438, %s452
      %p454 = scmp.eq.s32.totalorder %s45, 0
      %p455 = por %p453, %p454
      %s457 = sadd.s32 %s456, 1
      %p460 = scmp.eq.s32.totalorder %s39, 1
      %p461 = scmp.ne.s32.totalorder %s456, %s458
      %p462 = scmp.eq.s32.totalorder %s39, 0
      %p463 = por %p461, %p462
      %p464 = scmp.ne.s32.totalorder %s456, %s458
      %p465 = scmp.eq.s32.totalorder %s44, 1
      %p466 = por %p464, %p465
      %p467 = scmp.ne.s32.totalorder %s458, %s459
      %p468 = scmp.eq.s32.totalorder %s44, 0
      %p469 = por %p467, %p468
      %p470 = scmp.ne.s32.totalorder %s458, %s459
      %p471 = scmp.eq.s32.totalorder %s45, 1
      %p472 = por %p470, %p471
      %p474 = scmp.ne.s32.totalorder %s459, %s473
      %p475 = scmp.eq.s32.totalorder %s45, 0
      %p476 = por %p474, %p475
      %s478 = sadd.s32 %s477, 1
      %p481 = scmp.eq.s32.totalorder %s39, 1
      %p482 = scmp.ne.s32.totalorder %s477, %s479
      %p483 = scmp.eq.s32.totalorder %s39, 0
      %p484 = por %p482, %p483
      %p485 = scmp.ne.s32.totalorder %s477, %s479
      %p486 = scmp.eq.s32.totalorder %s44, 1
      %p487 = por %p485, %p486
      %p488 = scmp.ne.s32.totalorder %s479, %s480
      %p489 = scmp.eq.s32.totalorder %s44, 0
      %p490 = por %p488, %p489
      %p491 = scmp.ne.s32.totalorder %s479, %s480
      %p492 = scmp.eq.s32.totalorder %s45, 1
      %p493 = por %p491, %p492
      %p495 = scmp.ne.s32.totalorder %s480, %s494
      %p496 = scmp.eq.s32.totalorder %s45, 0
      %p497 = por %p495, %p496
      %s499 = sadd.s32 %s498, 1
      %p502 = scmp.eq.s32.totalorder %s39, 1
      %p503 = scmp.ne.s32.totalorder %s498, %s500
      %p504 = scmp.eq.s32.totalorder %s39, 0
      %p505 = por %p503, %p504
      %p506 = scmp.ne.s32.totalorder %s498, %s500
      %p507 = scmp.eq.s32.totalorder %s44, 1
      %p508 = por %p506, %p507
      %p509 = scmp.ne.s32.totalorder %s500, %s501
      %p510 = scmp.eq.s32.totalorder %s44, 0
      %p511 = por %p509, %p510
      %p512 = scmp.ne.s32.totalorder %s500, %s501
      %p513 = scmp.eq.s32.totalorder %s45, 1
      %p514 = por %p512, %p513
      %p516 = scmp.ne.s32.totalorder %s501, %s515
      %p517 = scmp.eq.s32.totalorder %s45, 0
      %p518 = por %p516, %p517
      %s519 = ssub.s32 %s39, %s46
      %p520 = scmp.eq.s32.totalorder %s519, 0
      %s522 = sadd.s32 %s521, 1
      %s523 = scalar_select %p520, %s521, %s522
      %p526 = pneg %p520
      %p527 = scmp.eq.s32.totalorder %s39, 1
      %p528 = por %p526, %p527
      %p529 = scmp.ne.s32.totalorder %s521, %s524
      %p530 = scmp.eq.s32.totalorder %s39, 0
      %p531 = por %p529, %p530
      %p532 = scmp.ne.s32.totalorder %s521, %s524
      %p533 = scmp.eq.s32.totalorder %s44, 1
      %p534 = por %p532, %p533
      %p535 = scmp.ne.s32.totalorder %s524, %s525
      %p536 = scmp.eq.s32.totalorder %s44, 0
      %p537 = por %p535, %p536
      %p538 = scmp.ne.s32.totalorder %s524, %s525
      %p539 = scmp.eq.s32.totalorder %s45, 1
      %p540 = por %p538, %p539
      %p542 = scmp.ne.s32.totalorder %s525, %s541
      %p543 = scmp.eq.s32.totalorder %s45, 0
      %p544 = por %p542, %p543
      %p545 = scmp.le.s32.totalorder 1, %s39
      %p546 = scmp.lt.s32.totalorder %s39, 3
      %p547 = pnand %p545, %p546
      %p548 = pneg %p547
      // Predicated region
      $region9: #{forward_train.5} parent=5 // pred_check
        _
      $region10: #{forward_train.5} parent=5 // pred_check_branch
        %550 = sbr.rel (%p547) target = $region12
      $region11: #{forward_train.5} parent=5 // pred_region
        %s551 = ssub.s32 %s39, 1
        // Predicated region
        $region13: #{forward_train.5} parent=11 // pred_check
          %p552 = pneg %p112
        $region14: #{forward_train.5} parent=11 // pred_check_branch
          %554 = sbr.rel (%p552) target = $region16
        $region15: #{forward_train.5} parent=11 // pred_region
          %s556 = ssub.s32 3072, 3072
          %557 = vsyncadd [#allocation3], %s556
          %s558 = sshll.u32 [#allocation2], 4
          %s559 = int_to_ptr.vmem [resolvable:$true] %s558
          %564 = dma.hbm_to_vmem [thread:$0]  %s2, 3072, %s559, [#allocation3], 192, 192, 12
        $region16: #{forward_train.5} parent=11 // pred_fallthru
          _
        // Predicated region
        $region17: #{forward_train.5} parent=11 // pred_check
          %p565 = pneg %p133
        $region18: #{forward_train.5} parent=11 // pred_check_branch
          %567 = sbr.rel (%p565) target = $region20
        $region19: #{forward_train.5} parent=11 // pred_region
          %s569 = ssub.s32 48, 48
          %570 = vsyncadd [#allocation5], %s569
          %s572 = sshll.u32 [#allocation4], 4
          %s573 = int_to_ptr.vmem [resolvable:$true] %s572
          %575 = dma.hbm_to_vmem [thread:$0]  %s3, 48, %s573, [#allocation5]
        $region20: #{forward_train.5} parent=11 // pred_fallthru
          _
        // Predicated region
        $region21: #{forward_train.5} parent=11 // pred_check
          %p576 = pneg %p154
        $region22: #{forward_train.5} parent=11 // pred_check_branch
          %578 = sbr.rel (%p576) target = $region24
        $region23: #{forward_train.5} parent=11 // pred_region
          %s580 = ssub.s32 512, 512
          %581 = vsyncadd [#allocation5], %s580
          %s582 = sshll.u32 [#allocation6], 4
          %s583 = int_to_ptr.vmem [resolvable:$true] %s582
          %588 = dma.hbm_to_vmem [thread:$0]  %s4, 512, %s583, [#allocation5], 128, 128, 8
        $region24: #{forward_train.5} parent=11 // pred_fallthru
          _
        // Predicated region
        $region25: #{forward_train.5} parent=11 // pred_check
          %p589 = pneg %p175
        $region26: #{forward_train.5} parent=11 // pred_check_branch
          %591 = sbr.rel (%p589) target = $region28
        $region27: #{forward_train.5} parent=11 // pred_region
          %s593 = ssub.s32 16, 16
          %594 = vsyncadd [#allocation8], %s593
          %s596 = sshll.u32 [#allocation7], 4
          %s597 = int_to_ptr.vmem [resolvable:$true] %s596
          %599 = dma.hbm_to_vmem [thread:$0]  %s5, 16, %s597, [#allocation8]
        $region28: #{forward_train.5} parent=11 // pred_fallthru
          _
        // Predicated region
        $region29: #{forward_train.5} parent=11 // pred_check
          %p600 = pneg %p196
        $region30: #{forward_train.5} parent=11 // pred_check_branch
          %602 = sbr.rel (%p600) target = $region32
        $region31: #{forward_train.5} parent=11 // pred_region
          %s604 = ssub.s32 1024, 1024
          %605 = vsyncadd [#allocation8], %s604
          %s606 = sshll.u32 [#allocation9], 4
          %s607 = int_to_ptr.vmem [resolvable:$true] %s606
          %612 = dma.hbm_to_vmem [thread:$0]  %s6, 1024, %s607, [#allocation8], 64, 64, 4
        $region32: #{forward_train.5} parent=11 // pred_fallthru
          _
        // Predicated region
        $region33: #{forward_train.5} parent=11 // pred_check
          %p613 = pneg %p217
        $region34: #{forward_train.5} parent=11 // pred_check_branch
          %615 = sbr.rel (%p613) target = $region36
        $region35: #{forward_train.5} parent=11 // pred_region
          %s617 = ssub.s32 16, 16
          %618 = vsyncadd [#allocation11], %s617
          %s620 = sshll.u32 [#allocation10], 4
          %s621 = int_to_ptr.vmem [resolvable:$true] %s620
          %623 = dma.hbm_to_vmem [thread:$0]  %s7, 16, %s621, [#allocation11]
        $region36: #{forward_train.5} parent=11 // pred_fallthru
          _
        // Predicated region
        $region37: #{forward_train.5} parent=11 // pred_check
          %p624 = pneg %p238
        $region38: #{forward_train.5} parent=11 // pred_check_branch
          %626 = sbr.rel (%p624) target = $region40
        $region39: #{forward_train.5} parent=11 // pred_region
          %s628 = ssub.s32 2048, 2048
          %629 = vsyncadd [#allocation11], %s628
          %s630 = sshll.u32 [#allocation12], 4
          %s631 = int_to_ptr.vmem [resolvable:$true] %s630
          %636 = dma.hbm_to_vmem [thread:$0]  %s8, 2048, %s631, [#allocation11], 128, 128, 8
        $region40: #{forward_train.5} parent=11 // pred_fallthru
          _
        // Predicated region
        $region41: #{forward_train.5} parent=11 // pred_check
          %p637 = pneg %p259
        $region42: #{forward_train.5} parent=11 // pred_check_branch
          %639 = sbr.rel (%p637) target = $region44
        $region43: #{forward_train.5} parent=11 // pred_region
          %s641 = ssub.s32 32, 32
          %642 = vsyncadd [#allocation14], %s641
          %s644 = sshll.u32 [#allocation13], 4
          %s645 = int_to_ptr.vmem [resolvable:$true] %s644
          %647 = dma.hbm_to_vmem [thread:$0]  %s9, 32, %s645, [#allocation14]
        $region44: #{forward_train.5} parent=11 // pred_fallthru
          _
        // Predicated region
        $region45: #{forward_train.5} parent=11 // pred_check
          %p648 = pneg %p280
        $region46: #{forward_train.5} parent=11 // pred_check_branch
          %650 = sbr.rel (%p648) target = $region48
        $region47: #{forward_train.5} parent=11 // pred_region
          %s652 = ssub.s32 512, 512
          %653 = vsyncadd [#allocation14], %s652
          %s654 = sshll.u32 [#allocation15], 4
          %s655 = int_to_ptr.vmem [resolvable:$true] %s654
          %660 = dma.hbm_to_vmem [thread:$0]  %s10, 512, %s655, [#allocation14], 128, 128, 8
        $region48: #{forward_train.5} parent=11 // pred_fallthru
          _
        // Predicated region
        $region49: #{forward_train.5} parent=11 // pred_check
          %p661 = pneg %p301
        $region50: #{forward_train.5} parent=11 // pred_check_branch
          %663 = sbr.rel (%p661) target = $region52
        $region51: #{forward_train.5} parent=11 // pred_region
          %s665 = ssub.s32 16, 16
          %666 = vsyncadd [#allocation17], %s665
          %s668 = sshll.u32 [#allocation16], 4
          %s669 = int_to_ptr.vmem [resolvable:$true] %s668
          %671 = dma.hbm_to_vmem [thread:$0]  %s11, 16, %s669, [#allocation17]
        $region52: #{forward_train.5} parent=11 // pred_fallthru
          _
        // Predicated region
        $region53: #{forward_train.5} parent=11 // pred_check
          %p672 = pneg %p322
        $region54: #{forward_train.5} parent=11 // pred_check_branch
          %674 = sbr.rel (%p672) target = $region56
        $region55: #{forward_train.5} parent=11 // pred_region
          %s676 = ssub.s32 16384, 16384
          %677 = vsyncadd [#allocation17], %s676
          %s678 = sshll.u32 [#allocation18], 4
          %s679 = int_to_ptr.vmem [resolvable:$true] %s678
          %684 = dma.hbm_to_vmem [thread:$0]  %s12, 16384, %s679, [#allocation17], 1024, 1024, 64
        $region56: #{forward_train.5} parent=11 // pred_fallthru
          _
        // Predicated region
        $region57: #{forward_train.5} parent=11 // pred_check
          %p685 = pneg %p343
        $region58: #{forward_train.5} parent=11 // pred_check_branch
          %687 = sbr.rel (%p685) target = $region60
        $region59: #{forward_train.5} parent=11 // pred_region
          %s689 = ssub.s32 256, 256
          %690 = vsyncadd [#allocation20], %s689
          %s692 = sshll.u32 [#allocation19], 4
          %s693 = int_to_ptr.vmem [resolvable:$true] %s692
          %695 = dma.hbm_to_vmem [thread:$0]  %s13, 256, %s693, [#allocation20]
        $region60: #{forward_train.5} parent=11 // pred_fallthru
          _
        // Predicated region
        $region61: #{forward_train.5} parent=11 // pred_check
          %p696 = pneg %p364
        $region62: #{forward_train.5} parent=11 // pred_check_branch
          %698 = sbr.rel (%p696) target = $region64
        $region63: #{forward_train.5} parent=11 // pred_region
          %s700 = ssub.s32 16384, 16384
          %701 = vsyncadd [#allocation20], %s700
          %s702 = sshll.u32 [#allocation21], 4
          %s703 = int_to_ptr.vmem [resolvable:$true] %s702
          %708 = dma.hbm_to_vmem [thread:$0]  %s14, 16384, %s703, [#allocation20], 64, 64, 4
        $region64: #{forward_train.5} parent=11 // pred_fallthru
          _
        // Predicated region
        $region65: #{forward_train.5} parent=11 // pred_check
          %p709 = pneg %p385
        $region66: #{forward_train.5} parent=11 // pred_check_branch
          %711 = sbr.rel (%p709) target = $region68
        $region67: #{forward_train.5} parent=11 // pred_region
          %s713 = ssub.s32 16, 16
          %714 = vsyncadd [#allocation23], %s713
          %s716 = sshll.u32 [#allocation22], 4
          %s717 = int_to_ptr.vmem [resolvable:$true] %s716
          %719 = dma.hbm_to_vmem [thread:$0]  %s15, 16, %s717, [#allocation23]
        $region68: #{forward_train.5} parent=11 // pred_fallthru
          _
        // Predicated region
        $region69: #{forward_train.5} parent=11 // pred_check
          %p720 = pneg %p406
        $region70: #{forward_train.5} parent=11 // pred_check_branch
          %722 = sbr.rel (%p720) target = $region72
        $region71: #{forward_train.5} parent=11 // pred_region
          %s724 = ssub.s32 16, 16
          %725 = vsyncadd [#allocation23], %s724
          %s727 = sshll.u32 [#allocation24], 4
          %s728 = int_to_ptr.vmem [resolvable:$true] %s727
          %730 = dma.hbm_to_vmem [thread:$0]  %s16, 16, %s728, [#allocation23]
        $region72: #{forward_train.5} parent=11 // pred_fallthru
          _
        // Predicated region
        $region73: #{forward_train.5} parent=11 // pred_check
          %p731 = pneg %p427
        $region74: #{forward_train.5} parent=11 // pred_check_branch
          %733 = sbr.rel (%p731) target = $region76
        $region75: #{forward_train.5} parent=11 // pred_region
          %s735 = ssub.s32 16, 16
          %736 = vsyncadd [#allocation26], %s735
          %s738 = sshll.u32 [#allocation25], 4
          %s739 = int_to_ptr.vmem [resolvable:$true] %s738
          %741 = dma.hbm_to_vmem [thread:$0]  %s17, 16, %s739, [#allocation26]
        $region76: #{forward_train.5} parent=11 // pred_fallthru
          _
        // Predicated region
        $region77: #{forward_train.5} parent=11 // pred_check
          %p742 = pneg %p448
        $region78: #{forward_train.5} parent=11 // pred_check_branch
          %744 = sbr.rel (%p742) target = $region80
        $region79: #{forward_train.5} parent=11 // pred_region
          %s746 = ssub.s32 16, 16
          %747 = vsyncadd [#allocation26], %s746
          %s749 = sshll.u32 [#allocation27], 4
          %s750 = int_to_ptr.vmem [resolvable:$true] %s749
          %752 = dma.hbm_to_vmem [thread:$0]  %s18, 16, %s750, [#allocation26]
        $region80: #{forward_train.5} parent=11 // pred_fallthru
          _
        // Predicated region
        $region81: #{forward_train.5} parent=11 // pred_check
          %p753 = pneg %p469
        $region82: #{forward_train.5} parent=11 // pred_check_branch
          %755 = sbr.rel (%p753) target = $region84
        $region83: #{forward_train.5} parent=11 // pred_region
          %s757 = ssub.s32 16, 16
          %758 = vsyncadd [#allocation29], %s757
          %s760 = sshll.u32 [#allocation28], 4
          %s761 = int_to_ptr.vmem [resolvable:$true] %s760
          %763 = dma.hbm_to_vmem [thread:$0]  %s19, 16, %s761, [#allocation29]
        $region84: #{forward_train.5} parent=11 // pred_fallthru
          _
        // Predicated region
        $region85: #{forward_train.5} parent=11 // pred_check
          %p764 = pneg %p490
        $region86: #{forward_train.5} parent=11 // pred_check_branch
          %766 = sbr.rel (%p764) target = $region88
        $region87: #{forward_train.5} parent=11 // pred_region
          %s768 = ssub.s32 16, 16
          %769 = vsyncadd [#allocation29], %s768
          %s771 = sshll.u32 [#allocation30], 4
          %s772 = int_to_ptr.vmem [resolvable:$true] %s771
          %774 = dma.hbm_to_vmem [thread:$0]  %s20, 16, %s772, [#allocation29]
        $region88: #{forward_train.5} parent=11 // pred_fallthru
          _
        // Predicated region
        $region89: #{forward_train.5} parent=11 // pred_check
          %p775 = pneg %p511
        $region90: #{forward_train.5} parent=11 // pred_check_branch
          %777 = sbr.rel (%p775) target = $region92
        $region91: #{forward_train.5} parent=11 // pred_region
          %s779 = ssub.s32 16, 16
          %780 = vsyncadd [#allocation32], %s779
          %s782 = sshll.u32 [#allocation31], 4
          %s783 = int_to_ptr.vmem [resolvable:$true] %s782
          %785 = dma.hbm_to_vmem [thread:$0]  %s21, 16, %s783, [#allocation32]
        $region92: #{forward_train.5} parent=11 // pred_fallthru
          _
      $region12: #{forward_train.5} parent=5 // pred_fallthru
        _
      %p786 = scmp.lt.s32.totalorder %s39, 2
      // Predicated region
      $region93: #{forward_train.5} parent=5 // pred_check
        %p787 = pneg %p786
      $region94: #{forward_train.5} parent=5 // pred_check_branch
        %789 = sbr.rel (%p787) target = $region96
      $region95: #{forward_train.5} parent=5 // pred_region
        // Predicated region
        $region97: #{forward_train.5} parent=95 // pred_check
          %p790 = pneg %p59
        $region98: #{forward_train.5} parent=95 // pred_check_branch
          %792 = sbr.rel (%p790) target = $region100
        $region99: #{forward_train.5} parent=95 // pred_region
          %p793 = scmp.lt.s32.totalorder %s39, 1
          %s794 = scalar_select %p793, %s39, 1
          %s795 = smul.addr %s794, 8
          %s796 = scalar_lea.vmem %s0, %s795
        $region100: #{forward_train.5} parent=95 // pred_fallthru
          _
        // Predicated region
        $region101: #{forward_train.5} parent=95 // pred_check
          %p797 = pneg %p85
        $region102: #{forward_train.5} parent=95 // pred_check_branch
          %799 = sbr.rel (%p797) target = $region104
        $region103: #{forward_train.5} parent=95 // pred_region
          %p800 = scmp.lt.s32.totalorder %s39, 1
          %s801 = scalar_select %p800, %s39, 1
          %s802 = smul.addr %s801, 4
          %s803 = scalar_lea.vmem %s1, %s802
        $region104: #{forward_train.5} parent=95 // pred_fallthru
          _
      $region96: #{forward_train.5} parent=5 // pred_fallthru
        _
      %p804 = scmp.le.s32.totalorder 1, %s39
      %p805 = scmp.lt.s32.totalorder %s39, 3
      %p806 = pnand %p804, %p805
      %p807 = pneg %p806
      // Predicated region
      $region105: #{forward_train.5} parent=5 // pred_check
        _
      $region106: #{forward_train.5} parent=5 // pred_check_branch
        %809 = sbr.rel (%p806) target = $region108
      $region107: #{forward_train.5} parent=5 // pred_region
        %s810 = ssub.s32 %s39, 1
        // Predicated region
        $region109: #{forward_train.5} parent=107 // pred_check
          %p811 = pneg %p112
        $region110: #{forward_train.5} parent=107 // pred_check_branch
          %813 = sbr.rel (%p811) target = $region112
        $region111: #{forward_train.5} parent=107 // pred_region
          %814 = dma.done [#allocation3], 3072
        $region112: #{forward_train.5} parent=107 // pred_fallthru
          _
        // Predicated region
        $region113: #{forward_train.5} parent=107 // pred_check
          %p815 = pneg %p133
        $region114: #{forward_train.5} parent=107 // pred_check_branch
          %817 = sbr.rel (%p815) target = $region116
        $region115: #{forward_train.5} parent=107 // pred_region
          %818 = dma.done [#allocation5], 48
        $region116: #{forward_train.5} parent=107 // pred_fallthru
          _
        // Predicated region
        $region117: #{forward_train.5} parent=107 // pred_check
          %p819 = pneg %p154
        $region118: #{forward_train.5} parent=107 // pred_check_branch
          %821 = sbr.rel (%p819) target = $region120
        $region119: #{forward_train.5} parent=107 // pred_region
          %822 = dma.done [#allocation5], 512
        $region120: #{forward_train.5} parent=107 // pred_fallthru
          _
        // Predicated region
        $region121: #{forward_train.5} parent=107 // pred_check
          %p823 = pneg %p175
        $region122: #{forward_train.5} parent=107 // pred_check_branch
          %825 = sbr.rel (%p823) target = $region124
        $region123: #{forward_train.5} parent=107 // pred_region
          %826 = dma.done [#allocation8], 16
        $region124: #{forward_train.5} parent=107 // pred_fallthru
          _
        // Predicated region
        $region125: #{forward_train.5} parent=107 // pred_check
          %p827 = pneg %p196
        $region126: #{forward_train.5} parent=107 // pred_check_branch
          %829 = sbr.rel (%p827) target = $region128
        $region127: #{forward_train.5} parent=107 // pred_region
          %830 = dma.done [#allocation8], 1024
        $region128: #{forward_train.5} parent=107 // pred_fallthru
          _
        // Predicated region
        $region129: #{forward_train.5} parent=107 // pred_check
          %p831 = pneg %p217
        $region130: #{forward_train.5} parent=107 // pred_check_branch
          %833 = sbr.rel (%p831) target = $region132
        $region131: #{forward_train.5} parent=107 // pred_region
          %834 = dma.done [#allocation11], 16
        $region132: #{forward_train.5} parent=107 // pred_fallthru
          _
        // Predicated region
        $region133: #{forward_train.5} parent=107 // pred_check
          %p835 = pneg %p238
        $region134: #{forward_train.5} parent=107 // pred_check_branch
          %837 = sbr.rel (%p835) target = $region136
        $region135: #{forward_train.5} parent=107 // pred_region
          %838 = dma.done [#allocation11], 2048
        $region136: #{forward_train.5} parent=107 // pred_fallthru
          _
        // Predicated region
        $region137: #{forward_train.5} parent=107 // pred_check
          %p839 = pneg %p259
        $region138: #{forward_train.5} parent=107 // pred_check_branch
          %841 = sbr.rel (%p839) target = $region140
        $region139: #{forward_train.5} parent=107 // pred_region
          %842 = dma.done [#allocation14], 32
        $region140: #{forward_train.5} parent=107 // pred_fallthru
          _
        // Predicated region
        $region141: #{forward_train.5} parent=107 // pred_check
          %p843 = pneg %p280
        $region142: #{forward_train.5} parent=107 // pred_check_branch
          %845 = sbr.rel (%p843) target = $region144
        $region143: #{forward_train.5} parent=107 // pred_region
          %846 = dma.done [#allocation14], 512
        $region144: #{forward_train.5} parent=107 // pred_fallthru
          _
        // Predicated region
        $region145: #{forward_train.5} parent=107 // pred_check
          %p847 = pneg %p301
        $region146: #{forward_train.5} parent=107 // pred_check_branch
          %849 = sbr.rel (%p847) target = $region148
        $region147: #{forward_train.5} parent=107 // pred_region
          %850 = dma.done [#allocation17], 16
        $region148: #{forward_train.5} parent=107 // pred_fallthru
          _
        // Predicated region
        $region149: #{forward_train.5} parent=107 // pred_check
          %p851 = pneg %p322
        $region150: #{forward_train.5} parent=107 // pred_check_branch
          %853 = sbr.rel (%p851) target = $region152
        $region151: #{forward_train.5} parent=107 // pred_region
          %854 = dma.done [#allocation17], 16384
        $region152: #{forward_train.5} parent=107 // pred_fallthru
          _
        // Predicated region
        $region153: #{forward_train.5} parent=107 // pred_check
          %p855 = pneg %p343
        $region154: #{forward_train.5} parent=107 // pred_check_branch
          %857 = sbr.rel (%p855) target = $region156
        $region155: #{forward_train.5} parent=107 // pred_region
          %858 = dma.done [#allocation20], 256
        $region156: #{forward_train.5} parent=107 // pred_fallthru
          _
        // Predicated region
        $region157: #{forward_train.5} parent=107 // pred_check
          %p859 = pneg %p364
        $region158: #{forward_train.5} parent=107 // pred_check_branch
          %861 = sbr.rel (%p859) target = $region160
        $region159: #{forward_train.5} parent=107 // pred_region
          %862 = dma.done [#allocation20], 16384
        $region160: #{forward_train.5} parent=107 // pred_fallthru
          _
        // Predicated region
        $region161: #{forward_train.5} parent=107 // pred_check
          %p863 = pneg %p385
        $region162: #{forward_train.5} parent=107 // pred_check_branch
          %865 = sbr.rel (%p863) target = $region164
        $region163: #{forward_train.5} parent=107 // pred_region
          %866 = dma.done [#allocation23], 16
        $region164: #{forward_train.5} parent=107 // pred_fallthru
          _
        // Predicated region
        $region165: #{forward_train.5} parent=107 // pred_check
          %p867 = pneg %p406
        $region166: #{forward_train.5} parent=107 // pred_check_branch
          %869 = sbr.rel (%p867) target = $region168
        $region167: #{forward_train.5} parent=107 // pred_region
          %870 = dma.done [#allocation23], 16
        $region168: #{forward_train.5} parent=107 // pred_fallthru
          _
        // Predicated region
        $region169: #{forward_train.5} parent=107 // pred_check
          %p871 = pneg %p427
        $region170: #{forward_train.5} parent=107 // pred_check_branch
          %873 = sbr.rel (%p871) target = $region172
        $region171: #{forward_train.5} parent=107 // pred_region
          %874 = dma.done [#allocation26], 16
        $region172: #{forward_train.5} parent=107 // pred_fallthru
          _
        // Predicated region
        $region173: #{forward_train.5} parent=107 // pred_check
          %p875 = pneg %p448
        $region174: #{forward_train.5} parent=107 // pred_check_branch
          %877 = sbr.rel (%p875) target = $region176
        $region175: #{forward_train.5} parent=107 // pred_region
          %878 = dma.done [#allocation26], 16
        $region176: #{forward_train.5} parent=107 // pred_fallthru
          _
        // Predicated region
        $region177: #{forward_train.5} parent=107 // pred_check
          %p879 = pneg %p469
        $region178: #{forward_train.5} parent=107 // pred_check_branch
          %881 = sbr.rel (%p879) target = $region180
        $region179: #{forward_train.5} parent=107 // pred_region
          %882 = dma.done [#allocation29], 16
        $region180: #{forward_train.5} parent=107 // pred_fallthru
          _
        // Predicated region
        $region181: #{forward_train.5} parent=107 // pred_check
          %p883 = pneg %p490
        $region182: #{forward_train.5} parent=107 // pred_check_branch
          %885 = sbr.rel (%p883) target = $region184
        $region183: #{forward_train.5} parent=107 // pred_region
          %886 = dma.done [#allocation29], 16
        $region184: #{forward_train.5} parent=107 // pred_fallthru
          _
        // Predicated region
        $region185: #{forward_train.5} parent=107 // pred_check
          %p887 = pneg %p511
        $region186: #{forward_train.5} parent=107 // pred_check_branch
          %889 = sbr.rel (%p887) target = $region188
        $region187: #{forward_train.5} parent=107 // pred_region
          %890 = dma.done [#allocation32], 16
        $region188: #{forward_train.5} parent=107 // pred_fallthru
          _
        %p891 = scmp.lt.s32.totalorder %s44, 1
        %s892 = scalar_select %p891, %s44, 1
        %s893 = smul.addr %s892, 8
        %s894 = scalar_lea.vmem %s0, %s893
        %p895 = pneg %p65
        %p896 = pneg %p62
        %p897 = scmp.lt.s32.totalorder %s44, 1
        %s898 = scalar_select %p897, %s44, 1
        %s899 = smul.addr %s898, 4
        %s900 = scalar_lea.vmem %s1, %s899
        %p901 = pneg %p91
        %p902 = pneg %p88
        %p903 = pneg %p112
        %p904 = pneg %p109
        %p905 = pneg %p133
        %p906 = pneg %p130
        %p907 = pneg %p154
        %p908 = pneg %p151
        %p909 = pneg %p175
        %p910 = pneg %p172
        %p911 = pneg %p196
        %p912 = pneg %p193
        %p913 = pneg %p217
        %p914 = pneg %p214
        %p915 = pneg %p238
        %p916 = pneg %p235
        %p917 = pneg %p259
        %p918 = pneg %p256
        %p919 = pneg %p280
        %p920 = pneg %p277
        %p921 = pneg %p301
        %p922 = pneg %p298
        %p923 = pneg %p322
        %p924 = pneg %p319
        %p925 = pneg %p343
        %p926 = pneg %p340
        %p927 = pneg %p364
        %p928 = pneg %p361
        %p929 = pneg %p385
        %p930 = pneg %p382
        %p931 = pneg %p406
        %p932 = pneg %p403
        %p933 = pneg %p427
        %p934 = pneg %p424
        %p935 = pneg %p448
        %p936 = pneg %p445
        %p937 = pneg %p469
        %p938 = pneg %p466
        %p939 = pneg %p490
        %p940 = pneg %p487
        %p941 = pneg %p511
        %p942 = pneg %p508
        %p943 = pneg %p537
        %p944 = pneg %p534
        %p945 = scmp.lt.s32.totalorder %s44, 1
        %s946 = scalar_select %p945, %s44, 1
        %s947 = smul.addr %s946, 8
        %s948 = scalar_lea.vmem %s22, %s947
        %p949 = scmp.lt.s32.totalorder %s44, 1
        %s950 = scalar_select %p949, %s44, 1
        %s951 = smul.addr %s950, 8
        %s952 = scalar_lea.vmem %s0, %s951
        %p953 = scmp.lt.s32.totalorder %s44, 1
        %s954 = scalar_select %p953, %s44, 1
        %s955 = smul.addr %s954, 4
        %s956 = scalar_lea.vmem %s1, %s955
        %p957 = scmp.lt.s32.totalorder %s44, 1
        %s958 = scalar_select %p957, %s44, 1
        %s959 = smul.addr %s958, 8
        %s960 = scalar_lea.vmem %s22, %s959
        %v962 = vld [vmem:[%s952] sm:$0xff]
        %v963 = vld [vmem:[%s956] sm:$0xf]
        %v964 = vpack.c.bf16 %v962, %v962
        %v965 = vld [vmem:[#allocation2] sm:$0xff]
        %v966 = vld [vmem:[#allocation2 + $0x8] sm:$0xf]
        %v967 = vld [vmem:[#allocation2 + $0xc] sm:$0xff]
        %v968 = vld [vmem:[#allocation2 + $0x14] sm:$0xf]
        %v969 = vld [vmem:[#allocation2 + $0x18] sm:$0xff]
        %v970 = vld [vmem:[#allocation2 + $0x20] sm:$0xf]
        %v971 = vld [vmem:[#allocation2 + $0x24] sm:$0xff]
        %v972 = vld [vmem:[#allocation2 + $0x2c] sm:$0xf]
        %v973 = vld [vmem:[#allocation2 + $0x30] sm:$0xff]
        %v974 = vld [vmem:[#allocation2 + $0x38] sm:$0xf]
        %v975 = vld [vmem:[#allocation2 + $0x3c] sm:$0xff]
        %v976 = vld [vmem:[#allocation2 + $0x44] sm:$0xf]
        %v977 = vld [vmem:[#allocation2 + $0x48] sm:$0xff]
        %v978 = vld [vmem:[#allocation2 + $0x50] sm:$0xf]
        %v979 = vld [vmem:[#allocation2 + $0x54] sm:$0xff]
        %v980 = vld [vmem:[#allocation2 + $0x5c] sm:$0xf]
        %v981 = vld [vmem:[#allocation2 + $0x60] sm:$0xff]
        %v982 = vld [vmem:[#allocation2 + $0x68] sm:$0xf]
        %v983 = vld [vmem:[#allocation2 + $0x6c] sm:$0xff]
        %v984 = vld [vmem:[#allocation2 + $0x74] sm:$0xf]
        %v985 = vld [vmem:[#allocation2 + $0x78] sm:$0xff]
        %v986 = vld [vmem:[#allocation2 + $0x80] sm:$0xf]
        %v987 = vld [vmem:[#allocation2 + $0x84] sm:$0xff]
        %v988 = vld [vmem:[#allocation2 + $0x8c] sm:$0xf]
        %v989 = vld [vmem:[#allocation2 + $0x90] sm:$0xff]
        %v990 = vld [vmem:[#allocation2 + $0x98] sm:$0xf]
        %v991 = vld [vmem:[#allocation2 + $0x9c] sm:$0xff]
        %v992 = vld [vmem:[#allocation2 + $0xa4] sm:$0xf]
        %v993 = vld [vmem:[#allocation2 + $0xa8] sm:$0xff]
        %v994 = vld [vmem:[#allocation2 + $0xb0] sm:$0xf]
        %v995 = vld [vmem:[#allocation2 + $0xb4] sm:$0xff]
        %v996 = vld [vmem:[#allocation2 + $0xbc] sm:$0xf]
        %v997 = vld [vmem:[#allocation4] sm:$0x7]
        %v999 = vlaneseq
        %v1000 = vshrl.u32 %v999, 7
        %v1001 = vsub.s32 0, %v1000
        %v1002 = vrot.slane %v997, %v1001
        %v1003 = vlaneseq
        %v1004 = vshrl.u32 %v1003, 7
        %v1005 = vsub.s32 1, %v1004
        %v1006 = vrot.slane %v997, %v1005
        %v1007 = vlaneseq
        %v1008 = vshrl.u32 %v1007, 7
        %v1009 = vsub.s32 2, %v1008
        %v1010 = vrot.slane %v997, %v1009
        %v1046 = vunpack.c.l.b16 %v965
        %v1047 = vunpack.c.h.b16 %v965
        %v1048 = vunpack.c.l.b16 %v966
        %v1049 = vunpack.c.l.b16 %v967
        %v1050 = vunpack.c.h.b16 %v967
        %v1051 = vunpack.c.l.b16 %v968
        %v1052 = vunpack.c.l.b16 %v969
        %v1053 = vunpack.c.h.b16 %v969
        %v1054 = vunpack.c.l.b16 %v970
        %v1055 = vunpack.c.l.b16 %v971
        %v1056 = vunpack.c.h.b16 %v971
        %v1057 = vunpack.c.l.b16 %v972
        %v1058 = vunpack.c.l.b16 %v973
        %v1059 = vunpack.c.h.b16 %v973
        %v1060 = vunpack.c.l.b16 %v974
        %v1061 = vunpack.c.l.b16 %v975
        %v1062 = vunpack.c.h.b16 %v975
        %v1063 = vunpack.c.l.b16 %v976
        %v1064 = vunpack.c.l.b16 %v977
        %v1065 = vunpack.c.h.b16 %v977
        %v1066 = vunpack.c.l.b16 %v978
        %v1067 = vunpack.c.l.b16 %v979
        %v1068 = vunpack.c.h.b16 %v979
        %v1069 = vunpack.c.l.b16 %v980
        %v1070 = vunpack.c.l.b16 %v981
        %v1071 = vunpack.c.h.b16 %v981
        %v1072 = vunpack.c.l.b16 %v982
        %v1073 = vunpack.c.l.b16 %v983
        %v1074 = vunpack.c.h.b16 %v983
        %v1075 = vunpack.c.l.b16 %v984
        %v1076 = vunpack.c.l.b16 %v985
        %v1077 = vunpack.c.h.b16 %v985
        %v1078 = vunpack.c.l.b16 %v986
        %v1079 = vunpack.c.l.b16 %v987
        %v1080 = vunpack.c.h.b16 %v987
        %v1081 = vunpack.c.l.b16 %v988
        %v1082 = vunpack.c.l.b16 %v989
        %v1083 = vunpack.c.h.b16 %v989
        %v1084 = vunpack.c.l.b16 %v990
        %v1085 = vunpack.c.l.b16 %v991
        %v1086 = vunpack.c.h.b16 %v991
        %v1087 = vunpack.c.l.b16 %v992
        %v1088 = vunpack.c.l.b16 %v993
        %v1089 = vunpack.c.h.b16 %v993
        %v1090 = vunpack.c.l.b16 %v994
        %v1091 = vunpack.c.l.b16 %v995
        %v1092 = vunpack.c.h.b16 %v995
        %v1093 = vunpack.c.l.b16 %v996
        %v1094 = vpack.c.b16 %v1049, %v1046
        %v1095 = vpack.c.b16 %v1050, %v1047
        %v1096 = vpack.c.b16 %v1051, %v1048
        %v1097 = vpack.c.b16 %v1055, %v1052
        %v1098 = vpack.c.b16 %v1056, %v1053
        %v1099 = vpack.c.b16 %v1057, %v1054
        %v1100 = vpack.c.b16 %v1061, %v1058
        %v1101 = vpack.c.b16 %v1062, %v1059
        %v1102 = vpack.c.b16 %v1063, %v1060
        %v1103 = vpack.c.b16 %v1067, %v1064
        %v1104 = vpack.c.b16 %v1068, %v1065
        %v1105 = vpack.c.b16 %v1069, %v1066
        %v1106 = vpack.c.b16 %v1073, %v1070
        %v1107 = vpack.c.b16 %v1074, %v1071
        %v1108 = vpack.c.b16 %v1075, %v1072
        %v1109 = vpack.c.b16 %v1079, %v1076
        %v1110 = vpack.c.b16 %v1080, %v1077
        %v1111 = vpack.c.b16 %v1081, %v1078
        %v1112 = vpack.c.b16 %v1085, %v1082
        %v1113 = vpack.c.b16 %v1086, %v1083
        %v1114 = vpack.c.b16 %v1087, %v1084
        %v1115 = vpack.c.b16 %v1091, %v1088
        %v1116 = vpack.c.b16 %v1092, %v1089
        %v1117 = vpack.c.b16 %v1093, %v1090
        %1142 = vmatprep.subr.bf16.mxu0 %v1095
        %1143 = vmatpush1.bf16.msra.mxu0 %v1094
        %1144 = vmatprep.subr.bf16.mxu0 %v1098
        %1145 = vmatpush1.bf16.msra.mxu0 %v1097
        %1146 = vmatprep.subr.bf16.mxu0 %v1101
        %1147 = vmatpush1.bf16.msra.mxu0 %v1100
        %1148 = vmatprep.subr.bf16.mxu0 %v1104
        %1149 = vmatpush1.bf16.msra.mxu0 %v1103
        %1150 = vmatprep.subr.bf16.mxu0 %v1107
        %1151 = vmatpush1.bf16.msra.mxu0 %v1106
        %1152 = vmatprep.subr.bf16.mxu0 %v1110
        %1153 = vmatpush1.bf16.msra.mxu0 %v1109
        %1154 = vmatprep.subr.bf16.mxu0 %v1113
        %1155 = vmatpush1.bf16.msra.mxu0 %v1112
        %1156 = vmatprep.subr.bf16.mxu0 %v1116
        %1157 = vmatpush1.bf16.msra.mxu0 %v1115
        %1158 = vmatprep.subr.bf16.mxu0 0
        %1159 = vmatpush1.bf16.msra.mxu0 0
        %1160 = vmatprep.subr.bf16.mxu0 0
        %1161 = vmatpush1.bf16.msra.mxu0 0
        %1162 = vmatprep.subr.bf16.mxu0 0
        %1163 = vmatpush1.bf16.msra.mxu0 0
        %1164 = vmatprep.subr.bf16.mxu0 0
        %1165 = vmatpush1.bf16.msra.mxu0 0
        %1166 = vmatprep.subr.bf16.mxu0 0
        %1167 = vmatpush1.bf16.msra.mxu0 0
        %1168 = vmatprep.subr.bf16.mxu0 0
        %1169 = vmatpush1.bf16.msra.mxu0 0
        %1170 = vmatprep.subr.bf16.mxu0 0
        %1171 = vmatpush1.bf16.msra.mxu0 0
        %1172 = vmatprep.subr.bf16.mxu0 0
        %1173 = vmatpush1.bf16.msra.mxu0 0
        %1174 = vmatprep.mubr.bf16.mxu0 0
        %1175 = vmatmul.mubr.bf16.gmra.mrb[0].mxu0 %v964
        %v1176 = vpop.f32.mrb[0].mxu0
        %v1177 = vadd.f32 %v1002, %v1176
        %v1178 = vpop.f32.mrb[0].mxu0
        %v1179 = vadd.f32 %v1006, %v1178
        %v1180 = vpop.f32.mrb[0].mxu0
        %v1181 = vpop.f32.mrb[0].mxu0
        %1182 = vdwg.mxu0
        %1183 = vmatprep.subr.bf16.mxu0 0
        %1184 = vmatpush1.bf16.msra.mxu0 %v1096
        %1185 = vmatprep.subr.bf16.mxu0 0
        %1186 = vmatpush1.bf16.msra.mxu0 %v1099
        %1187 = vmatprep.subr.bf16.mxu0 0
        %1188 = vmatpush1.bf16.msra.mxu0 %v1102
        %1189 = vmatprep.subr.bf16.mxu0 0
        %1190 = vmatpush1.bf16.msra.mxu0 %v1105
        %1191 = vmatprep.subr.bf16.mxu0 0
        %1192 = vmatpush1.bf16.msra.mxu0 %v1108
        %1193 = vmatprep.subr.bf16.mxu0 0
        %1194 = vmatpush1.bf16.msra.mxu0 %v1111
        %1195 = vmatprep.subr.bf16.mxu0 0
        %1196 = vmatpush1.bf16.msra.mxu0 %v1114
        %1197 = vmatprep.subr.bf16.mxu0 0
        %1198 = vmatpush1.bf16.msra.mxu0 %v1117
        %1199 = vmatprep.subr.bf16.mxu0 0
        %1200 = vmatpush1.bf16.msra.mxu0 0
        %1201 = vmatprep.subr.bf16.mxu0 0
        %1202 = vmatpush1.bf16.msra.mxu0 0
        %1203 = vmatprep.subr.bf16.mxu0 0
        %1204 = vmatpush1.bf16.msra.mxu0 0
        %1205 = vmatprep.subr.bf16.mxu0 0
        %1206 = vmatpush1.bf16.msra.mxu0 0
        %1207 = vmatprep.subr.bf16.mxu0 0
        %1208 = vmatpush1.bf16.msra.mxu0 0
        %1209 = vmatprep.subr.bf16.mxu0 0
        %1210 = vmatpush1.bf16.msra.mxu0 0
        %1211 = vmatprep.subr.bf16.mxu0 0
        %1212 = vmatpush1.bf16.msra.mxu0 0
        %1213 = vmatprep.subr.bf16.mxu0 0
        %1214 = vmatpush1.bf16.msra.mxu0 0
        %1215 = vmatprep.mubr.bf16.mxu0 0
        %1216 = vmatmul.mubr.bf16.gmra.mrb[0].mxu0 %v964
        %v1217 = vpop.f32.mrb[0].mxu0
        %v1218 = vadd.f32 %v1010, %v1217
        %v1219 = vpop.f32.mrb[0].mxu0
        %v1220 = vpop.f32.mrb[0].mxu0
        %v1221 = vpop.f32.mrb[0].mxu0
        %1222 = vdwg.mxu0
        %v1223 = vlaneseq
        %v1224 = vshrl.u32 %v1223, 7
        %v1225 = vlaneseq
        %v1226 = vand.u32 %v1225, 127
        %vm1227 = vcmp.le.s32.totalorder %v1226, %v1224
        %v1228 = vpack.c.bf16 %v1177, %v1177
        %v1229 = vpack.c.bf16 %v1179, %v1179
        %v1230 = vpack.c.bf16 %v1218, %v1218
        %vm1231 = vcmask 64512
        %v1233 = vsel %vm1231, %v1228, 0
        %v1236 = vsel %vm1231, %v1229, 0
        %1238 = vmatprep.subr.bf16.mxu0 0
        %1239 = vmatpush1.bf16.xpose.msra.mxu0 %v1236
        %1240 = vmatprep.subr.bf16.mxu0 0
        %1241 = vmatpush1.bf16.xpose.msra.mxu0 0
        %1242 = vmatprep.subr.bf16.mxu0 0
        %1243 = vmatpush1.bf16.xpose.msra.mxu0 0
        %1244 = vmatprep.subr.bf16.mxu0 0
        %1245 = vmatpush1.bf16.xpose.msra.mxu0 0
        %1246 = vmatprep.subr.bf16.mxu0 0
        %1247 = vmatpush1.bf16.xpose.msra.mxu0 0
        %1248 = vmatprep.subr.bf16.mxu0 0
        %1249 = vmatpush1.bf16.xpose.msra.mxu0 0
        %1250 = vmatprep.subr.bf16.mxu0 0
        %1251 = vmatpush1.bf16.xpose.msra.mxu0 0
        %1252 = vmatprep.subr.bf16.mxu0 0
        %1253 = vmatpush1.bf16.xpose.msra.mxu0 0
        %1254 = vmatprep.subr.bf16.mxu0 0
        %1255 = vmatpush1.bf16.xpose.msra.mxu0 0
        %1256 = vmatprep.subr.bf16.mxu0 0
        %1257 = vmatpush1.bf16.xpose.msra.mxu0 0
        %1258 = vmatprep.subr.bf16.mxu0 0
        %1259 = vmatpush1.bf16.xpose.msra.mxu0 0
        %1260 = vmatprep.subr.bf16.mxu0 0
        %1261 = vmatpush1.bf16.xpose.msra.mxu0 0
        %1262 = vmatprep.subr.bf16.mxu0 0
        %1263 = vmatpush1.bf16.xpose.msra.mxu0 0
        %1264 = vmatprep.subr.bf16.mxu0 0
        %1265 = vmatpush1.bf16.xpose.msra.mxu0 0
        %1266 = vmatprep.subr.bf16.mxu0 0
        %1267 = vmatpush1.bf16.xpose.msra.mxu0 0
        %1268 = vmatprep.subr.bf16.mxu0 0
        %1269 = vmatpush1.bf16.xpose.msra.mxu0 0
        %1270 = vmatprep.mubr.bf16.mxu0 0
        %1271 = vmatmul.mubr.bf16.gmra.mrb[0].mxu0 %v1233
        %v1272 = vpop.f32.mrb[0].mxu0
        %v1273 = vadd.f32 0.0, %v1272
        %v1274 = vpop.f32.mrb[0].mxu0
        %v1275 = vpop.f32.mrb[0].mxu0
        %v1276 = vpop.f32.mrb[0].mxu0
        %1277 = vdwg.mxu0
        %v1278 = vsel %vm1227, %v1273, -1e+30
        %v1279 = vsel %vm1231, %v1278, -inf
        %1280 = vmax.xlane.f32.xlu0 %v1279
        %v1281 = vpop.xlane.xlu0 %1280
        %v1282 = vsub.f32 %v1278, %v1281
        %v1283 = vmul.f32 %v1282, 1.442695
        %v1284 = vpow.pop %v1283
        %v1285 = vsel %vm1231, %v1284, 0.0
        %1286 = vadd.xlane.f32.xlu0 %v1285
        %v1287 = vpop.xlane.xlu0 %1286
        %v1288 = vrcp.pop %v1287
        %v1289 = vmul.f32 %v1284, %v1288
        %v1290 = vpack.c.bf16 %v1289, %v1289
        %v1292 = vsel %vm1231, %v1290, 0
        %vm1294 = vcmask 1043456
        %v1296 = vsel %vm1294, %v1230, 0
        %1298 = vmatprep.subr.bf16.mxu0 0
        %1299 = vmatpush1.bf16.msra.mxu0 %v1296
        %1300 = vmatprep.subr.bf16.mxu0 0
        %1301 = vmatpush1.bf16.msra.mxu0 0
        %1302 = vmatprep.subr.bf16.mxu0 0
        %1303 = vmatpush1.bf16.msra.mxu0 0
        %1304 = vmatprep.subr.bf16.mxu0 0
        %1305 = vmatpush1.bf16.msra.mxu0 0
        %1306 = vmatprep.subr.bf16.mxu0 0
        %1307 = vmatpush1.bf16.msra.mxu0 0
        %1308 = vmatprep.subr.bf16.mxu0 0
        %1309 = vmatpush1.bf16.msra.mxu0 0
        %1310 = vmatprep.subr.bf16.mxu0 0
        %1311 = vmatpush1.bf16.msra.mxu0 0
        %1312 = vmatprep.subr.bf16.mxu0 0
        %1313 = vmatpush1.bf16.msra.mxu0 0
        %1314 = vmatprep.subr.bf16.mxu0 0
        %1315 = vmatpush1.bf16.msra.mxu0 0
        %1316 = vmatprep.subr.bf16.mxu0 0
        %1317 = vmatpush1.bf16.msra.mxu0 0
        %1318 = vmatprep.subr.bf16.mxu0 0
        %1319 = vmatpush1.bf16.msra.mxu0 0
        %1320 = vmatprep.subr.bf16.mxu0 0
        %1321 = vmatpush1.bf16.msra.mxu0 0
        %1322 = vmatprep.subr.bf16.mxu0 0
        %1323 = vmatpush1.bf16.msra.mxu0 0
        %1324 = vmatprep.subr.bf16.mxu0 0
        %1325 = vmatpush1.bf16.msra.mxu0 0
        %1326 = vmatprep.subr.bf16.mxu0 0
        %1327 = vmatpush1.bf16.msra.mxu0 0
        %1328 = vmatprep.subr.bf16.mxu0 0
        %1329 = vmatpush1.bf16.msra.mxu0 0
        %1330 = vmatprep.mubr.bf16.mxu0 0
        %1331 = vmatmul.mubr.bf16.gmra.mrb[0].mxu0 %v1292
        %v1332 = vpop.f32.mrb[0].mxu0
        %v1333 = vadd.f32 0.0, %v1332
        %v1334 = vpop.f32.mrb[0].mxu0
        %v1335 = vpop.f32.mrb[0].mxu0
        %v1336 = vpop.f32.mrb[0].mxu0
        %1337 = vdwg.mxu0
        %v1338 = vld [vmem:[#allocation6] sm:$0xff]
        %v1339 = vpack.c.bf16 %v1338, %v1338
        %v1340 = vpack.c.bf16 %v1333, %v1333
        %1342 = vrot.lane.b32.xlu0 %v1228, 120
        %v1343 = vpop.permute.xlu0 %1342
        %1345 = vrot.lane.b32.xlu0 %v1229, 120
        %v1346 = vpop.permute.xlu0 %1345
        %v1348 = vsel %vm1231, %v1343, 0
        %v1351 = vsel %vm1231, %v1346, 0
        %1353 = vmatprep.subr.bf16.mxu0 0
        %1354 = vmatpush1.bf16.xpose.msra.mxu0 %v1351
        %1355 = vmatprep.subr.bf16.mxu0 0
        %1356 = vmatpush1.bf16.xpose.msra.mxu0 0
        %1357 = vmatprep.subr.bf16.mxu0 0
        %1358 = vmatpush1.bf16.xpose.msra.mxu0 0
        %1359 = vmatprep.subr.bf16.mxu0 0
        %1360 = vmatpush1.bf16.xpose.msra.mxu0 0
        %1361 = vmatprep.subr.bf16.mxu0 0
        %1362 = vmatpush1.bf16.xpose.msra.mxu0 0
        %1363 = vmatprep.subr.bf16.mxu0 0
        %1364 = vmatpush1.bf16.xpose.msra.mxu0 0
        %1365 = vmatprep.subr.bf16.mxu0 0
        %1366 = vmatpush1.bf16.xpose.msra.mxu0 0
        %1367 = vmatprep.subr.bf16.mxu0 0
        %1368 = vmatpush1.bf16.xpose.msra.mxu0 0
        %1369 = vmatprep.subr.bf16.mxu0 0
        %1370 = vmatpush1.bf16.xpose.msra.mxu0 0
        %1371 = vmatprep.subr.bf16.mxu0 0
        %1372 = vmatpush1.bf16.xpose.msra.mxu0 0
        %1373 = vmatprep.subr.bf16.mxu0 0
        %1374 = vmatpush1.bf16.xpose.msra.mxu0 0
        %1375 = vmatprep.subr.bf16.mxu0 0
        %1376 = vmatpush1.bf16.xpose.msra.mxu0 0
        %1377 = vmatprep.subr.bf16.mxu0 0
        %1378 = vmatpush1.bf16.xpose.msra.mxu0 0
        %1379 = vmatprep.subr.bf16.mxu0 0
        %1380 = vmatpush1.bf16.xpose.msra.mxu0 0
        %1381 = vmatprep.subr.bf16.mxu0 0
        %1382 = vmatpush1.bf16.xpose.msra.mxu0 0
        %1383 = vmatprep.subr.bf16.mxu0 0
        %1384 = vmatpush1.bf16.xpose.msra.mxu0 0
        %1385 = vmatprep.mubr.bf16.mxu0 0
        %1386 = vmatmul.mubr.bf16.gmra.mrb[0].mxu0 %v1348
        %v1387 = vpop.f32.mrb[0].mxu0
        %v1388 = vadd.f32 0.0, %v1387
        %v1389 = vpop.f32.mrb[0].mxu0
        %v1390 = vpop.f32.mrb[0].mxu0
        %v1391 = vpop.f32.mrb[0].mxu0
        %1392 = vdwg.mxu0
        %v1393 = vsel %vm1227, %v1388, -1e+30
        %v1394 = vsel %vm1231, %v1393, -inf
        %1395 = vmax.xlane.f32.xlu0 %v1394
        %v1396 = vpop.xlane.xlu0 %1395
        %v1397 = vsub.f32 %v1393, %v1396
        %v1398 = vmul.f32 %v1397, 1.442695
        %v1399 = vpow.pop %v1398
        %v1400 = vsel %vm1231, %v1399, 0.0
        %1401 = vadd.xlane.f32.xlu0 %v1400
        %v1402 = vpop.xlane.xlu0 %1401
        %v1403 = vrcp.pop %v1402
        %v1404 = vmul.f32 %v1399, %v1403
        %v1405 = vpack.c.bf16 %v1404, %v1404
        %1407 = vrot.lane.b32.xlu0 %v1230, 120
        %v1408 = vpop.permute.xlu0 %1407
        %v1410 = vsel %vm1231, %v1405, 0
        %v1413 = vsel %vm1294, %v1408, 0
        %1415 = vmatprep.subr.bf16.mxu0 0
        %1416 = vmatpush1.bf16.msra.mxu0 %v1413
        %1417 = vmatprep.subr.bf16.mxu0 0
        %1418 = vmatpush1.bf16.msra.mxu0 0
        %1419 = vmatprep.subr.bf16.mxu0 0
        %1420 = vmatpush1.bf16.msra.mxu0 0
        %1421 = vmatprep.subr.bf16.mxu0 0
        %1422 = vmatpush1.bf16.msra.mxu0 0
        %1423 = vmatprep.subr.bf16.mxu0 0
        %1424 = vmatpush1.bf16.msra.mxu0 0
        %1425 = vmatprep.subr.bf16.mxu0 0
        %1426 = vmatpush1.bf16.msra.mxu0 0
        %1427 = vmatprep.subr.bf16.mxu0 0
        %1428 = vmatpush1.bf16.msra.mxu0 0
        %1429 = vmatprep.subr.bf16.mxu0 0
        %1430 = vmatpush1.bf16.msra.mxu0 0
        %1431 = vmatprep.subr.bf16.mxu0 0
        %1432 = vmatpush1.bf16.msra.mxu0 0
        %1433 = vmatprep.subr.bf16.mxu0 0
        %1434 = vmatpush1.bf16.msra.mxu0 0
        %1435 = vmatprep.subr.bf16.mxu0 0
        %1436 = vmatpush1.bf16.msra.mxu0 0
        %1437 = vmatprep.subr.bf16.mxu0 0
        %1438 = vmatpush1.bf16.msra.mxu0 0
        %1439 = vmatprep.subr.bf16.mxu0 0
        %1440 = vmatpush1.bf16.msra.mxu0 0
        %1441 = vmatprep.subr.bf16.mxu0 0
        %1442 = vmatpush1.bf16.msra.mxu0 0
        %1443 = vmatprep.subr.bf16.mxu0 0
        %1444 = vmatpush1.bf16.msra.mxu0 0
        %1445 = vmatprep.subr.bf16.mxu0 0
        %1446 = vmatpush1.bf16.msra.mxu0 0
        %1447 = vmatprep.mubr.bf16.mxu0 0
        %1448 = vmatmul.mubr.bf16.gmra.mrb[0].mxu0 %v1410
        %v1449 = vpop.f32.mrb[0].mxu0
        %v1450 = vadd.f32 0.0, %v1449
        %v1451 = vpop.f32.mrb[0].mxu0
        %v1452 = vpop.f32.mrb[0].mxu0
        %v1453 = vpop.f32.mrb[0].mxu0
        %1454 = vdwg.mxu0
        %v1455 = vld [vmem:[#allocation6 + $0x8] sm:$0xff]
        %v1456 = vpack.c.bf16 %v1455, %v1455
        %v1457 = vpack.c.bf16 %v1450, %v1450
        %v1459 = vsel %vm1231, %v1457, 0
        %v1462 = vsel %vm1294, %v1456, 0
        %1464 = vmatprep.subr.bf16.mxu0 0
        %1465 = vmatpush1.bf16.msra.mxu0 %v1462
        %1466 = vmatprep.subr.bf16.mxu0 0
        %1467 = vmatpush1.bf16.msra.mxu0 0
        %1468 = vmatprep.subr.bf16.mxu0 0
        %1469 = vmatpush1.bf16.msra.mxu0 0
        %1470 = vmatprep.subr.bf16.mxu0 0
        %1471 = vmatpush1.bf16.msra.mxu0 0
        %1472 = vmatprep.subr.bf16.mxu0 0
        %1473 = vmatpush1.bf16.msra.mxu0 0
        %1474 = vmatprep.subr.bf16.mxu0 0
        %1475 = vmatpush1.bf16.msra.mxu0 0
        %1476 = vmatprep.subr.bf16.mxu0 0
        %1477 = vmatpush1.bf16.msra.mxu0 0
        %1478 = vmatprep.subr.bf16.mxu0 0
        %1479 = vmatpush1.bf16.msra.mxu0 0
        %1480 = vmatprep.subr.bf16.mxu0 0
        %1481 = vmatpush1.bf16.msra.mxu0 0
        %1482 = vmatprep.subr.bf16.mxu0 0
        %1483 = vmatpush1.bf16.msra.mxu0 0
        %1484 = vmatprep.subr.bf16.mxu0 0
        %1485 = vmatpush1.bf16.msra.mxu0 0
        %1486 = vmatprep.subr.bf16.mxu0 0
        %1487 = vmatpush1.bf16.msra.mxu0 0
        %1488 = vmatprep.subr.bf16.mxu0 0
        %1489 = vmatpush1.bf16.msra.mxu0 0
        %1490 = vmatprep.subr.bf16.mxu0 0
        %1491 = vmatpush1.bf16.msra.mxu0 0
        %1492 = vmatprep.subr.bf16.mxu0 0
        %1493 = vmatpush1.bf16.msra.mxu0 0
        %1494 = vmatprep.subr.bf16.mxu0 0
        %1495 = vmatpush1.bf16.msra.mxu0 0
        %1496 = vmatprep.mubr.bf16.mxu0 0
        %1497 = vmatmul.mubr.bf16.gmra.mrb[0].mxu0 %v1459
        %v1498 = vpop.f32.mrb[0].mxu0
        %v1499 = vadd.f32 0.0, %v1498
        %v1500 = vpop.f32.mrb[0].mxu0
        %v1501 = vpop.f32.mrb[0].mxu0
        %v1502 = vpop.f32.mrb[0].mxu0
        %1503 = vdwg.mxu0
        %v1505 = vsel %vm1231, %v1340, 0
        %v1508 = vsel %vm1294, %v1339, 0
        %1510 = vmatprep.subr.bf16.mxu0 0
        %1511 = vmatpush1.bf16.msra.mxu0 %v1508
        %1512 = vmatprep.subr.bf16.mxu0 0
        %1513 = vmatpush1.bf16.msra.mxu0 0
        %1514 = vmatprep.subr.bf16.mxu0 0
        %1515 = vmatpush1.bf16.msra.mxu0 0
        %1516 = vmatprep.subr.bf16.mxu0 0
        %1517 = vmatpush1.bf16.msra.mxu0 0
        %1518 = vmatprep.subr.bf16.mxu0 0
        %1519 = vmatpush1.bf16.msra.mxu0 0
        %1520 = vmatprep.subr.bf16.mxu0 0
        %1521 = vmatpush1.bf16.msra.mxu0 0
        %1522 = vmatprep.subr.bf16.mxu0 0
        %1523 = vmatpush1.bf16.msra.mxu0 0
        %1524 = vmatprep.subr.bf16.mxu0 0
        %1525 = vmatpush1.bf16.msra.mxu0 0
        %1526 = vmatprep.subr.bf16.mxu0 0
        %1527 = vmatpush1.bf16.msra.mxu0 0
        %1528 = vmatprep.subr.bf16.mxu0 0
        %1529 = vmatpush1.bf16.msra.mxu0 0
        %1530 = vmatprep.subr.bf16.mxu0 0
        %1531 = vmatpush1.bf16.msra.mxu0 0
        %1532 = vmatprep.subr.bf16.mxu0 0
        %1533 = vmatpush1.bf16.msra.mxu0 0
        %1534 = vmatprep.subr.bf16.mxu0 0
        %1535 = vmatpush1.bf16.msra.mxu0 0
        %1536 = vmatprep.subr.bf16.mxu0 0
        %1537 = vmatpush1.bf16.msra.mxu0 0
        %1538 = vmatprep.subr.bf16.mxu0 0
        %1539 = vmatpush1.bf16.msra.mxu0 0
        %1540 = vmatprep.subr.bf16.mxu0 0
        %1541 = vmatpush1.bf16.msra.mxu0 0
        %1542 = vmatprep.mubr.bf16.mxu0 0
        %1543 = vmatmul.mubr.bf16.gmra.mrb[0].mxu0 %v1505
        %v1544 = vpop.f32.mrb[0].mxu0
        %v1545 = vadd.f32 %v1499, %v1544
        %v1546 = vpop.f32.mrb[0].mxu0
        %v1547 = vpop.f32.mrb[0].mxu0
        %v1548 = vpop.f32.mrb[0].mxu0
        %1549 = vdwg.mxu0
        %1550 = vrot.lane.b32.xlu0 %v1228, 112
        %v1551 = vpop.permute.xlu0 %1550
        %1552 = vrot.lane.b32.xlu0 %v1229, 112
        %v1553 = vpop.permute.xlu0 %1552
        %v1555 = vsel %vm1231, %v1551, 0
        %v1558 = vsel %vm1231, %v1553, 0
        %1560 = vmatprep.subr.bf16.mxu0 0
        %1561 = vmatpush1.bf16.xpose.msra.mxu0 %v1558
        %1562 = vmatprep.subr.bf16.mxu0 0
        %1563 = vmatpush1.bf16.xpose.msra.mxu0 0
        %1564 = vmatprep.subr.bf16.mxu0 0
        %1565 = vmatpush1.bf16.xpose.msra.mxu0 0
        %1566 = vmatprep.subr.bf16.mxu0 0
        %1567 = vmatpush1.bf16.xpose.msra.mxu0 0
        %1568 = vmatprep.subr.bf16.mxu0 0
        %1569 = vmatpush1.bf16.xpose.msra.mxu0 0
        %1570 = vmatprep.subr.bf16.mxu0 0
        %1571 = vmatpush1.bf16.xpose.msra.mxu0 0
        %1572 = vmatprep.subr.bf16.mxu0 0
        %1573 = vmatpush1.bf16.xpose.msra.mxu0 0
        %1574 = vmatprep.subr.bf16.mxu0 0
        %1575 = vmatpush1.bf16.xpose.msra.mxu0 0
        %1576 = vmatprep.subr.bf16.mxu0 0
        %1577 = vmatpush1.bf16.xpose.msra.mxu0 0
        %1578 = vmatprep.subr.bf16.mxu0 0
        %1579 = vmatpush1.bf16.xpose.msra.mxu0 0
        %1580 = vmatprep.subr.bf16.mxu0 0
        %1581 = vmatpush1.bf16.xpose.msra.mxu0 0
        %1582 = vmatprep.subr.bf16.mxu0 0
        %1583 = vmatpush1.bf16.xpose.msra.mxu0 0
        %1584 = vmatprep.subr.bf16.mxu0 0
        %1585 = vmatpush1.bf16.xpose.msra.mxu0 0
        %1586 = vmatprep.subr.bf16.mxu0 0
        %1587 = vmatpush1.bf16.xpose.msra.mxu0 0
        %1588 = vmatprep.subr.bf16.mxu0 0
        %1589 = vmatpush1.bf16.xpose.msra.mxu0 0
        %1590 = vmatprep.subr.bf16.mxu0 0
        %1591 = vmatpush1.bf16.xpose.msra.mxu0 0
        %1592 = vmatprep.mubr.bf16.mxu0 0
        %1593 = vmatmul.mubr.bf16.gmra.mrb[0].mxu0 %v1555
        %v1594 = vpop.f32.mrb[0].mxu0
        %v1595 = vadd.f32 0.0, %v1594
        %v1596 = vpop.f32.mrb[0].mxu0
        %v1597 = vpop.f32.mrb[0].mxu0
        %v1598 = vpop.f32.mrb[0].mxu0
        %1599 = vdwg.mxu0
        %v1600 = vsel %vm1227, %v1595, -1e+30
        %v1601 = vsel %vm1231, %v1600, -inf
        %1602 = vmax.xlane.f32.xlu0 %v1601
        %v1603 = vpop.xlane.xlu0 %1602
        %v1604 = vsub.f32 %v1600, %v1603
        %v1605 = vmul.f32 %v1604, 1.442695
        %v1606 = vpow.pop %v1605
        %v1607 = vsel %vm1231, %v1606, 0.0
        %1608 = vadd.xlane.f32.xlu0 %v1607
        %v1609 = vpop.xlane.xlu0 %1608
        %v1610 = vrcp.pop %v1609
        %v1611 = vmul.f32 %v1606, %v1610
        %v1612 = vpack.c.bf16 %v1611, %v1611
        %1613 = vrot.lane.b32.xlu0 %v1230, 112
        %v1614 = vpop.permute.xlu0 %1613
        %v1616 = vsel %vm1231, %v1612, 0
        %v1619 = vsel %vm1294, %v1614, 0
        %1621 = vmatprep.subr.bf16.mxu0 0
        %1622 = vmatpush1.bf16.msra.mxu0 %v1619
        %1623 = vmatprep.subr.bf16.mxu0 0
        %1624 = vmatpush1.bf16.msra.mxu0 0
        %1625 = vmatprep.subr.bf16.mxu0 0
        %1626 = vmatpush1.bf16.msra.mxu0 0
        %1627 = vmatprep.subr.bf16.mxu0 0
        %1628 = vmatpush1.bf16.msra.mxu0 0
        %1629 = vmatprep.subr.bf16.mxu0 0
        %1630 = vmatpush1.bf16.msra.mxu0 0
        %1631 = vmatprep.subr.bf16.mxu0 0
        %1632 = vmatpush1.bf16.msra.mxu0 0
        %1633 = vmatprep.subr.bf16.mxu0 0
        %1634 = vmatpush1.bf16.msra.mxu0 0
        %1635 = vmatprep.subr.bf16.mxu0 0
        %1636 = vmatpush1.bf16.msra.mxu0 0
        %1637 = vmatprep.subr.bf16.mxu0 0
        %1638 = vmatpush1.bf16.msra.mxu0 0
        %1639 = vmatprep.subr.bf16.mxu0 0
        %1640 = vmatpush1.bf16.msra.mxu0 0
        %1641 = vmatprep.subr.bf16.mxu0 0
        %1642 = vmatpush1.bf16.msra.mxu0 0
        %1643 = vmatprep.subr.bf16.mxu0 0
        %1644 = vmatpush1.bf16.msra.mxu0 0
        %1645 = vmatprep.subr.bf16.mxu0 0
        %1646 = vmatpush1.bf16.msra.mxu0 0
        %1647 = vmatprep.subr.bf16.mxu0 0
        %1648 = vmatpush1.bf16.msra.mxu0 0
        %1649 = vmatprep.subr.bf16.mxu0 0
        %1650 = vmatpush1.bf16.msra.mxu0 0
        %1651 = vmatprep.subr.bf16.mxu0 0
        %1652 = vmatpush1.bf16.msra.mxu0 0
        %1653 = vmatprep.mubr.bf16.mxu0 0
        %1654 = vmatmul.mubr.bf16.gmra.mrb[0].mxu0 %v1616
        %v1655 = vpop.f32.mrb[0].mxu0
        %v1656 = vadd.f32 0.0, %v1655
        %v1657 = vpop.f32.mrb[0].mxu0
        %v1658 = vpop.f32.mrb[0].mxu0
        %v1659 = vpop.f32.mrb[0].mxu0
        %1660 = vdwg.mxu0
        %v1661 = vld [vmem:[#allocation6 + $0x10] sm:$0xff]
        %v1662 = vpack.c.bf16 %v1661, %v1661
        %v1663 = vpack.c.bf16 %v1656, %v1656
        %v1665 = vsel %vm1231, %v1663, 0
        %v1668 = vsel %vm1294, %v1662, 0
        %1670 = vmatprep.subr.bf16.mxu0 0
        %1671 = vmatpush1.bf16.msra.mxu0 %v1668
        %1672 = vmatprep.subr.bf16.mxu0 0
        %1673 = vmatpush1.bf16.msra.mxu0 0
        %1674 = vmatprep.subr.bf16.mxu0 0
        %1675 = vmatpush1.bf16.msra.mxu0 0
        %1676 = vmatprep.subr.bf16.mxu0 0
        %1677 = vmatpush1.bf16.msra.mxu0 0
        %1678 = vmatprep.subr.bf16.mxu0 0
        %1679 = vmatpush1.bf16.msra.mxu0 0
        %1680 = vmatprep.subr.bf16.mxu0 0
        %1681 = vmatpush1.bf16.msra.mxu0 0
        %1682 = vmatprep.subr.bf16.mxu0 0
        %1683 = vmatpush1.bf16.msra.mxu0 0
        %1684 = vmatprep.subr.bf16.mxu0 0
        %1685 = vmatpush1.bf16.msra.mxu0 0
        %1686 = vmatprep.subr.bf16.mxu0 0
        %1687 = vmatpush1.bf16.msra.mxu0 0
        %1688 = vmatprep.subr.bf16.mxu0 0
        %1689 = vmatpush1.bf16.msra.mxu0 0
        %1690 = vmatprep.subr.bf16.mxu0 0
        %1691 = vmatpush1.bf16.msra.mxu0 0
        %1692 = vmatprep.subr.bf16.mxu0 0
        %1693 = vmatpush1.bf16.msra.mxu0 0
        %1694 = vmatprep.subr.bf16.mxu0 0
        %1695 = vmatpush1.bf16.msra.mxu0 0
        %1696 = vmatprep.subr.bf16.mxu0 0
        %1697 = vmatpush1.bf16.msra.mxu0 0
        %1698 = vmatprep.subr.bf16.mxu0 0
        %1699 = vmatpush1.bf16.msra.mxu0 0
        %1700 = vmatprep.subr.bf16.mxu0 0
        %1701 = vmatpush1.bf16.msra.mxu0 0
        %1702 = vmatprep.mubr.bf16.mxu0 0
        %1703 = vmatmul.mubr.bf16.gmra.mrb[0].mxu0 %v1665
        %v1704 = vpop.f32.mrb[0].mxu0
        %v1705 = vadd.f32 0.0, %v1704
        %v1706 = vpop.f32.mrb[0].mxu0
        %v1707 = vpop.f32.mrb[0].mxu0
        %v1708 = vpop.f32.mrb[0].mxu0
        %1709 = vdwg.mxu0
        %v1710 = vadd.f32 %v1545, %v1705
        %1711 = vrot.lane.b32.xlu0 %v1228, 104
        %v1712 = vpop.permute.xlu0 %1711
        %1713 = vrot.lane.b32.xlu0 %v1229, 104
        %v1714 = vpop.permute.xlu0 %1713
        %v1716 = vsel %vm1231, %v1712, 0
        %v1719 = vsel %vm1231, %v1714, 0
        %1721 = vmatprep.subr.bf16.mxu0 0
        %1722 = vmatpush1.bf16.xpose.msra.mxu0 %v1719
        %1723 = vmatprep.subr.bf16.mxu0 0
        %1724 = vmatpush1.bf16.xpose.msra.mxu0 0
        %1725 = vmatprep.subr.bf16.mxu0 0
        %1726 = vmatpush1.bf16.xpose.msra.mxu0 0
        %1727 = vmatprep.subr.bf16.mxu0 0
        %1728 = vmatpush1.bf16.xpose.msra.mxu0 0
        %1729 = vmatprep.subr.bf16.mxu0 0
        %1730 = vmatpush1.bf16.xpose.msra.mxu0 0
        %1731 = vmatprep.subr.bf16.mxu0 0
        %1732 = vmatpush1.bf16.xpose.msra.mxu0 0
        %1733 = vmatprep.subr.bf16.mxu0 0
        %1734 = vmatpush1.bf16.xpose.msra.mxu0 0
        %1735 = vmatprep.subr.bf16.mxu0 0
        %1736 = vmatpush1.bf16.xpose.msra.mxu0 0
        %1737 = vmatprep.subr.bf16.mxu0 0
        %1738 = vmatpush1.bf16.xpose.msra.mxu0 0
        %1739 = vmatprep.subr.bf16.mxu0 0
        %1740 = vmatpush1.bf16.xpose.msra.mxu0 0
        %1741 = vmatprep.subr.bf16.mxu0 0
        %1742 = vmatpush1.bf16.xpose.msra.mxu0 0
        %1743 = vmatprep.subr.bf16.mxu0 0
        %1744 = vmatpush1.bf16.xpose.msra.mxu0 0
        %1745 = vmatprep.subr.bf16.mxu0 0
        %1746 = vmatpush1.bf16.xpose.msra.mxu0 0
        %1747 = vmatprep.subr.bf16.mxu0 0
        %1748 = vmatpush1.bf16.xpose.msra.mxu0 0
        %1749 = vmatprep.subr.bf16.mxu0 0
        %1750 = vmatpush1.bf16.xpose.msra.mxu0 0
        %1751 = vmatprep.subr.bf16.mxu0 0
        %1752 = vmatpush1.bf16.xpose.msra.mxu0 0
        %1753 = vmatprep.mubr.bf16.mxu0 0
        %1754 = vmatmul.mubr.bf16.gmra.mrb[0].mxu0 %v1716
        %v1755 = vpop.f32.mrb[0].mxu0
        %v1756 = vadd.f32 0.0, %v1755
        %v1757 = vpop.f32.mrb[0].mxu0
        %v1758 = vpop.f32.mrb[0].mxu0
        %v1759 = vpop.f32.mrb[0].mxu0
        %1760 = vdwg.mxu0
        %v1761 = vsel %vm1227, %v1756, -1e+30
        %v1762 = vsel %vm1231, %v1761, -inf
        %1763 = vmax.xlane.f32.xlu0 %v1762
        %v1764 = vpop.xlane.xlu0 %1763
        %v1765 = vsub.f32 %v1761, %v1764
        %v1766 = vmul.f32 %v1765, 1.442695
        %v1767 = vpow.pop %v1766
        %v1768 = vsel %vm1231, %v1767, 0.0
        %1769 = vadd.xlane.f32.xlu0 %v1768
        %v1770 = vpop.xlane.xlu0 %1769
        %v1771 = vrcp.pop %v1770
        %v1772 = vmul.f32 %v1767, %v1771
        %v1773 = vpack.c.bf16 %v1772, %v1772
        %1774 = vrot.lane.b32.xlu0 %v1230, 104
        %v1775 = vpop.permute.xlu0 %1774
        %v1777 = vsel %vm1231, %v1773, 0
        %v1780 = vsel %vm1294, %v1775, 0
        %1782 = vmatprep.subr.bf16.mxu0 0
        %1783 = vmatpush1.bf16.msra.mxu0 %v1780
        %1784 = vmatprep.subr.bf16.mxu0 0
        %1785 = vmatpush1.bf16.msra.mxu0 0
        %1786 = vmatprep.subr.bf16.mxu0 0
        %1787 = vmatpush1.bf16.msra.mxu0 0
        %1788 = vmatprep.subr.bf16.mxu0 0
        %1789 = vmatpush1.bf16.msra.mxu0 0
        %1790 = vmatprep.subr.bf16.mxu0 0
        %1791 = vmatpush1.bf16.msra.mxu0 0
        %1792 = vmatprep.subr.bf16.mxu0 0
        %1793 = vmatpush1.bf16.msra.mxu0 0
        %1794 = vmatprep.subr.bf16.mxu0 0
        %1795 = vmatpush1.bf16.msra.mxu0 0
        %1796 = vmatprep.subr.bf16.mxu0 0
        %1797 = vmatpush1.bf16.msra.mxu0 0
        %1798 = vmatprep.subr.bf16.mxu0 0
        %1799 = vmatpush1.bf16.msra.mxu0 0
        %1800 = vmatprep.subr.bf16.mxu0 0
        %1801 = vmatpush1.bf16.msra.mxu0 0
        %1802 = vmatprep.subr.bf16.mxu0 0
        %1803 = vmatpush1.bf16.msra.mxu0 0
        %1804 = vmatprep.subr.bf16.mxu0 0
        %1805 = vmatpush1.bf16.msra.mxu0 0
        %1806 = vmatprep.subr.bf16.mxu0 0
        %1807 = vmatpush1.bf16.msra.mxu0 0
        %1808 = vmatprep.subr.bf16.mxu0 0
        %1809 = vmatpush1.bf16.msra.mxu0 0
        %1810 = vmatprep.subr.bf16.mxu0 0
        %1811 = vmatpush1.bf16.msra.mxu0 0
        %1812 = vmatprep.subr.bf16.mxu0 0
        %1813 = vmatpush1.bf16.msra.mxu0 0
        %1814 = vmatprep.mubr.bf16.mxu0 0
        %1815 = vmatmul.mubr.bf16.gmra.mrb[0].mxu0 %v1777
        %v1816 = vpop.f32.mrb[0].mxu0
        %v1817 = vadd.f32 0.0, %v1816
        %v1818 = vpop.f32.mrb[0].mxu0
        %v1819 = vpop.f32.mrb[0].mxu0
        %v1820 = vpop.f32.mrb[0].mxu0
        %1821 = vdwg.mxu0
        %v1822 = vld [vmem:[#allocation6 + $0x18] sm:$0xff]
        %v1823 = vpack.c.bf16 %v1822, %v1822
        %v1824 = vpack.c.bf16 %v1817, %v1817
        %v1826 = vsel %vm1231, %v1824, 0
        %v1829 = vsel %vm1294, %v1823, 0
        %1831 = vmatprep.subr.bf16.mxu0 0
        %1832 = vmatpush1.bf16.msra.mxu0 %v1829
        %1833 = vmatprep.subr.bf16.mxu0 0
        %1834 = vmatpush1.bf16.msra.mxu0 0
        %1835 = vmatprep.subr.bf16.mxu0 0
        %1836 = vmatpush1.bf16.msra.mxu0 0
        %1837 = vmatprep.subr.bf16.mxu0 0
        %1838 = vmatpush1.bf16.msra.mxu0 0
        %1839 = vmatprep.subr.bf16.mxu0 0
        %1840 = vmatpush1.bf16.msra.mxu0 0
        %1841 = vmatprep.subr.bf16.mxu0 0
        %1842 = vmatpush1.bf16.msra.mxu0 0
        %1843 = vmatprep.subr.bf16.mxu0 0
        %1844 = vmatpush1.bf16.msra.mxu0 0
        %1845 = vmatprep.subr.bf16.mxu0 0
        %1846 = vmatpush1.bf16.msra.mxu0 0
        %1847 = vmatprep.subr.bf16.mxu0 0
        %1848 = vmatpush1.bf16.msra.mxu0 0
        %1849 = vmatprep.subr.bf16.mxu0 0
        %1850 = vmatpush1.bf16.msra.mxu0 0
        %1851 = vmatprep.subr.bf16.mxu0 0
        %1852 = vmatpush1.bf16.msra.mxu0 0
        %1853 = vmatprep.subr.bf16.mxu0 0
        %1854 = vmatpush1.bf16.msra.mxu0 0
        %1855 = vmatprep.subr.bf16.mxu0 0
        %1856 = vmatpush1.bf16.msra.mxu0 0
        %1857 = vmatprep.subr.bf16.mxu0 0
        %1858 = vmatpush1.bf16.msra.mxu0 0
        %1859 = vmatprep.subr.bf16.mxu0 0
        %1860 = vmatpush1.bf16.msra.mxu0 0
        %1861 = vmatprep.subr.bf16.mxu0 0
        %1862 = vmatpush1.bf16.msra.mxu0 0
        %1863 = vmatprep.mubr.bf16.mxu0 0
        %1864 = vmatmul.mubr.bf16.gmra.mrb[0].mxu0 %v1826
        %v1865 = vpop.f32.mrb[0].mxu0
        %v1866 = vadd.f32 0.0, %v1865
        %v1867 = vpop.f32.mrb[0].mxu0
        %v1868 = vpop.f32.mrb[0].mxu0
        %v1869 = vpop.f32.mrb[0].mxu0
        %1870 = vdwg.mxu0
        %v1871 = vadd.f32 %v1710, %v1866
        %v1872 = vld [vmem:[#allocation7] sm:$0x1]
        %v1874 = vlaneseq
        %v1875 = vshrl.u32 %v1874, 7
        %v1876 = vsub.s32 0, %v1875
        %v1877 = vrot.slane %v1872, %v1876
        %v1879 = vadd.f32 %v1871, %v1877
        %v1880 = vadd.f32 %v962, %v1879
        %1881 = vadd.xlane.f32.xlu0 %v1880
        %v1882 = vpop.xlane.xlu0 %1881
        %v1883 = vmul.f32 %v1882, 0.03125
        %v1884 = vmul.f32 %v1880, %v1880
        %1885 = vadd.xlane.f32.xlu0 %v1884
        %v1886 = vpop.xlane.xlu0 %1885
        %v1887 = vmul.f32 %v1886, 0.03125
        %v1888 = vmul.f32 %v1883, %v1883
        %v1889 = vsub.f32 %v1887, %v1888
        %v1890 = vsub.f32 %v1880, %v1883
        %v1891 = vadd.f32 %v1889, 1e-05
        %v1892 = vrsqrt.pop %v1891
        %v1893 = vmul.f32 %v1890, %v1892
        %v1894 = vld [vmem:[#allocation24] sm:$0x1]
        %v1896 = vlaneseq
        %v1897 = vshrl.u32 %v1896, 7
        %v1898 = vsub.s32 0, %v1897
        %v1899 = vrot.slane %v1894, %v1898
        %v1901 = vmul.f32 %v1893, %v1899
        %v1902 = vld [vmem:[#allocation25] sm:$0x1]
        %v1904 = vlaneseq
        %v1905 = vshrl.u32 %v1904, 7
        %v1906 = vsub.s32 0, %v1905
        %v1907 = vrot.slane %v1902, %v1906
        %v1909 = vadd.f32 %v1901, %v1907
        %v1910 = vpack.c.bf16 %v1909, %v1909
        %v1911 = vld [vmem:[#allocation9] sm:$0xf]
        %v1912 = vld [vmem:[#allocation9 + $0x4] sm:$0xf]
        %v1913 = vld [vmem:[#allocation9 + $0x8] sm:$0xf]
        %v1914 = vld [vmem:[#allocation9 + $0xc] sm:$0xf]
        %v1915 = vld [vmem:[#allocation9 + $0x10] sm:$0xf]
        %v1916 = vld [vmem:[#allocation9 + $0x14] sm:$0xf]
        %v1917 = vld [vmem:[#allocation9 + $0x18] sm:$0xf]
        %v1918 = vld [vmem:[#allocation9 + $0x1c] sm:$0xf]
        %v1919 = vld [vmem:[#allocation9 + $0x20] sm:$0xf]
        %v1920 = vld [vmem:[#allocation9 + $0x24] sm:$0xf]
        %v1921 = vld [vmem:[#allocation9 + $0x28] sm:$0xf]
        %v1922 = vld [vmem:[#allocation9 + $0x2c] sm:$0xf]
        %v1923 = vld [vmem:[#allocation9 + $0x30] sm:$0xf]
        %v1924 = vld [vmem:[#allocation9 + $0x34] sm:$0xf]
        %v1925 = vld [vmem:[#allocation9 + $0x38] sm:$0xf]
        %v1926 = vld [vmem:[#allocation9 + $0x3c] sm:$0xf]
        %v1927 = vld [vmem:[#allocation10] sm:$0x1]
        %v1929 = vlaneseq
        %v1930 = vshrl.u32 %v1929, 7
        %v1931 = vsub.s32 0, %v1930
        %v1932 = vrot.slane %v1927, %v1931
        %v1950 = vunpack.c.l.b16 %v1911
        %v1951 = vunpack.c.l.b16 %v1912
        %v1952 = vunpack.c.l.b16 %v1913
        %v1953 = vunpack.c.l.b16 %v1914
        %v1954 = vunpack.c.l.b16 %v1915
        %v1955 = vunpack.c.l.b16 %v1916
        %v1956 = vunpack.c.l.b16 %v1917
        %v1957 = vunpack.c.l.b16 %v1918
        %v1958 = vunpack.c.l.b16 %v1919
        %v1959 = vunpack.c.l.b16 %v1920
        %v1960 = vunpack.c.l.b16 %v1921
        %v1961 = vunpack.c.l.b16 %v1922
        %v1962 = vunpack.c.l.b16 %v1923
        %v1963 = vunpack.c.l.b16 %v1924
        %v1964 = vunpack.c.l.b16 %v1925
        %v1965 = vunpack.c.l.b16 %v1926
        %v1966 = vpack.c.b16 %v1951, %v1950
        %v1967 = vpack.c.b16 %v1953, %v1952
        %v1968 = vpack.c.b16 %v1955, %v1954
        %v1969 = vpack.c.b16 %v1957, %v1956
        %v1970 = vpack.c.b16 %v1959, %v1958
        %v1971 = vpack.c.b16 %v1961, %v1960
        %v1972 = vpack.c.b16 %v1963, %v1962
        %v1973 = vpack.c.b16 %v1965, %v1964
        %1982 = vmatprep.subr.bf16.mxu0 0
        %1983 = vmatpush1.bf16.msra.mxu0 %v1966
        %1984 = vmatprep.subr.bf16.mxu0 0
        %1985 = vmatpush1.bf16.msra.mxu0 %v1967
        %1986 = vmatprep.subr.bf16.mxu0 0
        %1987 = vmatpush1.bf16.msra.mxu0 %v1968
        %1988 = vmatprep.subr.bf16.mxu0 0
        %1989 = vmatpush1.bf16.msra.mxu0 %v1969
        %1990 = vmatprep.subr.bf16.mxu0 0
        %1991 = vmatpush1.bf16.msra.mxu0 %v1970
        %1992 = vmatprep.subr.bf16.mxu0 0
        %1993 = vmatpush1.bf16.msra.mxu0 %v1971
        %1994 = vmatprep.subr.bf16.mxu0 0
        %1995 = vmatpush1.bf16.msra.mxu0 %v1972
        %1996 = vmatprep.subr.bf16.mxu0 0
        %1997 = vmatpush1.bf16.msra.mxu0 %v1973
        %1998 = vmatprep.subr.bf16.mxu0 0
        %1999 = vmatpush1.bf16.msra.mxu0 0
        %2000 = vmatprep.subr.bf16.mxu0 0
        %2001 = vmatpush1.bf16.msra.mxu0 0
        %2002 = vmatprep.subr.bf16.mxu0 0
        %2003 = vmatpush1.bf16.msra.mxu0 0
        %2004 = vmatprep.subr.bf16.mxu0 0
        %2005 = vmatpush1.bf16.msra.mxu0 0
        %2006 = vmatprep.subr.bf16.mxu0 0
        %2007 = vmatpush1.bf16.msra.mxu0 0
        %2008 = vmatprep.subr.bf16.mxu0 0
        %2009 = vmatpush1.bf16.msra.mxu0 0
        %2010 = vmatprep.subr.bf16.mxu0 0
        %2011 = vmatpush1.bf16.msra.mxu0 0
        %2012 = vmatprep.subr.bf16.mxu0 0
        %2013 = vmatpush1.bf16.msra.mxu0 0
        %2014 = vmatprep.mubr.bf16.mxu0 0
        %2015 = vmatmul.mubr.bf16.gmra.mrb[0].mxu0 %v1910
        %v2016 = vpop.f32.mrb[0].mxu0
        %v2017 = vadd.f32 %v1932, %v2016
        %v2018 = vpop.f32.mrb[0].mxu0
        %v2019 = vpop.f32.mrb[0].mxu0
        %v2020 = vpop.f32.mrb[0].mxu0
        %2021 = vdwg.mxu0
        %v2022 = vpack.c.bf16 %v963, %v963
        %v2023 = vld [vmem:[#allocation12] sm:$0xff]
        %v2024 = vld [vmem:[#allocation12 + $0x8] sm:$0xff]
        %v2025 = vld [vmem:[#allocation12 + $0x10] sm:$0xff]
        %v2026 = vld [vmem:[#allocation12 + $0x18] sm:$0xff]
        %v2027 = vld [vmem:[#allocation12 + $0x20] sm:$0xff]
        %v2028 = vld [vmem:[#allocation12 + $0x28] sm:$0xff]
        %v2029 = vld [vmem:[#allocation12 + $0x30] sm:$0xff]
        %v2030 = vld [vmem:[#allocation12 + $0x38] sm:$0xff]
        %v2031 = vld [vmem:[#allocation12 + $0x40] sm:$0xff]
        %v2032 = vld [vmem:[#allocation12 + $0x48] sm:$0xff]
        %v2033 = vld [vmem:[#allocation12 + $0x50] sm:$0xff]
        %v2034 = vld [vmem:[#allocation12 + $0x58] sm:$0xff]
        %v2035 = vld [vmem:[#allocation12 + $0x60] sm:$0xff]
        %v2036 = vld [vmem:[#allocation12 + $0x68] sm:$0xff]
        %v2037 = vld [vmem:[#allocation12 + $0x70] sm:$0xff]
        %v2038 = vld [vmem:[#allocation12 + $0x78] sm:$0xff]
        %v2039 = vld [vmem:[#allocation13] sm:$0x3]
        %v2041 = vlaneseq
        %v2042 = vshrl.u32 %v2041, 7
        %v2043 = vsub.s32 0, %v2042
        %v2044 = vrot.slane %v2039, %v2043
        %v2045 = vlaneseq
        %v2046 = vshrl.u32 %v2045, 7
        %v2047 = vsub.s32 1, %v2046
        %v2048 = vrot.slane %v2039, %v2047
        %v2067 = vunpack.c.l.b16 %v2023
        %v2068 = vunpack.c.h.b16 %v2023
        %v2069 = vunpack.c.l.b16 %v2024
        %v2070 = vunpack.c.h.b16 %v2024
        %v2071 = vunpack.c.l.b16 %v2025
        %v2072 = vunpack.c.h.b16 %v2025
        %v2073 = vunpack.c.l.b16 %v2026
        %v2074 = vunpack.c.h.b16 %v2026
        %v2075 = vunpack.c.l.b16 %v2027
        %v2076 = vunpack.c.h.b16 %v2027
        %v2077 = vunpack.c.l.b16 %v2028
        %v2078 = vunpack.c.h.b16 %v2028
        %v2079 = vunpack.c.l.b16 %v2029
        %v2080 = vunpack.c.h.b16 %v2029
        %v2081 = vunpack.c.l.b16 %v2030
        %v2082 = vunpack.c.h.b16 %v2030
        %v2083 = vunpack.c.l.b16 %v2031
        %v2084 = vunpack.c.h.b16 %v2031
        %v2085 = vunpack.c.l.b16 %v2032
        %v2086 = vunpack.c.h.b16 %v2032
        %v2087 = vunpack.c.l.b16 %v2033
        %v2088 = vunpack.c.h.b16 %v2033
        %v2089 = vunpack.c.l.b16 %v2034
        %v2090 = vunpack.c.h.b16 %v2034
        %v2091 = vunpack.c.l.b16 %v2035
        %v2092 = vunpack.c.h.b16 %v2035
        %v2093 = vunpack.c.l.b16 %v2036
        %v2094 = vunpack.c.h.b16 %v2036
        %v2095 = vunpack.c.l.b16 %v2037
        %v2096 = vunpack.c.h.b16 %v2037
        %v2097 = vunpack.c.l.b16 %v2038
        %v2098 = vunpack.c.h.b16 %v2038
        %v2099 = vpack.c.b16 %v2069, %v2067
        %v2100 = vpack.c.b16 %v2070, %v2068
        %v2101 = vpack.c.b16 %v2073, %v2071
        %v2102 = vpack.c.b16 %v2074, %v2072
        %v2103 = vpack.c.b16 %v2077, %v2075
        %v2104 = vpack.c.b16 %v2078, %v2076
        %v2105 = vpack.c.b16 %v2081, %v2079
        %v2106 = vpack.c.b16 %v2082, %v2080
        %v2107 = vpack.c.b16 %v2085, %v2083
        %v2108 = vpack.c.b16 %v2086, %v2084
        %v2109 = vpack.c.b16 %v2089, %v2087
        %v2110 = vpack.c.b16 %v2090, %v2088
        %v2111 = vpack.c.b16 %v2093, %v2091
        %v2112 = vpack.c.b16 %v2094, %v2092
        %v2113 = vpack.c.b16 %v2097, %v2095
        %v2114 = vpack.c.b16 %v2098, %v2096
        %2131 = vmatprep.subr.bf16.mxu0 %v2100
        %2132 = vmatpush1.bf16.msra.mxu0 %v2099
        %2133 = vmatprep.subr.bf16.mxu0 %v2102
        %2134 = vmatpush1.bf16.msra.mxu0 %v2101
        %2135 = vmatprep.subr.bf16.mxu0 %v2104
        %2136 = vmatpush1.bf16.msra.mxu0 %v2103
        %2137 = vmatprep.subr.bf16.mxu0 %v2106
        %2138 = vmatpush1.bf16.msra.mxu0 %v2105
        %2139 = vmatprep.subr.bf16.mxu0 %v2108
        %2140 = vmatpush1.bf16.msra.mxu0 %v2107
        %2141 = vmatprep.subr.bf16.mxu0 %v2110
        %2142 = vmatpush1.bf16.msra.mxu0 %v2109
        %2143 = vmatprep.subr.bf16.mxu0 %v2112
        %2144 = vmatpush1.bf16.msra.mxu0 %v2111
        %2145 = vmatprep.subr.bf16.mxu0 %v2114
        %2146 = vmatpush1.bf16.msra.mxu0 %v2113
        %2147 = vmatprep.subr.bf16.mxu0 0
        %2148 = vmatpush1.bf16.msra.mxu0 0
        %2149 = vmatprep.subr.bf16.mxu0 0
        %2150 = vmatpush1.bf16.msra.mxu0 0
        %2151 = vmatprep.subr.bf16.mxu0 0
        %2152 = vmatpush1.bf16.msra.mxu0 0
        %2153 = vmatprep.subr.bf16.mxu0 0
        %2154 = vmatpush1.bf16.msra.mxu0 0
        %2155 = vmatprep.subr.bf16.mxu0 0
        %2156 = vmatpush1.bf16.msra.mxu0 0
        %2157 = vmatprep.subr.bf16.mxu0 0
        %2158 = vmatpush1.bf16.msra.mxu0 0
        %2159 = vmatprep.subr.bf16.mxu0 0
        %2160 = vmatpush1.bf16.msra.mxu0 0
        %2161 = vmatprep.subr.bf16.mxu0 0
        %2162 = vmatpush1.bf16.msra.mxu0 0
        %2163 = vmatprep.mubr.bf16.mxu0 0
        %2164 = vmatmul.mubr.bf16.gmra.mrb[0].mxu0 %v2022
        %v2165 = vpop.f32.mrb[0].mxu0
        %v2166 = vadd.f32 %v2044, %v2165
        %v2167 = vpop.f32.mrb[0].mxu0
        %v2168 = vadd.f32 %v2048, %v2167
        %v2169 = vpop.f32.mrb[0].mxu0
        %v2170 = vpop.f32.mrb[0].mxu0
        %2171 = vdwg.mxu0
        %v2172 = vpack.c.bf16 %v2017, %v2017
        %v2173 = vpack.c.bf16 %v2166, %v2166
        %v2174 = vpack.c.bf16 %v2168, %v2168
        %v2176 = vsel %vm1231, %v2172, 0
        %v2179 = vsel %vm1231, %v2173, 0
        %2181 = vmatprep.subr.bf16.mxu0 0
        %2182 = vmatpush1.bf16.xpose.msra.mxu0 %v2179
        %2183 = vmatprep.subr.bf16.mxu0 0
        %2184 = vmatpush1.bf16.xpose.msra.mxu0 0
        %2185 = vmatprep.subr.bf16.mxu0 0
        %2186 = vmatpush1.bf16.xpose.msra.mxu0 0
        %2187 = vmatprep.subr.bf16.mxu0 0
        %2188 = vmatpush1.bf16.xpose.msra.mxu0 0
        %2189 = vmatprep.subr.bf16.mxu0 0
        %2190 = vmatpush1.bf16.xpose.msra.mxu0 0
        %2191 = vmatprep.subr.bf16.mxu0 0
        %2192 = vmatpush1.bf16.xpose.msra.mxu0 0
        %2193 = vmatprep.subr.bf16.mxu0 0
        %2194 = vmatpush1.bf16.xpose.msra.mxu0 0
        %2195 = vmatprep.subr.bf16.mxu0 0
        %2196 = vmatpush1.bf16.xpose.msra.mxu0 0
        %2197 = vmatprep.subr.bf16.mxu0 0
        %2198 = vmatpush1.bf16.xpose.msra.mxu0 0
        %2199 = vmatprep.subr.bf16.mxu0 0
        %2200 = vmatpush1.bf16.xpose.msra.mxu0 0
        %2201 = vmatprep.subr.bf16.mxu0 0
        %2202 = vmatpush1.bf16.xpose.msra.mxu0 0
        %2203 = vmatprep.subr.bf16.mxu0 0
        %2204 = vmatpush1.bf16.xpose.msra.mxu0 0
        %2205 = vmatprep.subr.bf16.mxu0 0
        %2206 = vmatpush1.bf16.xpose.msra.mxu0 0
        %2207 = vmatprep.subr.bf16.mxu0 0
        %2208 = vmatpush1.bf16.xpose.msra.mxu0 0
        %2209 = vmatprep.subr.bf16.mxu0 0
        %2210 = vmatpush1.bf16.xpose.msra.mxu0 0
        %2211 = vmatprep.subr.bf16.mxu0 0
        %2212 = vmatpush1.bf16.xpose.msra.mxu0 0
        %2213 = vmatprep.mubr.bf16.mxu0 0
        %2214 = vmatmul.mubr.bf16.gmra.mrb[0].mxu0 %v2176
        %v2215 = vpop.f32.mrb[0].mxu0
        %v2216 = vadd.f32 0.0, %v2215
        %v2217 = vpop.f32.mrb[0].mxu0
        %v2218 = vpop.f32.mrb[0].mxu0
        %v2219 = vpop.f32.mrb[0].mxu0
        %2220 = vdwg.mxu0
        %vm2221 = vcmask 31744
        %v2222 = vsel %vm2221, %v2216, -inf
        %2223 = vmax.xlane.f32.xlu0 %v2222
        %v2224 = vpop.xlane.xlu0 %2223
        %v2225 = vsub.f32 %v2216, %v2224
        %v2226 = vmul.f32 %v2225, 1.442695
        %v2227 = vpow.pop %v2226
        %v2228 = vsel %vm2221, %v2227, 0.0
        %2229 = vadd.xlane.f32.xlu0 %v2228
        %v2230 = vpop.xlane.xlu0 %2229
        %v2231 = vrcp.pop %v2230
        %v2232 = vmul.f32 %v2227, %v2231
        %v2233 = vpack.c.bf16 %v2232, %v2232
        %v2235 = vsel %vm2221, %v2233, 0
        %vm2237 = vcmask 1041408
        %v2239 = vsel %vm2237, %v2174, 0
        %2241 = vmatprep.subr.bf16.mxu0 0
        %2242 = vmatpush1.bf16.msra.mxu0 %v2239
        %2243 = vmatprep.subr.bf16.mxu0 0
        %2244 = vmatpush1.bf16.msra.mxu0 0
        %2245 = vmatprep.subr.bf16.mxu0 0
        %2246 = vmatpush1.bf16.msra.mxu0 0
        %2247 = vmatprep.subr.bf16.mxu0 0
        %2248 = vmatpush1.bf16.msra.mxu0 0
        %2249 = vmatprep.subr.bf16.mxu0 0
        %2250 = vmatpush1.bf16.msra.mxu0 0
        %2251 = vmatprep.subr.bf16.mxu0 0
        %2252 = vmatpush1.bf16.msra.mxu0 0
        %2253 = vmatprep.subr.bf16.mxu0 0
        %2254 = vmatpush1.bf16.msra.mxu0 0
        %2255 = vmatprep.subr.bf16.mxu0 0
        %2256 = vmatpush1.bf16.msra.mxu0 0
        %2257 = vmatprep.subr.bf16.mxu0 0
        %2258 = vmatpush1.bf16.msra.mxu0 0
        %2259 = vmatprep.subr.bf16.mxu0 0
        %2260 = vmatpush1.bf16.msra.mxu0 0
        %2261 = vmatprep.subr.bf16.mxu0 0
        %2262 = vmatpush1.bf16.msra.mxu0 0
        %2263 = vmatprep.subr.bf16.mxu0 0
        %2264 = vmatpush1.bf16.msra.mxu0 0
        %2265 = vmatprep.subr.bf16.mxu0 0
        %2266 = vmatpush1.bf16.msra.mxu0 0
        %2267 = vmatprep.subr.bf16.mxu0 0
        %2268 = vmatpush1.bf16.msra.mxu0 0
        %2269 = vmatprep.subr.bf16.mxu0 0
        %2270 = vmatpush1.bf16.msra.mxu0 0
        %2271 = vmatprep.subr.bf16.mxu0 0
        %2272 = vmatpush1.bf16.msra.mxu0 0
        %2273 = vmatprep.mubr.bf16.mxu0 0
        %2274 = vmatmul.mubr.bf16.gmra.mrb[0].mxu0 %v2235
        %v2275 = vpop.f32.mrb[0].mxu0
        %v2276 = vadd.f32 0.0, %v2275
        %v2277 = vpop.f32.mrb[0].mxu0
        %v2278 = vpop.f32.mrb[0].mxu0
        %v2279 = vpop.f32.mrb[0].mxu0
        %2280 = vdwg.mxu0
        %v2281 = vld [vmem:[#allocation15] sm:$0xff]
        %v2282 = vpack.c.bf16 %v2281, %v2281
        %v2283 = vpack.c.bf16 %v2276, %v2276
        %2285 = vrot.lane.b32.xlu0 %v2172, 120
        %v2286 = vpop.permute.xlu0 %2285
        %2288 = vrot.lane.b32.xlu0 %v2173, 120
        %v2289 = vpop.permute.xlu0 %2288
        %v2291 = vsel %vm1231, %v2286, 0
        %v2294 = vsel %vm1231, %v2289, 0
        %2296 = vmatprep.subr.bf16.mxu0 0
        %2297 = vmatpush1.bf16.xpose.msra.mxu0 %v2294
        %2298 = vmatprep.subr.bf16.mxu0 0
        %2299 = vmatpush1.bf16.xpose.msra.mxu0 0
        %2300 = vmatprep.subr.bf16.mxu0 0
        %2301 = vmatpush1.bf16.xpose.msra.mxu0 0
        %2302 = vmatprep.subr.bf16.mxu0 0
        %2303 = vmatpush1.bf16.xpose.msra.mxu0 0
        %2304 = vmatprep.subr.bf16.mxu0 0
        %2305 = vmatpush1.bf16.xpose.msra.mxu0 0
        %2306 = vmatprep.subr.bf16.mxu0 0
        %2307 = vmatpush1.bf16.xpose.msra.mxu0 0
        %2308 = vmatprep.subr.bf16.mxu0 0
        %2309 = vmatpush1.bf16.xpose.msra.mxu0 0
        %2310 = vmatprep.subr.bf16.mxu0 0
        %2311 = vmatpush1.bf16.xpose.msra.mxu0 0
        %2312 = vmatprep.subr.bf16.mxu0 0
        %2313 = vmatpush1.bf16.xpose.msra.mxu0 0
        %2314 = vmatprep.subr.bf16.mxu0 0
        %2315 = vmatpush1.bf16.xpose.msra.mxu0 0
        %2316 = vmatprep.subr.bf16.mxu0 0
        %2317 = vmatpush1.bf16.xpose.msra.mxu0 0
        %2318 = vmatprep.subr.bf16.mxu0 0
        %2319 = vmatpush1.bf16.xpose.msra.mxu0 0
        %2320 = vmatprep.subr.bf16.mxu0 0
        %2321 = vmatpush1.bf16.xpose.msra.mxu0 0
        %2322 = vmatprep.subr.bf16.mxu0 0
        %2323 = vmatpush1.bf16.xpose.msra.mxu0 0
        %2324 = vmatprep.subr.bf16.mxu0 0
        %2325 = vmatpush1.bf16.xpose.msra.mxu0 0
        %2326 = vmatprep.subr.bf16.mxu0 0
        %2327 = vmatpush1.bf16.xpose.msra.mxu0 0
        %2328 = vmatprep.mubr.bf16.mxu0 0
        %2329 = vmatmul.mubr.bf16.gmra.mrb[0].mxu0 %v2291
        %v2330 = vpop.f32.mrb[0].mxu0
        %v2331 = vadd.f32 0.0, %v2330
        %v2332 = vpop.f32.mrb[0].mxu0
        %v2333 = vpop.f32.mrb[0].mxu0
        %v2334 = vpop.f32.mrb[0].mxu0
        %2335 = vdwg.mxu0
        %v2336 = vsel %vm2221, %v2331, -inf
        %2337 = vmax.xlane.f32.xlu0 %v2336
        %v2338 = vpop.xlane.xlu0 %2337
        %v2339 = vsub.f32 %v2331, %v2338
        %v2340 = vmul.f32 %v2339, 1.442695
        %v2341 = vpow.pop %v2340
        %v2342 = vsel %vm2221, %v2341, 0.0
        %2343 = vadd.xlane.f32.xlu0 %v2342
        %v2344 = vpop.xlane.xlu0 %2343
        %v2345 = vrcp.pop %v2344
        %v2346 = vmul.f32 %v2341, %v2345
        %v2347 = vpack.c.bf16 %v2346, %v2346
        %2349 = vrot.lane.b32.xlu0 %v2174, 120
        %v2350 = vpop.permute.xlu0 %2349
        %v2352 = vsel %vm2221, %v2347, 0
        %v2355 = vsel %vm2237, %v2350, 0
        %2357 = vmatprep.subr.bf16.mxu0 0
        %2358 = vmatpush1.bf16.msra.mxu0 %v2355
        %2359 = vmatprep.subr.bf16.mxu0 0
        %2360 = vmatpush1.bf16.msra.mxu0 0
        %2361 = vmatprep.subr.bf16.mxu0 0
        %2362 = vmatpush1.bf16.msra.mxu0 0
        %2363 = vmatprep.subr.bf16.mxu0 0
        %2364 = vmatpush1.bf16.msra.mxu0 0
        %2365 = vmatprep.subr.bf16.mxu0 0
        %2366 = vmatpush1.bf16.msra.mxu0 0
        %2367 = vmatprep.subr.bf16.mxu0 0
        %2368 = vmatpush1.bf16.msra.mxu0 0
        %2369 = vmatprep.subr.bf16.mxu0 0
        %2370 = vmatpush1.bf16.msra.mxu0 0
        %2371 = vmatprep.subr.bf16.mxu0 0
        %2372 = vmatpush1.bf16.msra.mxu0 0
        %2373 = vmatprep.subr.bf16.mxu0 0
        %2374 = vmatpush1.bf16.msra.mxu0 0
        %2375 = vmatprep.subr.bf16.mxu0 0
        %2376 = vmatpush1.bf16.msra.mxu0 0
        %2377 = vmatprep.subr.bf16.mxu0 0
        %2378 = vmatpush1.bf16.msra.mxu0 0
        %2379 = vmatprep.subr.bf16.mxu0 0
        %2380 = vmatpush1.bf16.msra.mxu0 0
        %2381 = vmatprep.subr.bf16.mxu0 0
        %2382 = vmatpush1.bf16.msra.mxu0 0
        %2383 = vmatprep.subr.bf16.mxu0 0
        %2384 = vmatpush1.bf16.msra.mxu0 0
        %2385 = vmatprep.subr.bf16.mxu0 0
        %2386 = vmatpush1.bf16.msra.mxu0 0
        %2387 = vmatprep.subr.bf16.mxu0 0
        %2388 = vmatpush1.bf16.msra.mxu0 0
        %2389 = vmatprep.mubr.bf16.mxu0 0
        %2390 = vmatmul.mubr.bf16.gmra.mrb[0].mxu0 %v2352
        %v2391 = vpop.f32.mrb[0].mxu0
        %v2392 = vadd.f32 0.0, %v2391
        %v2393 = vpop.f32.mrb[0].mxu0
        %v2394 = vpop.f32.mrb[0].mxu0
        %v2395 = vpop.f32.mrb[0].mxu0
        %2396 = vdwg.mxu0
        %v2397 = vld [vmem:[#allocation15 + $0x8] sm:$0xff]
        %v2398 = vpack.c.bf16 %v2397, %v2397
        %v2399 = vpack.c.bf16 %v2392, %v2392
        %v2401 = vsel %vm1231, %v2399, 0
        %v2404 = vsel %vm1294, %v2398, 0
        %2406 = vmatprep.subr.bf16.mxu0 0
        %2407 = vmatpush1.bf16.msra.mxu0 %v2404
        %2408 = vmatprep.subr.bf16.mxu0 0
        %2409 = vmatpush1.bf16.msra.mxu0 0
        %2410 = vmatprep.subr.bf16.mxu0 0
        %2411 = vmatpush1.bf16.msra.mxu0 0
        %2412 = vmatprep.subr.bf16.mxu0 0
        %2413 = vmatpush1.bf16.msra.mxu0 0
        %2414 = vmatprep.subr.bf16.mxu0 0
        %2415 = vmatpush1.bf16.msra.mxu0 0
        %2416 = vmatprep.subr.bf16.mxu0 0
        %2417 = vmatpush1.bf16.msra.mxu0 0
        %2418 = vmatprep.subr.bf16.mxu0 0
        %2419 = vmatpush1.bf16.msra.mxu0 0
        %2420 = vmatprep.subr.bf16.mxu0 0
        %2421 = vmatpush1.bf16.msra.mxu0 0
        %2422 = vmatprep.subr.bf16.mxu0 0
        %2423 = vmatpush1.bf16.msra.mxu0 0
        %2424 = vmatprep.subr.bf16.mxu0 0
        %2425 = vmatpush1.bf16.msra.mxu0 0
        %2426 = vmatprep.subr.bf16.mxu0 0
        %2427 = vmatpush1.bf16.msra.mxu0 0
        %2428 = vmatprep.subr.bf16.mxu0 0
        %2429 = vmatpush1.bf16.msra.mxu0 0
        %2430 = vmatprep.subr.bf16.mxu0 0
        %2431 = vmatpush1.bf16.msra.mxu0 0
        %2432 = vmatprep.subr.bf16.mxu0 0
        %2433 = vmatpush1.bf16.msra.mxu0 0
        %2434 = vmatprep.subr.bf16.mxu0 0
        %2435 = vmatpush1.bf16.msra.mxu0 0
        %2436 = vmatprep.subr.bf16.mxu0 0
        %2437 = vmatpush1.bf16.msra.mxu0 0
        %2438 = vmatprep.mubr.bf16.mxu0 0
        %2439 = vmatmul.mubr.bf16.gmra.mrb[0].mxu0 %v2401
        %v2440 = vpop.f32.mrb[0].mxu0
        %v2441 = vadd.f32 0.0, %v2440
        %v2442 = vpop.f32.mrb[0].mxu0
        %v2443 = vpop.f32.mrb[0].mxu0
        %v2444 = vpop.f32.mrb[0].mxu0
        %2445 = vdwg.mxu0
        %v2447 = vsel %vm1231, %v2283, 0
        %v2450 = vsel %vm1294, %v2282, 0
        %2452 = vmatprep.subr.bf16.mxu0 0
        %2453 = vmatpush1.bf16.msra.mxu0 %v2450
        %2454 = vmatprep.subr.bf16.mxu0 0
        %2455 = vmatpush1.bf16.msra.mxu0 0
        %2456 = vmatprep.subr.bf16.mxu0 0
        %2457 = vmatpush1.bf16.msra.mxu0 0
        %2458 = vmatprep.subr.bf16.mxu0 0
        %2459 = vmatpush1.bf16.msra.mxu0 0
        %2460 = vmatprep.subr.bf16.mxu0 0
        %2461 = vmatpush1.bf16.msra.mxu0 0
        %2462 = vmatprep.subr.bf16.mxu0 0
        %2463 = vmatpush1.bf16.msra.mxu0 0
        %2464 = vmatprep.subr.bf16.mxu0 0
        %2465 = vmatpush1.bf16.msra.mxu0 0
        %2466 = vmatprep.subr.bf16.mxu0 0
        %2467 = vmatpush1.bf16.msra.mxu0 0
        %2468 = vmatprep.subr.bf16.mxu0 0
        %2469 = vmatpush1.bf16.msra.mxu0 0
        %2470 = vmatprep.subr.bf16.mxu0 0
        %2471 = vmatpush1.bf16.msra.mxu0 0
        %2472 = vmatprep.subr.bf16.mxu0 0
        %2473 = vmatpush1.bf16.msra.mxu0 0
        %2474 = vmatprep.subr.bf16.mxu0 0
        %2475 = vmatpush1.bf16.msra.mxu0 0
        %2476 = vmatprep.subr.bf16.mxu0 0
        %2477 = vmatpush1.bf16.msra.mxu0 0
        %2478 = vmatprep.subr.bf16.mxu0 0
        %2479 = vmatpush1.bf16.msra.mxu0 0
        %2480 = vmatprep.subr.bf16.mxu0 0
        %2481 = vmatpush1.bf16.msra.mxu0 0
        %2482 = vmatprep.subr.bf16.mxu0 0
        %2483 = vmatpush1.bf16.msra.mxu0 0
        %2484 = vmatprep.mubr.bf16.mxu0 0
        %2485 = vmatmul.mubr.bf16.gmra.mrb[0].mxu0 %v2447
        %v2486 = vpop.f32.mrb[0].mxu0
        %v2487 = vadd.f32 %v2441, %v2486
        %v2488 = vpop.f32.mrb[0].mxu0
        %v2489 = vpop.f32.mrb[0].mxu0
        %v2490 = vpop.f32.mrb[0].mxu0
        %2491 = vdwg.mxu0
        %2492 = vrot.lane.b32.xlu0 %v2172, 112
        %v2493 = vpop.permute.xlu0 %2492
        %2494 = vrot.lane.b32.xlu0 %v2173, 112
        %v2495 = vpop.permute.xlu0 %2494
        %v2497 = vsel %vm1231, %v2493, 0
        %v2500 = vsel %vm1231, %v2495, 0
        %2502 = vmatprep.subr.bf16.mxu0 0
        %2503 = vmatpush1.bf16.xpose.msra.mxu0 %v2500
        %2504 = vmatprep.subr.bf16.mxu0 0
        %2505 = vmatpush1.bf16.xpose.msra.mxu0 0
        %2506 = vmatprep.subr.bf16.mxu0 0
        %2507 = vmatpush1.bf16.xpose.msra.mxu0 0
        %2508 = vmatprep.subr.bf16.mxu0 0
        %2509 = vmatpush1.bf16.xpose.msra.mxu0 0
        %2510 = vmatprep.subr.bf16.mxu0 0
        %2511 = vmatpush1.bf16.xpose.msra.mxu0 0
        %2512 = vmatprep.subr.bf16.mxu0 0
        %2513 = vmatpush1.bf16.xpose.msra.mxu0 0
        %2514 = vmatprep.subr.bf16.mxu0 0
        %2515 = vmatpush1.bf16.xpose.msra.mxu0 0
        %2516 = vmatprep.subr.bf16.mxu0 0
        %2517 = vmatpush1.bf16.xpose.msra.mxu0 0
        %2518 = vmatprep.subr.bf16.mxu0 0
        %2519 = vmatpush1.bf16.xpose.msra.mxu0 0
        %2520 = vmatprep.subr.bf16.mxu0 0
        %2521 = vmatpush1.bf16.xpose.msra.mxu0 0
        %2522 = vmatprep.subr.bf16.mxu0 0
        %2523 = vmatpush1.bf16.xpose.msra.mxu0 0
        %2524 = vmatprep.subr.bf16.mxu0 0
        %2525 = vmatpush1.bf16.xpose.msra.mxu0 0
        %2526 = vmatprep.subr.bf16.mxu0 0
        %2527 = vmatpush1.bf16.xpose.msra.mxu0 0
        %2528 = vmatprep.subr.bf16.mxu0 0
        %2529 = vmatpush1.bf16.xpose.msra.mxu0 0
        %2530 = vmatprep.subr.bf16.mxu0 0
        %2531 = vmatpush1.bf16.xpose.msra.mxu0 0
        %2532 = vmatprep.subr.bf16.mxu0 0
        %2533 = vmatpush1.bf16.xpose.msra.mxu0 0
        %2534 = vmatprep.mubr.bf16.mxu0 0
        %2535 = vmatmul.mubr.bf16.gmra.mrb[0].mxu0 %v2497
        %v2536 = vpop.f32.mrb[0].mxu0
        %v2537 = vadd.f32 0.0, %v2536
        %v2538 = vpop.f32.mrb[0].mxu0
        %v2539 = vpop.f32.mrb[0].mxu0
        %v2540 = vpop.f32.mrb[0].mxu0
        %2541 = vdwg.mxu0
        %v2542 = vsel %vm2221, %v2537, -inf
        %2543 = vmax.xlane.f32.xlu0 %v2542
        %v2544 = vpop.xlane.xlu0 %2543
        %v2545 = vsub.f32 %v2537, %v2544
        %v2546 = vmul.f32 %v2545, 1.442695
        %v2547 = vpow.pop %v2546
        %v2548 = vsel %vm2221, %v2547, 0.0
        %2549 = vadd.xlane.f32.xlu0 %v2548
        %v2550 = vpop.xlane.xlu0 %2549
        %v2551 = vrcp.pop %v2550
        %v2552 = vmul.f32 %v2547, %v2551
        %v2553 = vpack.c.bf16 %v2552, %v2552
        %2554 = vrot.lane.b32.xlu0 %v2174, 112
        %v2555 = vpop.permute.xlu0 %2554
        %v2557 = vsel %vm2221, %v2553, 0
        %v2560 = vsel %vm2237, %v2555, 0
        %2562 = vmatprep.subr.bf16.mxu0 0
        %2563 = vmatpush1.bf16.msra.mxu0 %v2560
        %2564 = vmatprep.subr.bf16.mxu0 0
        %2565 = vmatpush1.bf16.msra.mxu0 0
        %2566 = vmatprep.subr.bf16.mxu0 0
        %2567 = vmatpush1.bf16.msra.mxu0 0
        %2568 = vmatprep.subr.bf16.mxu0 0
        %2569 = vmatpush1.bf16.msra.mxu0 0
        %2570 = vmatprep.subr.bf16.mxu0 0
        %2571 = vmatpush1.bf16.msra.mxu0 0
        %2572 = vmatprep.subr.bf16.mxu0 0
        %2573 = vmatpush1.bf16.msra.mxu0 0
        %2574 = vmatprep.subr.bf16.mxu0 0
        %2575 = vmatpush1.bf16.msra.mxu0 0
        %2576 = vmatprep.subr.bf16.mxu0 0
        %2577 = vmatpush1.bf16.msra.mxu0 0
        %2578 = vmatprep.subr.bf16.mxu0 0
        %2579 = vmatpush1.bf16.msra.mxu0 0
        %2580 = vmatprep.subr.bf16.mxu0 0
        %2581 = vmatpush1.bf16.msra.mxu0 0
        %2582 = vmatprep.subr.bf16.mxu0 0
        %2583 = vmatpush1.bf16.msra.mxu0 0
        %2584 = vmatprep.subr.bf16.mxu0 0
        %2585 = vmatpush1.bf16.msra.mxu0 0
        %2586 = vmatprep.subr.bf16.mxu0 0
        %2587 = vmatpush1.bf16.msra.mxu0 0
        %2588 = vmatprep.subr.bf16.mxu0 0
        %2589 = vmatpush1.bf16.msra.mxu0 0
        %2590 = vmatprep.subr.bf16.mxu0 0
        %2591 = vmatpush1.bf16.msra.mxu0 0
        %2592 = vmatprep.subr.bf16.mxu0 0
        %2593 = vmatpush1.bf16.msra.mxu0 0
        %2594 = vmatprep.mubr.bf16.mxu0 0
        %2595 = vmatmul.mubr.bf16.gmra.mrb[0].mxu0 %v2557
        %v2596 = vpop.f32.mrb[0].mxu0
        %v2597 = vadd.f32 0.0, %v2596
        %v2598 = vpop.f32.mrb[0].mxu0
        %v2599 = vpop.f32.mrb[0].mxu0
        %v2600 = vpop.f32.mrb[0].mxu0
        %2601 = vdwg.mxu0
        %v2602 = vld [vmem:[#allocation15 + $0x10] sm:$0xff]
        %v2603 = vpack.c.bf16 %v2602, %v2602
        %v2604 = vpack.c.bf16 %v2597, %v2597
        %v2606 = vsel %vm1231, %v2604, 0
        %v2609 = vsel %vm1294, %v2603, 0
        %2611 = vmatprep.subr.bf16.mxu0 0
        %2612 = vmatpush1.bf16.msra.mxu0 %v2609
        %2613 = vmatprep.subr.bf16.mxu0 0
        %2614 = vmatpush1.bf16.msra.mxu0 0
        %2615 = vmatprep.subr.bf16.mxu0 0
        %2616 = vmatpush1.bf16.msra.mxu0 0
        %2617 = vmatprep.subr.bf16.mxu0 0
        %2618 = vmatpush1.bf16.msra.mxu0 0
        %2619 = vmatprep.subr.bf16.mxu0 0
        %2620 = vmatpush1.bf16.msra.mxu0 0
        %2621 = vmatprep.subr.bf16.mxu0 0
        %2622 = vmatpush1.bf16.msra.mxu0 0
        %2623 = vmatprep.subr.bf16.mxu0 0
        %2624 = vmatpush1.bf16.msra.mxu0 0
        %2625 = vmatprep.subr.bf16.mxu0 0
        %2626 = vmatpush1.bf16.msra.mxu0 0
        %2627 = vmatprep.subr.bf16.mxu0 0
        %2628 = vmatpush1.bf16.msra.mxu0 0
        %2629 = vmatprep.subr.bf16.mxu0 0
        %2630 = vmatpush1.bf16.msra.mxu0 0
        %2631 = vmatprep.subr.bf16.mxu0 0
        %2632 = vmatpush1.bf16.msra.mxu0 0
        %2633 = vmatprep.subr.bf16.mxu0 0
        %2634 = vmatpush1.bf16.msra.mxu0 0
        %2635 = vmatprep.subr.bf16.mxu0 0
        %2636 = vmatpush1.bf16.msra.mxu0 0
        %2637 = vmatprep.subr.bf16.mxu0 0
        %2638 = vmatpush1.bf16.msra.mxu0 0
        %2639 = vmatprep.subr.bf16.mxu0 0
        %2640 = vmatpush1.bf16.msra.mxu0 0
        %2641 = vmatprep.subr.bf16.mxu0 0
        %2642 = vmatpush1.bf16.msra.mxu0 0
        %2643 = vmatprep.mubr.bf16.mxu0 0
        %2644 = vmatmul.mubr.bf16.gmra.mrb[0].mxu0 %v2606
        %v2645 = vpop.f32.mrb[0].mxu0
        %v2646 = vadd.f32 0.0, %v2645
        %v2647 = vpop.f32.mrb[0].mxu0
        %v2648 = vpop.f32.mrb[0].mxu0
        %v2649 = vpop.f32.mrb[0].mxu0
        %2650 = vdwg.mxu0
        %v2651 = vadd.f32 %v2487, %v2646
        %2652 = vrot.lane.b32.xlu0 %v2172, 104
        %v2653 = vpop.permute.xlu0 %2652
        %2654 = vrot.lane.b32.xlu0 %v2173, 104
        %v2655 = vpop.permute.xlu0 %2654
        %v2657 = vsel %vm1231, %v2653, 0
        %v2660 = vsel %vm1231, %v2655, 0
        %2662 = vmatprep.subr.bf16.mxu0 0
        %2663 = vmatpush1.bf16.xpose.msra.mxu0 %v2660
        %2664 = vmatprep.subr.bf16.mxu0 0
        %2665 = vmatpush1.bf16.xpose.msra.mxu0 0
        %2666 = vmatprep.subr.bf16.mxu0 0
        %2667 = vmatpush1.bf16.xpose.msra.mxu0 0
        %2668 = vmatprep.subr.bf16.mxu0 0
        %2669 = vmatpush1.bf16.xpose.msra.mxu0 0
        %2670 = vmatprep.subr.bf16.mxu0 0
        %2671 = vmatpush1.bf16.xpose.msra.mxu0 0
        %2672 = vmatprep.subr.bf16.mxu0 0
        %2673 = vmatpush1.bf16.xpose.msra.mxu0 0
        %2674 = vmatprep.subr.bf16.mxu0 0
        %2675 = vmatpush1.bf16.xpose.msra.mxu0 0
        %2676 = vmatprep.subr.bf16.mxu0 0
        %2677 = vmatpush1.bf16.xpose.msra.mxu0 0
        %2678 = vmatprep.subr.bf16.mxu0 0
        %2679 = vmatpush1.bf16.xpose.msra.mxu0 0
        %2680 = vmatprep.subr.bf16.mxu0 0
        %2681 = vmatpush1.bf16.xpose.msra.mxu0 0
        %2682 = vmatprep.subr.bf16.mxu0 0
        %2683 = vmatpush1.bf16.xpose.msra.mxu0 0
        %2684 = vmatprep.subr.bf16.mxu0 0
        %2685 = vmatpush1.bf16.xpose.msra.mxu0 0
        %2686 = vmatprep.subr.bf16.mxu0 0
        %2687 = vmatpush1.bf16.xpose.msra.mxu0 0
        %2688 = vmatprep.subr.bf16.mxu0 0
        %2689 = vmatpush1.bf16.xpose.msra.mxu0 0
        %2690 = vmatprep.subr.bf16.mxu0 0
        %2691 = vmatpush1.bf16.xpose.msra.mxu0 0
        %2692 = vmatprep.subr.bf16.mxu0 0
        %2693 = vmatpush1.bf16.xpose.msra.mxu0 0
        %2694 = vmatprep.mubr.bf16.mxu0 0
        %2695 = vmatmul.mubr.bf16.gmra.mrb[0].mxu0 %v2657
        %v2696 = vpop.f32.mrb[0].mxu0
        %v2697 = vadd.f32 0.0, %v2696
        %v2698 = vpop.f32.mrb[0].mxu0
        %v2699 = vpop.f32.mrb[0].mxu0
        %v2700 = vpop.f32.mrb[0].mxu0
        %2701 = vdwg.mxu0
        %v2702 = vsel %vm2221, %v2697, -inf
        %2703 = vmax.xlane.f32.xlu0 %v2702
        %v2704 = vpop.xlane.xlu0 %2703
        %v2705 = vsub.f32 %v2697, %v2704
        %v2706 = vmul.f32 %v2705, 1.442695
        %v2707 = vpow.pop %v2706
        %v2708 = vsel %vm2221, %v2707, 0.0
        %2709 = vadd.xlane.f32.xlu0 %v2708
        %v2710 = vpop.xlane.xlu0 %2709
        %v2711 = vrcp.pop %v2710
        %v2712 = vmul.f32 %v2707, %v2711
        %v2713 = vpack.c.bf16 %v2712, %v2712
        %2714 = vrot.lane.b32.xlu0 %v2174, 104
        %v2715 = vpop.permute.xlu0 %2714
        %v2717 = vsel %vm2221, %v2713, 0
        %v2720 = vsel %vm2237, %v2715, 0
        %2722 = vmatprep.subr.bf16.mxu0 0
        %2723 = vmatpush1.bf16.msra.mxu0 %v2720
        %2724 = vmatprep.subr.bf16.mxu0 0
        %2725 = vmatpush1.bf16.msra.mxu0 0
        %2726 = vmatprep.subr.bf16.mxu0 0
        %2727 = vmatpush1.bf16.msra.mxu0 0
        %2728 = vmatprep.subr.bf16.mxu0 0
        %2729 = vmatpush1.bf16.msra.mxu0 0
        %2730 = vmatprep.subr.bf16.mxu0 0
        %2731 = vmatpush1.bf16.msra.mxu0 0
        %2732 = vmatprep.subr.bf16.mxu0 0
        %2733 = vmatpush1.bf16.msra.mxu0 0
        %2734 = vmatprep.subr.bf16.mxu0 0
        %2735 = vmatpush1.bf16.msra.mxu0 0
        %2736 = vmatprep.subr.bf16.mxu0 0
        %2737 = vmatpush1.bf16.msra.mxu0 0
        %2738 = vmatprep.subr.bf16.mxu0 0
        %2739 = vmatpush1.bf16.msra.mxu0 0
        %2740 = vmatprep.subr.bf16.mxu0 0
        %2741 = vmatpush1.bf16.msra.mxu0 0
        %2742 = vmatprep.subr.bf16.mxu0 0
        %2743 = vmatpush1.bf16.msra.mxu0 0
        %2744 = vmatprep.subr.bf16.mxu0 0
        %2745 = vmatpush1.bf16.msra.mxu0 0
        %2746 = vmatprep.subr.bf16.mxu0 0
        %2747 = vmatpush1.bf16.msra.mxu0 0
        %2748 = vmatprep.subr.bf16.mxu0 0
        %2749 = vmatpush1.bf16.msra.mxu0 0
        %2750 = vmatprep.subr.bf16.mxu0 0
        %2751 = vmatpush1.bf16.msra.mxu0 0
        %2752 = vmatprep.subr.bf16.mxu0 0
        %2753 = vmatpush1.bf16.msra.mxu0 0
        %2754 = vmatprep.mubr.bf16.mxu0 0
        %2755 = vmatmul.mubr.bf16.gmra.mrb[0].mxu0 %v2717
        %v2756 = vpop.f32.mrb[0].mxu0
        %v2757 = vadd.f32 0.0, %v2756
        %v2758 = vpop.f32.mrb[0].mxu0
        %v2759 = vpop.f32.mrb[0].mxu0
        %v2760 = vpop.f32.mrb[0].mxu0
        %2761 = vdwg.mxu0
        %v2762 = vld [vmem:[#allocation15 + $0x18] sm:$0xff]
        %v2763 = vpack.c.bf16 %v2762, %v2762
        %v2764 = vpack.c.bf16 %v2757, %v2757
        %v2766 = vsel %vm1231, %v2764, 0
        %v2769 = vsel %vm1294, %v2763, 0
        %2771 = vmatprep.subr.bf16.mxu0 0
        %2772 = vmatpush1.bf16.msra.mxu0 %v2769
        %2773 = vmatprep.subr.bf16.mxu0 0
        %2774 = vmatpush1.bf16.msra.mxu0 0
        %2775 = vmatprep.subr.bf16.mxu0 0
        %2776 = vmatpush1.bf16.msra.mxu0 0
        %2777 = vmatprep.subr.bf16.mxu0 0
        %2778 = vmatpush1.bf16.msra.mxu0 0
        %2779 = vmatprep.subr.bf16.mxu0 0
        %2780 = vmatpush1.bf16.msra.mxu0 0
        %2781 = vmatprep.subr.bf16.mxu0 0
        %2782 = vmatpush1.bf16.msra.mxu0 0
        %2783 = vmatprep.subr.bf16.mxu0 0
        %2784 = vmatpush1.bf16.msra.mxu0 0
        %2785 = vmatprep.subr.bf16.mxu0 0
        %2786 = vmatpush1.bf16.msra.mxu0 0
        %2787 = vmatprep.subr.bf16.mxu0 0
        %2788 = vmatpush1.bf16.msra.mxu0 0
        %2789 = vmatprep.subr.bf16.mxu0 0
        %2790 = vmatpush1.bf16.msra.mxu0 0
        %2791 = vmatprep.subr.bf16.mxu0 0
        %2792 = vmatpush1.bf16.msra.mxu0 0
        %2793 = vmatprep.subr.bf16.mxu0 0
        %2794 = vmatpush1.bf16.msra.mxu0 0
        %2795 = vmatprep.subr.bf16.mxu0 0
        %2796 = vmatpush1.bf16.msra.mxu0 0
        %2797 = vmatprep.subr.bf16.mxu0 0
        %2798 = vmatpush1.bf16.msra.mxu0 0
        %2799 = vmatprep.subr.bf16.mxu0 0
        %2800 = vmatpush1.bf16.msra.mxu0 0
        %2801 = vmatprep.subr.bf16.mxu0 0
        %2802 = vmatpush1.bf16.msra.mxu0 0
        %2803 = vmatprep.mubr.bf16.mxu0 0
        %2804 = vmatmul.mubr.bf16.gmra.mrb[0].mxu0 %v2766
        %v2805 = vpop.f32.mrb[0].mxu0
        %v2806 = vadd.f32 0.0, %v2805
        %v2807 = vpop.f32.mrb[0].mxu0
        %v2808 = vpop.f32.mrb[0].mxu0
        %v2809 = vpop.f32.mrb[0].mxu0
        %2810 = vdwg.mxu0
        %v2811 = vadd.f32 %v2651, %v2806
        %v2812 = vld [vmem:[#allocation16] sm:$0x1]
        %v2814 = vlaneseq
        %v2815 = vshrl.u32 %v2814, 7
        %v2816 = vsub.s32 0, %v2815
        %v2817 = vrot.slane %v2812, %v2816
        %v2819 = vadd.f32 %v2811, %v2817
        %v2820 = vadd.f32 %v1909, %v2819
        %2821 = vadd.xlane.f32.xlu0 %v2820
        %v2822 = vpop.xlane.xlu0 %2821
        %v2823 = vmul.f32 %v2822, 0.03125
        %v2824 = vmul.f32 %v2820, %v2820
        %2825 = vadd.xlane.f32.xlu0 %v2824
        %v2826 = vpop.xlane.xlu0 %2825
        %v2827 = vmul.f32 %v2826, 0.03125
        %v2828 = vmul.f32 %v2823, %v2823
        %v2829 = vsub.f32 %v2827, %v2828
        %v2830 = vsub.f32 %v2820, %v2823
        %v2831 = vadd.f32 %v2829, 1e-05
        %v2832 = vrsqrt.pop %v2831
        %v2833 = vmul.f32 %v2830, %v2832
        %v2834 = vld [vmem:[#allocation27] sm:$0x1]
        %v2836 = vlaneseq
        %v2837 = vshrl.u32 %v2836, 7
        %v2838 = vsub.s32 0, %v2837
        %v2839 = vrot.slane %v2834, %v2838
        %v2841 = vmul.f32 %v2833, %v2839
        %v2842 = vld [vmem:[#allocation28] sm:$0x1]
        %v2844 = vlaneseq
        %v2845 = vshrl.u32 %v2844, 7
        %v2846 = vsub.s32 0, %v2845
        %v2847 = vrot.slane %v2842, %v2846
        %v2849 = vadd.f32 %v2841, %v2847
        %v2850 = vpack.c.bf16 %v2849, %v2849
        %v2851 = vld [vmem:[#allocation18] sm:$0xff]
        %v2852 = vld [vmem:[#allocation18 + $0x8] sm:$0xff]
        %v2853 = vld [vmem:[#allocation18 + $0x10] sm:$0xff]
        %v2854 = vld [vmem:[#allocation18 + $0x18] sm:$0xff]
        %v2855 = vld [vmem:[#allocation18 + $0x20] sm:$0xff]
        %v2856 = vld [vmem:[#allocation18 + $0x28] sm:$0xff]
        %v2857 = vld [vmem:[#allocation18 + $0x30] sm:$0xff]
        %v2858 = vld [vmem:[#allocation18 + $0x38] sm:$0xff]
        %v2859 = vld [vmem:[#allocation18 + $0x40] sm:$0xff]
        %v2860 = vld [vmem:[#allocation18 + $0x48] sm:$0xff]
        %v2861 = vld [vmem:[#allocation18 + $0x50] sm:$0xff]
        %v2862 = vld [vmem:[#allocation18 + $0x58] sm:$0xff]
        %v2863 = vld [vmem:[#allocation18 + $0x60] sm:$0xff]
        %v2864 = vld [vmem:[#allocation18 + $0x68] sm:$0xff]
        %v2865 = vld [vmem:[#allocation18 + $0x70] sm:$0xff]
        %v2866 = vld [vmem:[#allocation18 + $0x78] sm:$0xff]
        %v2867 = vld [vmem:[#allocation18 + $0x80] sm:$0xff]
        %v2868 = vld [vmem:[#allocation18 + $0x88] sm:$0xff]
        %v2869 = vld [vmem:[#allocation18 + $0x90] sm:$0xff]
        %v2870 = vld [vmem:[#allocation18 + $0x98] sm:$0xff]
        %v2871 = vld [vmem:[#allocation18 + $0xa0] sm:$0xff]
        %v2872 = vld [vmem:[#allocation18 + $0xa8] sm:$0xff]
        %v2873 = vld [vmem:[#allocation18 + $0xb0] sm:$0xff]
        %v2874 = vld [vmem:[#allocation18 + $0xb8] sm:$0xff]
        %v2875 = vld [vmem:[#allocation18 + $0xc0] sm:$0xff]
        %v2876 = vld [vmem:[#allocation18 + $0xc8] sm:$0xff]
        %v2877 = vld [vmem:[#allocation18 + $0xd0] sm:$0xff]
        %v2878 = vld [vmem:[#allocation18 + $0xd8] sm:$0xff]
        %v2879 = vld [vmem:[#allocation18 + $0xe0] sm:$0xff]
        %v2880 = vld [vmem:[#allocation18 + $0xe8] sm:$0xff]
        %v2881 = vld [vmem:[#allocation18 + $0xf0] sm:$0xff]
        %v2882 = vld [vmem:[#allocation18 + $0xf8] sm:$0xff]
        %v2883 = vld [vmem:[#allocation18 + $0x100] sm:$0xff]
        %v2884 = vld [vmem:[#allocation18 + $0x108] sm:$0xff]
        %v2885 = vld [vmem:[#allocation18 + $0x110] sm:$0xff]
        %v2886 = vld [vmem:[#allocation18 + $0x118] sm:$0xff]
        %v2887 = vld [vmem:[#allocation18 + $0x120] sm:$0xff]
        %v2888 = vld [vmem:[#allocation18 + $0x128] sm:$0xff]
        %v2889 = vld [vmem:[#allocation18 + $0x130] sm:$0xff]
        %v2890 = vld [vmem:[#allocation18 + $0x138] sm:$0xff]
        %v2891 = vld [vmem:[#allocation18 + $0x140] sm:$0xff]
        %v2892 = vld [vmem:[#allocation18 + $0x148] sm:$0xff]
        %v2893 = vld [vmem:[#allocation18 + $0x150] sm:$0xff]
        %v2894 = vld [vmem:[#allocation18 + $0x158] sm:$0xff]
        %v2895 = vld [vmem:[#allocation18 + $0x160] sm:$0xff]
        %v2896 = vld [vmem:[#allocation18 + $0x168] sm:$0xff]
        %v2897 = vld [vmem:[#allocation18 + $0x170] sm:$0xff]
        %v2898 = vld [vmem:[#allocation18 + $0x178] sm:$0xff]
        %v2899 = vld [vmem:[#allocation18 + $0x180] sm:$0xff]
        %v2900 = vld [vmem:[#allocation18 + $0x188] sm:$0xff]
        %v2901 = vld [vmem:[#allocation18 + $0x190] sm:$0xff]
        %v2902 = vld [vmem:[#allocation18 + $0x198] sm:$0xff]
        %v2903 = vld [vmem:[#allocation18 + $0x1a0] sm:$0xff]
        %v2904 = vld [vmem:[#allocation18 + $0x1a8] sm:$0xff]
        %v2905 = vld [vmem:[#allocation18 + $0x1b0] sm:$0xff]
        %v2906 = vld [vmem:[#allocation18 + $0x1b8] sm:$0xff]
        %v2907 = vld [vmem:[#allocation18 + $0x1c0] sm:$0xff]
        %v2908 = vld [vmem:[#allocation18 + $0x1c8] sm:$0xff]
        %v2909 = vld [vmem:[#allocation18 + $0x1d0] sm:$0xff]
        %v2910 = vld [vmem:[#allocation18 + $0x1d8] sm:$0xff]
        %v2911 = vld [vmem:[#allocation18 + $0x1e0] sm:$0xff]
        %v2912 = vld [vmem:[#allocation18 + $0x1e8] sm:$0xff]
        %v2913 = vld [vmem:[#allocation18 + $0x1f0] sm:$0xff]
        %v2914 = vld [vmem:[#allocation18 + $0x1f8] sm:$0xff]
        %v2915 = vld [vmem:[#allocation18 + $0x200] sm:$0xff]
        %v2916 = vld [vmem:[#allocation18 + $0x208] sm:$0xff]
        %v2917 = vld [vmem:[#allocation18 + $0x210] sm:$0xff]
        %v2918 = vld [vmem:[#allocation18 + $0x218] sm:$0xff]
        %v2919 = vld [vmem:[#allocation18 + $0x220] sm:$0xff]
        %v2920 = vld [vmem:[#allocation18 + $0x228] sm:$0xff]
        %v2921 = vld [vmem:[#allocation18 + $0x230] sm:$0xff]
        %v2922 = vld [vmem:[#allocation18 + $0x238] sm:$0xff]
        %v2923 = vld [vmem:[#allocation18 + $0x240] sm:$0xff]
        %v2924 = vld [vmem:[#allocation18 + $0x248] sm:$0xff]
        %v2925 = vld [vmem:[#allocation18 + $0x250] sm:$0xff]
        %v2926 = vld [vmem:[#allocation18 + $0x258] sm:$0xff]
        %v2927 = vld [vmem:[#allocation18 + $0x260] sm:$0xff]
        %v2928 = vld [vmem:[#allocation18 + $0x268] sm:$0xff]
        %v2929 = vld [vmem:[#allocation18 + $0x270] sm:$0xff]
        %v2930 = vld [vmem:[#allocation18 + $0x278] sm:$0xff]
        %v2931 = vld [vmem:[#allocation18 + $0x280] sm:$0xff]
        %v2932 = vld [vmem:[#allocation18 + $0x288] sm:$0xff]
        %v2933 = vld [vmem:[#allocation18 + $0x290] sm:$0xff]
        %v2934 = vld [vmem:[#allocation18 + $0x298] sm:$0xff]
        %v2935 = vld [vmem:[#allocation18 + $0x2a0] sm:$0xff]
        %v2936 = vld [vmem:[#allocation18 + $0x2a8] sm:$0xff]
        %v2937 = vld [vmem:[#allocation18 + $0x2b0] sm:$0xff]
        %v2938 = vld [vmem:[#allocation18 + $0x2b8] sm:$0xff]
        %v2939 = vld [vmem:[#allocation18 + $0x2c0] sm:$0xff]
        %v2940 = vld [vmem:[#allocation18 + $0x2c8] sm:$0xff]
        %v2941 = vld [vmem:[#allocation18 + $0x2d0] sm:$0xff]
        %v2942 = vld [vmem:[#allocation18 + $0x2d8] sm:$0xff]
        %v2943 = vld [vmem:[#allocation18 + $0x2e0] sm:$0xff]
        %v2944 = vld [vmem:[#allocation18 + $0x2e8] sm:$0xff]
        %v2945 = vld [vmem:[#allocation18 + $0x2f0] sm:$0xff]
        %v2946 = vld [vmem:[#allocation18 + $0x2f8] sm:$0xff]
        %v2947 = vld [vmem:[#allocation18 + $0x300] sm:$0xff]
        %v2948 = vld [vmem:[#allocation18 + $0x308] sm:$0xff]
        %v2949 = vld [vmem:[#allocation18 + $0x310] sm:$0xff]
        %v2950 = vld [vmem:[#allocation18 + $0x318] sm:$0xff]
        %v2951 = vld [vmem:[#allocation18 + $0x320] sm:$0xff]
        %v2952 = vld [vmem:[#allocation18 + $0x328] sm:$0xff]
        %v2953 = vld [vmem:[#allocation18 + $0x330] sm:$0xff]
        %v2954 = vld [vmem:[#allocation18 + $0x338] sm:$0xff]
        %v2955 = vld [vmem:[#allocation18 + $0x340] sm:$0xff]
        %v2956 = vld [vmem:[#allocation18 + $0x348] sm:$0xff]
        %v2957 = vld [vmem:[#allocation18 + $0x350] sm:$0xff]
        %v2958 = vld [vmem:[#allocation18 + $0x358] sm:$0xff]
        %v2959 = vld [vmem:[#allocation18 + $0x360] sm:$0xff]
        %v2960 = vld [vmem:[#allocation18 + $0x368] sm:$0xff]
        %v2961 = vld [vmem:[#allocation18 + $0x370] sm:$0xff]
        %v2962 = vld [vmem:[#allocation18 + $0x378] sm:$0xff]
        %v2963 = vld [vmem:[#allocation18 + $0x380] sm:$0xff]
        %v2964 = vld [vmem:[#allocation18 + $0x388] sm:$0xff]
        %v2965 = vld [vmem:[#allocation18 + $0x390] sm:$0xff]
        %v2966 = vld [vmem:[#allocation18 + $0x398] sm:$0xff]
        %v2967 = vld [vmem:[#allocation18 + $0x3a0] sm:$0xff]
        %v2968 = vld [vmem:[#allocation18 + $0x3a8] sm:$0xff]
        %v2969 = vld [vmem:[#allocation18 + $0x3b0] sm:$0xff]
        %v2970 = vld [vmem:[#allocation18 + $0x3b8] sm:$0xff]
        %v2971 = vld [vmem:[#allocation18 + $0x3c0] sm:$0xff]
        %v2972 = vld [vmem:[#allocation18 + $0x3c8] sm:$0xff]
        %v2973 = vld [vmem:[#allocation18 + $0x3d0] sm:$0xff]
        %v2974 = vld [vmem:[#allocation18 + $0x3d8] sm:$0xff]
        %v2975 = vld [vmem:[#allocation18 + $0x3e0] sm:$0xff]
        %v2976 = vld [vmem:[#allocation18 + $0x3e8] sm:$0xff]
        %v2977 = vld [vmem:[#allocation18 + $0x3f0] sm:$0xff]
        %v2978 = vld [vmem:[#allocation18 + $0x3f8] sm:$0xff]
        %v2979 = vld [vmem:[#allocation19] sm:$0xff]
        %v2980 = vld [vmem:[#allocation19 + $0x8] sm:$0xff]
        %v2983 = vlaneseq
        %v2984 = vshrl.u32 %v2983, 7
        %v2985 = vsub.s32 0, %v2984
        %v2986 = vrot.slane %v2979, %v2985
        %v2987 = vlaneseq
        %v2988 = vshrl.u32 %v2987, 7
        %v2989 = vsub.s32 1, %v2988
        %v2990 = vrot.slane %v2979, %v2989
        %v2991 = vlaneseq
        %v2992 = vshrl.u32 %v2991, 7
        %v2993 = vsub.s32 2, %v2992
        %v2994 = vrot.slane %v2979, %v2993
        %v2995 = vlaneseq
        %v2996 = vshrl.u32 %v2995, 7
        %v2997 = vsub.s32 3, %v2996
        %v2998 = vrot.slane %v2979, %v2997
        %v2999 = vlaneseq
        %v3000 = vshrl.u32 %v2999, 7
        %v3001 = vsub.s32 4, %v3000
        %v3002 = vrot.slane %v2979, %v3001
        %v3003 = vlaneseq
        %v3004 = vshrl.u32 %v3003, 7
        %v3005 = vsub.s32 5, %v3004
        %v3006 = vrot.slane %v2979, %v3005
        %v3007 = vlaneseq
        %v3008 = vshrl.u32 %v3007, 7
        %v3009 = vsub.s32 6, %v3008
        %v3010 = vrot.slane %v2979, %v3009
        %v3011 = vlaneseq
        %v3012 = vshrl.u32 %v3011, 7
        %v3013 = vsub.s32 7, %v3012
        %v3014 = vrot.slane %v2979, %v3013
        %v3015 = vlaneseq
        %v3016 = vshrl.u32 %v3015, 7
        %v3017 = vsub.s32 0, %v3016
        %v3018 = vrot.slane %v2980, %v3017
        %v3019 = vlaneseq
        %v3020 = vshrl.u32 %v3019, 7
        %v3021 = vsub.s32 1, %v3020
        %v3022 = vrot.slane %v2980, %v3021
        %v3023 = vlaneseq
        %v3024 = vshrl.u32 %v3023, 7
        %v3025 = vsub.s32 2, %v3024
        %v3026 = vrot.slane %v2980, %v3025
        %v3027 = vlaneseq
        %v3028 = vshrl.u32 %v3027, 7
        %v3029 = vsub.s32 3, %v3028
        %v3030 = vrot.slane %v2980, %v3029
        %v3031 = vlaneseq
        %v3032 = vshrl.u32 %v3031, 7
        %v3033 = vsub.s32 4, %v3032
        %v3034 = vrot.slane %v2980, %v3033
        %v3035 = vlaneseq
        %v3036 = vshrl.u32 %v3035, 7
        %v3037 = vsub.s32 5, %v3036
        %v3038 = vrot.slane %v2980, %v3037
        %v3039 = vlaneseq
        %v3040 = vshrl.u32 %v3039, 7
        %v3041 = vsub.s32 6, %v3040
        %v3042 = vrot.slane %v2980, %v3041
        %v3043 = vlaneseq
        %v3044 = vshrl.u32 %v3043, 7
        %v3045 = vsub.s32 7, %v3044
        %v3046 = vrot.slane %v2980, %v3045
        %v3191 = vunpack.c.l.b16 %v2851
        %v3192 = vunpack.c.h.b16 %v2851
        %v3193 = vunpack.c.l.b16 %v2852
        %v3194 = vunpack.c.h.b16 %v2852
        %v3195 = vunpack.c.l.b16 %v2853
        %v3196 = vunpack.c.h.b16 %v2853
        %v3197 = vunpack.c.l.b16 %v2854
        %v3198 = vunpack.c.h.b16 %v2854
        %v3199 = vunpack.c.l.b16 %v2855
        %v3200 = vunpack.c.h.b16 %v2855
        %v3201 = vunpack.c.l.b16 %v2856
        %v3202 = vunpack.c.h.b16 %v2856
        %v3203 = vunpack.c.l.b16 %v2857
        %v3204 = vunpack.c.h.b16 %v2857
        %v3205 = vunpack.c.l.b16 %v2858
        %v3206 = vunpack.c.h.b16 %v2858
        %v3207 = vunpack.c.l.b16 %v2859
        %v3208 = vunpack.c.h.b16 %v2859
        %v3209 = vunpack.c.l.b16 %v2860
        %v3210 = vunpack.c.h.b16 %v2860
        %v3211 = vunpack.c.l.b16 %v2861
        %v3212 = vunpack.c.h.b16 %v2861
        %v3213 = vunpack.c.l.b16 %v2862
        %v3214 = vunpack.c.h.b16 %v2862
        %v3215 = vunpack.c.l.b16 %v2863
        %v3216 = vunpack.c.h.b16 %v2863
        %v3217 = vunpack.c.l.b16 %v2864
        %v3218 = vunpack.c.h.b16 %v2864
        %v3219 = vunpack.c.l.b16 %v2865
        %v3220 = vunpack.c.h.b16 %v2865
        %v3221 = vunpack.c.l.b16 %v2866
        %v3222 = vunpack.c.h.b16 %v2866
        %v3223 = vunpack.c.l.b16 %v2867
        %v3224 = vunpack.c.h.b16 %v2867
        %v3225 = vunpack.c.l.b16 %v2868
        %v3226 = vunpack.c.h.b16 %v2868
        %v3227 = vunpack.c.l.b16 %v2869
        %v3228 = vunpack.c.h.b16 %v2869
        %v3229 = vunpack.c.l.b16 %v2870
        %v3230 = vunpack.c.h.b16 %v2870
        %v3231 = vunpack.c.l.b16 %v2871
        %v3232 = vunpack.c.h.b16 %v2871
        %v3233 = vunpack.c.l.b16 %v2872
        %v3234 = vunpack.c.h.b16 %v2872
        %v3235 = vunpack.c.l.b16 %v2873
        %v3236 = vunpack.c.h.b16 %v2873
        %v3237 = vunpack.c.l.b16 %v2874
        %v3238 = vunpack.c.h.b16 %v2874
        %v3239 = vunpack.c.l.b16 %v2875
        %v3240 = vunpack.c.h.b16 %v2875
        %v3241 = vunpack.c.l.b16 %v2876
        %v3242 = vunpack.c.h.b16 %v2876
        %v3243 = vunpack.c.l.b16 %v2877
        %v3244 = vunpack.c.h.b16 %v2877
        %v3245 = vunpack.c.l.b16 %v2878
        %v3246 = vunpack.c.h.b16 %v2878
        %v3247 = vunpack.c.l.b16 %v2879
        %v3248 = vunpack.c.h.b16 %v2879
        %v3249 = vunpack.c.l.b16 %v2880
        %v3250 = vunpack.c.h.b16 %v2880
        %v3251 = vunpack.c.l.b16 %v2881
        %v3252 = vunpack.c.h.b16 %v2881
        %v3253 = vunpack.c.l.b16 %v2882
        %v3254 = vunpack.c.h.b16 %v2882
        %v3255 = vunpack.c.l.b16 %v2883
        %v3256 = vunpack.c.h.b16 %v2883
        %v3257 = vunpack.c.l.b16 %v2884
        %v3258 = vunpack.c.h.b16 %v2884
        %v3259 = vunpack.c.l.b16 %v2885
        %v3260 = vunpack.c.h.b16 %v2885
        %v3261 = vunpack.c.l.b16 %v2886
        %v3262 = vunpack.c.h.b16 %v2886
        %v3263 = vunpack.c.l.b16 %v2887
        %v3264 = vunpack.c.h.b16 %v2887
        %v3265 = vunpack.c.l.b16 %v2888
        %v3266 = vunpack.c.h.b16 %v2888
        %v3267 = vunpack.c.l.b16 %v2889
        %v3268 = vunpack.c.h.b16 %v2889
        %v3269 = vunpack.c.l.b16 %v2890
        %v3270 = vunpack.c.h.b16 %v2890
        %v3271 = vunpack.c.l.b16 %v2891
        %v3272 = vunpack.c.h.b16 %v2891
        %v3273 = vunpack.c.l.b16 %v2892
        %v3274 = vunpack.c.h.b16 %v2892
        %v3275 = vunpack.c.l.b16 %v2893
        %v3276 = vunpack.c.h.b16 %v2893
        %v3277 = vunpack.c.l.b16 %v2894
        %v3278 = vunpack.c.h.b16 %v2894
        %v3279 = vunpack.c.l.b16 %v2895
        %v3280 = vunpack.c.h.b16 %v2895
        %v3281 = vunpack.c.l.b16 %v2896
        %v3282 = vunpack.c.h.b16 %v2896
        %v3283 = vunpack.c.l.b16 %v2897
        %v3284 = vunpack.c.h.b16 %v2897
        %v3285 = vunpack.c.l.b16 %v2898
        %v3286 = vunpack.c.h.b16 %v2898
        %v3287 = vunpack.c.l.b16 %v2899
        %v3288 = vunpack.c.h.b16 %v2899
        %v3289 = vunpack.c.l.b16 %v2900
        %v3290 = vunpack.c.h.b16 %v2900
        %v3291 = vunpack.c.l.b16 %v2901
        %v3292 = vunpack.c.h.b16 %v2901
        %v3293 = vunpack.c.l.b16 %v2902
        %v3294 = vunpack.c.h.b16 %v2902
        %v3295 = vunpack.c.l.b16 %v2903
        %v3296 = vunpack.c.h.b16 %v2903
        %v3297 = vunpack.c.l.b16 %v2904
        %v3298 = vunpack.c.h.b16 %v2904
        %v3299 = vunpack.c.l.b16 %v2905
        %v3300 = vunpack.c.h.b16 %v2905
        %v3301 = vunpack.c.l.b16 %v2906
        %v3302 = vunpack.c.h.b16 %v2906
        %v3303 = vunpack.c.l.b16 %v2907
        %v3304 = vunpack.c.h.b16 %v2907
        %v3305 = vunpack.c.l.b16 %v2908
        %v3306 = vunpack.c.h.b16 %v2908
        %v3307 = vunpack.c.l.b16 %v2909
        %v3308 = vunpack.c.h.b16 %v2909
        %v3309 = vunpack.c.l.b16 %v2910
        %v3310 = vunpack.c.h.b16 %v2910
        %v3311 = vunpack.c.l.b16 %v2911
        %v3312 = vunpack.c.h.b16 %v2911
        %v3313 = vunpack.c.l.b16 %v2912
        %v3314 = vunpack.c.h.b16 %v2912
        %v3315 = vunpack.c.l.b16 %v2913
        %v3316 = vunpack.c.h.b16 %v2913
        %v3317 = vunpack.c.l.b16 %v2914
        %v3318 = vunpack.c.h.b16 %v2914
        %v3319 = vunpack.c.l.b16 %v2915
        %v3320 = vunpack.c.h.b16 %v2915
        %v3321 = vunpack.c.l.b16 %v2916
        %v3322 = vunpack.c.h.b16 %v2916
        %v3323 = vunpack.c.l.b16 %v2917
        %v3324 = vunpack.c.h.b16 %v2917
        %v3325 = vunpack.c.l.b16 %v2918
        %v3326 = vunpack.c.h.b16 %v2918
        %v3327 = vunpack.c.l.b16 %v2919
        %v3328 = vunpack.c.h.b16 %v2919
        %v3329 = vunpack.c.l.b16 %v2920
        %v3330 = vunpack.c.h.b16 %v2920
        %v3331 = vunpack.c.l.b16 %v2921
        %v3332 = vunpack.c.h.b16 %v2921
        %v3333 = vunpack.c.l.b16 %v2922
        %v3334 = vunpack.c.h.b16 %v2922
        %v3335 = vunpack.c.l.b16 %v2923
        %v3336 = vunpack.c.h.b16 %v2923
        %v3337 = vunpack.c.l.b16 %v2924
        %v3338 = vunpack.c.h.b16 %v2924
        %v3339 = vunpack.c.l.b16 %v2925
        %v3340 = vunpack.c.h.b16 %v2925
        %v3341 = vunpack.c.l.b16 %v2926
        %v3342 = vunpack.c.h.b16 %v2926
        %v3343 = vunpack.c.l.b16 %v2927
        %v3344 = vunpack.c.h.b16 %v2927
        %v3345 = vunpack.c.l.b16 %v2928
        %v3346 = vunpack.c.h.b16 %v2928
        %v3347 = vunpack.c.l.b16 %v2929
        %v3348 = vunpack.c.h.b16 %v2929
        %v3349 = vunpack.c.l.b16 %v2930
        %v3350 = vunpack.c.h.b16 %v2930
        %v3351 = vunpack.c.l.b16 %v2931
        %v3352 = vunpack.c.h.b16 %v2931
        %v3353 = vunpack.c.l.b16 %v2932
        %v3354 = vunpack.c.h.b16 %v2932
        %v3355 = vunpack.c.l.b16 %v2933
        %v3356 = vunpack.c.h.b16 %v2933
        %v3357 = vunpack.c.l.b16 %v2934
        %v3358 = vunpack.c.h.b16 %v2934
        %v3359 = vunpack.c.l.b16 %v2935
        %v3360 = vunpack.c.h.b16 %v2935
        %v3361 = vunpack.c.l.b16 %v2936
        %v3362 = vunpack.c.h.b16 %v2936
        %v3363 = vunpack.c.l.b16 %v2937
        %v3364 = vunpack.c.h.b16 %v2937
        %v3365 = vunpack.c.l.b16 %v2938
        %v3366 = vunpack.c.h.b16 %v2938
        %v3367 = vunpack.c.l.b16 %v2939
        %v3368 = vunpack.c.h.b16 %v2939
        %v3369 = vunpack.c.l.b16 %v2940
        %v3370 = vunpack.c.h.b16 %v2940
        %v3371 = vunpack.c.l.b16 %v2941
        %v3372 = vunpack.c.h.b16 %v2941
        %v3373 = vunpack.c.l.b16 %v2942
        %v3374 = vunpack.c.h.b16 %v2942
        %v3375 = vunpack.c.l.b16 %v2943
        %v3376 = vunpack.c.h.b16 %v2943
        %v3377 = vunpack.c.l.b16 %v2944
        %v3378 = vunpack.c.h.b16 %v2944
        %v3379 = vunpack.c.l.b16 %v2945
        %v3380 = vunpack.c.h.b16 %v2945
        %v3381 = vunpack.c.l.b16 %v2946
        %v3382 = vunpack.c.h.b16 %v2946
        %v3383 = vunpack.c.l.b16 %v2947
        %v3384 = vunpack.c.h.b16 %v2947
        %v3385 = vunpack.c.l.b16 %v2948
        %v3386 = vunpack.c.h.b16 %v2948
        %v3387 = vunpack.c.l.b16 %v2949
        %v3388 = vunpack.c.h.b16 %v2949
        %v3389 = vunpack.c.l.b16 %v2950
        %v3390 = vunpack.c.h.b16 %v2950
        %v3391 = vunpack.c.l.b16 %v2951
        %v3392 = vunpack.c.h.b16 %v2951
        %v3393 = vunpack.c.l.b16 %v2952
        %v3394 = vunpack.c.h.b16 %v2952
        %v3395 = vunpack.c.l.b16 %v2953
        %v3396 = vunpack.c.h.b16 %v2953
        %v3397 = vunpack.c.l.b16 %v2954
        %v3398 = vunpack.c.h.b16 %v2954
        %v3399 = vunpack.c.l.b16 %v2955
        %v3400 = vunpack.c.h.b16 %v2955
        %v3401 = vunpack.c.l.b16 %v2956
        %v3402 = vunpack.c.h.b16 %v2956
        %v3403 = vunpack.c.l.b16 %v2957
        %v3404 = vunpack.c.h.b16 %v2957
        %v3405 = vunpack.c.l.b16 %v2958
        %v3406 = vunpack.c.h.b16 %v2958
        %v3407 = vunpack.c.l.b16 %v2959
        %v3408 = vunpack.c.h.b16 %v2959
        %v3409 = vunpack.c.l.b16 %v2960
        %v3410 = vunpack.c.h.b16 %v2960
        %v3411 = vunpack.c.l.b16 %v2961
        %v3412 = vunpack.c.h.b16 %v2961
        %v3413 = vunpack.c.l.b16 %v2962
        %v3414 = vunpack.c.h.b16 %v2962
        %v3415 = vunpack.c.l.b16 %v2963
        %v3416 = vunpack.c.h.b16 %v2963
        %v3417 = vunpack.c.l.b16 %v2964
        %v3418 = vunpack.c.h.b16 %v2964
        %v3419 = vunpack.c.l.b16 %v2965
        %v3420 = vunpack.c.h.b16 %v2965
        %v3421 = vunpack.c.l.b16 %v2966
        %v3422 = vunpack.c.h.b16 %v2966
        %v3423 = vunpack.c.l.b16 %v2967
        %v3424 = vunpack.c.h.b16 %v2967
        %v3425 = vunpack.c.l.b16 %v2968
        %v3426 = vunpack.c.h.b16 %v2968
        %v3427 = vunpack.c.l.b16 %v2969
        %v3428 = vunpack.c.h.b16 %v2969
        %v3429 = vunpack.c.l.b16 %v2970
        %v3430 = vunpack.c.h.b16 %v2970
        %v3431 = vunpack.c.l.b16 %v2971
        %v3432 = vunpack.c.h.b16 %v2971
        %v3433 = vunpack.c.l.b16 %v2972
        %v3434 = vunpack.c.h.b16 %v2972
        %v3435 = vunpack.c.l.b16 %v2973
        %v3436 = vunpack.c.h.b16 %v2973
        %v3437 = vunpack.c.l.b16 %v2974
        %v3438 = vunpack.c.h.b16 %v2974
        %v3439 = vunpack.c.l.b16 %v2975
        %v3440 = vunpack.c.h.b16 %v2975
        %v3441 = vunpack.c.l.b16 %v2976
        %v3442 = vunpack.c.h.b16 %v2976
        %v3443 = vunpack.c.l.b16 %v2977
        %v3444 = vunpack.c.h.b16 %v2977
        %v3445 = vunpack.c.l.b16 %v2978
        %v3446 = vunpack.c.h.b16 %v2978
        %v3447 = vpack.c.b16 %v3207, %v3191
        %v3448 = vpack.c.b16 %v3208, %v3192
        %v3449 = vpack.c.b16 %v3209, %v3193
        %v3450 = vpack.c.b16 %v3210, %v3194
        %v3451 = vpack.c.b16 %v3211, %v3195
        %v3452 = vpack.c.b16 %v3212, %v3196
        %v3453 = vpack.c.b16 %v3213, %v3197
        %v3454 = vpack.c.b16 %v3214, %v3198
        %v3455 = vpack.c.b16 %v3215, %v3199
        %v3456 = vpack.c.b16 %v3216, %v3200
        %v3457 = vpack.c.b16 %v3217, %v3201
        %v3458 = vpack.c.b16 %v3218, %v3202
        %v3459 = vpack.c.b16 %v3219, %v3203
        %v3460 = vpack.c.b16 %v3220, %v3204
        %v3461 = vpack.c.b16 %v3221, %v3205
        %v3462 = vpack.c.b16 %v3222, %v3206
        %v3463 = vpack.c.b16 %v3239, %v3223
        %v3464 = vpack.c.b16 %v3240, %v3224
        %v3465 = vpack.c.b16 %v3241, %v3225
        %v3466 = vpack.c.b16 %v3242, %v3226
        %v3467 = vpack.c.b16 %v3243, %v3227
        %v3468 = vpack.c.b16 %v3244, %v3228
        %v3469 = vpack.c.b16 %v3245, %v3229
        %v3470 = vpack.c.b16 %v3246, %v3230
        %v3471 = vpack.c.b16 %v3247, %v3231
        %v3472 = vpack.c.b16 %v3248, %v3232
        %v3473 = vpack.c.b16 %v3249, %v3233
        %v3474 = vpack.c.b16 %v3250, %v3234
        %v3475 = vpack.c.b16 %v3251, %v3235
        %v3476 = vpack.c.b16 %v3252, %v3236
        %v3477 = vpack.c.b16 %v3253, %v3237
        %v3478 = vpack.c.b16 %v3254, %v3238
        %v3479 = vpack.c.b16 %v3271, %v3255
        %v3480 = vpack.c.b16 %v3272, %v3256
        %v3481 = vpack.c.b16 %v3273, %v3257
        %v3482 = vpack.c.b16 %v3274, %v3258
        %v3483 = vpack.c.b16 %v3275, %v3259
        %v3484 = vpack.c.b16 %v3276, %v3260
        %v3485 = vpack.c.b16 %v3277, %v3261
        %v3486 = vpack.c.b16 %v3278, %v3262
        %v3487 = vpack.c.b16 %v3279, %v3263
        %v3488 = vpack.c.b16 %v3280, %v3264
        %v3489 = vpack.c.b16 %v3281, %v3265
        %v3490 = vpack.c.b16 %v3282, %v3266
        %v3491 = vpack.c.b16 %v3283, %v3267
        %v3492 = vpack.c.b16 %v3284, %v3268
        %v3493 = vpack.c.b16 %v3285, %v3269
        %v3494 = vpack.c.b16 %v3286, %v3270
        %v3495 = vpack.c.b16 %v3303, %v3287
        %v3496 = vpack.c.b16 %v3304, %v3288
        %v3497 = vpack.c.b16 %v3305, %v3289
        %v3498 = vpack.c.b16 %v3306, %v3290
        %v3499 = vpack.c.b16 %v3307, %v3291
        %v3500 = vpack.c.b16 %v3308, %v3292
        %v3501 = vpack.c.b16 %v3309, %v3293
        %v3502 = vpack.c.b16 %v3310, %v3294
        %v3503 = vpack.c.b16 %v3311, %v3295
        %v3504 = vpack.c.b16 %v3312, %v3296
        %v3505 = vpack.c.b16 %v3313, %v3297
        %v3506 = vpack.c.b16 %v3314, %v3298
        %v3507 = vpack.c.b16 %v3315, %v3299
        %v3508 = vpack.c.b16 %v3316, %v3300
        %v3509 = vpack.c.b16 %v3317, %v3301
        %v3510 = vpack.c.b16 %v3318, %v3302
        %v3511 = vpack.c.b16 %v3335, %v3319
        %v3512 = vpack.c.b16 %v3336, %v3320
        %v3513 = vpack.c.b16 %v3337, %v3321
        %v3514 = vpack.c.b16 %v3338, %v3322
        %v3515 = vpack.c.b16 %v3339, %v3323
        %v3516 = vpack.c.b16 %v3340, %v3324
        %v3517 = vpack.c.b16 %v3341, %v3325
        %v3518 = vpack.c.b16 %v3342, %v3326
        %v3519 = vpack.c.b16 %v3343, %v3327
        %v3520 = vpack.c.b16 %v3344, %v3328
        %v3521 = vpack.c.b16 %v3345, %v3329
        %v3522 = vpack.c.b16 %v3346, %v3330
        %v3523 = vpack.c.b16 %v3347, %v3331
        %v3524 = vpack.c.b16 %v3348, %v3332
        %v3525 = vpack.c.b16 %v3349, %v3333
        %v3526 = vpack.c.b16 %v3350, %v3334
        %v3527 = vpack.c.b16 %v3367, %v3351
        %v3528 = vpack.c.b16 %v3368, %v3352
        %v3529 = vpack.c.b16 %v3369, %v3353
        %v3530 = vpack.c.b16 %v3370, %v3354
        %v3531 = vpack.c.b16 %v3371, %v3355
        %v3532 = vpack.c.b16 %v3372, %v3356
        %v3533 = vpack.c.b16 %v3373, %v3357
        %v3534 = vpack.c.b16 %v3374, %v3358
        %v3535 = vpack.c.b16 %v3375, %v3359
        %v3536 = vpack.c.b16 %v3376, %v3360
        %v3537 = vpack.c.b16 %v3377, %v3361
        %v3538 = vpack.c.b16 %v3378, %v3362
        %v3539 = vpack.c.b16 %v3379, %v3363
        %v3540 = vpack.c.b16 %v3380, %v3364
        %v3541 = vpack.c.b16 %v3381, %v3365
        %v3542 = vpack.c.b16 %v3382, %v3366
        %v3543 = vpack.c.b16 %v3399, %v3383
        %v3544 = vpack.c.b16 %v3400, %v3384
        %v3545 = vpack.c.b16 %v3401, %v3385
        %v3546 = vpack.c.b16 %v3402, %v3386
        %v3547 = vpack.c.b16 %v3403, %v3387
        %v3548 = vpack.c.b16 %v3404, %v3388
        %v3549 = vpack.c.b16 %v3405, %v3389
        %v3550 = vpack.c.b16 %v3406, %v3390
        %v3551 = vpack.c.b16 %v3407, %v3391
        %v3552 = vpack.c.b16 %v3408, %v3392
        %v3553 = vpack.c.b16 %v3409, %v3393
        %v3554 = vpack.c.b16 %v3410, %v3394
        %v3555 = vpack.c.b16 %v3411, %v3395
        %v3556 = vpack.c.b16 %v3412, %v3396
        %v3557 = vpack.c.b16 %v3413, %v3397
        %v3558 = vpack.c.b16 %v3414, %v3398
        %v3559 = vpack.c.b16 %v3431, %v3415
        %v3560 = vpack.c.b16 %v3432, %v3416
        %v3561 = vpack.c.b16 %v3433, %v3417
        %v3562 = vpack.c.b16 %v3434, %v3418
        %v3563 = vpack.c.b16 %v3435, %v3419
        %v3564 = vpack.c.b16 %v3436, %v3420
        %v3565 = vpack.c.b16 %v3437, %v3421
        %v3566 = vpack.c.b16 %v3438, %v3422
        %v3567 = vpack.c.b16 %v3439, %v3423
        %v3568 = vpack.c.b16 %v3440, %v3424
        %v3569 = vpack.c.b16 %v3441, %v3425
        %v3570 = vpack.c.b16 %v3442, %v3426
        %v3571 = vpack.c.b16 %v3443, %v3427
        %v3572 = vpack.c.b16 %v3444, %v3428
        %v3573 = vpack.c.b16 %v3445, %v3429
        %v3574 = vpack.c.b16 %v3446, %v3430
        %3703 = vmatprep.subr.bf16.mxu0 %v3448
        %3704 = vmatpush1.bf16.msra.mxu0 %v3447
        %3705 = vmatprep.subr.bf16.mxu0 %v3464
        %3706 = vmatpush1.bf16.msra.mxu0 %v3463
        %3707 = vmatprep.subr.bf16.mxu0 %v3480
        %3708 = vmatpush1.bf16.msra.mxu0 %v3479
        %3709 = vmatprep.subr.bf16.mxu0 %v3496
        %3710 = vmatpush1.bf16.msra.mxu0 %v3495
        %3711 = vmatprep.subr.bf16.mxu0 %v3512
        %3712 = vmatpush1.bf16.msra.mxu0 %v3511
        %3713 = vmatprep.subr.bf16.mxu0 %v3528
        %3714 = vmatpush1.bf16.msra.mxu0 %v3527
        %3715 = vmatprep.subr.bf16.mxu0 %v3544
        %3716 = vmatpush1.bf16.msra.mxu0 %v3543
        %3717 = vmatprep.subr.bf16.mxu0 %v3560
        %3718 = vmatpush1.bf16.msra.mxu0 %v3559
        %3719 = vmatprep.subr.bf16.mxu0 0
        %3720 = vmatpush1.bf16.msra.mxu0 0
        %3721 = vmatprep.subr.bf16.mxu0 0
        %3722 = vmatpush1.bf16.msra.mxu0 0
        %3723 = vmatprep.subr.bf16.mxu0 0
        %3724 = vmatpush1.bf16.msra.mxu0 0
        %3725 = vmatprep.subr.bf16.mxu0 0
        %3726 = vmatpush1.bf16.msra.mxu0 0
        %3727 = vmatprep.subr.bf16.mxu0 0
        %3728 = vmatpush1.bf16.msra.mxu0 0
        %3729 = vmatprep.subr.bf16.mxu0 0
        %3730 = vmatpush1.bf16.msra.mxu0 0
        %3731 = vmatprep.subr.bf16.mxu0 0
        %3732 = vmatpush1.bf16.msra.mxu0 0
        %3733 = vmatprep.subr.bf16.mxu0 0
        %3734 = vmatpush1.bf16.msra.mxu0 0
        %3735 = vmatprep.mubr.bf16.mxu0 0
        %3736 = vmatmul.mubr.bf16.gmra.mrb[0].mxu0 %v2850
        %v3737 = vpop.f32.mrb[0].mxu0
        %v3738 = vadd.f32 %v2986, %v3737
        %v3739 = vpop.f32.mrb[0].mxu0
        %v3740 = vadd.f32 %v2990, %v3739
        %v3741 = vpop.f32.mrb[0].mxu0
        %v3742 = vpop.f32.mrb[0].mxu0
        %3743 = vdwg.mxu0
        %3744 = vmatprep.subr.bf16.mxu0 %v3450
        %3745 = vmatpush1.bf16.msra.mxu0 %v3449
        %3746 = vmatprep.subr.bf16.mxu0 %v3466
        %3747 = vmatpush1.bf16.msra.mxu0 %v3465
        %3748 = vmatprep.subr.bf16.mxu0 %v3482
        %3749 = vmatpush1.bf16.msra.mxu0 %v3481
        %3750 = vmatprep.subr.bf16.mxu0 %v3498
        %3751 = vmatpush1.bf16.msra.mxu0 %v3497
        %3752 = vmatprep.subr.bf16.mxu0 %v3514
        %3753 = vmatpush1.bf16.msra.mxu0 %v3513
        %3754 = vmatprep.subr.bf16.mxu0 %v3530
        %3755 = vmatpush1.bf16.msra.mxu0 %v3529
        %3756 = vmatprep.subr.bf16.mxu0 %v3546
        %3757 = vmatpush1.bf16.msra.mxu0 %v3545
        %3758 = vmatprep.subr.bf16.mxu0 %v3562
        %3759 = vmatpush1.bf16.msra.mxu0 %v3561
        %3760 = vmatprep.subr.bf16.mxu0 0
        %3761 = vmatpush1.bf16.msra.mxu0 0
        %3762 = vmatprep.subr.bf16.mxu0 0
        %3763 = vmatpush1.bf16.msra.mxu0 0
        %3764 = vmatprep.subr.bf16.mxu0 0
        %3765 = vmatpush1.bf16.msra.mxu0 0
        %3766 = vmatprep.subr.bf16.mxu0 0
        %3767 = vmatpush1.bf16.msra.mxu0 0
        %3768 = vmatprep.subr.bf16.mxu0 0
        %3769 = vmatpush1.bf16.msra.mxu0 0
        %3770 = vmatprep.subr.bf16.mxu0 0
        %3771 = vmatpush1.bf16.msra.mxu0 0
        %3772 = vmatprep.subr.bf16.mxu0 0
        %3773 = vmatpush1.bf16.msra.mxu0 0
        %3774 = vmatprep.subr.bf16.mxu0 0
        %3775 = vmatpush1.bf16.msra.mxu0 0
        %3776 = vmatprep.mubr.bf16.mxu0 0
        %3777 = vmatmul.mubr.bf16.gmra.mrb[0].mxu0 %v2850
        %v3778 = vpop.f32.mrb[0].mxu0
        %v3779 = vadd.f32 %v2994, %v3778
        %v3780 = vpop.f32.mrb[0].mxu0
        %v3781 = vadd.f32 %v2998, %v3780
        %v3782 = vpop.f32.mrb[0].mxu0
        %v3783 = vpop.f32.mrb[0].mxu0
        %3784 = vdwg.mxu0
        %3785 = vmatprep.subr.bf16.mxu0 %v3452
        %3786 = vmatpush1.bf16.msra.mxu0 %v3451
        %3787 = vmatprep.subr.bf16.mxu0 %v3468
        %3788 = vmatpush1.bf16.msra.mxu0 %v3467
        %3789 = vmatprep.subr.bf16.mxu0 %v3484
        %3790 = vmatpush1.bf16.msra.mxu0 %v3483
        %3791 = vmatprep.subr.bf16.mxu0 %v3500
        %3792 = vmatpush1.bf16.msra.mxu0 %v3499
        %3793 = vmatprep.subr.bf16.mxu0 %v3516
        %3794 = vmatpush1.bf16.msra.mxu0 %v3515
        %3795 = vmatprep.subr.bf16.mxu0 %v3532
        %3796 = vmatpush1.bf16.msra.mxu0 %v3531
        %3797 = vmatprep.subr.bf16.mxu0 %v3548
        %3798 = vmatpush1.bf16.msra.mxu0 %v3547
        %3799 = vmatprep.subr.bf16.mxu0 %v3564
        %3800 = vmatpush1.bf16.msra.mxu0 %v3563
        %3801 = vmatprep.subr.bf16.mxu0 0
        %3802 = vmatpush1.bf16.msra.mxu0 0
        %3803 = vmatprep.subr.bf16.mxu0 0
        %3804 = vmatpush1.bf16.msra.mxu0 0
        %3805 = vmatprep.subr.bf16.mxu0 0
        %3806 = vmatpush1.bf16.msra.mxu0 0
        %3807 = vmatprep.subr.bf16.mxu0 0
        %3808 = vmatpush1.bf16.msra.mxu0 0
        %3809 = vmatprep.subr.bf16.mxu0 0
        %3810 = vmatpush1.bf16.msra.mxu0 0
        %3811 = vmatprep.subr.bf16.mxu0 0
        %3812 = vmatpush1.bf16.msra.mxu0 0
        %3813 = vmatprep.subr.bf16.mxu0 0
        %3814 = vmatpush1.bf16.msra.mxu0 0
        %3815 = vmatprep.subr.bf16.mxu0 0
        %3816 = vmatpush1.bf16.msra.mxu0 0
        %3817 = vmatprep.mubr.bf16.mxu0 0
        %3818 = vmatmul.mubr.bf16.gmra.mrb[0].mxu0 %v2850
        %v3819 = vpop.f32.mrb[0].mxu0
        %v3820 = vadd.f32 %v3002, %v3819
        %v3821 = vpop.f32.mrb[0].mxu0
        %v3822 = vadd.f32 %v3006, %v3821
        %v3823 = vpop.f32.mrb[0].mxu0
        %v3824 = vpop.f32.mrb[0].mxu0
        %3825 = vdwg.mxu0
        %3826 = vmatprep.subr.bf16.mxu0 %v3454
        %3827 = vmatpush1.bf16.msra.mxu0 %v3453
        %3828 = vmatprep.subr.bf16.mxu0 %v3470
        %3829 = vmatpush1.bf16.msra.mxu0 %v3469
        %3830 = vmatprep.subr.bf16.mxu0 %v3486
        %3831 = vmatpush1.bf16.msra.mxu0 %v3485
        %3832 = vmatprep.subr.bf16.mxu0 %v3502
        %3833 = vmatpush1.bf16.msra.mxu0 %v3501
        %3834 = vmatprep.subr.bf16.mxu0 %v3518
        %3835 = vmatpush1.bf16.msra.mxu0 %v3517
        %3836 = vmatprep.subr.bf16.mxu0 %v3534
        %3837 = vmatpush1.bf16.msra.mxu0 %v3533
        %3838 = vmatprep.subr.bf16.mxu0 %v3550
        %3839 = vmatpush1.bf16.msra.mxu0 %v3549
        %3840 = vmatprep.subr.bf16.mxu0 %v3566
        %3841 = vmatpush1.bf16.msra.mxu0 %v3565
        %3842 = vmatprep.subr.bf16.mxu0 0
        %3843 = vmatpush1.bf16.msra.mxu0 0
        %3844 = vmatprep.subr.bf16.mxu0 0
        %3845 = vmatpush1.bf16.msra.mxu0 0
        %3846 = vmatprep.subr.bf16.mxu0 0
        %3847 = vmatpush1.bf16.msra.mxu0 0
        %3848 = vmatprep.subr.bf16.mxu0 0
        %3849 = vmatpush1.bf16.msra.mxu0 0
        %3850 = vmatprep.subr.bf16.mxu0 0
        %3851 = vmatpush1.bf16.msra.mxu0 0
        %3852 = vmatprep.subr.bf16.mxu0 0
        %3853 = vmatpush1.bf16.msra.mxu0 0
        %3854 = vmatprep.subr.bf16.mxu0 0
        %3855 = vmatpush1.bf16.msra.mxu0 0
        %3856 = vmatprep.subr.bf16.mxu0 0
        %3857 = vmatpush1.bf16.msra.mxu0 0
        %3858 = vmatprep.mubr.bf16.mxu0 0
        %3859 = vmatmul.mubr.bf16.gmra.mrb[0].mxu0 %v2850
        %v3860 = vpop.f32.mrb[0].mxu0
        %v3861 = vadd.f32 %v3010, %v3860
        %v3862 = vpop.f32.mrb[0].mxu0
        %v3863 = vadd.f32 %v3014, %v3862
        %v3864 = vpop.f32.mrb[0].mxu0
        %v3865 = vpop.f32.mrb[0].mxu0
        %3866 = vdwg.mxu0
        %3867 = vmatprep.subr.bf16.mxu0 %v3456
        %3868 = vmatpush1.bf16.msra.mxu0 %v3455
        %3869 = vmatprep.subr.bf16.mxu0 %v3472
        %3870 = vmatpush1.bf16.msra.mxu0 %v3471
        %3871 = vmatprep.subr.bf16.mxu0 %v3488
        %3872 = vmatpush1.bf16.msra.mxu0 %v3487
        %3873 = vmatprep.subr.bf16.mxu0 %v3504
        %3874 = vmatpush1.bf16.msra.mxu0 %v3503
        %3875 = vmatprep.subr.bf16.mxu0 %v3520
        %3876 = vmatpush1.bf16.msra.mxu0 %v3519
        %3877 = vmatprep.subr.bf16.mxu0 %v3536
        %3878 = vmatpush1.bf16.msra.mxu0 %v3535
        %3879 = vmatprep.subr.bf16.mxu0 %v3552
        %3880 = vmatpush1.bf16.msra.mxu0 %v3551
        %3881 = vmatprep.subr.bf16.mxu0 %v3568
        %3882 = vmatpush1.bf16.msra.mxu0 %v3567
        %3883 = vmatprep.subr.bf16.mxu0 0
        %3884 = vmatpush1.bf16.msra.mxu0 0
        %3885 = vmatprep.subr.bf16.mxu0 0
        %3886 = vmatpush1.bf16.msra.mxu0 0
        %3887 = vmatprep.subr.bf16.mxu0 0
        %3888 = vmatpush1.bf16.msra.mxu0 0
        %3889 = vmatprep.subr.bf16.mxu0 0
        %3890 = vmatpush1.bf16.msra.mxu0 0
        %3891 = vmatprep.subr.bf16.mxu0 0
        %3892 = vmatpush1.bf16.msra.mxu0 0
        %3893 = vmatprep.subr.bf16.mxu0 0
        %3894 = vmatpush1.bf16.msra.mxu0 0
        %3895 = vmatprep.subr.bf16.mxu0 0
        %3896 = vmatpush1.bf16.msra.mxu0 0
        %3897 = vmatprep.subr.bf16.mxu0 0
        %3898 = vmatpush1.bf16.msra.mxu0 0
        %3899 = vmatprep.mubr.bf16.mxu0 0
        %3900 = vmatmul.mubr.bf16.gmra.mrb[0].mxu0 %v2850
        %v3901 = vpop.f32.mrb[0].mxu0
        %v3902 = vadd.f32 %v3018, %v3901
        %v3903 = vpop.f32.mrb[0].mxu0
        %v3904 = vadd.f32 %v3022, %v3903
        %v3905 = vpop.f32.mrb[0].mxu0
        %v3906 = vpop.f32.mrb[0].mxu0
        %3907 = vdwg.mxu0
        %3908 = vmatprep.subr.bf16.mxu0 %v3458
        %3909 = vmatpush1.bf16.msra.mxu0 %v3457
        %3910 = vmatprep.subr.bf16.mxu0 %v3474
        %3911 = vmatpush1.bf16.msra.mxu0 %v3473
        %3912 = vmatprep.subr.bf16.mxu0 %v3490
        %3913 = vmatpush1.bf16.msra.mxu0 %v3489
        %3914 = vmatprep.subr.bf16.mxu0 %v3506
        %3915 = vmatpush1.bf16.msra.mxu0 %v3505
        %3916 = vmatprep.subr.bf16.mxu0 %v3522
        %3917 = vmatpush1.bf16.msra.mxu0 %v3521
        %3918 = vmatprep.subr.bf16.mxu0 %v3538
        %3919 = vmatpush1.bf16.msra.mxu0 %v3537
        %3920 = vmatprep.subr.bf16.mxu0 %v3554
        %3921 = vmatpush1.bf16.msra.mxu0 %v3553
        %3922 = vmatprep.subr.bf16.mxu0 %v3570
        %3923 = vmatpush1.bf16.msra.mxu0 %v3569
        %3924 = vmatprep.subr.bf16.mxu0 0
        %3925 = vmatpush1.bf16.msra.mxu0 0
        %3926 = vmatprep.subr.bf16.mxu0 0
        %3927 = vmatpush1.bf16.msra.mxu0 0
        %3928 = vmatprep.subr.bf16.mxu0 0
        %3929 = vmatpush1.bf16.msra.mxu0 0
        %3930 = vmatprep.subr.bf16.mxu0 0
        %3931 = vmatpush1.bf16.msra.mxu0 0
        %3932 = vmatprep.subr.bf16.mxu0 0
        %3933 = vmatpush1.bf16.msra.mxu0 0
        %3934 = vmatprep.subr.bf16.mxu0 0
        %3935 = vmatpush1.bf16.msra.mxu0 0
        %3936 = vmatprep.subr.bf16.mxu0 0
        %3937 = vmatpush1.bf16.msra.mxu0 0
        %3938 = vmatprep.subr.bf16.mxu0 0
        %3939 = vmatpush1.bf16.msra.mxu0 0
        %3940 = vmatprep.mubr.bf16.mxu0 0
        %3941 = vmatmul.mubr.bf16.gmra.mrb[0].mxu0 %v2850
        %v3942 = vpop.f32.mrb[0].mxu0
        %v3943 = vadd.f32 %v3026, %v3942
        %v3944 = vpop.f32.mrb[0].mxu0
        %v3945 = vadd.f32 %v3030, %v3944
        %v3946 = vpop.f32.mrb[0].mxu0
        %v3947 = vpop.f32.mrb[0].mxu0
        %3948 = vdwg.mxu0
        %3949 = vmatprep.subr.bf16.mxu0 %v3460
        %3950 = vmatpush1.bf16.msra.mxu0 %v3459
        %3951 = vmatprep.subr.bf16.mxu0 %v3476
        %3952 = vmatpush1.bf16.msra.mxu0 %v3475
        %3953 = vmatprep.subr.bf16.mxu0 %v3492
        %3954 = vmatpush1.bf16.msra.mxu0 %v3491
        %3955 = vmatprep.subr.bf16.mxu0 %v3508
        %3956 = vmatpush1.bf16.msra.mxu0 %v3507
        %3957 = vmatprep.subr.bf16.mxu0 %v3524
        %3958 = vmatpush1.bf16.msra.mxu0 %v3523
        %3959 = vmatprep.subr.bf16.mxu0 %v3540
        %3960 = vmatpush1.bf16.msra.mxu0 %v3539
        %3961 = vmatprep.subr.bf16.mxu0 %v3556
        %3962 = vmatpush1.bf16.msra.mxu0 %v3555
        %3963 = vmatprep.subr.bf16.mxu0 %v3572
        %3964 = vmatpush1.bf16.msra.mxu0 %v3571
        %3965 = vmatprep.subr.bf16.mxu0 0
        %3966 = vmatpush1.bf16.msra.mxu0 0
        %3967 = vmatprep.subr.bf16.mxu0 0
        %3968 = vmatpush1.bf16.msra.mxu0 0
        %3969 = vmatprep.subr.bf16.mxu0 0
        %3970 = vmatpush1.bf16.msra.mxu0 0
        %3971 = vmatprep.subr.bf16.mxu0 0
        %3972 = vmatpush1.bf16.msra.mxu0 0
        %3973 = vmatprep.subr.bf16.mxu0 0
        %3974 = vmatpush1.bf16.msra.mxu0 0
        %3975 = vmatprep.subr.bf16.mxu0 0
        %3976 = vmatpush1.bf16.msra.mxu0 0
        %3977 = vmatprep.subr.bf16.mxu0 0
        %3978 = vmatpush1.bf16.msra.mxu0 0
        %3979 = vmatprep.subr.bf16.mxu0 0
        %3980 = vmatpush1.bf16.msra.mxu0 0
        %3981 = vmatprep.mubr.bf16.mxu0 0
        %3982 = vmatmul.mubr.bf16.gmra.mrb[0].mxu0 %v2850
        %v3983 = vpop.f32.mrb[0].mxu0
        %v3984 = vadd.f32 %v3034, %v3983
        %v3985 = vpop.f32.mrb[0].mxu0
        %v3986 = vadd.f32 %v3038, %v3985
        %v3987 = vpop.f32.mrb[0].mxu0
        %v3988 = vpop.f32.mrb[0].mxu0
        %3989 = vdwg.mxu0
        %3990 = vmatprep.subr.bf16.mxu0 %v3462
        %3991 = vmatpush1.bf16.msra.mxu0 %v3461
        %3992 = vmatprep.subr.bf16.mxu0 %v3478
        %3993 = vmatpush1.bf16.msra.mxu0 %v3477
        %3994 = vmatprep.subr.bf16.mxu0 %v3494
        %3995 = vmatpush1.bf16.msra.mxu0 %v3493
        %3996 = vmatprep.subr.bf16.mxu0 %v3510
        %3997 = vmatpush1.bf16.msra.mxu0 %v3509
        %3998 = vmatprep.subr.bf16.mxu0 %v3526
        %3999 = vmatpush1.bf16.msra.mxu0 %v3525
        %4000 = vmatprep.subr.bf16.mxu0 %v3542
        %4001 = vmatpush1.bf16.msra.mxu0 %v3541
        %4002 = vmatprep.subr.bf16.mxu0 %v3558
        %4003 = vmatpush1.bf16.msra.mxu0 %v3557
        %4004 = vmatprep.subr.bf16.mxu0 %v3574
        %4005 = vmatpush1.bf16.msra.mxu0 %v3573
        %4006 = vmatprep.subr.bf16.mxu0 0
        %4007 = vmatpush1.bf16.msra.mxu0 0
        %4008 = vmatprep.subr.bf16.mxu0 0
        %4009 = vmatpush1.bf16.msra.mxu0 0
        %4010 = vmatprep.subr.bf16.mxu0 0
        %4011 = vmatpush1.bf16.msra.mxu0 0
        %4012 = vmatprep.subr.bf16.mxu0 0
        %4013 = vmatpush1.bf16.msra.mxu0 0
        %4014 = vmatprep.subr.bf16.mxu0 0
        %4015 = vmatpush1.bf16.msra.mxu0 0
        %4016 = vmatprep.subr.bf16.mxu0 0
        %4017 = vmatpush1.bf16.msra.mxu0 0
        %4018 = vmatprep.subr.bf16.mxu0 0
        %4019 = vmatpush1.bf16.msra.mxu0 0
        %4020 = vmatprep.subr.bf16.mxu0 0
        %4021 = vmatpush1.bf16.msra.mxu0 0
        %4022 = vmatprep.mubr.bf16.mxu0 0
        %4023 = vmatmul.mubr.bf16.gmra.mrb[0].mxu0 %v2850
        %v4024 = vpop.f32.mrb[0].mxu0
        %v4025 = vadd.f32 %v3042, %v4024
        %v4026 = vpop.f32.mrb[0].mxu0
        %v4027 = vadd.f32 %v3046, %v4026
        %v4028 = vpop.f32.mrb[0].mxu0
        %v4029 = vpop.f32.mrb[0].mxu0
        %4030 = vdwg.mxu0
        %v4031 = vmax.f32 %v3738, 0.0
        %v4032 = vmax.f32 %v3740, 0.0
        %v4033 = vmax.f32 %v3779, 0.0
        %v4034 = vmax.f32 %v3781, 0.0
        %v4035 = vmax.f32 %v3820, 0.0
        %v4036 = vmax.f32 %v3822, 0.0
        %v4037 = vmax.f32 %v3861, 0.0
        %v4038 = vmax.f32 %v3863, 0.0
        %v4039 = vmax.f32 %v3902, 0.0
        %v4040 = vmax.f32 %v3904, 0.0
        %v4041 = vmax.f32 %v3943, 0.0
        %v4042 = vmax.f32 %v3945, 0.0
        %v4043 = vmax.f32 %v3984, 0.0
        %v4044 = vmax.f32 %v3986, 0.0
        %v4045 = vmax.f32 %v4025, 0.0
        %v4046 = vmax.f32 %v4027, 0.0
        %v4047 = vpack.c.bf16 %v4031, %v4031
        %v4048 = vpack.c.bf16 %v4032, %v4032
        %v4049 = vpack.c.bf16 %v4033, %v4033
        %v4050 = vpack.c.bf16 %v4034, %v4034
        %v4051 = vpack.c.bf16 %v4035, %v4035
        %v4052 = vpack.c.bf16 %v4036, %v4036
        %v4053 = vpack.c.bf16 %v4037, %v4037
        %v4054 = vpack.c.bf16 %v4038, %v4038
        %v4055 = vpack.c.bf16 %v4039, %v4039
        %v4056 = vpack.c.bf16 %v4040, %v4040
        %v4057 = vpack.c.bf16 %v4041, %v4041
        %v4058 = vpack.c.bf16 %v4042, %v4042
        %v4059 = vpack.c.bf16 %v4043, %v4043
        %v4060 = vpack.c.bf16 %v4044, %v4044
        %v4061 = vpack.c.bf16 %v4045, %v4045
        %v4062 = vpack.c.bf16 %v4046, %v4046
        %v4063 = vld [vmem:[#allocation21] sm:$0xf]
        %v4064 = vld [vmem:[#allocation21 + $0x4] sm:$0xf]
        %v4065 = vld [vmem:[#allocation21 + $0x8] sm:$0xf]
        %v4066 = vld [vmem:[#allocation21 + $0xc] sm:$0xf]
        %v4067 = vld [vmem:[#allocation21 + $0x10] sm:$0xf]
        %v4068 = vld [vmem:[#allocation21 + $0x14] sm:$0xf]
        %v4069 = vld [vmem:[#allocation21 + $0x18] sm:$0xf]
        %v4070 = vld [vmem:[#allocation21 + $0x1c] sm:$0xf]
        %v4071 = vld [vmem:[#allocation21 + $0x20] sm:$0xf]
        %v4072 = vld [vmem:[#allocation21 + $0x24] sm:$0xf]
        %v4073 = vld [vmem:[#allocation21 + $0x28] sm:$0xf]
        %v4074 = vld [vmem:[#allocation21 + $0x2c] sm:$0xf]
        %v4075 = vld [vmem:[#allocation21 + $0x30] sm:$0xf]
        %v4076 = vld [vmem:[#allocation21 + $0x34] sm:$0xf]
        %v4077 = vld [vmem:[#allocation21 + $0x38] sm:$0xf]
        %v4078 = vld [vmem:[#allocation21 + $0x3c] sm:$0xf]
        %v4079 = vld [vmem:[#allocation21 + $0x40] sm:$0xf]
        %v4080 = vld [vmem:[#allocation21 + $0x44] sm:$0xf]
        %v4081 = vld [vmem:[#allocation21 + $0x48] sm:$0xf]
        %v4082 = vld [vmem:[#allocation21 + $0x4c] sm:$0xf]
        %v4083 = vld [vmem:[#allocation21 + $0x50] sm:$0xf]
        %v4084 = vld [vmem:[#allocation21 + $0x54] sm:$0xf]
        %v4085 = vld [vmem:[#allocation21 + $0x58] sm:$0xf]
        %v4086 = vld [vmem:[#allocation21 + $0x5c] sm:$0xf]
        %v4087 = vld [vmem:[#allocation21 + $0x60] sm:$0xf]
        %v4088 = vld [vmem:[#allocation21 + $0x64] sm:$0xf]
        %v4089 = vld [vmem:[#allocation21 + $0x68] sm:$0xf]
        %v4090 = vld [vmem:[#allocation21 + $0x6c] sm:$0xf]
        %v4091 = vld [vmem:[#allocation21 + $0x70] sm:$0xf]
        %v4092 = vld [vmem:[#allocation21 + $0x74] sm:$0xf]
        %v4093 = vld [vmem:[#allocation21 + $0x78] sm:$0xf]
        %v4094 = vld [vmem:[#allocation21 + $0x7c] sm:$0xf]
        %v4095 = vld [vmem:[#allocation21 + $0x80] sm:$0xf]
        %v4096 = vld [vmem:[#allocation21 + $0x84] sm:$0xf]
        %v4097 = vld [vmem:[#allocation21 + $0x88] sm:$0xf]
        %v4098 = vld [vmem:[#allocation21 + $0x8c] sm:$0xf]
        %v4099 = vld [vmem:[#allocation21 + $0x90] sm:$0xf]
        %v4100 = vld [vmem:[#allocation21 + $0x94] sm:$0xf]
        %v4101 = vld [vmem:[#allocation21 + $0x98] sm:$0xf]
        %v4102 = vld [vmem:[#allocation21 + $0x9c] sm:$0xf]
        %v4103 = vld [vmem:[#allocation21 + $0xa0] sm:$0xf]
        %v4104 = vld [vmem:[#allocation21 + $0xa4] sm:$0xf]
        %v4105 = vld [vmem:[#allocation21 + $0xa8] sm:$0xf]
        %v4106 = vld [vmem:[#allocation21 + $0xac] sm:$0xf]
        %v4107 = vld [vmem:[#allocation21 + $0xb0] sm:$0xf]
        %v4108 = vld [vmem:[#allocation21 + $0xb4] sm:$0xf]
        %v4109 = vld [vmem:[#allocation21 + $0xb8] sm:$0xf]
        %v4110 = vld [vmem:[#allocation21 + $0xbc] sm:$0xf]
        %v4111 = vld [vmem:[#allocation21 + $0xc0] sm:$0xf]
        %v4112 = vld [vmem:[#allocation21 + $0xc4] sm:$0xf]
        %v4113 = vld [vmem:[#allocation21 + $0xc8] sm:$0xf]
        %v4114 = vld [vmem:[#allocation21 + $0xcc] sm:$0xf]
        %v4115 = vld [vmem:[#allocation21 + $0xd0] sm:$0xf]
        %v4116 = vld [vmem:[#allocation21 + $0xd4] sm:$0xf]
        %v4117 = vld [vmem:[#allocation21 + $0xd8] sm:$0xf]
        %v4118 = vld [vmem:[#allocation21 + $0xdc] sm:$0xf]
        %v4119 = vld [vmem:[#allocation21 + $0xe0] sm:$0xf]
        %v4120 = vld [vmem:[#allocation21 + $0xe4] sm:$0xf]
        %v4121 = vld [vmem:[#allocation21 + $0xe8] sm:$0xf]
        %v4122 = vld [vmem:[#allocation21 + $0xec] sm:$0xf]
        %v4123 = vld [vmem:[#allocation21 + $0xf0] sm:$0xf]
        %v4124 = vld [vmem:[#allocation21 + $0xf4] sm:$0xf]
        %v4125 = vld [vmem:[#allocation21 + $0xf8] sm:$0xf]
        %v4126 = vld [vmem:[#allocation21 + $0xfc] sm:$0xf]
        %v4127 = vld [vmem:[#allocation21 + $0x100] sm:$0xf]
        %v4128 = vld [vmem:[#allocation21 + $0x104] sm:$0xf]
        %v4129 = vld [vmem:[#allocation21 + $0x108] sm:$0xf]
        %v4130 = vld [vmem:[#allocation21 + $0x10c] sm:$0xf]
        %v4131 = vld [vmem:[#allocation21 + $0x110] sm:$0xf]
        %v4132 = vld [vmem:[#allocation21 + $0x114] sm:$0xf]
        %v4133 = vld [vmem:[#allocation21 + $0x118] sm:$0xf]
        %v4134 = vld [vmem:[#allocation21 + $0x11c] sm:$0xf]
        %v4135 = vld [vmem:[#allocation21 + $0x120] sm:$0xf]
        %v4136 = vld [vmem:[#allocation21 + $0x124] sm:$0xf]
        %v4137 = vld [vmem:[#allocation21 + $0x128] sm:$0xf]
        %v4138 = vld [vmem:[#allocation21 + $0x12c] sm:$0xf]
        %v4139 = vld [vmem:[#allocation21 + $0x130] sm:$0xf]
        %v4140 = vld [vmem:[#allocation21 + $0x134] sm:$0xf]
        %v4141 = vld [vmem:[#allocation21 + $0x138] sm:$0xf]
        %v4142 = vld [vmem:[#allocation21 + $0x13c] sm:$0xf]
        %v4143 = vld [vmem:[#allocation21 + $0x140] sm:$0xf]
        %v4144 = vld [vmem:[#allocation21 + $0x144] sm:$0xf]
        %v4145 = vld [vmem:[#allocation21 + $0x148] sm:$0xf]
        %v4146 = vld [vmem:[#allocation21 + $0x14c] sm:$0xf]
        %v4147 = vld [vmem:[#allocation21 + $0x150] sm:$0xf]
        %v4148 = vld [vmem:[#allocation21 + $0x154] sm:$0xf]
        %v4149 = vld [vmem:[#allocation21 + $0x158] sm:$0xf]
        %v4150 = vld [vmem:[#allocation21 + $0x15c] sm:$0xf]
        %v4151 = vld [vmem:[#allocation21 + $0x160] sm:$0xf]
        %v4152 = vld [vmem:[#allocation21 + $0x164] sm:$0xf]
        %v4153 = vld [vmem:[#allocation21 + $0x168] sm:$0xf]
        %v4154 = vld [vmem:[#allocation21 + $0x16c] sm:$0xf]
        %v4155 = vld [vmem:[#allocation21 + $0x170] sm:$0xf]
        %v4156 = vld [vmem:[#allocation21 + $0x174] sm:$0xf]
        %v4157 = vld [vmem:[#allocation21 + $0x178] sm:$0xf]
        %v4158 = vld [vmem:[#allocation21 + $0x17c] sm:$0xf]
        %v4159 = vld [vmem:[#allocation21 + $0x180] sm:$0xf]
        %v4160 = vld [vmem:[#allocation21 + $0x184] sm:$0xf]
        %v4161 = vld [vmem:[#allocation21 + $0x188] sm:$0xf]
        %v4162 = vld [vmem:[#allocation21 + $0x18c] sm:$0xf]
        %v4163 = vld [vmem:[#allocation21 + $0x190] sm:$0xf]
        %v4164 = vld [vmem:[#allocation21 + $0x194] sm:$0xf]
        %v4165 = vld [vmem:[#allocation21 + $0x198] sm:$0xf]
        %v4166 = vld [vmem:[#allocation21 + $0x19c] sm:$0xf]
        %v4167 = vld [vmem:[#allocation21 + $0x1a0] sm:$0xf]
        %v4168 = vld [vmem:[#allocation21 + $0x1a4] sm:$0xf]
        %v4169 = vld [vmem:[#allocation21 + $0x1a8] sm:$0xf]
        %v4170 = vld [vmem:[#allocation21 + $0x1ac] sm:$0xf]
        %v4171 = vld [vmem:[#allocation21 + $0x1b0] sm:$0xf]
        %v4172 = vld [vmem:[#allocation21 + $0x1b4] sm:$0xf]
        %v4173 = vld [vmem:[#allocation21 + $0x1b8] sm:$0xf]
        %v4174 = vld [vmem:[#allocation21 + $0x1bc] sm:$0xf]
        %v4175 = vld [vmem:[#allocation21 + $0x1c0] sm:$0xf]
        %v4176 = vld [vmem:[#allocation21 + $0x1c4] sm:$0xf]
        %v4177 = vld [vmem:[#allocation21 + $0x1c8] sm:$0xf]
        %v4178 = vld [vmem:[#allocation21 + $0x1cc] sm:$0xf]
        %v4179 = vld [vmem:[#allocation21 + $0x1d0] sm:$0xf]
        %v4180 = vld [vmem:[#allocation21 + $0x1d4] sm:$0xf]
        %v4181 = vld [vmem:[#allocation21 + $0x1d8] sm:$0xf]
        %v4182 = vld [vmem:[#allocation21 + $0x1dc] sm:$0xf]
        %v4183 = vld [vmem:[#allocation21 + $0x1e0] sm:$0xf]
        %v4184 = vld [vmem:[#allocation21 + $0x1e4] sm:$0xf]
        %v4185 = vld [vmem:[#allocation21 + $0x1e8] sm:$0xf]
        %v4186 = vld [vmem:[#allocation21 + $0x1ec] sm:$0xf]
        %v4187 = vld [vmem:[#allocation21 + $0x1f0] sm:$0xf]
        %v4188 = vld [vmem:[#allocation21 + $0x1f4] sm:$0xf]
        %v4189 = vld [vmem:[#allocation21 + $0x1f8] sm:$0xf]
        %v4190 = vld [vmem:[#allocation21 + $0x1fc] sm:$0xf]
        %v4191 = vld [vmem:[#allocation21 + $0x200] sm:$0xf]
        %v4192 = vld [vmem:[#allocation21 + $0x204] sm:$0xf]
        %v4193 = vld [vmem:[#allocation21 + $0x208] sm:$0xf]
        %v4194 = vld [vmem:[#allocation21 + $0x20c] sm:$0xf]
        %v4195 = vld [vmem:[#allocation21 + $0x210] sm:$0xf]
        %v4196 = vld [vmem:[#allocation21 + $0x214] sm:$0xf]
        %v4197 = vld [vmem:[#allocation21 + $0x218] sm:$0xf]
        %v4198 = vld [vmem:[#allocation21 + $0x21c] sm:$0xf]
        %v4199 = vld [vmem:[#allocation21 + $0x220] sm:$0xf]
        %v4200 = vld [vmem:[#allocation21 + $0x224] sm:$0xf]
        %v4201 = vld [vmem:[#allocation21 + $0x228] sm:$0xf]
        %v4202 = vld [vmem:[#allocation21 + $0x22c] sm:$0xf]
        %v4203 = vld [vmem:[#allocation21 + $0x230] sm:$0xf]
        %v4204 = vld [vmem:[#allocation21 + $0x234] sm:$0xf]
        %v4205 = vld [vmem:[#allocation21 + $0x238] sm:$0xf]
        %v4206 = vld [vmem:[#allocation21 + $0x23c] sm:$0xf]
        %v4207 = vld [vmem:[#allocation21 + $0x240] sm:$0xf]
        %v4208 = vld [vmem:[#allocation21 + $0x244] sm:$0xf]
        %v4209 = vld [vmem:[#allocation21 + $0x248] sm:$0xf]
        %v4210 = vld [vmem:[#allocation21 + $0x24c] sm:$0xf]
        %v4211 = vld [vmem:[#allocation21 + $0x250] sm:$0xf]
        %v4212 = vld [vmem:[#allocation21 + $0x254] sm:$0xf]
        %v4213 = vld [vmem:[#allocation21 + $0x258] sm:$0xf]
        %v4214 = vld [vmem:[#allocation21 + $0x25c] sm:$0xf]
        %v4215 = vld [vmem:[#allocation21 + $0x260] sm:$0xf]
        %v4216 = vld [vmem:[#allocation21 + $0x264] sm:$0xf]
        %v4217 = vld [vmem:[#allocation21 + $0x268] sm:$0xf]
        %v4218 = vld [vmem:[#allocation21 + $0x26c] sm:$0xf]
        %v4219 = vld [vmem:[#allocation21 + $0x270] sm:$0xf]
        %v4220 = vld [vmem:[#allocation21 + $0x274] sm:$0xf]
        %v4221 = vld [vmem:[#allocation21 + $0x278] sm:$0xf]
        %v4222 = vld [vmem:[#allocation21 + $0x27c] sm:$0xf]
        %v4223 = vld [vmem:[#allocation21 + $0x280] sm:$0xf]
        %v4224 = vld [vmem:[#allocation21 + $0x284] sm:$0xf]
        %v4225 = vld [vmem:[#allocation21 + $0x288] sm:$0xf]
        %v4226 = vld [vmem:[#allocation21 + $0x28c] sm:$0xf]
        %v4227 = vld [vmem:[#allocation21 + $0x290] sm:$0xf]
        %v4228 = vld [vmem:[#allocation21 + $0x294] sm:$0xf]
        %v4229 = vld [vmem:[#allocation21 + $0x298] sm:$0xf]
        %v4230 = vld [vmem:[#allocation21 + $0x29c] sm:$0xf]
        %v4231 = vld [vmem:[#allocation21 + $0x2a0] sm:$0xf]
        %v4232 = vld [vmem:[#allocation21 + $0x2a4] sm:$0xf]
        %v4233 = vld [vmem:[#allocation21 + $0x2a8] sm:$0xf]
        %v4234 = vld [vmem:[#allocation21 + $0x2ac] sm:$0xf]
        %v4235 = vld [vmem:[#allocation21 + $0x2b0] sm:$0xf]
        %v4236 = vld [vmem:[#allocation21 + $0x2b4] sm:$0xf]
        %v4237 = vld [vmem:[#allocation21 + $0x2b8] sm:$0xf]
        %v4238 = vld [vmem:[#allocation21 + $0x2bc] sm:$0xf]
        %v4239 = vld [vmem:[#allocation21 + $0x2c0] sm:$0xf]
        %v4240 = vld [vmem:[#allocation21 + $0x2c4] sm:$0xf]
        %v4241 = vld [vmem:[#allocation21 + $0x2c8] sm:$0xf]
        %v4242 = vld [vmem:[#allocation21 + $0x2cc] sm:$0xf]
        %v4243 = vld [vmem:[#allocation21 + $0x2d0] sm:$0xf]
        %v4244 = vld [vmem:[#allocation21 + $0x2d4] sm:$0xf]
        %v4245 = vld [vmem:[#allocation21 + $0x2d8] sm:$0xf]
        %v4246 = vld [vmem:[#allocation21 + $0x2dc] sm:$0xf]
        %v4247 = vld [vmem:[#allocation21 + $0x2e0] sm:$0xf]
        %v4248 = vld [vmem:[#allocation21 + $0x2e4] sm:$0xf]
        %v4249 = vld [vmem:[#allocation21 + $0x2e8] sm:$0xf]
        %v4250 = vld [vmem:[#allocation21 + $0x2ec] sm:$0xf]
        %v4251 = vld [vmem:[#allocation21 + $0x2f0] sm:$0xf]
        %v4252 = vld [vmem:[#allocation21 + $0x2f4] sm:$0xf]
        %v4253 = vld [vmem:[#allocation21 + $0x2f8] sm:$0xf]
        %v4254 = vld [vmem:[#allocation21 + $0x2fc] sm:$0xf]
        %v4255 = vld [vmem:[#allocation21 + $0x300] sm:$0xf]
        %v4256 = vld [vmem:[#allocation21 + $0x304] sm:$0xf]
        %v4257 = vld [vmem:[#allocation21 + $0x308] sm:$0xf]
        %v4258 = vld [vmem:[#allocation21 + $0x30c] sm:$0xf]
        %v4259 = vld [vmem:[#allocation21 + $0x310] sm:$0xf]
        %v4260 = vld [vmem:[#allocation21 + $0x314] sm:$0xf]
        %v4261 = vld [vmem:[#allocation21 + $0x318] sm:$0xf]
        %v4262 = vld [vmem:[#allocation21 + $0x31c] sm:$0xf]
        %v4263 = vld [vmem:[#allocation21 + $0x320] sm:$0xf]
        %v4264 = vld [vmem:[#allocation21 + $0x324] sm:$0xf]
        %v4265 = vld [vmem:[#allocation21 + $0x328] sm:$0xf]
        %v4266 = vld [vmem:[#allocation21 + $0x32c] sm:$0xf]
        %v4267 = vld [vmem:[#allocation21 + $0x330] sm:$0xf]
        %v4268 = vld [vmem:[#allocation21 + $0x334] sm:$0xf]
        %v4269 = vld [vmem:[#allocation21 + $0x338] sm:$0xf]
        %v4270 = vld [vmem:[#allocation21 + $0x33c] sm:$0xf]
        %v4271 = vld [vmem:[#allocation21 + $0x340] sm:$0xf]
        %v4272 = vld [vmem:[#allocation21 + $0x344] sm:$0xf]
        %v4273 = vld [vmem:[#allocation21 + $0x348] sm:$0xf]
        %v4274 = vld [vmem:[#allocation21 + $0x34c] sm:$0xf]
        %v4275 = vld [vmem:[#allocation21 + $0x350] sm:$0xf]
        %v4276 = vld [vmem:[#allocation21 + $0x354] sm:$0xf]
        %v4277 = vld [vmem:[#allocation21 + $0x358] sm:$0xf]
        %v4278 = vld [vmem:[#allocation21 + $0x35c] sm:$0xf]
        %v4279 = vld [vmem:[#allocation21 + $0x360] sm:$0xf]
        %v4280 = vld [vmem:[#allocation21 + $0x364] sm:$0xf]
        %v4281 = vld [vmem:[#allocation21 + $0x368] sm:$0xf]
        %v4282 = vld [vmem:[#allocation21 + $0x36c] sm:$0xf]
        %v4283 = vld [vmem:[#allocation21 + $0x370] sm:$0xf]
        %v4284 = vld [vmem:[#allocation21 + $0x374] sm:$0xf]
        %v4285 = vld [vmem:[#allocation21 + $0x378] sm:$0xf]
        %v4286 = vld [vmem:[#allocation21 + $0x37c] sm:$0xf]
        %v4287 = vld [vmem:[#allocation21 + $0x380] sm:$0xf]
        %v4288 = vld [vmem:[#allocation21 + $0x384] sm:$0xf]
        %v4289 = vld [vmem:[#allocation21 + $0x388] sm:$0xf]
        %v4290 = vld [vmem:[#allocation21 + $0x38c] sm:$0xf]
        %v4291 = vld [vmem:[#allocation21 + $0x390] sm:$0xf]
        %v4292 = vld [vmem:[#allocation21 + $0x394] sm:$0xf]
        %v4293 = vld [vmem:[#allocation21 + $0x398] sm:$0xf]
        %v4294 = vld [vmem:[#allocation21 + $0x39c] sm:$0xf]
        %v4295 = vld [vmem:[#allocation21 + $0x3a0] sm:$0xf]
        %v4296 = vld [vmem:[#allocation21 + $0x3a4] sm:$0xf]
        %v4297 = vld [vmem:[#allocation21 + $0x3a8] sm:$0xf]
        %v4298 = vld [vmem:[#allocation21 + $0x3ac] sm:$0xf]
        %v4299 = vld [vmem:[#allocation21 + $0x3b0] sm:$0xf]
        %v4300 = vld [vmem:[#allocation21 + $0x3b4] sm:$0xf]
        %v4301 = vld [vmem:[#allocation21 + $0x3b8] sm:$0xf]
        %v4302 = vld [vmem:[#allocation21 + $0x3bc] sm:$0xf]
        %v4303 = vld [vmem:[#allocation21 + $0x3c0] sm:$0xf]
        %v4304 = vld [vmem:[#allocation21 + $0x3c4] sm:$0xf]
        %v4305 = vld [vmem:[#allocation21 + $0x3c8] sm:$0xf]
        %v4306 = vld [vmem:[#allocation21 + $0x3cc] sm:$0xf]
        %v4307 = vld [vmem:[#allocation21 + $0x3d0] sm:$0xf]
        %v4308 = vld [vmem:[#allocation21 + $0x3d4] sm:$0xf]
        %v4309 = vld [vmem:[#allocation21 + $0x3d8] sm:$0xf]
        %v4310 = vld [vmem:[#allocation21 + $0x3dc] sm:$0xf]
        %v4311 = vld [vmem:[#allocation21 + $0x3e0] sm:$0xf]
        %v4312 = vld [vmem:[#allocation21 + $0x3e4] sm:$0xf]
        %v4313 = vld [vmem:[#allocation21 + $0x3e8] sm:$0xf]
        %v4314 = vld [vmem:[#allocation21 + $0x3ec] sm:$0xf]
        %v4315 = vld [vmem:[#allocation21 + $0x3f0] sm:$0xf]
        %v4316 = vld [vmem:[#allocation21 + $0x3f4] sm:$0xf]
        %v4317 = vld [vmem:[#allocation21 + $0x3f8] sm:$0xf]
        %v4318 = vld [vmem:[#allocation21 + $0x3fc] sm:$0xf]
        %v4319 = vld [vmem:[#allocation22] sm:$0x1]
        %v4321 = vlaneseq
        %v4322 = vshrl.u32 %v4321, 7
        %v4323 = vsub.s32 0, %v4322
        %v4324 = vrot.slane %v4319, %v4323
        %v4582 = vunpack.c.l.b16 %v4063
        %v4583 = vunpack.c.l.b16 %v4064
        %v4584 = vunpack.c.l.b16 %v4065
        %v4585 = vunpack.c.l.b16 %v4066
        %v4586 = vunpack.c.l.b16 %v4067
        %v4587 = vunpack.c.l.b16 %v4068
        %v4588 = vunpack.c.l.b16 %v4069
        %v4589 = vunpack.c.l.b16 %v4070
        %v4590 = vunpack.c.l.b16 %v4071
        %v4591 = vunpack.c.l.b16 %v4072
        %v4592 = vunpack.c.l.b16 %v4073
        %v4593 = vunpack.c.l.b16 %v4074
        %v4594 = vunpack.c.l.b16 %v4075
        %v4595 = vunpack.c.l.b16 %v4076
        %v4596 = vunpack.c.l.b16 %v4077
        %v4597 = vunpack.c.l.b16 %v4078
        %v4598 = vunpack.c.l.b16 %v4079
        %v4599 = vunpack.c.l.b16 %v4080
        %v4600 = vunpack.c.l.b16 %v4081
        %v4601 = vunpack.c.l.b16 %v4082
        %v4602 = vunpack.c.l.b16 %v4083
        %v4603 = vunpack.c.l.b16 %v4084
        %v4604 = vunpack.c.l.b16 %v4085
        %v4605 = vunpack.c.l.b16 %v4086
        %v4606 = vunpack.c.l.b16 %v4087
        %v4607 = vunpack.c.l.b16 %v4088
        %v4608 = vunpack.c.l.b16 %v4089
        %v4609 = vunpack.c.l.b16 %v4090
        %v4610 = vunpack.c.l.b16 %v4091
        %v4611 = vunpack.c.l.b16 %v4092
        %v4612 = vunpack.c.l.b16 %v4093
        %v4613 = vunpack.c.l.b16 %v4094
        %v4614 = vunpack.c.l.b16 %v4095
        %v4615 = vunpack.c.l.b16 %v4096
        %v4616 = vunpack.c.l.b16 %v4097
        %v4617 = vunpack.c.l.b16 %v4098
        %v4618 = vunpack.c.l.b16 %v4099
        %v4619 = vunpack.c.l.b16 %v4100
        %v4620 = vunpack.c.l.b16 %v4101
        %v4621 = vunpack.c.l.b16 %v4102
        %v4622 = vunpack.c.l.b16 %v4103
        %v4623 = vunpack.c.l.b16 %v4104
        %v4624 = vunpack.c.l.b16 %v4105
        %v4625 = vunpack.c.l.b16 %v4106
        %v4626 = vunpack.c.l.b16 %v4107
        %v4627 = vunpack.c.l.b16 %v4108
        %v4628 = vunpack.c.l.b16 %v4109
        %v4629 = vunpack.c.l.b16 %v4110
        %v4630 = vunpack.c.l.b16 %v4111
        %v4631 = vunpack.c.l.b16 %v4112
        %v4632 = vunpack.c.l.b16 %v4113
        %v4633 = vunpack.c.l.b16 %v4114
        %v4634 = vunpack.c.l.b16 %v4115
        %v4635 = vunpack.c.l.b16 %v4116
        %v4636 = vunpack.c.l.b16 %v4117
        %v4637 = vunpack.c.l.b16 %v4118
        %v4638 = vunpack.c.l.b16 %v4119
        %v4639 = vunpack.c.l.b16 %v4120
        %v4640 = vunpack.c.l.b16 %v4121
        %v4641 = vunpack.c.l.b16 %v4122
        %v4642 = vunpack.c.l.b16 %v4123
        %v4643 = vunpack.c.l.b16 %v4124
        %v4644 = vunpack.c.l.b16 %v4125
        %v4645 = vunpack.c.l.b16 %v4126
        %v4646 = vunpack.c.l.b16 %v4127
        %v4647 = vunpack.c.l.b16 %v4128
        %v4648 = vunpack.c.l.b16 %v4129
        %v4649 = vunpack.c.l.b16 %v4130
        %v4650 = vunpack.c.l.b16 %v4131
        %v4651 = vunpack.c.l.b16 %v4132
        %v4652 = vunpack.c.l.b16 %v4133
        %v4653 = vunpack.c.l.b16 %v4134
        %v4654 = vunpack.c.l.b16 %v4135
        %v4655 = vunpack.c.l.b16 %v4136
        %v4656 = vunpack.c.l.b16 %v4137
        %v4657 = vunpack.c.l.b16 %v4138
        %v4658 = vunpack.c.l.b16 %v4139
        %v4659 = vunpack.c.l.b16 %v4140
        %v4660 = vunpack.c.l.b16 %v4141
        %v4661 = vunpack.c.l.b16 %v4142
        %v4662 = vunpack.c.l.b16 %v4143
        %v4663 = vunpack.c.l.b16 %v4144
        %v4664 = vunpack.c.l.b16 %v4145
        %v4665 = vunpack.c.l.b16 %v4146
        %v4666 = vunpack.c.l.b16 %v4147
        %v4667 = vunpack.c.l.b16 %v4148
        %v4668 = vunpack.c.l.b16 %v4149
        %v4669 = vunpack.c.l.b16 %v4150
        %v4670 = vunpack.c.l.b16 %v4151
        %v4671 = vunpack.c.l.b16 %v4152
        %v4672 = vunpack.c.l.b16 %v4153
        %v4673 = vunpack.c.l.b16 %v4154
        %v4674 = vunpack.c.l.b16 %v4155
        %v4675 = vunpack.c.l.b16 %v4156
        %v4676 = vunpack.c.l.b16 %v4157
        %v4677 = vunpack.c.l.b16 %v4158
        %v4678 = vunpack.c.l.b16 %v4159
        %v4679 = vunpack.c.l.b16 %v4160
        %v4680 = vunpack.c.l.b16 %v4161
        %v4681 = vunpack.c.l.b16 %v4162
        %v4682 = vunpack.c.l.b16 %v4163
        %v4683 = vunpack.c.l.b16 %v4164
        %v4684 = vunpack.c.l.b16 %v4165
        %v4685 = vunpack.c.l.b16 %v4166
        %v4686 = vunpack.c.l.b16 %v4167
        %v4687 = vunpack.c.l.b16 %v4168
        %v4688 = vunpack.c.l.b16 %v4169
        %v4689 = vunpack.c.l.b16 %v4170
        %v4690 = vunpack.c.l.b16 %v4171
        %v4691 = vunpack.c.l.b16 %v4172
        %v4692 = vunpack.c.l.b16 %v4173
        %v4693 = vunpack.c.l.b16 %v4174
        %v4694 = vunpack.c.l.b16 %v4175
        %v4695 = vunpack.c.l.b16 %v4176
        %v4696 = vunpack.c.l.b16 %v4177
        %v4697 = vunpack.c.l.b16 %v4178
        %v4698 = vunpack.c.l.b16 %v4179
        %v4699 = vunpack.c.l.b16 %v4180
        %v4700 = vunpack.c.l.b16 %v4181
        %v4701 = vunpack.c.l.b16 %v4182
        %v4702 = vunpack.c.l.b16 %v4183
        %v4703 = vunpack.c.l.b16 %v4184
        %v4704 = vunpack.c.l.b16 %v4185
        %v4705 = vunpack.c.l.b16 %v4186
        %v4706 = vunpack.c.l.b16 %v4187
        %v4707 = vunpack.c.l.b16 %v4188
        %v4708 = vunpack.c.l.b16 %v4189
        %v4709 = vunpack.c.l.b16 %v4190
        %v4710 = vunpack.c.l.b16 %v4191
        %v4711 = vunpack.c.l.b16 %v4192
        %v4712 = vunpack.c.l.b16 %v4193
        %v4713 = vunpack.c.l.b16 %v4194
        %v4714 = vunpack.c.l.b16 %v4195
        %v4715 = vunpack.c.l.b16 %v4196
        %v4716 = vunpack.c.l.b16 %v4197
        %v4717 = vunpack.c.l.b16 %v4198
        %v4718 = vunpack.c.l.b16 %v4199
        %v4719 = vunpack.c.l.b16 %v4200
        %v4720 = vunpack.c.l.b16 %v4201
        %v4721 = vunpack.c.l.b16 %v4202
        %v4722 = vunpack.c.l.b16 %v4203
        %v4723 = vunpack.c.l.b16 %v4204
        %v4724 = vunpack.c.l.b16 %v4205
        %v4725 = vunpack.c.l.b16 %v4206
        %v4726 = vunpack.c.l.b16 %v4207
        %v4727 = vunpack.c.l.b16 %v4208
        %v4728 = vunpack.c.l.b16 %v4209
        %v4729 = vunpack.c.l.b16 %v4210
        %v4730 = vunpack.c.l.b16 %v4211
        %v4731 = vunpack.c.l.b16 %v4212
        %v4732 = vunpack.c.l.b16 %v4213
        %v4733 = vunpack.c.l.b16 %v4214
        %v4734 = vunpack.c.l.b16 %v4215
        %v4735 = vunpack.c.l.b16 %v4216
        %v4736 = vunpack.c.l.b16 %v4217
        %v4737 = vunpack.c.l.b16 %v4218
        %v4738 = vunpack.c.l.b16 %v4219
        %v4739 = vunpack.c.l.b16 %v4220
        %v4740 = vunpack.c.l.b16 %v4221
        %v4741 = vunpack.c.l.b16 %v4222
        %v4742 = vunpack.c.l.b16 %v4223
        %v4743 = vunpack.c.l.b16 %v4224
        %v4744 = vunpack.c.l.b16 %v4225
        %v4745 = vunpack.c.l.b16 %v4226
        %v4746 = vunpack.c.l.b16 %v4227
        %v4747 = vunpack.c.l.b16 %v4228
        %v4748 = vunpack.c.l.b16 %v4229
        %v4749 = vunpack.c.l.b16 %v4230
        %v4750 = vunpack.c.l.b16 %v4231
        %v4751 = vunpack.c.l.b16 %v4232
        %v4752 = vunpack.c.l.b16 %v4233
        %v4753 = vunpack.c.l.b16 %v4234
        %v4754 = vunpack.c.l.b16 %v4235
        %v4755 = vunpack.c.l.b16 %v4236
        %v4756 = vunpack.c.l.b16 %v4237
        %v4757 = vunpack.c.l.b16 %v4238
        %v4758 = vunpack.c.l.b16 %v4239
        %v4759 = vunpack.c.l.b16 %v4240
        %v4760 = vunpack.c.l.b16 %v4241
        %v4761 = vunpack.c.l.b16 %v4242
        %v4762 = vunpack.c.l.b16 %v4243
        %v4763 = vunpack.c.l.b16 %v4244
        %v4764 = vunpack.c.l.b16 %v4245
        %v4765 = vunpack.c.l.b16 %v4246
        %v4766 = vunpack.c.l.b16 %v4247
        %v4767 = vunpack.c.l.b16 %v4248
        %v4768 = vunpack.c.l.b16 %v4249
        %v4769 = vunpack.c.l.b16 %v4250
        %v4770 = vunpack.c.l.b16 %v4251
        %v4771 = vunpack.c.l.b16 %v4252
        %v4772 = vunpack.c.l.b16 %v4253
        %v4773 = vunpack.c.l.b16 %v4254
        %v4774 = vunpack.c.l.b16 %v4255
        %v4775 = vunpack.c.l.b16 %v4256
        %v4776 = vunpack.c.l.b16 %v4257
        %v4777 = vunpack.c.l.b16 %v4258
        %v4778 = vunpack.c.l.b16 %v4259
        %v4779 = vunpack.c.l.b16 %v4260
        %v4780 = vunpack.c.l.b16 %v4261
        %v4781 = vunpack.c.l.b16 %v4262
        %v4782 = vunpack.c.l.b16 %v4263
        %v4783 = vunpack.c.l.b16 %v4264
        %v4784 = vunpack.c.l.b16 %v4265
        %v4785 = vunpack.c.l.b16 %v4266
        %v4786 = vunpack.c.l.b16 %v4267
        %v4787 = vunpack.c.l.b16 %v4268
        %v4788 = vunpack.c.l.b16 %v4269
        %v4789 = vunpack.c.l.b16 %v4270
        %v4790 = vunpack.c.l.b16 %v4271
        %v4791 = vunpack.c.l.b16 %v4272
        %v4792 = vunpack.c.l.b16 %v4273
        %v4793 = vunpack.c.l.b16 %v4274
        %v4794 = vunpack.c.l.b16 %v4275
        %v4795 = vunpack.c.l.b16 %v4276
        %v4796 = vunpack.c.l.b16 %v4277
        %v4797 = vunpack.c.l.b16 %v4278
        %v4798 = vunpack.c.l.b16 %v4279
        %v4799 = vunpack.c.l.b16 %v4280
        %v4800 = vunpack.c.l.b16 %v4281
        %v4801 = vunpack.c.l.b16 %v4282
        %v4802 = vunpack.c.l.b16 %v4283
        %v4803 = vunpack.c.l.b16 %v4284
        %v4804 = vunpack.c.l.b16 %v4285
        %v4805 = vunpack.c.l.b16 %v4286
        %v4806 = vunpack.c.l.b16 %v4287
        %v4807 = vunpack.c.l.b16 %v4288
        %v4808 = vunpack.c.l.b16 %v4289
        %v4809 = vunpack.c.l.b16 %v4290
        %v4810 = vunpack.c.l.b16 %v4291
        %v4811 = vunpack.c.l.b16 %v4292
        %v4812 = vunpack.c.l.b16 %v4293
        %v4813 = vunpack.c.l.b16 %v4294
        %v4814 = vunpack.c.l.b16 %v4295
        %v4815 = vunpack.c.l.b16 %v4296
        %v4816 = vunpack.c.l.b16 %v4297
        %v4817 = vunpack.c.l.b16 %v4298
        %v4818 = vunpack.c.l.b16 %v4299
        %v4819 = vunpack.c.l.b16 %v4300
        %v4820 = vunpack.c.l.b16 %v4301
        %v4821 = vunpack.c.l.b16 %v4302
        %v4822 = vunpack.c.l.b16 %v4303
        %v4823 = vunpack.c.l.b16 %v4304
        %v4824 = vunpack.c.l.b16 %v4305
        %v4825 = vunpack.c.l.b16 %v4306
        %v4826 = vunpack.c.l.b16 %v4307
        %v4827 = vunpack.c.l.b16 %v4308
        %v4828 = vunpack.c.l.b16 %v4309
        %v4829 = vunpack.c.l.b16 %v4310
        %v4830 = vunpack.c.l.b16 %v4311
        %v4831 = vunpack.c.l.b16 %v4312
        %v4832 = vunpack.c.l.b16 %v4313
        %v4833 = vunpack.c.l.b16 %v4314
        %v4834 = vunpack.c.l.b16 %v4315
        %v4835 = vunpack.c.l.b16 %v4316
        %v4836 = vunpack.c.l.b16 %v4317
        %v4837 = vunpack.c.l.b16 %v4318
        %v4838 = vpack.c.b16 %v4583, %v4582
        %v4839 = vpack.c.b16 %v4585, %v4584
        %v4840 = vpack.c.b16 %v4587, %v4586
        %v4841 = vpack.c.b16 %v4589, %v4588
        %v4842 = vpack.c.b16 %v4591, %v4590
        %v4843 = vpack.c.b16 %v4593, %v4592
        %v4844 = vpack.c.b16 %v4595, %v4594
        %v4845 = vpack.c.b16 %v4597, %v4596
        %v4846 = vpack.c.b16 %v4599, %v4598
        %v4847 = vpack.c.b16 %v4601, %v4600
        %v4848 = vpack.c.b16 %v4603, %v4602
        %v4849 = vpack.c.b16 %v4605, %v4604
        %v4850 = vpack.c.b16 %v4607, %v4606
        %v4851 = vpack.c.b16 %v4609, %v4608
        %v4852 = vpack.c.b16 %v4611, %v4610
        %v4853 = vpack.c.b16 %v4613, %v4612
        %v4854 = vpack.c.b16 %v4615, %v4614
        %v4855 = vpack.c.b16 %v4617, %v4616
        %v4856 = vpack.c.b16 %v4619, %v4618
        %v4857 = vpack.c.b16 %v4621, %v4620
        %v4858 = vpack.c.b16 %v4623, %v4622
        %v4859 = vpack.c.b16 %v4625, %v4624
        %v4860 = vpack.c.b16 %v4627, %v4626
        %v4861 = vpack.c.b16 %v4629, %v4628
        %v4862 = vpack.c.b16 %v4631, %v4630
        %v4863 = vpack.c.b16 %v4633, %v4632
        %v4864 = vpack.c.b16 %v4635, %v4634
        %v4865 = vpack.c.b16 %v4637, %v4636
        %v4866 = vpack.c.b16 %v4639, %v4638
        %v4867 = vpack.c.b16 %v4641, %v4640
        %v4868 = vpack.c.b16 %v4643, %v4642
        %v4869 = vpack.c.b16 %v4645, %v4644
        %v4870 = vpack.c.b16 %v4647, %v4646
        %v4871 = vpack.c.b16 %v4649, %v4648
        %v4872 = vpack.c.b16 %v4651, %v4650
        %v4873 = vpack.c.b16 %v4653, %v4652
        %v4874 = vpack.c.b16 %v4655, %v4654
        %v4875 = vpack.c.b16 %v4657, %v4656
        %v4876 = vpack.c.b16 %v4659, %v4658
        %v4877 = vpack.c.b16 %v4661, %v4660
        %v4878 = vpack.c.b16 %v4663, %v4662
        %v4879 = vpack.c.b16 %v4665, %v4664
        %v4880 = vpack.c.b16 %v4667, %v4666
        %v4881 = vpack.c.b16 %v4669, %v4668
        %v4882 = vpack.c.b16 %v4671, %v4670
        %v4883 = vpack.c.b16 %v4673, %v4672
        %v4884 = vpack.c.b16 %v4675, %v4674
        %v4885 = vpack.c.b16 %v4677, %v4676
        %v4886 = vpack.c.b16 %v4679, %v4678
        %v4887 = vpack.c.b16 %v4681, %v4680
        %v4888 = vpack.c.b16 %v4683, %v4682
        %v4889 = vpack.c.b16 %v4685, %v4684
        %v4890 = vpack.c.b16 %v4687, %v4686
        %v4891 = vpack.c.b16 %v4689, %v4688
        %v4892 = vpack.c.b16 %v4691, %v4690
        %v4893 = vpack.c.b16 %v4693, %v4692
        %v4894 = vpack.c.b16 %v4695, %v4694
        %v4895 = vpack.c.b16 %v4697, %v4696
        %v4896 = vpack.c.b16 %v4699, %v4698
        %v4897 = vpack.c.b16 %v4701, %v4700
        %v4898 = vpack.c.b16 %v4703, %v4702
        %v4899 = vpack.c.b16 %v4705, %v4704
        %v4900 = vpack.c.b16 %v4707, %v4706
        %v4901 = vpack.c.b16 %v4709, %v4708
        %v4902 = vpack.c.b16 %v4711, %v4710
        %v4903 = vpack.c.b16 %v4713, %v4712
        %v4904 = vpack.c.b16 %v4715, %v4714
        %v4905 = vpack.c.b16 %v4717, %v4716
        %v4906 = vpack.c.b16 %v4719, %v4718
        %v4907 = vpack.c.b16 %v4721, %v4720
        %v4908 = vpack.c.b16 %v4723, %v4722
        %v4909 = vpack.c.b16 %v4725, %v4724
        %v4910 = vpack.c.b16 %v4727, %v4726
        %v4911 = vpack.c.b16 %v4729, %v4728
        %v4912 = vpack.c.b16 %v4731, %v4730
        %v4913 = vpack.c.b16 %v4733, %v4732
        %v4914 = vpack.c.b16 %v4735, %v4734
        %v4915 = vpack.c.b16 %v4737, %v4736
        %v4916 = vpack.c.b16 %v4739, %v4738
        %v4917 = vpack.c.b16 %v4741, %v4740
        %v4918 = vpack.c.b16 %v4743, %v4742
        %v4919 = vpack.c.b16 %v4745, %v4744
        %v4920 = vpack.c.b16 %v4747, %v4746
        %v4921 = vpack.c.b16 %v4749, %v4748
        %v4922 = vpack.c.b16 %v4751, %v4750
        %v4923 = vpack.c.b16 %v4753, %v4752
        %v4924 = vpack.c.b16 %v4755, %v4754
        %v4925 = vpack.c.b16 %v4757, %v4756
        %v4926 = vpack.c.b16 %v4759, %v4758
        %v4927 = vpack.c.b16 %v4761, %v4760
        %v4928 = vpack.c.b16 %v4763, %v4762
        %v4929 = vpack.c.b16 %v4765, %v4764
        %v4930 = vpack.c.b16 %v4767, %v4766
        %v4931 = vpack.c.b16 %v4769, %v4768
        %v4932 = vpack.c.b16 %v4771, %v4770
        %v4933 = vpack.c.b16 %v4773, %v4772
        %v4934 = vpack.c.b16 %v4775, %v4774
        %v4935 = vpack.c.b16 %v4777, %v4776
        %v4936 = vpack.c.b16 %v4779, %v4778
        %v4937 = vpack.c.b16 %v4781, %v4780
        %v4938 = vpack.c.b16 %v4783, %v4782
        %v4939 = vpack.c.b16 %v4785, %v4784
        %v4940 = vpack.c.b16 %v4787, %v4786
        %v4941 = vpack.c.b16 %v4789, %v4788
        %v4942 = vpack.c.b16 %v4791, %v4790
        %v4943 = vpack.c.b16 %v4793, %v4792
        %v4944 = vpack.c.b16 %v4795, %v4794
        %v4945 = vpack.c.b16 %v4797, %v4796
        %v4946 = vpack.c.b16 %v4799, %v4798
        %v4947 = vpack.c.b16 %v4801, %v4800
        %v4948 = vpack.c.b16 %v4803, %v4802
        %v4949 = vpack.c.b16 %v4805, %v4804
        %v4950 = vpack.c.b16 %v4807, %v4806
        %v4951 = vpack.c.b16 %v4809, %v4808
        %v4952 = vpack.c.b16 %v4811, %v4810
        %v4953 = vpack.c.b16 %v4813, %v4812
        %v4954 = vpack.c.b16 %v4815, %v4814
        %v4955 = vpack.c.b16 %v4817, %v4816
        %v4956 = vpack.c.b16 %v4819, %v4818
        %v4957 = vpack.c.b16 %v4821, %v4820
        %v4958 = vpack.c.b16 %v4823, %v4822
        %v4959 = vpack.c.b16 %v4825, %v4824
        %v4960 = vpack.c.b16 %v4827, %v4826
        %v4961 = vpack.c.b16 %v4829, %v4828
        %v4962 = vpack.c.b16 %v4831, %v4830
        %v4963 = vpack.c.b16 %v4833, %v4832
        %v4964 = vpack.c.b16 %v4835, %v4834
        %v4965 = vpack.c.b16 %v4837, %v4836
        %5094 = vmatprep.subr.bf16.mxu0 0
        %5095 = vmatpush1.bf16.msra.mxu0 %v4838
        %5096 = vmatprep.subr.bf16.mxu0 0
        %5097 = vmatpush1.bf16.msra.mxu0 %v4839
        %5098 = vmatprep.subr.bf16.mxu0 0
        %5099 = vmatpush1.bf16.msra.mxu0 %v4840
        %5100 = vmatprep.subr.bf16.mxu0 0
        %5101 = vmatpush1.bf16.msra.mxu0 %v4841
        %5102 = vmatprep.subr.bf16.mxu0 0
        %5103 = vmatpush1.bf16.msra.mxu0 %v4842
        %5104 = vmatprep.subr.bf16.mxu0 0
        %5105 = vmatpush1.bf16.msra.mxu0 %v4843
        %5106 = vmatprep.subr.bf16.mxu0 0
        %5107 = vmatpush1.bf16.msra.mxu0 %v4844
        %5108 = vmatprep.subr.bf16.mxu0 0
        %5109 = vmatpush1.bf16.msra.mxu0 %v4845
        %5110 = vmatprep.subr.bf16.mxu0 0
        %5111 = vmatpush1.bf16.msra.mxu0 %v4846
        %5112 = vmatprep.subr.bf16.mxu0 0
        %5113 = vmatpush1.bf16.msra.mxu0 %v4847
        %5114 = vmatprep.subr.bf16.mxu0 0
        %5115 = vmatpush1.bf16.msra.mxu0 %v4848
        %5116 = vmatprep.subr.bf16.mxu0 0
        %5117 = vmatpush1.bf16.msra.mxu0 %v4849
        %5118 = vmatprep.subr.bf16.mxu0 0
        %5119 = vmatpush1.bf16.msra.mxu0 %v4850
        %5120 = vmatprep.subr.bf16.mxu0 0
        %5121 = vmatpush1.bf16.msra.mxu0 %v4851
        %5122 = vmatprep.subr.bf16.mxu0 0
        %5123 = vmatpush1.bf16.msra.mxu0 %v4852
        %5124 = vmatprep.subr.bf16.mxu0 0
        %5125 = vmatpush1.bf16.msra.mxu0 %v4853
        %5126 = vmatprep.mubr.bf16.mxu0 %v4048
        %5127 = vmatmul.mubr.bf16.gmra.mrb[0].mxu0 %v4047
        %v5128 = vpop.f32.mrb[0].mxu0
        %v5129 = vadd.f32 %v4324, %v5128
        %v5130 = vpop.f32.mrb[0].mxu0
        %v5131 = vpop.f32.mrb[0].mxu0
        %v5132 = vpop.f32.mrb[0].mxu0
        %5133 = vdwg.mxu0
        %5134 = vmatprep.subr.bf16.mxu0 0
        %5135 = vmatpush1.bf16.msra.mxu0 %v4854
        %5136 = vmatprep.subr.bf16.mxu0 0
        %5137 = vmatpush1.bf16.msra.mxu0 %v4855
        %5138 = vmatprep.subr.bf16.mxu0 0
        %5139 = vmatpush1.bf16.msra.mxu0 %v4856
        %5140 = vmatprep.subr.bf16.mxu0 0
        %5141 = vmatpush1.bf16.msra.mxu0 %v4857
        %5142 = vmatprep.subr.bf16.mxu0 0
        %5143 = vmatpush1.bf16.msra.mxu0 %v4858
        %5144 = vmatprep.subr.bf16.mxu0 0
        %5145 = vmatpush1.bf16.msra.mxu0 %v4859
        %5146 = vmatprep.subr.bf16.mxu0 0
        %5147 = vmatpush1.bf16.msra.mxu0 %v4860
        %5148 = vmatprep.subr.bf16.mxu0 0
        %5149 = vmatpush1.bf16.msra.mxu0 %v4861
        %5150 = vmatprep.subr.bf16.mxu0 0
        %5151 = vmatpush1.bf16.msra.mxu0 %v4862
        %5152 = vmatprep.subr.bf16.mxu0 0
        %5153 = vmatpush1.bf16.msra.mxu0 %v4863
        %5154 = vmatprep.subr.bf16.mxu0 0
        %5155 = vmatpush1.bf16.msra.mxu0 %v4864
        %5156 = vmatprep.subr.bf16.mxu0 0
        %5157 = vmatpush1.bf16.msra.mxu0 %v4865
        %5158 = vmatprep.subr.bf16.mxu0 0
        %5159 = vmatpush1.bf16.msra.mxu0 %v4866
        %5160 = vmatprep.subr.bf16.mxu0 0
        %5161 = vmatpush1.bf16.msra.mxu0 %v4867
        %5162 = vmatprep.subr.bf16.mxu0 0
        %5163 = vmatpush1.bf16.msra.mxu0 %v4868
        %5164 = vmatprep.subr.bf16.mxu0 0
        %5165 = vmatpush1.bf16.msra.mxu0 %v4869
        %5166 = vmatprep.mubr.bf16.mxu0 %v4050
        %5167 = vmatmul.mubr.bf16.gmra.mrb[0].mxu0 %v4049
        %v5168 = vpop.f32.mrb[0].mxu0
        %v5169 = vadd.f32 %v5129, %v5168
        %v5170 = vpop.f32.mrb[0].mxu0
        %v5171 = vpop.f32.mrb[0].mxu0
        %v5172 = vpop.f32.mrb[0].mxu0
        %5173 = vdwg.mxu0
        %5174 = vmatprep.subr.bf16.mxu0 0
        %5175 = vmatpush1.bf16.msra.mxu0 %v4870
        %5176 = vmatprep.subr.bf16.mxu0 0
        %5177 = vmatpush1.bf16.msra.mxu0 %v4871
        %5178 = vmatprep.subr.bf16.mxu0 0
        %5179 = vmatpush1.bf16.msra.mxu0 %v4872
        %5180 = vmatprep.subr.bf16.mxu0 0
        %5181 = vmatpush1.bf16.msra.mxu0 %v4873
        %5182 = vmatprep.subr.bf16.mxu0 0
        %5183 = vmatpush1.bf16.msra.mxu0 %v4874
        %5184 = vmatprep.subr.bf16.mxu0 0
        %5185 = vmatpush1.bf16.msra.mxu0 %v4875
        %5186 = vmatprep.subr.bf16.mxu0 0
        %5187 = vmatpush1.bf16.msra.mxu0 %v4876
        %5188 = vmatprep.subr.bf16.mxu0 0
        %5189 = vmatpush1.bf16.msra.mxu0 %v4877
        %5190 = vmatprep.subr.bf16.mxu0 0
        %5191 = vmatpush1.bf16.msra.mxu0 %v4878
        %5192 = vmatprep.subr.bf16.mxu0 0
        %5193 = vmatpush1.bf16.msra.mxu0 %v4879
        %5194 = vmatprep.subr.bf16.mxu0 0
        %5195 = vmatpush1.bf16.msra.mxu0 %v4880
        %5196 = vmatprep.subr.bf16.mxu0 0
        %5197 = vmatpush1.bf16.msra.mxu0 %v4881
        %5198 = vmatprep.subr.bf16.mxu0 0
        %5199 = vmatpush1.bf16.msra.mxu0 %v4882
        %5200 = vmatprep.subr.bf16.mxu0 0
        %5201 = vmatpush1.bf16.msra.mxu0 %v4883
        %5202 = vmatprep.subr.bf16.mxu0 0
        %5203 = vmatpush1.bf16.msra.mxu0 %v4884
        %5204 = vmatprep.subr.bf16.mxu0 0
        %5205 = vmatpush1.bf16.msra.mxu0 %v4885
        %5206 = vmatprep.mubr.bf16.mxu0 %v4052
        %5207 = vmatmul.mubr.bf16.gmra.mrb[0].mxu0 %v4051
        %v5208 = vpop.f32.mrb[0].mxu0
        %v5209 = vadd.f32 %v5169, %v5208
        %v5210 = vpop.f32.mrb[0].mxu0
        %v5211 = vpop.f32.mrb[0].mxu0
        %v5212 = vpop.f32.mrb[0].mxu0
        %5213 = vdwg.mxu0
        %5214 = vmatprep.subr.bf16.mxu0 0
        %5215 = vmatpush1.bf16.msra.mxu0 %v4886
        %5216 = vmatprep.subr.bf16.mxu0 0
        %5217 = vmatpush1.bf16.msra.mxu0 %v4887
        %5218 = vmatprep.subr.bf16.mxu0 0
        %5219 = vmatpush1.bf16.msra.mxu0 %v4888
        %5220 = vmatprep.subr.bf16.mxu0 0
        %5221 = vmatpush1.bf16.msra.mxu0 %v4889
        %5222 = vmatprep.subr.bf16.mxu0 0
        %5223 = vmatpush1.bf16.msra.mxu0 %v4890
        %5224 = vmatprep.subr.bf16.mxu0 0
        %5225 = vmatpush1.bf16.msra.mxu0 %v4891
        %5226 = vmatprep.subr.bf16.mxu0 0
        %5227 = vmatpush1.bf16.msra.mxu0 %v4892
        %5228 = vmatprep.subr.bf16.mxu0 0
        %5229 = vmatpush1.bf16.msra.mxu0 %v4893
        %5230 = vmatprep.subr.bf16.mxu0 0
        %5231 = vmatpush1.bf16.msra.mxu0 %v4894
        %5232 = vmatprep.subr.bf16.mxu0 0
        %5233 = vmatpush1.bf16.msra.mxu0 %v4895
        %5234 = vmatprep.subr.bf16.mxu0 0
        %5235 = vmatpush1.bf16.msra.mxu0 %v4896
        %5236 = vmatprep.subr.bf16.mxu0 0
        %5237 = vmatpush1.bf16.msra.mxu0 %v4897
        %5238 = vmatprep.subr.bf16.mxu0 0
        %5239 = vmatpush1.bf16.msra.mxu0 %v4898
        %5240 = vmatprep.subr.bf16.mxu0 0
        %5241 = vmatpush1.bf16.msra.mxu0 %v4899
        %5242 = vmatprep.subr.bf16.mxu0 0
        %5243 = vmatpush1.bf16.msra.mxu0 %v4900
        %5244 = vmatprep.subr.bf16.mxu0 0
        %5245 = vmatpush1.bf16.msra.mxu0 %v4901
        %5246 = vmatprep.mubr.bf16.mxu0 %v4054
        %5247 = vmatmul.mubr.bf16.gmra.mrb[0].mxu0 %v4053
        %v5248 = vpop.f32.mrb[0].mxu0
        %v5249 = vadd.f32 %v5209, %v5248
        %v5250 = vpop.f32.mrb[0].mxu0
        %v5251 = vpop.f32.mrb[0].mxu0
        %v5252 = vpop.f32.mrb[0].mxu0
        %5253 = vdwg.mxu0
        %5254 = vmatprep.subr.bf16.mxu0 0
        %5255 = vmatpush1.bf16.msra.mxu0 %v4902
        %5256 = vmatprep.subr.bf16.mxu0 0
        %5257 = vmatpush1.bf16.msra.mxu0 %v4903
        %5258 = vmatprep.subr.bf16.mxu0 0
        %5259 = vmatpush1.bf16.msra.mxu0 %v4904
        %5260 = vmatprep.subr.bf16.mxu0 0
        %5261 = vmatpush1.bf16.msra.mxu0 %v4905
        %5262 = vmatprep.subr.bf16.mxu0 0
        %5263 = vmatpush1.bf16.msra.mxu0 %v4906
        %5264 = vmatprep.subr.bf16.mxu0 0
        %5265 = vmatpush1.bf16.msra.mxu0 %v4907
        %5266 = vmatprep.subr.bf16.mxu0 0
        %5267 = vmatpush1.bf16.msra.mxu0 %v4908
        %5268 = vmatprep.subr.bf16.mxu0 0
        %5269 = vmatpush1.bf16.msra.mxu0 %v4909
        %5270 = vmatprep.subr.bf16.mxu0 0
        %5271 = vmatpush1.bf16.msra.mxu0 %v4910
        %5272 = vmatprep.subr.bf16.mxu0 0
        %5273 = vmatpush1.bf16.msra.mxu0 %v4911
        %5274 = vmatprep.subr.bf16.mxu0 0
        %5275 = vmatpush1.bf16.msra.mxu0 %v4912
        %5276 = vmatprep.subr.bf16.mxu0 0
        %5277 = vmatpush1.bf16.msra.mxu0 %v4913
        %5278 = vmatprep.subr.bf16.mxu0 0
        %5279 = vmatpush1.bf16.msra.mxu0 %v4914
        %5280 = vmatprep.subr.bf16.mxu0 0
        %5281 = vmatpush1.bf16.msra.mxu0 %v4915
        %5282 = vmatprep.subr.bf16.mxu0 0
        %5283 = vmatpush1.bf16.msra.mxu0 %v4916
        %5284 = vmatprep.subr.bf16.mxu0 0
        %5285 = vmatpush1.bf16.msra.mxu0 %v4917
        %5286 = vmatprep.mubr.bf16.mxu0 %v4056
        %5287 = vmatmul.mubr.bf16.gmra.mrb[0].mxu0 %v4055
        %v5288 = vpop.f32.mrb[0].mxu0
        %v5289 = vadd.f32 %v5249, %v5288
        %v5290 = vpop.f32.mrb[0].mxu0
        %v5291 = vpop.f32.mrb[0].mxu0
        %v5292 = vpop.f32.mrb[0].mxu0
        %5293 = vdwg.mxu0
        %5294 = vmatprep.subr.bf16.mxu0 0
        %5295 = vmatpush1.bf16.msra.mxu0 %v4918
        %5296 = vmatprep.subr.bf16.mxu0 0
        %5297 = vmatpush1.bf16.msra.mxu0 %v4919
        %5298 = vmatprep.subr.bf16.mxu0 0
        %5299 = vmatpush1.bf16.msra.mxu0 %v4920
        %5300 = vmatprep.subr.bf16.mxu0 0
        %5301 = vmatpush1.bf16.msra.mxu0 %v4921
        %5302 = vmatprep.subr.bf16.mxu0 0
        %5303 = vmatpush1.bf16.msra.mxu0 %v4922
        %5304 = vmatprep.subr.bf16.mxu0 0
        %5305 = vmatpush1.bf16.msra.mxu0 %v4923
        %5306 = vmatprep.subr.bf16.mxu0 0
        %5307 = vmatpush1.bf16.msra.mxu0 %v4924
        %5308 = vmatprep.subr.bf16.mxu0 0
        %5309 = vmatpush1.bf16.msra.mxu0 %v4925
        %5310 = vmatprep.subr.bf16.mxu0 0
        %5311 = vmatpush1.bf16.msra.mxu0 %v4926
        %5312 = vmatprep.subr.bf16.mxu0 0
        %5313 = vmatpush1.bf16.msra.mxu0 %v4927
        %5314 = vmatprep.subr.bf16.mxu0 0
        %5315 = vmatpush1.bf16.msra.mxu0 %v4928
        %5316 = vmatprep.subr.bf16.mxu0 0
        %5317 = vmatpush1.bf16.msra.mxu0 %v4929
        %5318 = vmatprep.subr.bf16.mxu0 0
        %5319 = vmatpush1.bf16.msra.mxu0 %v4930
        %5320 = vmatprep.subr.bf16.mxu0 0
        %5321 = vmatpush1.bf16.msra.mxu0 %v4931
        %5322 = vmatprep.subr.bf16.mxu0 0
        %5323 = vmatpush1.bf16.msra.mxu0 %v4932
        %5324 = vmatprep.subr.bf16.mxu0 0
        %5325 = vmatpush1.bf16.msra.mxu0 %v4933
        %5326 = vmatprep.mubr.bf16.mxu0 %v4058
        %5327 = vmatmul.mubr.bf16.gmra.mrb[0].mxu0 %v4057
        %v5328 = vpop.f32.mrb[0].mxu0
        %v5329 = vadd.f32 %v5289, %v5328
        %v5330 = vpop.f32.mrb[0].mxu0
        %v5331 = vpop.f32.mrb[0].mxu0
        %v5332 = vpop.f32.mrb[0].mxu0
        %5333 = vdwg.mxu0
        %5334 = vmatprep.subr.bf16.mxu0 0
        %5335 = vmatpush1.bf16.msra.mxu0 %v4934
        %5336 = vmatprep.subr.bf16.mxu0 0
        %5337 = vmatpush1.bf16.msra.mxu0 %v4935
        %5338 = vmatprep.subr.bf16.mxu0 0
        %5339 = vmatpush1.bf16.msra.mxu0 %v4936
        %5340 = vmatprep.subr.bf16.mxu0 0
        %5341 = vmatpush1.bf16.msra.mxu0 %v4937
        %5342 = vmatprep.subr.bf16.mxu0 0
        %5343 = vmatpush1.bf16.msra.mxu0 %v4938
        %5344 = vmatprep.subr.bf16.mxu0 0
        %5345 = vmatpush1.bf16.msra.mxu0 %v4939
        %5346 = vmatprep.subr.bf16.mxu0 0
        %5347 = vmatpush1.bf16.msra.mxu0 %v4940
        %5348 = vmatprep.subr.bf16.mxu0 0
        %5349 = vmatpush1.bf16.msra.mxu0 %v4941
        %5350 = vmatprep.subr.bf16.mxu0 0
        %5351 = vmatpush1.bf16.msra.mxu0 %v4942
        %5352 = vmatprep.subr.bf16.mxu0 0
        %5353 = vmatpush1.bf16.msra.mxu0 %v4943
        %5354 = vmatprep.subr.bf16.mxu0 0
        %5355 = vmatpush1.bf16.msra.mxu0 %v4944
        %5356 = vmatprep.subr.bf16.mxu0 0
        %5357 = vmatpush1.bf16.msra.mxu0 %v4945
        %5358 = vmatprep.subr.bf16.mxu0 0
        %5359 = vmatpush1.bf16.msra.mxu0 %v4946
        %5360 = vmatprep.subr.bf16.mxu0 0
        %5361 = vmatpush1.bf16.msra.mxu0 %v4947
        %5362 = vmatprep.subr.bf16.mxu0 0
        %5363 = vmatpush1.bf16.msra.mxu0 %v4948
        %5364 = vmatprep.subr.bf16.mxu0 0
        %5365 = vmatpush1.bf16.msra.mxu0 %v4949
        %5366 = vmatprep.mubr.bf16.mxu0 %v4060
        %5367 = vmatmul.mubr.bf16.gmra.mrb[0].mxu0 %v4059
        %v5368 = vpop.f32.mrb[0].mxu0
        %v5369 = vadd.f32 %v5329, %v5368
        %v5370 = vpop.f32.mrb[0].mxu0
        %v5371 = vpop.f32.mrb[0].mxu0
        %v5372 = vpop.f32.mrb[0].mxu0
        %5373 = vdwg.mxu0
        %5374 = vmatprep.subr.bf16.mxu0 0
        %5375 = vmatpush1.bf16.msra.mxu0 %v4950
        %5376 = vmatprep.subr.bf16.mxu0 0
        %5377 = vmatpush1.bf16.msra.mxu0 %v4951
        %5378 = vmatprep.subr.bf16.mxu0 0
        %5379 = vmatpush1.bf16.msra.mxu0 %v4952
        %5380 = vmatprep.subr.bf16.mxu0 0
        %5381 = vmatpush1.bf16.msra.mxu0 %v4953
        %5382 = vmatprep.subr.bf16.mxu0 0
        %5383 = vmatpush1.bf16.msra.mxu0 %v4954
        %5384 = vmatprep.subr.bf16.mxu0 0
        %5385 = vmatpush1.bf16.msra.mxu0 %v4955
        %5386 = vmatprep.subr.bf16.mxu0 0
        %5387 = vmatpush1.bf16.msra.mxu0 %v4956
        %5388 = vmatprep.subr.bf16.mxu0 0
        %5389 = vmatpush1.bf16.msra.mxu0 %v4957
        %5390 = vmatprep.subr.bf16.mxu0 0
        %5391 = vmatpush1.bf16.msra.mxu0 %v4958
        %5392 = vmatprep.subr.bf16.mxu0 0
        %5393 = vmatpush1.bf16.msra.mxu0 %v4959
        %5394 = vmatprep.subr.bf16.mxu0 0
        %5395 = vmatpush1.bf16.msra.mxu0 %v4960
        %5396 = vmatprep.subr.bf16.mxu0 0
        %5397 = vmatpush1.bf16.msra.mxu0 %v4961
        %5398 = vmatprep.subr.bf16.mxu0 0
        %5399 = vmatpush1.bf16.msra.mxu0 %v4962
        %5400 = vmatprep.subr.bf16.mxu0 0
        %5401 = vmatpush1.bf16.msra.mxu0 %v4963
        %5402 = vmatprep.subr.bf16.mxu0 0
        %5403 = vmatpush1.bf16.msra.mxu0 %v4964
        %5404 = vmatprep.subr.bf16.mxu0 0
        %5405 = vmatpush1.bf16.msra.mxu0 %v4965
        %5406 = vmatprep.mubr.bf16.mxu0 %v4062
        %5407 = vmatmul.mubr.bf16.gmra.mrb[0].mxu0 %v4061
        %v5408 = vpop.f32.mrb[0].mxu0
        %v5409 = vadd.f32 %v5369, %v5408
        %v5410 = vpop.f32.mrb[0].mxu0
        %v5411 = vpop.f32.mrb[0].mxu0
        %v5412 = vpop.f32.mrb[0].mxu0
        %5413 = vdwg.mxu0
        %v5414 = vadd.f32 %v2849, %v5409
        %5415 = vadd.xlane.f32.xlu0 %v5414
        %v5416 = vpop.xlane.xlu0 %5415
        %v5417 = vmul.f32 %v5416, 0.03125
        %v5418 = vmul.f32 %v5414, %v5414
        %5419 = vadd.xlane.f32.xlu0 %v5418
        %v5420 = vpop.xlane.xlu0 %5419
        %v5421 = vmul.f32 %v5420, 0.03125
        %v5422 = vmul.f32 %v5417, %v5417
        %v5423 = vsub.f32 %v5421, %v5422
        %v5424 = vsub.f32 %v5414, %v5417
        %v5425 = vadd.f32 %v5423, 1e-05
        %v5426 = vrsqrt.pop %v5425
        %v5427 = vmul.f32 %v5424, %v5426
        %v5428 = vld [vmem:[#allocation30] sm:$0x1]
        %v5430 = vlaneseq
        %v5431 = vshrl.u32 %v5430, 7
        %v5432 = vsub.s32 0, %v5431
        %v5433 = vrot.slane %v5428, %v5432
        %v5435 = vmul.f32 %v5427, %v5433
        %v5436 = vld [vmem:[#allocation31] sm:$0x1]
        %v5438 = vlaneseq
        %v5439 = vshrl.u32 %v5438, 7
        %v5440 = vsub.s32 0, %v5439
        %v5441 = vrot.slane %v5436, %v5440
        %v5443 = vadd.f32 %v5435, %v5441
        %5444 = vst [vmem:[%s960] sm:$0xff] %v5443
        %p5445 = scmp.lt.s32.totalorder %s44, 1
        %s5446 = scalar_select %p5445, %s44, 1
        %s5447 = smul.addr %s5446, 8
        %s5448 = scalar_lea.vmem %s22, %s5447
        // Predicated region
        $region189: #{forward_train.5} parent=107 // pred_check
          %p5449 = pneg %p534
        $region190: #{forward_train.5} parent=107 // pred_check_branch
          %5451 = sbr.rel (%p5449) target = $region192
        $region191: #{forward_train.5} parent=107 // pred_region
          _
        $region192: #{forward_train.5} parent=107 // pred_fallthru
          _
      $region108: #{forward_train.5} parent=5 // pred_fallthru
        _
      %p5452 = scmp.le.s32.totalorder 2, %s39
      // Predicated region
      $region193: #{forward_train.5} parent=5 // pred_check
        %p5453 = pneg %p5452
      $region194: #{forward_train.5} parent=5 // pred_check_branch
        %5455 = sbr.rel (%p5453) target = $region196
      $region195: #{forward_train.5} parent=5 // pred_region
        %s5456 = ssub.s32 %s39, 2
        // Predicated region
        $region197: #{forward_train.5} parent=195 // pred_check
          %p5457 = pneg %p540
        $region198: #{forward_train.5} parent=195 // pred_check_branch
          %5459 = sbr.rel (%p5457) target = $region200
        $region199: #{forward_train.5} parent=195 // pred_region
          %p5460 = scmp.lt.s32.totalorder %s45, 1
          %s5461 = scalar_select %p5460, %s45, 1
          %s5462 = smul.addr %s5461, 8
          %s5463 = scalar_lea.vmem %s22, %s5462
        $region200: #{forward_train.5} parent=195 // pred_fallthru
          _
      $region196: #{forward_train.5} parent=5 // pred_fallthru
        _
    $region6: #{forward_train.5} parent=1 // loop_footer
      %s43 = sadd.s32 1, %s39
    $region7: #{forward_train.5} parent=1 // loop_footer_branch
      %38 = sbr.rel target = $region3
    $region8: #{forward_train.5} parent=1 // loop_exit
      _
    %5464 = vsyncpa [#allocation3], 1
    %s5465 = scalar_lea.sflag [#allocation3], 1
    %5466 = vsyncpa %s5465, 1
    %5467 = vsyncpa [#allocation5], 1
    %5468 = vsyncpa [#allocation8], 1
    %5469 = vsyncpa [#allocation11], 1
    %5470 = vsyncpa [#allocation14], 1
    %5471 = vsyncpa [#allocation17], 1
    %5472 = vsyncpa [#allocation20], 1
    %5473 = vsyncpa [#allocation23], 1
    %5474 = vsyncpa [#allocation26], 1
    %5475 = vsyncpa [#allocation29], 1
    %5476 = vsyncpa [#allocation32], 1

</llo_original>
